<compile_context>
chip_gen: v6e
topology: v6e:2x2x1
jax: 0.10.0
libtpu: 0.0.40
codegen_flags: <defaults>
</compile_context>

<pallas_src>
import jax
import jax.numpy as jnp
from jax.experimental import pallas as pl
from jax.experimental.pallas import tpu as pltpu

# ---------------- model dims (PyTorch module defaults) ----------------
L1_HIDDEN = 300   # GRU hidden size
L1_OUT    = 100   # l1: action_dim -> 100
L2_OUT    = 300   # l2: 400 -> 300
L3_OUT    = 1     # l3: 300 -> 1

H_PAD = 384       # GRU hidden padded to 3 x 128 lanes (gate slabs 128-aligned)
U_PAD = 128       # action branch padded to one full lane group


def _critic_kernel(x_ref, u_ref,
                   w_ih_ref, b_g_ref, b_hn_ref,
                   w1_ref, b1_ref,
                   w_hh_hbm, w2_hbm,
                   b2_ref, w3_ref, b3_ref,
                   out_ref,
                   whh_buf, w2_buf, dma_sem):
    """Whole forward pass; small shapes, no grid tiling needed."""
    B = u_ref.shape[0]
    TB, S = x_ref.shape
    T = TB // B
    HP = b_hn_ref.shape[1]
    f32 = jnp.float32
    bf16 = jnp.bfloat16

    # ---- kick off HBM->VMEM DMAs for the big, late-used weight slabs now ----
    cp_whh = pltpu.make_async_copy(w_hh_hbm, whh_buf, dma_sem.at[0])
    cp_w2 = pltpu.make_async_copy(w2_hbm, w2_buf, dma_sem.at[1])
    cp_whh.start()
    cp_w2.start()

    # ---- hoisted, fused input projection (time-major: rows t*B .. t*B+B-1) ----
    # Needs only x + W_ih (~40 KB), so it overlaps the weight DMAs above.
    x_tb = x_ref[...].astype(bf16)                                   # (T*B, S)
    gx = (jnp.dot(x_tb, w_ih_ref[...], preferred_element_type=f32)
          + b_g_ref[...])                                            # (T*B, 3*HP)

    # ---- action branch: relu(Linear(action_dim -> 100)), padded to 128 lanes
    u1 = jnp.maximum(
        jnp.dot(u_ref[...].astype(bf16), w1_ref[...],
                preferred_element_type=f32) + b1_ref[...], 0.0)      # (B, 128)

    # Hoist the b_hn broadcast out of the unrolled recurrence.
    b_hn = jnp.broadcast_to(b_hn_ref[...], (B, HP))                  # (B, HP) f32

    # ---- GRU recurrence: fused per-step W_hh matmul, full unroll, f32 carry --
    cp_whh.wait()
    w_hh = whh_buf[...]                                              # (HP, 3*HP) bf16

    h = jnp.zeros((B, HP), f32)
    for t in range(T):                      # T is static & tiny -> full unroll
        gh = jnp.dot(h.astype(bf16), w_hh, preferred_element_type=f32)  # (B, 3*HP)
        gx_t = gx[t * B:(t + 1) * B, :]     # contiguous rows, static slice
        r = jax.nn.sigmoid(gx_t[:, 0 * HP:1 * HP] + gh[:, 0 * HP:1 * HP])
        z = jax.nn.sigmoid(gx_t[:, 1 * HP:2 * HP] + gh[:, 1 * HP:2 * HP])
        n = jnp.tanh(gx_t[:, 2 * HP:3 * HP]
                     + r * (gh[:, 2 * HP:3 * HP] + b_hn))
        h = (1.0 - z) * n + z * h           # == gru_out[:, t, :] (padded lanes stay 0)

    # ---- l2 over lane-aligned concat([h, u1]) : single (B, 512)@(512, 300) ----
    cp_w2.wait()
    hu = jnp.concatenate([h.astype(bf16), u1.astype(bf16)], axis=1)  # (B, HP+128)
    x1 = jnp.maximum(
        jnp.dot(hu, w2_buf[...], preferred_element_type=f32) + b2_ref[...], 0.0)

    # ---- l3 -> (B, 1) ----
    out_ref[...] = (jnp.dot(x1.astype(bf16), w3_ref[...],
                            preferred_element_type=f32)
                    + b3_ref[...]).astype(out_ref.dtype)


def critic_forward(x, u, params):
    """x: (B, T, state_dim) float32 (batch_first, like PyTorch); u: (B, action_dim)."""
    B, T, S = x.shape
    H = L1_HIDDEN
    HP = H_PAD
    p = params
    bf16 = jnp.bfloat16

    def pad_cols(a, n):
        return jnp.pad(a, ((0, 0), (0, n - a.shape[1])))

    def pad_rows(a, n):
        return jnp.pad(a, ((0, n - a.shape[0]), (0, 0)))

    # Per-gate split (r, z, n), zero-padded to HP lanes per gate, re-concatenated
    # into 128-aligned slabs.  Weights cast to bf16 for the MXU.
    w_ih = p["w_ih"]
    w_hh = p["w_hh"]
    w_ih_cat = jnp.concatenate(
        [pad_cols(w_ih[:, g * H:(g + 1) * H], HP) for g in range(3)],
        axis=1).astype(bf16)                                   # (S, 3*HP)
    w_hh_cat = jnp.concatenate(
        [pad_rows(pad_cols(w_hh[:, g * H:(g + 1) * H], HP), HP) for g in range(3)],
        axis=1).astype(bf16)                                   # (HP, 3*HP)

    # Fold h-independent biases (kept f32).  b_hh of the n gate stays separate
    # (must be multiplied by r per PyTorch GRU semantics).
    b_ih, b_hh = p["b_ih"], p["b_hh"]
    b_r = pad_cols(b_ih[:, 0 * H:1 * H] + b_hh[:, 0 * H:1 * H], HP)
    b_z = pad_cols(b_ih[:, 1 * H:2 * H] + b_hh[:, 1 * H:2 * H], HP)
    b_in = pad_cols(b_ih[:, 2 * H:3 * H], HP)
    b_gates = jnp.concatenate([b_r, b_z, b_in], axis=1)        # (1, 3*HP) f32
    b_hn = pad_cols(b_hh[:, 2 * H:3 * H], HP)                  # (1, HP)   f32

    # l1 padded to 128 output lanes (padded lanes are exactly 0 after relu).
    w1 = pad_cols(p["w1"], U_PAD).astype(bf16)                 # (A, 128)
    b1 = pad_cols(p["b1"], U_PAD)                              # (1, 128)

    # l2 as one (HP + 128, 300) slab: rows [0:300]=W2h, [300:HP]=0,
    # [HP:HP+100]=W2u, rest 0 — matches concat([h_pad, u1_pad]).
    w2_cat = jnp.concatenate(
        [pad_rows(p["w2h"], HP), pad_rows(p["w2u"], U_PAD)], axis=0).astype(bf16)

    w3 = p["w3"].astype(bf16)

    # Time-major flatten so per-step gx rows are contiguous inside the kernel.
    x_tb = jnp.transpose(x, (1, 0, 2)).reshape(T * B, S)

    vmem = pl.BlockSpec(memory_space=pltpu.MemorySpace.VMEM)
    anyspace = pl.BlockSpec(memory_space=pl.ANY)   # big weights: manual DMA overlap

    operands = (x_tb, u,
                w_ih_cat, b_gates, b_hn,
                w1, b1,
                w_hh_cat, w2_cat,
                p["b2"], w3, p["b3"])
    in_specs = [vmem, vmem,
                vmem, vmem, vmem,
                vmem, vmem,
                anyspace, anyspace,
                vmem, vmem, vmem]

    return pl.pallas_call(
        _critic_kernel,
        out_shape=jax.ShapeDtypeStruct((B, L3_OUT), jnp.float32),
        in_specs=in_specs,
        out_specs=vmem,
        scratch_shapes=[
            pltpu.VMEM((HP, 3 * HP), bf16),        # W_hh landing buffer
            pltpu.VMEM((HP + U_PAD, L2_OUT), bf16),  # fused W2 landing buffer
            pltpu.SemaphoreType.DMA((2,)),
        ],
    )(*operands)


def init_params(key, state_dim, action_dim):
    """Deterministic init mirroring the PyTorch layer shapes (pre-transposed)."""
    H = L1_HIDDEN
    ks = jax.random.split(key, 10)

    def unif(k, shape, fan_in):
        bound = 1.0 / jnp.sqrt(jnp.float32(fan_in))
        return jax.random.uniform(k, shape, jnp.float32, -bound, bound)

    # GRU: weight_ih (3H, S) -> stored as (S, 3H); weight_hh (3H, H) -> (H, 3H)
    w_ih = unif(ks[0], (state_dim, 3 * H), H)
    w_hh = unif(ks[1], (H, 3 * H), H)
    b_ih = unif(ks[2], (1, 3 * H), H)
    b_hh = unif(ks[3], (1, 3 * H), H)
    # l1: (100, action_dim) -> (action_dim, 100)
    w1 = unif(ks[4], (action_dim, L1_OUT), action_dim)
    b1 = unif(ks[5], (1, L1_OUT), action_dim)
    # l2: (300, 400) -> (400, 300), split into h-part and u-part
    w2 = unif(ks[6], (H + L1_OUT, L2_OUT), H + L1_OUT)
    b2 = unif(ks[7], (1, L2_OUT), H + L1_OUT)
    # l3: (1, 300) -> (300, 1)
    w3 = unif(ks[8], (L2_OUT, L3_OUT), L2_OUT)
    b3 = unif(ks[9], (1, L3_OUT), L2_OUT)

    return dict(w_ih=w_ih, w_hh=w_hh, b_ih=b_ih, b_hh=b_hh,
                w1=w1, b1=b1,
                w2h=w2[:H], w2u=w2[H:], b2=b2,
                w3=w3, b3=b3)


def critic_forward_ref(x, u, p, matmul_dtype=jnp.float32):
    """Pure-JAX reference with PyTorch GRU gate ordering (r, z, n).

    matmul_dtype=jnp.bfloat16 mimics the kernel's bf16-operand / f32-accum
    MXU numerics; jnp.float32 is the full-precision PyTorch-like reference.
    """
    H = L1_HIDDEN
    B, T, _ = x.shape

    def mm(a, w):
        return jnp.dot(a.astype(matmul_dtype), w.astype(matmul_dtype),
                       preferred_element_type=jnp.float32)

    h = jnp.zeros((B, H), jnp.float32)
    for t in range(T):
        gx = mm(x[:, t, :], p["w_ih"]) + p["b_ih"]
        gh = mm(h, p["w_hh"]) + p["b_hh"]
        r = jax.nn.sigmoid(gx[:, :H] + gh[:, :H])
        z = jax.nn.sigmoid(gx[:, H:2 * H] + gh[:, H:2 * H])
        n = jnp.tanh(gx[:, 2 * H:] + r * gh[:, 2 * H:])
        h = (1.0 - z) * n + z * h
    u1 = jax.nn.relu(mm(u, p["w1"]) + p["b1"])
    x1 = jax.nn.relu(mm(h, p["w2h"]) + mm(u1, p["w2u"]) + p["b2"])
    return mm(x1, p["w3"]) + p["b3"]


if __name__ == "__main__":
    key = jax.random.PRNGKey(0)
    k_param, k_x, k_u = jax.random.split(key, 3)

    B, T, state_dim, action_dim = 2, 8, 16, 4
    params = init_params(k_param, state_dim, action_dim)
    x = jax.random.normal(k_x, (B, T, state_dim), jnp.float32)
    u = jax.random.normal(k_u, (B, action_dim), jnp.float32)

    out = jax.block_until_ready(jax.jit(critic_forward)(x, u, params))

    # Reference with identical bf16-operand / f32-accum matmul numerics (tight).
    ref_bf16 = jax.block_until_ready(
        critic_forward_ref(x, u, params, matmul_dtype=jnp.bfloat16))
    # Full-f32 reference matching PyTorch semantics (looser: bf16 MXU operands).
    ref_f32 = jax.block_until_ready(
        critic_forward_ref(x, u, params, matmul_dtype=jnp.float32))

    assert out.shape == (B, 1), out.shape
    assert jnp.allclose(out, ref_bf16, atol=5e-3, rtol=5e-3), (out, ref_bf16)
    assert jnp.allclose(out, ref_f32, atol=1e-1, rtol=1e-1), (out, ref_f32)
    print("KERNEL_OK")
</pallas_src>

<mosaic_0001>
module attributes {stable_mosaic.version = 11 : i64} {
  func.func @_critic_kernel(%arg0: memref<16x16xf32, #tpu.memory_space<vmem>>, %arg1: memref<2x4xf32, #tpu.memory_space<vmem>>, %arg2: memref<16x1152xbf16, #tpu.memory_space<vmem>>, %arg3: memref<1x1152xf32, #tpu.memory_space<vmem>>, %arg4: memref<1x384xf32, #tpu.memory_space<vmem>>, %arg5: memref<4x128xbf16, #tpu.memory_space<vmem>>, %arg6: memref<1x128xf32, #tpu.memory_space<vmem>>, %arg7: memref<384x1152xbf16, #tpu.memory_space<any>>, %arg8: memref<512x300xbf16, #tpu.memory_space<any>>, %arg9: memref<1x300xf32, #tpu.memory_space<vmem>>, %arg10: memref<300x1xbf16, #tpu.memory_space<vmem>>, %arg11: memref<1x1xf32, #tpu.memory_space<vmem>>, %arg12: memref<2x1xf32, #tpu.memory_space<vmem>>, %arg13: memref<384x1152xbf16, #tpu.memory_space<vmem>>, %arg14: memref<512x300xbf16, #tpu.memory_space<vmem>>, %arg15: memref<2x!tpu.dma_semaphore, #tpu.memory_space<semaphore_mem>>) attributes {dimension_semantics = [], scalar_prefetch = 0 : i64, scratch_operands = 3 : i64, tpu.core_type = #tpu.core_type<tc>} {
    %c0_i32 = arith.constant 0 : i32
    %0 = tpu.memref_slice %arg15[%c0_i32] : memref<2x!tpu.dma_semaphore, #tpu.memory_space<semaphore_mem>> -> memref<1x!tpu.dma_semaphore, #tpu.memory_space<semaphore_mem>>
    %1 = tpu.memref_squeeze %0 : memref<1x!tpu.dma_semaphore, #tpu.memory_space<semaphore_mem>> -> memref<!tpu.dma_semaphore, #tpu.memory_space<semaphore_mem>>
    tpu.enqueue_dma source(%arg7 : memref<384x1152xbf16, #tpu.memory_space<any>>) target(%arg13 : memref<384x1152xbf16, #tpu.memory_space<vmem>>) target_semaphore(%1 : memref<!tpu.dma_semaphore, #tpu.memory_space<semaphore_mem>>)
    %c1_i32 = arith.constant 1 : i32
    %2 = tpu.memref_slice %arg15[%c1_i32] : memref<2x!tpu.dma_semaphore, #tpu.memory_space<semaphore_mem>> -> memref<1x!tpu.dma_semaphore, #tpu.memory_space<semaphore_mem>>
    %3 = tpu.memref_squeeze %2 : memref<1x!tpu.dma_semaphore, #tpu.memory_space<semaphore_mem>> -> memref<!tpu.dma_semaphore, #tpu.memory_space<semaphore_mem>>
    tpu.enqueue_dma source(%arg8 : memref<512x300xbf16, #tpu.memory_space<any>>) target(%arg14 : memref<512x300xbf16, #tpu.memory_space<vmem>>) target_semaphore(%3 : memref<!tpu.dma_semaphore, #tpu.memory_space<semaphore_mem>>)
    %c0 = arith.constant 0 : index
    %c0_0 = arith.constant 0 : index
    %4 = vector.load %arg0[%c0, %c0_0] : memref<16x16xf32, #tpu.memory_space<vmem>>, vector<16x16xf32>
    %5 = arith.truncf %4 : vector<16x16xf32> to vector<16x16xbf16>
    %c0_1 = arith.constant 0 : index
    %c0_2 = arith.constant 0 : index
    %6 = vector.load %arg2[%c0_1, %c0_2] : memref<16x1152xbf16, #tpu.memory_space<vmem>>, vector<16x1152xbf16>
    %cst = arith.constant dense<0.000000e+00> : vector<16x1152xf32>
    %7 = tpu.matmul %5, %6, %cst {dimension_numbers = #tpu.dot_dimension_numbers<[1], [0], [0], [1], [0, 0, 1, 1], [], []>} : vector<16x16xbf16>, vector<16x1152xbf16>, vector<16x1152xf32> -> vector<16x1152xf32>
    %c0_3 = arith.constant 0 : index
    %c0_4 = arith.constant 0 : index
    %8 = vector.load %arg3[%c0_3, %c0_4] : memref<1x1152xf32, #tpu.memory_space<vmem>>, vector<1x1152xf32>
    %9 = vector.broadcast %8 : vector<1x1152xf32> to vector<16x1152xf32>
    %10 = arith.addf %7, %9 : vector<16x1152xf32>
    %c0_5 = arith.constant 0 : index
    %c0_6 = arith.constant 0 : index
    %11 = vector.load %arg1[%c0_5, %c0_6] : memref<2x4xf32, #tpu.memory_space<vmem>>, vector<2x4xf32>
    %12 = arith.truncf %11 : vector<2x4xf32> to vector<2x4xbf16>
    %c0_7 = arith.constant 0 : index
    %c0_8 = arith.constant 0 : index
    %13 = vector.load %arg5[%c0_7, %c0_8] : memref<4x128xbf16, #tpu.memory_space<vmem>>, vector<4x128xbf16>
    %cst_9 = arith.constant dense<0.000000e+00> : vector<2x128xf32>
    %14 = tpu.matmul %12, %13, %cst_9 {dimension_numbers = #tpu.dot_dimension_numbers<[1], [0], [0], [1], [0, 0, 1, 1], [], []>} : vector<2x4xbf16>, vector<4x128xbf16>, vector<2x128xf32> -> vector<2x128xf32>
    %c0_10 = arith.constant 0 : index
    %c0_11 = arith.constant 0 : index
    %15 = vector.load %arg6[%c0_10, %c0_11] : memref<1x128xf32, #tpu.memory_space<vmem>>, vector<1x128xf32>
    %16 = vector.broadcast %15 : vector<1x128xf32> to vector<2x128xf32>
    %17 = arith.addf %14, %16 : vector<2x128xf32>
    %cst_12 = arith.constant 0.000000e+00 : f32
    %18 = vector.broadcast %cst_12 : f32 to vector<2x128xf32>
    %19 = arith.maximumf %17, %18 : vector<2x128xf32>
    %c0_13 = arith.constant 0 : index
    %c0_14 = arith.constant 0 : index
    %20 = vector.load %arg4[%c0_13, %c0_14] : memref<1x384xf32, #tpu.memory_space<vmem>>, vector<1x384xf32>
    %21 = vector.shape_cast %20 : vector<1x384xf32> to vector<1x384xf32>
    %22 = vector.broadcast %21 : vector<1x384xf32> to vector<2x384xf32>
    %c0_i32_15 = arith.constant 0 : i32
    %23 = tpu.memref_slice %arg15[%c0_i32_15] : memref<2x!tpu.dma_semaphore, #tpu.memory_space<semaphore_mem>> -> memref<1x!tpu.dma_semaphore, #tpu.memory_space<semaphore_mem>>
    %24 = tpu.memref_squeeze %23 : memref<1x!tpu.dma_semaphore, #tpu.memory_space<semaphore_mem>> -> memref<!tpu.dma_semaphore, #tpu.memory_space<semaphore_mem>>
    tpu.wait_dma2 semaphore(%24 : memref<!tpu.dma_semaphore, #tpu.memory_space<semaphore_mem>>) src(%arg7 : memref<384x1152xbf16, #tpu.memory_space<any>>) dst(%arg13 : memref<384x1152xbf16, #tpu.memory_space<vmem>>)
    %c0_16 = arith.constant 0 : index
    %c0_17 = arith.constant 0 : index
    %25 = vector.load %arg13[%c0_16, %c0_17] : memref<384x1152xbf16, #tpu.memory_space<vmem>>, vector<384x1152xbf16>
    %cst_18 = arith.constant 0.000000e+00 : f32
    %26 = vector.broadcast %cst_18 : f32 to vector<2x384xf32>
    %27 = arith.truncf %26 : vector<2x384xf32> to vector<2x384xbf16>
    %cst_19 = arith.constant dense<0.000000e+00> : vector<2x1152xf32>
    %28 = tpu.matmul %27, %25, %cst_19 {dimension_numbers = #tpu.dot_dimension_numbers<[1], [0], [0], [1], [0, 0, 1, 1], [], []>} : vector<2x384xbf16>, vector<384x1152xbf16>, vector<2x1152xf32> -> vector<2x1152xf32>
    %29 = vector.extract_strided_slice %10 {offsets = [0, 0], sizes = [2, 1152], strides = [1, 1]} : vector<16x1152xf32> to vector<2x1152xf32>
    %30 = vector.extract_strided_slice %29 {offsets = [0, 0], sizes = [2, 384], strides = [1, 1]} : vector<2x1152xf32> to vector<2x384xf32>
    %31 = vector.extract_strided_slice %28 {offsets = [0, 0], sizes = [2, 384], strides = [1, 1]} : vector<2x1152xf32> to vector<2x384xf32>
    %32 = arith.addf %30, %31 : vector<2x384xf32>
    %33 = arith.negf %32 : vector<2x384xf32>
    %34 = math.exp %33 : vector<2x384xf32>
    %cst_20 = arith.constant 1.000000e+00 : f32
    %35 = vector.broadcast %cst_20 : f32 to vector<2x384xf32>
    %36 = arith.addf %35, %34 : vector<2x384xf32>
    %37 = arith.divf %35, %36 : vector<2x384xf32>
    %38 = vector.extract_strided_slice %29 {offsets = [0, 384], sizes = [2, 384], strides = [1, 1]} : vector<2x1152xf32> to vector<2x384xf32>
    %39 = vector.extract_strided_slice %28 {offsets = [0, 384], sizes = [2, 384], strides = [1, 1]} : vector<2x1152xf32> to vector<2x384xf32>
    %40 = arith.addf %38, %39 : vector<2x384xf32>
    %41 = arith.negf %40 : vector<2x384xf32>
    %42 = math.exp %41 : vector<2x384xf32>
    %cst_21 = arith.constant 1.000000e+00 : f32
    %43 = vector.broadcast %cst_21 : f32 to vector<2x384xf32>
    %44 = arith.addf %43, %42 : vector<2x384xf32>
    %45 = arith.divf %43, %44 : vector<2x384xf32>
    %46 = vector.extract_strided_slice %29 {offsets = [0, 768], sizes = [2, 384], strides = [1, 1]} : vector<2x1152xf32> to vector<2x384xf32>
    %47 = vector.extract_strided_slice %28 {offsets = [0, 768], sizes = [2, 384], strides = [1, 1]} : vector<2x1152xf32> to vector<2x384xf32>
    %48 = arith.addf %47, %22 : vector<2x384xf32>
    %49 = arith.mulf %37, %48 : vector<2x384xf32>
    %50 = arith.addf %46, %49 : vector<2x384xf32>
    %51 = math.tanh %50 : vector<2x384xf32>
    %cst_22 = arith.constant 1.000000e+00 : f32
    %52 = vector.broadcast %cst_22 : f32 to vector<2x384xf32>
    %53 = arith.subf %52, %45 : vector<2x384xf32>
    %54 = arith.mulf %53, %51 : vector<2x384xf32>
    %55 = arith.mulf %45, %26 : vector<2x384xf32>
    %56 = arith.addf %54, %55 : vector<2x384xf32>
    %57 = arith.truncf %56 : vector<2x384xf32> to vector<2x384xbf16>
    %cst_23 = arith.constant dense<0.000000e+00> : vector<2x1152xf32>
    %58 = tpu.matmul %57, %25, %cst_23 {dimension_numbers = #tpu.dot_dimension_numbers<[1], [0], [0], [1], [0, 0, 1, 1], [], []>} : vector<2x384xbf16>, vector<384x1152xbf16>, vector<2x1152xf32> -> vector<2x1152xf32>
    %59 = vector.extract_strided_slice %10 {offsets = [2, 0], sizes = [2, 1152], strides = [1, 1]} : vector<16x1152xf32> to vector<2x1152xf32>
    %60 = vector.extract_strided_slice %59 {offsets = [0, 0], sizes = [2, 384], strides = [1, 1]} : vector<2x1152xf32> to vector<2x384xf32>
    %61 = vector.extract_strided_slice %58 {offsets = [0, 0], sizes = [2, 384], strides = [1, 1]} : vector<2x1152xf32> to vector<2x384xf32>
    %62 = arith.addf %60, %61 : vector<2x384xf32>
    %63 = arith.negf %62 : vector<2x384xf32>
    %64 = math.exp %63 : vector<2x384xf32>
    %cst_24 = arith.constant 1.000000e+00 : f32
    %65 = vector.broadcast %cst_24 : f32 to vector<2x384xf32>
    %66 = arith.addf %65, %64 : vector<2x384xf32>
    %67 = arith.divf %65, %66 : vector<2x384xf32>
    %68 = vector.extract_strided_slice %59 {offsets = [0, 384], sizes = [2, 384], strides = [1, 1]} : vector<2x1152xf32> to vector<2x384xf32>
    %69 = vector.extract_strided_slice %58 {offsets = [0, 384], sizes = [2, 384], strides = [1, 1]} : vector<2x1152xf32> to vector<2x384xf32>
    %70 = arith.addf %68, %69 : vector<2x384xf32>
    %71 = arith.negf %70 : vector<2x384xf32>
    %72 = math.exp %71 : vector<2x384xf32>
    %cst_25 = arith.constant 1.000000e+00 : f32
    %73 = vector.broadcast %cst_25 : f32 to vector<2x384xf32>
    %74 = arith.addf %73, %72 : vector<2x384xf32>
    %75 = arith.divf %73, %74 : vector<2x384xf32>
    %76 = vector.extract_strided_slice %59 {offsets = [0, 768], sizes = [2, 384], strides = [1, 1]} : vector<2x1152xf32> to vector<2x384xf32>
    %77 = vector.extract_strided_slice %58 {offsets = [0, 768], sizes = [2, 384], strides = [1, 1]} : vector<2x1152xf32> to vector<2x384xf32>
    %78 = arith.addf %77, %22 : vector<2x384xf32>
    %79 = arith.mulf %67, %78 : vector<2x384xf32>
    %80 = arith.addf %76, %79 : vector<2x384xf32>
    %81 = math.tanh %80 : vector<2x384xf32>
    %cst_26 = arith.constant 1.000000e+00 : f32
    %82 = vector.broadcast %cst_26 : f32 to vector<2x384xf32>
    %83 = arith.subf %82, %75 : vector<2x384xf32>
    %84 = arith.mulf %83, %81 : vector<2x384xf32>
    %85 = arith.mulf %75, %56 : vector<2x384xf32>
    %86 = arith.addf %84, %85 : vector<2x384xf32>
    %87 = arith.truncf %86 : vector<2x384xf32> to vector<2x384xbf16>
    %cst_27 = arith.constant dense<0.000000e+00> : vector<2x1152xf32>
    %88 = tpu.matmul %87, %25, %cst_27 {dimension_numbers = #tpu.dot_dimension_numbers<[1], [0], [0], [1], [0, 0, 1, 1], [], []>} : vector<2x384xbf16>, vector<384x1152xbf16>, vector<2x1152xf32> -> vector<2x1152xf32>
    %89 = vector.extract_strided_slice %10 {offsets = [4, 0], sizes = [2, 1152], strides = [1, 1]} : vector<16x1152xf32> to vector<2x1152xf32>
    %90 = vector.extract_strided_slice %89 {offsets = [0, 0], sizes = [2, 384], strides = [1, 1]} : vector<2x1152xf32> to vector<2x384xf32>
    %91 = vector.extract_strided_slice %88 {offsets = [0, 0], sizes = [2, 384], strides = [1, 1]} : vector<2x1152xf32> to vector<2x384xf32>
    %92 = arith.addf %90, %91 : vector<2x384xf32>
    %93 = arith.negf %92 : vector<2x384xf32>
    %94 = math.exp %93 : vector<2x384xf32>
    %cst_28 = arith.constant 1.000000e+00 : f32
    %95 = vector.broadcast %cst_28 : f32 to vector<2x384xf32>
    %96 = arith.addf %95, %94 : vector<2x384xf32>
    %97 = arith.divf %95, %96 : vector<2x384xf32>
    %98 = vector.extract_strided_slice %89 {offsets = [0, 384], sizes = [2, 384], strides = [1, 1]} : vector<2x1152xf32> to vector<2x384xf32>
    %99 = vector.extract_strided_slice %88 {offsets = [0, 384], sizes = [2, 384], strides = [1, 1]} : vector<2x1152xf32> to vector<2x384xf32>
    %100 = arith.addf %98, %99 : vector<2x384xf32>
    %101 = arith.negf %100 : vector<2x384xf32>
    %102 = math.exp %101 : vector<2x384xf32>
    %cst_29 = arith.constant 1.000000e+00 : f32
    %103 = vector.broadcast %cst_29 : f32 to vector<2x384xf32>
    %104 = arith.addf %103, %102 : vector<2x384xf32>
    %105 = arith.divf %103, %104 : vector<2x384xf32>
    %106 = vector.extract_strided_slice %89 {offsets = [0, 768], sizes = [2, 384], strides = [1, 1]} : vector<2x1152xf32> to vector<2x384xf32>
    %107 = vector.extract_strided_slice %88 {offsets = [0, 768], sizes = [2, 384], strides = [1, 1]} : vector<2x1152xf32> to vector<2x384xf32>
    %108 = arith.addf %107, %22 : vector<2x384xf32>
    %109 = arith.mulf %97, %108 : vector<2x384xf32>
    %110 = arith.addf %106, %109 : vector<2x384xf32>
    %111 = math.tanh %110 : vector<2x384xf32>
    %cst_30 = arith.constant 1.000000e+00 : f32
    %112 = vector.broadcast %cst_30 : f32 to vector<2x384xf32>
    %113 = arith.subf %112, %105 : vector<2x384xf32>
    %114 = arith.mulf %113, %111 : vector<2x384xf32>
    %115 = arith.mulf %105, %86 : vector<2x384xf32>
    %116 = arith.addf %114, %115 : vector<2x384xf32>
    %117 = arith.truncf %116 : vector<2x384xf32> to vector<2x384xbf16>
    %cst_31 = arith.constant dense<0.000000e+00> : vector<2x1152xf32>
    %118 = tpu.matmul %117, %25, %cst_31 {dimension_numbers = #tpu.dot_dimension_numbers<[1], [0], [0], [1], [0, 0, 1, 1], [], []>} : vector<2x384xbf16>, vector<384x1152xbf16>, vector<2x1152xf32> -> vector<2x1152xf32>
    %119 = vector.extract_strided_slice %10 {offsets = [6, 0], sizes = [2, 1152], strides = [1, 1]} : vector<16x1152xf32> to vector<2x1152xf32>
    %120 = vector.extract_strided_slice %119 {offsets = [0, 0], sizes = [2, 384], strides = [1, 1]} : vector<2x1152xf32> to vector<2x384xf32>
    %121 = vector.extract_strided_slice %118 {offsets = [0, 0], sizes = [2, 384], strides = [1, 1]} : vector<2x1152xf32> to vector<2x384xf32>
    %122 = arith.addf %120, %121 : vector<2x384xf32>
    %123 = arith.negf %122 : vector<2x384xf32>
    %124 = math.exp %123 : vector<2x384xf32>
    %cst_32 = arith.constant 1.000000e+00 : f32
    %125 = vector.broadcast %cst_32 : f32 to vector<2x384xf32>
    %126 = arith.addf %125, %124 : vector<2x384xf32>
    %127 = arith.divf %125, %126 : vector<2x384xf32>
    %128 = vector.extract_strided_slice %119 {offsets = [0, 384], sizes = [2, 384], strides = [1, 1]} : vector<2x1152xf32> to vector<2x384xf32>
    %129 = vector.extract_strided_slice %118 {offsets = [0, 384], sizes = [2, 384], strides = [1, 1]} : vector<2x1152xf32> to vector<2x384xf32>
    %130 = arith.addf %128, %129 : vector<2x384xf32>
    %131 = arith.negf %130 : vector<2x384xf32>
    %132 = math.exp %131 : vector<2x384xf32>
    %cst_33 = arith.constant 1.000000e+00 : f32
    %133 = vector.broadcast %cst_33 : f32 to vector<2x384xf32>
    %134 = arith.addf %133, %132 : vector<2x384xf32>
    %135 = arith.divf %133, %134 : vector<2x384xf32>
    %136 = vector.extract_strided_slice %119 {offsets = [0, 768], sizes = [2, 384], strides = [1, 1]} : vector<2x1152xf32> to vector<2x384xf32>
    %137 = vector.extract_strided_slice %118 {offsets = [0, 768], sizes = [2, 384], strides = [1, 1]} : vector<2x1152xf32> to vector<2x384xf32>
    %138 = arith.addf %137, %22 : vector<2x384xf32>
    %139 = arith.mulf %127, %138 : vector<2x384xf32>
    %140 = arith.addf %136, %139 : vector<2x384xf32>
    %141 = math.tanh %140 : vector<2x384xf32>
    %cst_34 = arith.constant 1.000000e+00 : f32
    %142 = vector.broadcast %cst_34 : f32 to vector<2x384xf32>
    %143 = arith.subf %142, %135 : vector<2x384xf32>
    %144 = arith.mulf %143, %141 : vector<2x384xf32>
    %145 = arith.mulf %135, %116 : vector<2x384xf32>
    %146 = arith.addf %144, %145 : vector<2x384xf32>
    %147 = arith.truncf %146 : vector<2x384xf32> to vector<2x384xbf16>
    %cst_35 = arith.constant dense<0.000000e+00> : vector<2x1152xf32>
    %148 = tpu.matmul %147, %25, %cst_35 {dimension_numbers = #tpu.dot_dimension_numbers<[1], [0], [0], [1], [0, 0, 1, 1], [], []>} : vector<2x384xbf16>, vector<384x1152xbf16>, vector<2x1152xf32> -> vector<2x1152xf32>
    %149 = vector.extract_strided_slice %10 {offsets = [8, 0], sizes = [2, 1152], strides = [1, 1]} : vector<16x1152xf32> to vector<2x1152xf32>
    %150 = vector.extract_strided_slice %149 {offsets = [0, 0], sizes = [2, 384], strides = [1, 1]} : vector<2x1152xf32> to vector<2x384xf32>
    %151 = vector.extract_strided_slice %148 {offsets = [0, 0], sizes = [2, 384], strides = [1, 1]} : vector<2x1152xf32> to vector<2x384xf32>
    %152 = arith.addf %150, %151 : vector<2x384xf32>
    %153 = arith.negf %152 : vector<2x384xf32>
    %154 = math.exp %153 : vector<2x384xf32>
    %cst_36 = arith.constant 1.000000e+00 : f32
    %155 = vector.broadcast %cst_36 : f32 to vector<2x384xf32>
    %156 = arith.addf %155, %154 : vector<2x384xf32>
    %157 = arith.divf %155, %156 : vector<2x384xf32>
    %158 = vector.extract_strided_slice %149 {offsets = [0, 384], sizes = [2, 384], strides = [1, 1]} : vector<2x1152xf32> to vector<2x384xf32>
    %159 = vector.extract_strided_slice %148 {offsets = [0, 384], sizes = [2, 384], strides = [1, 1]} : vector<2x1152xf32> to vector<2x384xf32>
    %160 = arith.addf %158, %159 : vector<2x384xf32>
    %161 = arith.negf %160 : vector<2x384xf32>
    %162 = math.exp %161 : vector<2x384xf32>
    %cst_37 = arith.constant 1.000000e+00 : f32
    %163 = vector.broadcast %cst_37 : f32 to vector<2x384xf32>
    %164 = arith.addf %163, %162 : vector<2x384xf32>
    %165 = arith.divf %163, %164 : vector<2x384xf32>
    %166 = vector.extract_strided_slice %149 {offsets = [0, 768], sizes = [2, 384], strides = [1, 1]} : vector<2x1152xf32> to vector<2x384xf32>
    %167 = vector.extract_strided_slice %148 {offsets = [0, 768], sizes = [2, 384], strides = [1, 1]} : vector<2x1152xf32> to vector<2x384xf32>
    %168 = arith.addf %167, %22 : vector<2x384xf32>
    %169 = arith.mulf %157, %168 : vector<2x384xf32>
    %170 = arith.addf %166, %169 : vector<2x384xf32>
    %171 = math.tanh %170 : vector<2x384xf32>
    %cst_38 = arith.constant 1.000000e+00 : f32
    %172 = vector.broadcast %cst_38 : f32 to vector<2x384xf32>
    %173 = arith.subf %172, %165 : vector<2x384xf32>
    %174 = arith.mulf %173, %171 : vector<2x384xf32>
    %175 = arith.mulf %165, %146 : vector<2x384xf32>
    %176 = arith.addf %174, %175 : vector<2x384xf32>
    %177 = arith.truncf %176 : vector<2x384xf32> to vector<2x384xbf16>
    %cst_39 = arith.constant dense<0.000000e+00> : vector<2x1152xf32>
    %178 = tpu.matmul %177, %25, %cst_39 {dimension_numbers = #tpu.dot_dimension_numbers<[1], [0], [0], [1], [0, 0, 1, 1], [], []>} : vector<2x384xbf16>, vector<384x1152xbf16>, vector<2x1152xf32> -> vector<2x1152xf32>
    %179 = vector.extract_strided_slice %10 {offsets = [10, 0], sizes = [2, 1152], strides = [1, 1]} : vector<16x1152xf32> to vector<2x1152xf32>
    %180 = vector.extract_strided_slice %179 {offsets = [0, 0], sizes = [2, 384], strides = [1, 1]} : vector<2x1152xf32> to vector<2x384xf32>
    %181 = vector.extract_strided_slice %178 {offsets = [0, 0], sizes = [2, 384], strides = [1, 1]} : vector<2x1152xf32> to vector<2x384xf32>
    %182 = arith.addf %180, %181 : vector<2x384xf32>
    %183 = arith.negf %182 : vector<2x384xf32>
    %184 = math.exp %183 : vector<2x384xf32>
    %cst_40 = arith.constant 1.000000e+00 : f32
    %185 = vector.broadcast %cst_40 : f32 to vector<2x384xf32>
    %186 = arith.addf %185, %184 : vector<2x384xf32>
    %187 = arith.divf %185, %186 : vector<2x384xf32>
    %188 = vector.extract_strided_slice %179 {offsets = [0, 384], sizes = [2, 384], strides = [1, 1]} : vector<2x1152xf32> to vector<2x384xf32>
    %189 = vector.extract_strided_slice %178 {offsets = [0, 384], sizes = [2, 384], strides = [1, 1]} : vector<2x1152xf32> to vector<2x384xf32>
    %190 = arith.addf %188, %189 : vector<2x384xf32>
    %191 = arith.negf %190 : vector<2x384xf32>
    %192 = math.exp %191 : vector<2x384xf32>
    %cst_41 = arith.constant 1.000000e+00 : f32
    %193 = vector.broadcast %cst_41 : f32 to vector<2x384xf32>
    %194 = arith.addf %193, %192 : vector<2x384xf32>
    %195 = arith.divf %193, %194 : vector<2x384xf32>
    %196 = vector.extract_strided_slice %179 {offsets = [0, 768], sizes = [2, 384], strides = [1, 1]} : vector<2x1152xf32> to vector<2x384xf32>
    %197 = vector.extract_strided_slice %178 {offsets = [0, 768], sizes = [2, 384], strides = [1, 1]} : vector<2x1152xf32> to vector<2x384xf32>
    %198 = arith.addf %197, %22 : vector<2x384xf32>
    %199 = arith.mulf %187, %198 : vector<2x384xf32>
    %200 = arith.addf %196, %199 : vector<2x384xf32>
    %201 = math.tanh %200 : vector<2x384xf32>
    %cst_42 = arith.constant 1.000000e+00 : f32
    %202 = vector.broadcast %cst_42 : f32 to vector<2x384xf32>
    %203 = arith.subf %202, %195 : vector<2x384xf32>
    %204 = arith.mulf %203, %201 : vector<2x384xf32>
    %205 = arith.mulf %195, %176 : vector<2x384xf32>
    %206 = arith.addf %204, %205 : vector<2x384xf32>
    %207 = arith.truncf %206 : vector<2x384xf32> to vector<2x384xbf16>
    %cst_43 = arith.constant dense<0.000000e+00> : vector<2x1152xf32>
    %208 = tpu.matmul %207, %25, %cst_43 {dimension_numbers = #tpu.dot_dimension_numbers<[1], [0], [0], [1], [0, 0, 1, 1], [], []>} : vector<2x384xbf16>, vector<384x1152xbf16>, vector<2x1152xf32> -> vector<2x1152xf32>
    %209 = vector.extract_strided_slice %10 {offsets = [12, 0], sizes = [2, 1152], strides = [1, 1]} : vector<16x1152xf32> to vector<2x1152xf32>
    %210 = vector.extract_strided_slice %209 {offsets = [0, 0], sizes = [2, 384], strides = [1, 1]} : vector<2x1152xf32> to vector<2x384xf32>
    %211 = vector.extract_strided_slice %208 {offsets = [0, 0], sizes = [2, 384], strides = [1, 1]} : vector<2x1152xf32> to vector<2x384xf32>
    %212 = arith.addf %210, %211 : vector<2x384xf32>
    %213 = arith.negf %212 : vector<2x384xf32>
    %214 = math.exp %213 : vector<2x384xf32>
    %cst_44 = arith.constant 1.000000e+00 : f32
    %215 = vector.broadcast %cst_44 : f32 to vector<2x384xf32>
    %216 = arith.addf %215, %214 : vector<2x384xf32>
    %217 = arith.divf %215, %216 : vector<2x384xf32>
    %218 = vector.extract_strided_slice %209 {offsets = [0, 384], sizes = [2, 384], strides = [1, 1]} : vector<2x1152xf32> to vector<2x384xf32>
    %219 = vector.extract_strided_slice %208 {offsets = [0, 384], sizes = [2, 384], strides = [1, 1]} : vector<2x1152xf32> to vector<2x384xf32>
    %220 = arith.addf %218, %219 : vector<2x384xf32>
    %221 = arith.negf %220 : vector<2x384xf32>
    %222 = math.exp %221 : vector<2x384xf32>
    %cst_45 = arith.constant 1.000000e+00 : f32
    %223 = vector.broadcast %cst_45 : f32 to vector<2x384xf32>
    %224 = arith.addf %223, %222 : vector<2x384xf32>
    %225 = arith.divf %223, %224 : vector<2x384xf32>
    %226 = vector.extract_strided_slice %209 {offsets = [0, 768], sizes = [2, 384], strides = [1, 1]} : vector<2x1152xf32> to vector<2x384xf32>
    %227 = vector.extract_strided_slice %208 {offsets = [0, 768], sizes = [2, 384], strides = [1, 1]} : vector<2x1152xf32> to vector<2x384xf32>
    %228 = arith.addf %227, %22 : vector<2x384xf32>
    %229 = arith.mulf %217, %228 : vector<2x384xf32>
    %230 = arith.addf %226, %229 : vector<2x384xf32>
    %231 = math.tanh %230 : vector<2x384xf32>
    %cst_46 = arith.constant 1.000000e+00 : f32
    %232 = vector.broadcast %cst_46 : f32 to vector<2x384xf32>
    %233 = arith.subf %232, %225 : vector<2x384xf32>
    %234 = arith.mulf %233, %231 : vector<2x384xf32>
    %235 = arith.mulf %225, %206 : vector<2x384xf32>
    %236 = arith.addf %234, %235 : vector<2x384xf32>
    %237 = arith.truncf %236 : vector<2x384xf32> to vector<2x384xbf16>
    %cst_47 = arith.constant dense<0.000000e+00> : vector<2x1152xf32>
    %238 = tpu.matmul %237, %25, %cst_47 {dimension_numbers = #tpu.dot_dimension_numbers<[1], [0], [0], [1], [0, 0, 1, 1], [], []>} : vector<2x384xbf16>, vector<384x1152xbf16>, vector<2x1152xf32> -> vector<2x1152xf32>
    %239 = vector.extract_strided_slice %10 {offsets = [14, 0], sizes = [2, 1152], strides = [1, 1]} : vector<16x1152xf32> to vector<2x1152xf32>
    %240 = vector.extract_strided_slice %239 {offsets = [0, 0], sizes = [2, 384], strides = [1, 1]} : vector<2x1152xf32> to vector<2x384xf32>
    %241 = vector.extract_strided_slice %238 {offsets = [0, 0], sizes = [2, 384], strides = [1, 1]} : vector<2x1152xf32> to vector<2x384xf32>
    %242 = arith.addf %240, %241 : vector<2x384xf32>
    %243 = arith.negf %242 : vector<2x384xf32>
    %244 = math.exp %243 : vector<2x384xf32>
    %cst_48 = arith.constant 1.000000e+00 : f32
    %245 = vector.broadcast %cst_48 : f32 to vector<2x384xf32>
    %246 = arith.addf %245, %244 : vector<2x384xf32>
    %247 = arith.divf %245, %246 : vector<2x384xf32>
    %248 = vector.extract_strided_slice %239 {offsets = [0, 384], sizes = [2, 384], strides = [1, 1]} : vector<2x1152xf32> to vector<2x384xf32>
    %249 = vector.extract_strided_slice %238 {offsets = [0, 384], sizes = [2, 384], strides = [1, 1]} : vector<2x1152xf32> to vector<2x384xf32>
    %250 = arith.addf %248, %249 : vector<2x384xf32>
    %251 = arith.negf %250 : vector<2x384xf32>
    %252 = math.exp %251 : vector<2x384xf32>
    %cst_49 = arith.constant 1.000000e+00 : f32
    %253 = vector.broadcast %cst_49 : f32 to vector<2x384xf32>
    %254 = arith.addf %253, %252 : vector<2x384xf32>
    %255 = arith.divf %253, %254 : vector<2x384xf32>
    %256 = vector.extract_strided_slice %239 {offsets = [0, 768], sizes = [2, 384], strides = [1, 1]} : vector<2x1152xf32> to vector<2x384xf32>
    %257 = vector.extract_strided_slice %238 {offsets = [0, 768], sizes = [2, 384], strides = [1, 1]} : vector<2x1152xf32> to vector<2x384xf32>
    %258 = arith.addf %257, %22 : vector<2x384xf32>
    %259 = arith.mulf %247, %258 : vector<2x384xf32>
    %260 = arith.addf %256, %259 : vector<2x384xf32>
    %261 = math.tanh %260 : vector<2x384xf32>
    %cst_50 = arith.constant 1.000000e+00 : f32
    %262 = vector.broadcast %cst_50 : f32 to vector<2x384xf32>
    %263 = arith.subf %262, %255 : vector<2x384xf32>
    %264 = arith.mulf %263, %261 : vector<2x384xf32>
    %265 = arith.mulf %255, %236 : vector<2x384xf32>
    %266 = arith.addf %264, %265 : vector<2x384xf32>
    %c1_i32_51 = arith.constant 1 : i32
    %267 = tpu.memref_slice %arg15[%c1_i32_51] : memref<2x!tpu.dma_semaphore, #tpu.memory_space<semaphore_mem>> -> memref<1x!tpu.dma_semaphore, #tpu.memory_space<semaphore_mem>>
    %268 = tpu.memref_squeeze %267 : memref<1x!tpu.dma_semaphore, #tpu.memory_space<semaphore_mem>> -> memref<!tpu.dma_semaphore, #tpu.memory_space<semaphore_mem>>
    tpu.wait_dma2 semaphore(%268 : memref<!tpu.dma_semaphore, #tpu.memory_space<semaphore_mem>>) src(%arg8 : memref<512x300xbf16, #tpu.memory_space<any>>) dst(%arg14 : memref<512x300xbf16, #tpu.memory_space<vmem>>)
    %269 = arith.truncf %266 : vector<2x384xf32> to vector<2x384xbf16>
    %270 = arith.truncf %19 : vector<2x128xf32> to vector<2x128xbf16>
    %271 = tpu.concatenate %269, %270 in 1 : vector<2x384xbf16>, vector<2x128xbf16> -> vector<2x512xbf16>
    %c0_52 = arith.constant 0 : index
    %c0_53 = arith.constant 0 : index
    %272 = vector.load %arg14[%c0_52, %c0_53] : memref<512x300xbf16, #tpu.memory_space<vmem>>, vector<512x300xbf16>
    %cst_54 = arith.constant dense<0.000000e+00> : vector<2x300xf32>
    %273 = tpu.matmul %271, %272, %cst_54 {dimension_numbers = #tpu.dot_dimension_numbers<[1], [0], [0], [1], [0, 0, 1, 1], [], []>} : vector<2x512xbf16>, vector<512x300xbf16>, vector<2x300xf32> -> vector<2x300xf32>
    %c0_55 = arith.constant 0 : index
    %c0_56 = arith.constant 0 : index
    %274 = vector.load %arg9[%c0_55, %c0_56] : memref<1x300xf32, #tpu.memory_space<vmem>>, vector<1x300xf32>
    %275 = vector.broadcast %274 : vector<1x300xf32> to vector<2x300xf32>
    %276 = arith.addf %273, %275 : vector<2x300xf32>
    %cst_57 = arith.constant 0.000000e+00 : f32
    %277 = vector.broadcast %cst_57 : f32 to vector<2x300xf32>
    %278 = arith.maximumf %276, %277 : vector<2x300xf32>
    %279 = arith.truncf %278 : vector<2x300xf32> to vector<2x300xbf16>
    %c0_58 = arith.constant 0 : index
    %c0_59 = arith.constant 0 : index
    %280 = vector.load %arg10[%c0_58, %c0_59] : memref<300x1xbf16, #tpu.memory_space<vmem>>, vector<300x1xbf16>
    %cst_60 = arith.constant dense<0.000000e+00> : vector<2x1xf32>
    %281 = tpu.matmul %279, %280, %cst_60 {dimension_numbers = #tpu.dot_dimension_numbers<[1], [0], [0], [1], [0, 0, 1, 1], [], []>} : vector<2x300xbf16>, vector<300x1xbf16>, vector<2x1xf32> -> vector<2x1xf32>
    %c0_61 = arith.constant 0 : index
    %c0_62 = arith.constant 0 : index
    %282 = vector.load %arg11[%c0_61, %c0_62] : memref<1x1xf32, #tpu.memory_space<vmem>>, vector<1x1xf32>
    %283 = vector.broadcast %282 : vector<1x1xf32> to vector<2x1xf32>
    %284 = arith.addf %281, %283 : vector<2x1xf32>
    %c0_63 = arith.constant 0 : index
    %c0_64 = arith.constant 0 : index
    %285 = vector.load %arg12[%c0_63, %c0_64] : memref<2x1xf32, #tpu.memory_space<vmem>>, vector<2x1xf32>
    tpu.vector_store %arg12[%c0_63, %c0_64], %284 {strides = array<i32>} : memref<2x1xf32, #tpu.memory_space<vmem>>, vector<2x1xf32>,
    return
  }
}

</mosaic_0001>

<llo_original>
// kernel: critic_forward.1
$region0: #{critic_forward.1}
  #allocation0 [shape = 'u32[]', space=smem, size = 0x4, offset = 0x4, fixed_abs, tag = 'smem constant byte address 0x4 - core index']
  #allocation1 [shape = 'u32[144,128]{1,0:T(1,128)}', space=vmem, size = 0x12000, scoped, tag = 'internal scratch']
  #allocation2 [shape = 'bf16[384,1152]{1,0:T(8,128)(2,1)}', space=vmem, size = 0xd8000, scoped, tag = 'scratch operand']
  #allocation3 [shape = 'bf16[512,300]{1,0:T(8,128)(2,1)}', space=vmem, size = 0x60000, scoped, tag = 'scratch operand']
  #allocation4 [shape = 's32[2]{0}', space=sflag, size = 0x8, scoped, tag = 'scratch operand']
  #allocation5 [shape = 'f32[1,1]{1,0:T(1,128)S(1)}', space=vmem, size = 0x200, scoped, tag = 'scoped memory for critic_forward.1']
  #allocation6 [shape = 's32[]', space=sflag, size = 0x4, offset = 0, fixed_abs, tag = 'sflag constant byte address 0x0 - dummy sync flag']
  #allocation7 [shape = 's32[]', space=sflag, size = 0x4, offset = 0, fixed_abs, tag = 'sflag constant byte address 0x0 - dummy sync flag']
  %s0 = inlined_call_operand.vmem [shape: f32[16,16], index: 0, kind: input, shape index: {}]
  %s1 = inlined_call_operand.vmem [shape: f32[2,4], index: 1, kind: input, shape index: {}]
  %s2 = inlined_call_operand.vmem [shape: bf16[16,1152], index: 2, kind: input, shape index: {}]
  %s3 = inlined_call_operand.vmem [shape: f32[1,1152], index: 3, kind: input, shape index: {}]
  %s4 = inlined_call_operand.vmem [shape: f32[1,384], index: 4, kind: input, shape index: {}]
  %s5 = inlined_call_operand.vmem [shape: bf16[4,128], index: 5, kind: input, shape index: {}]
  %s6 = inlined_call_operand.vmem [shape: f32[1,128], index: 6, kind: input, shape index: {}]
  %s7 = inlined_call_operand.vmem [shape: bf16[384,1152], index: 7, kind: input, shape index: {}]
  %s8 = inlined_call_operand.vmem [shape: bf16[512,300], index: 8, kind: input, shape index: {}]
  %s9 = inlined_call_operand.vmem [shape: f32[1,300], index: 9, kind: input, shape index: {}]
  %s10 = inlined_call_operand.vmem [shape: bf16[300,1], index: 10, kind: input, shape index: {}]
  %s11 = inlined_call_operand.<no memory space> [shape: f32[1,1], index: 11, kind: input, shape index: {}]
  %s12 = inlined_call_operand.vmem [shape: f32[2,1], index: 12, kind: output, shape index: {}]
  %s13 = sld [smem:[#allocation0]]
  $region118: #{critic_forward.1} parent=0
    _
  %s15 = ssub.s32 1, %s13
  %s16 = scalar_select 0, %s15, %s13
  %v17 = vstv %s11
  %18 = vst [vmem:[#allocation5] sm:$0x1] %v17
  // Predicated region
  $region2: #{critic_forward.1} parent=0 // pred_check
    _
  $region3: #{critic_forward.1} parent=0 // pred_check_branch
    %20 = sbr.rel (0) target = $region5
  $region4: #{critic_forward.1} parent=0 // pred_region
    _
  $region5: #{critic_forward.1} parent=0 // pred_fallthru
    _
  // Predicated region
  $region6: #{critic_forward.1} parent=0 // pred_check
    _
  $region7: #{critic_forward.1} parent=0 // pred_check_branch
    %22 = sbr.rel (0) target = $region9
  $region8: #{critic_forward.1} parent=0 // pred_region
    _
  $region9: #{critic_forward.1} parent=0 // pred_fallthru
    _
  // Predicated region
  $region10: #{critic_forward.1} parent=0 // pred_check
    _
  $region11: #{critic_forward.1} parent=0 // pred_check_branch
    %24 = sbr.rel (0) target = $region13
  $region12: #{critic_forward.1} parent=0 // pred_region
    _
  $region13: #{critic_forward.1} parent=0 // pred_fallthru
    _
  // Predicated region
  $region14: #{critic_forward.1} parent=0 // pred_check
    _
  $region15: #{critic_forward.1} parent=0 // pred_check_branch
    %26 = sbr.rel (0) target = $region17
  $region16: #{critic_forward.1} parent=0 // pred_region
    _
  $region17: #{critic_forward.1} parent=0 // pred_fallthru
    _
  // Predicated region
  $region18: #{critic_forward.1} parent=0 // pred_check
    _
  $region19: #{critic_forward.1} parent=0 // pred_check_branch
    %28 = sbr.rel (0) target = $region21
  $region20: #{critic_forward.1} parent=0 // pred_region
    _
  $region21: #{critic_forward.1} parent=0 // pred_fallthru
    _
  // Predicated region
  $region22: #{critic_forward.1} parent=0 // pred_check
    _
  $region23: #{critic_forward.1} parent=0 // pred_check_branch
    %30 = sbr.rel (0) target = $region25
  $region24: #{critic_forward.1} parent=0 // pred_region
    _
  $region25: #{critic_forward.1} parent=0 // pred_fallthru
    _
  // Predicated region
  $region26: #{critic_forward.1} parent=0 // pred_check
    _
  $region27: #{critic_forward.1} parent=0 // pred_check_branch
    %32 = sbr.rel (0) target = $region29
  $region28: #{critic_forward.1} parent=0 // pred_region
    _
  $region29: #{critic_forward.1} parent=0 // pred_fallthru
    _
  // Predicated region
  $region30: #{critic_forward.1} parent=0 // pred_check
    _
  $region31: #{critic_forward.1} parent=0 // pred_check_branch
    %34 = sbr.rel (0) target = $region33
  $region32: #{critic_forward.1} parent=0 // pred_region
    _
  $region33: #{critic_forward.1} parent=0 // pred_fallthru
    _
  // Predicated region
  $region34: #{critic_forward.1} parent=0 // pred_check
    _
  $region35: #{critic_forward.1} parent=0 // pred_check_branch
    %36 = sbr.rel (0) target = $region37
  $region36: #{critic_forward.1} parent=0 // pred_region
    _
  $region37: #{critic_forward.1} parent=0 // pred_fallthru
    _
  // Predicated region
  $region38: #{critic_forward.1} parent=0 // pred_check
    _
  $region39: #{critic_forward.1} parent=0 // pred_check_branch
    %38 = sbr.rel (0) target = $region41
  $region40: #{critic_forward.1} parent=0 // pred_region
    _
  $region41: #{critic_forward.1} parent=0 // pred_fallthru
    _
  %p41 = scmp.lt.u32.totalorder 1728, 8
  %p42 = pneg %p41
  // Predicated region
  $region42: #{critic_forward.1} parent=0 // pred_check
    _
  $region43: #{critic_forward.1} parent=0 // pred_check_branch
    %44 = sbr.rel (%p41) target = $region45
  $region44: #{critic_forward.1} parent=0 // pred_region
    %s60 = sand.u32 1728, 7
    %p61 = scmp.eq.s32.totalorder %s60, 0
    // Predicated region
    $region57: #{critic_forward.1} parent=44 // pred_check
      %p62 = pneg %p61
    $region58: #{critic_forward.1} parent=44 // pred_check_branch
      %64 = sbr.rel (%p62) target = $region60
    $region59: #{critic_forward.1} parent=44 // pred_region
      loop: start=0, step=1, limit=1
      $region61: #{critic_forward.1} parent=59 // loop_pre_header
        _
      $region62: #{critic_forward.1} parent=59 // loop_header
        %s66 = sphi 0, %s70
        %p67 = scmp.ge.s32.totalorder %s66, 1
        %s71 = sphi %s7, %s7
        %s72 = sphi [#allocation2], [#allocation2]
      $region63: #{critic_forward.1} parent=59 // loop_header_branch
        %69 = sbr.rel (%p67) target = $region67
      $region64: #{critic_forward.1} parent=59 // loop_body
        %v73 = vld [vmem:[%s71] sm:$0xff]
        %74 = vst [vmem:[%s72] sm:$0xff] %v73
        %v75 = vld [vmem:[%s71 + $0x8] sm:$0xff]
        %76 = vst [vmem:[%s72 + $0x8] sm:$0xff] %v75
        %v77 = vld [vmem:[%s71 + $0x10] sm:$0xff]
        %78 = vst [vmem:[%s72 + $0x10] sm:$0xff] %v77
        %v79 = vld [vmem:[%s71 + $0x18] sm:$0xff]
        %80 = vst [vmem:[%s72 + $0x18] sm:$0xff] %v79
        %v81 = vld [vmem:[%s71 + $0x20] sm:$0xff]
        %82 = vst [vmem:[%s72 + $0x20] sm:$0xff] %v81
        %v83 = vld [vmem:[%s71 + $0x28] sm:$0xff]
        %84 = vst [vmem:[%s72 + $0x28] sm:$0xff] %v83
        %v85 = vld [vmem:[%s71 + $0x30] sm:$0xff]
        %86 = vst [vmem:[%s72 + $0x30] sm:$0xff] %v85
        %v87 = vld [vmem:[%s71 + $0x38] sm:$0xff]
        %88 = vst [vmem:[%s72 + $0x38] sm:$0xff] %v87
        %v89 = vld [vmem:[%s71 + $0x40] sm:$0xff]
        %90 = vst [vmem:[%s72 + $0x40] sm:$0xff] %v89
        %v91 = vld [vmem:[%s71 + $0x48] sm:$0xff]
        %92 = vst [vmem:[%s72 + $0x48] sm:$0xff] %v91
        %v93 = vld [vmem:[%s71 + $0x50] sm:$0xff]
        %94 = vst [vmem:[%s72 + $0x50] sm:$0xff] %v93
        %v95 = vld [vmem:[%s71 + $0x58] sm:$0xff]
        %96 = vst [vmem:[%s72 + $0x58] sm:$0xff] %v95
        %v97 = vld [vmem:[%s71 + $0x60] sm:$0xff]
        %98 = vst [vmem:[%s72 + $0x60] sm:$0xff] %v97
        %v99 = vld [vmem:[%s71 + $0x68] sm:$0xff]
        %100 = vst [vmem:[%s72 + $0x68] sm:$0xff] %v99
        %v101 = vld [vmem:[%s71 + $0x70] sm:$0xff]
        %102 = vst [vmem:[%s72 + $0x70] sm:$0xff] %v101
        %v103 = vld [vmem:[%s71 + $0x78] sm:$0xff]
        %104 = vst [vmem:[%s72 + $0x78] sm:$0xff] %v103
        %v105 = vld [vmem:[%s71 + $0x80] sm:$0xff]
        %106 = vst [vmem:[%s72 + $0x80] sm:$0xff] %v105
        %v107 = vld [vmem:[%s71 + $0x88] sm:$0xff]
        %108 = vst [vmem:[%s72 + $0x88] sm:$0xff] %v107
        %v109 = vld [vmem:[%s71 + $0x90] sm:$0xff]
        %110 = vst [vmem:[%s72 + $0x90] sm:$0xff] %v109
        %v111 = vld [vmem:[%s71 + $0x98] sm:$0xff]
        %112 = vst [vmem:[%s72 + $0x98] sm:$0xff] %v111
        %v113 = vld [vmem:[%s71 + $0xa0] sm:$0xff]
        %114 = vst [vmem:[%s72 + $0xa0] sm:$0xff] %v113
        %v115 = vld [vmem:[%s71 + $0xa8] sm:$0xff]
        %116 = vst [vmem:[%s72 + $0xa8] sm:$0xff] %v115
        %v117 = vld [vmem:[%s71 + $0xb0] sm:$0xff]
        %118 = vst [vmem:[%s72 + $0xb0] sm:$0xff] %v117
        %v119 = vld [vmem:[%s71 + $0xb8] sm:$0xff]
        %120 = vst [vmem:[%s72 + $0xb8] sm:$0xff] %v119
        %v121 = vld [vmem:[%s71 + $0xc0] sm:$0xff]
        %122 = vst [vmem:[%s72 + $0xc0] sm:$0xff] %v121
        %v123 = vld [vmem:[%s71 + $0xc8] sm:$0xff]
        %124 = vst [vmem:[%s72 + $0xc8] sm:$0xff] %v123
        %v125 = vld [vmem:[%s71 + $0xd0] sm:$0xff]
        %126 = vst [vmem:[%s72 + $0xd0] sm:$0xff] %v125
        %v127 = vld [vmem:[%s71 + $0xd8] sm:$0xff]
        %128 = vst [vmem:[%s72 + $0xd8] sm:$0xff] %v127
        %v129 = vld [vmem:[%s71 + $0xe0] sm:$0xff]
        %130 = vst [vmem:[%s72 + $0xe0] sm:$0xff] %v129
        %v131 = vld [vmem:[%s71 + $0xe8] sm:$0xff]
        %132 = vst [vmem:[%s72 + $0xe8] sm:$0xff] %v131
        %v133 = vld [vmem:[%s71 + $0xf0] sm:$0xff]
        %134 = vst [vmem:[%s72 + $0xf0] sm:$0xff] %v133
        %v135 = vld [vmem:[%s71 + $0xf8] sm:$0xff]
        %136 = vst [vmem:[%s72 + $0xf8] sm:$0xff] %v135
        %v137 = vld [vmem:[%s71 + $0x100] sm:$0xff]
        %138 = vst [vmem:[%s72 + $0x100] sm:$0xff] %v137
        %v139 = vld [vmem:[%s71 + $0x108] sm:$0xff]
        %140 = vst [vmem:[%s72 + $0x108] sm:$0xff] %v139
        %v141 = vld [vmem:[%s71 + $0x110] sm:$0xff]
        %142 = vst [vmem:[%s72 + $0x110] sm:$0xff] %v141
        %v143 = vld [vmem:[%s71 + $0x118] sm:$0xff]
        %144 = vst [vmem:[%s72 + $0x118] sm:$0xff] %v143
        %v145 = vld [vmem:[%s71 + $0x120] sm:$0xff]
        %146 = vst [vmem:[%s72 + $0x120] sm:$0xff] %v145
        %v147 = vld [vmem:[%s71 + $0x128] sm:$0xff]
        %148 = vst [vmem:[%s72 + $0x128] sm:$0xff] %v147
        %v149 = vld [vmem:[%s71 + $0x130] sm:$0xff]
        %150 = vst [vmem:[%s72 + $0x130] sm:$0xff] %v149
        %v151 = vld [vmem:[%s71 + $0x138] sm:$0xff]
        %152 = vst [vmem:[%s72 + $0x138] sm:$0xff] %v151
        %v153 = vld [vmem:[%s71 + $0x140] sm:$0xff]
        %154 = vst [vmem:[%s72 + $0x140] sm:$0xff] %v153
        %v155 = vld [vmem:[%s71 + $0x148] sm:$0xff]
        %156 = vst [vmem:[%s72 + $0x148] sm:$0xff] %v155
        %v157 = vld [vmem:[%s71 + $0x150] sm:$0xff]
        %158 = vst [vmem:[%s72 + $0x150] sm:$0xff] %v157
        %v159 = vld [vmem:[%s71 + $0x158] sm:$0xff]
        %160 = vst [vmem:[%s72 + $0x158] sm:$0xff] %v159
        %v161 = vld [vmem:[%s71 + $0x160] sm:$0xff]
        %162 = vst [vmem:[%s72 + $0x160] sm:$0xff] %v161
        %v163 = vld [vmem:[%s71 + $0x168] sm:$0xff]
        %164 = vst [vmem:[%s72 + $0x168] sm:$0xff] %v163
        %v165 = vld [vmem:[%s71 + $0x170] sm:$0xff]
        %166 = vst [vmem:[%s72 + $0x170] sm:$0xff] %v165
        %v167 = vld [vmem:[%s71 + $0x178] sm:$0xff]
        %168 = vst [vmem:[%s72 + $0x178] sm:$0xff] %v167
        %v169 = vld [vmem:[%s71 + $0x180] sm:$0xff]
        %170 = vst [vmem:[%s72 + $0x180] sm:$0xff] %v169
        %v171 = vld [vmem:[%s71 + $0x188] sm:$0xff]
        %172 = vst [vmem:[%s72 + $0x188] sm:$0xff] %v171
        %v173 = vld [vmem:[%s71 + $0x190] sm:$0xff]
        %174 = vst [vmem:[%s72 + $0x190] sm:$0xff] %v173
        %v175 = vld [vmem:[%s71 + $0x198] sm:$0xff]
        %176 = vst [vmem:[%s72 + $0x198] sm:$0xff] %v175
        %v177 = vld [vmem:[%s71 + $0x1a0] sm:$0xff]
        %178 = vst [vmem:[%s72 + $0x1a0] sm:$0xff] %v177
        %v179 = vld [vmem:[%s71 + $0x1a8] sm:$0xff]
        %180 = vst [vmem:[%s72 + $0x1a8] sm:$0xff] %v179
        %v181 = vld [vmem:[%s71 + $0x1b0] sm:$0xff]
        %182 = vst [vmem:[%s72 + $0x1b0] sm:$0xff] %v181
        %v183 = vld [vmem:[%s71 + $0x1b8] sm:$0xff]
        %184 = vst [vmem:[%s72 + $0x1b8] sm:$0xff] %v183
        %v185 = vld [vmem:[%s71 + $0x1c0] sm:$0xff]
        %186 = vst [vmem:[%s72 + $0x1c0] sm:$0xff] %v185
        %v187 = vld [vmem:[%s71 + $0x1c8] sm:$0xff]
        %188 = vst [vmem:[%s72 + $0x1c8] sm:$0xff] %v187
        %v189 = vld [vmem:[%s71 + $0x1d0] sm:$0xff]
        %190 = vst [vmem:[%s72 + $0x1d0] sm:$0xff] %v189
        %v191 = vld [vmem:[%s71 + $0x1d8] sm:$0xff]
        %192 = vst [vmem:[%s72 + $0x1d8] sm:$0xff] %v191
        %v193 = vld [vmem:[%s71 + $0x1e0] sm:$0xff]
        %194 = vst [vmem:[%s72 + $0x1e0] sm:$0xff] %v193
        %v195 = vld [vmem:[%s71 + $0x1e8] sm:$0xff]
        %196 = vst [vmem:[%s72 + $0x1e8] sm:$0xff] %v195
        %v197 = vld [vmem:[%s71 + $0x1f0] sm:$0xff]
        %198 = vst [vmem:[%s72 + $0x1f0] sm:$0xff] %v197
        %v199 = vld [vmem:[%s71 + $0x1f8] sm:$0xff]
        %200 = vst [vmem:[%s72 + $0x1f8] sm:$0xff] %v199
        %v201 = vld [vmem:[%s71 + $0x200] sm:$0xff]
        %202 = vst [vmem:[%s72 + $0x200] sm:$0xff] %v201
        %v203 = vld [vmem:[%s71 + $0x208] sm:$0xff]
        %204 = vst [vmem:[%s72 + $0x208] sm:$0xff] %v203
        %v205 = vld [vmem:[%s71 + $0x210] sm:$0xff]
        %206 = vst [vmem:[%s72 + $0x210] sm:$0xff] %v205
        %v207 = vld [vmem:[%s71 + $0x218] sm:$0xff]
        %208 = vst [vmem:[%s72 + $0x218] sm:$0xff] %v207
        %v209 = vld [vmem:[%s71 + $0x220] sm:$0xff]
        %210 = vst [vmem:[%s72 + $0x220] sm:$0xff] %v209
        %v211 = vld [vmem:[%s71 + $0x228] sm:$0xff]
        %212 = vst [vmem:[%s72 + $0x228] sm:$0xff] %v211
        %v213 = vld [vmem:[%s71 + $0x230] sm:$0xff]
        %214 = vst [vmem:[%s72 + $0x230] sm:$0xff] %v213
        %v215 = vld [vmem:[%s71 + $0x238] sm:$0xff]
        %216 = vst [vmem:[%s72 + $0x238] sm:$0xff] %v215
        %v217 = vld [vmem:[%s71 + $0x240] sm:$0xff]
        %218 = vst [vmem:[%s72 + $0x240] sm:$0xff] %v217
        %v219 = vld [vmem:[%s71 + $0x248] sm:$0xff]
        %220 = vst [vmem:[%s72 + $0x248] sm:$0xff] %v219
        %v221 = vld [vmem:[%s71 + $0x250] sm:$0xff]
        %222 = vst [vmem:[%s72 + $0x250] sm:$0xff] %v221
        %v223 = vld [vmem:[%s71 + $0x258] sm:$0xff]
        %224 = vst [vmem:[%s72 + $0x258] sm:$0xff] %v223
        %v225 = vld [vmem:[%s71 + $0x260] sm:$0xff]
        %226 = vst [vmem:[%s72 + $0x260] sm:$0xff] %v225
        %v227 = vld [vmem:[%s71 + $0x268] sm:$0xff]
        %228 = vst [vmem:[%s72 + $0x268] sm:$0xff] %v227
        %v229 = vld [vmem:[%s71 + $0x270] sm:$0xff]
        %230 = vst [vmem:[%s72 + $0x270] sm:$0xff] %v229
        %v231 = vld [vmem:[%s71 + $0x278] sm:$0xff]
        %232 = vst [vmem:[%s72 + $0x278] sm:$0xff] %v231
        %v233 = vld [vmem:[%s71 + $0x280] sm:$0xff]
        %234 = vst [vmem:[%s72 + $0x280] sm:$0xff] %v233
        %v235 = vld [vmem:[%s71 + $0x288] sm:$0xff]
        %236 = vst [vmem:[%s72 + $0x288] sm:$0xff] %v235
        %v237 = vld [vmem:[%s71 + $0x290] sm:$0xff]
        %238 = vst [vmem:[%s72 + $0x290] sm:$0xff] %v237
        %v239 = vld [vmem:[%s71 + $0x298] sm:$0xff]
        %240 = vst [vmem:[%s72 + $0x298] sm:$0xff] %v239
        %v241 = vld [vmem:[%s71 + $0x2a0] sm:$0xff]
        %242 = vst [vmem:[%s72 + $0x2a0] sm:$0xff] %v241
        %v243 = vld [vmem:[%s71 + $0x2a8] sm:$0xff]
        %244 = vst [vmem:[%s72 + $0x2a8] sm:$0xff] %v243
        %v245 = vld [vmem:[%s71 + $0x2b0] sm:$0xff]
        %246 = vst [vmem:[%s72 + $0x2b0] sm:$0xff] %v245
        %v247 = vld [vmem:[%s71 + $0x2b8] sm:$0xff]
        %248 = vst [vmem:[%s72 + $0x2b8] sm:$0xff] %v247
        %v249 = vld [vmem:[%s71 + $0x2c0] sm:$0xff]
        %250 = vst [vmem:[%s72 + $0x2c0] sm:$0xff] %v249
        %v251 = vld [vmem:[%s71 + $0x2c8] sm:$0xff]
        %252 = vst [vmem:[%s72 + $0x2c8] sm:$0xff] %v251
        %v253 = vld [vmem:[%s71 + $0x2d0] sm:$0xff]
        %254 = vst [vmem:[%s72 + $0x2d0] sm:$0xff] %v253
        %v255 = vld [vmem:[%s71 + $0x2d8] sm:$0xff]
        %256 = vst [vmem:[%s72 + $0x2d8] sm:$0xff] %v255
        %v257 = vld [vmem:[%s71 + $0x2e0] sm:$0xff]
        %258 = vst [vmem:[%s72 + $0x2e0] sm:$0xff] %v257
        %v259 = vld [vmem:[%s71 + $0x2e8] sm:$0xff]
        %260 = vst [vmem:[%s72 + $0x2e8] sm:$0xff] %v259
        %v261 = vld [vmem:[%s71 + $0x2f0] sm:$0xff]
        %262 = vst [vmem:[%s72 + $0x2f0] sm:$0xff] %v261
        %v263 = vld [vmem:[%s71 + $0x2f8] sm:$0xff]
        %264 = vst [vmem:[%s72 + $0x2f8] sm:$0xff] %v263
        %v265 = vld [vmem:[%s71 + $0x300] sm:$0xff]
        %266 = vst [vmem:[%s72 + $0x300] sm:$0xff] %v265
        %v267 = vld [vmem:[%s71 + $0x308] sm:$0xff]
        %268 = vst [vmem:[%s72 + $0x308] sm:$0xff] %v267
        %v269 = vld [vmem:[%s71 + $0x310] sm:$0xff]
        %270 = vst [vmem:[%s72 + $0x310] sm:$0xff] %v269
        %v271 = vld [vmem:[%s71 + $0x318] sm:$0xff]
        %272 = vst [vmem:[%s72 + $0x318] sm:$0xff] %v271
        %v273 = vld [vmem:[%s71 + $0x320] sm:$0xff]
        %274 = vst [vmem:[%s72 + $0x320] sm:$0xff] %v273
        %v275 = vld [vmem:[%s71 + $0x328] sm:$0xff]
        %276 = vst [vmem:[%s72 + $0x328] sm:$0xff] %v275
        %v277 = vld [vmem:[%s71 + $0x330] sm:$0xff]
        %278 = vst [vmem:[%s72 + $0x330] sm:$0xff] %v277
        %v279 = vld [vmem:[%s71 + $0x338] sm:$0xff]
        %280 = vst [vmem:[%s72 + $0x338] sm:$0xff] %v279
        %v281 = vld [vmem:[%s71 + $0x340] sm:$0xff]
        %282 = vst [vmem:[%s72 + $0x340] sm:$0xff] %v281
        %v283 = vld [vmem:[%s71 + $0x348] sm:$0xff]
        %284 = vst [vmem:[%s72 + $0x348] sm:$0xff] %v283
        %v285 = vld [vmem:[%s71 + $0x350] sm:$0xff]
        %286 = vst [vmem:[%s72 + $0x350] sm:$0xff] %v285
        %v287 = vld [vmem:[%s71 + $0x358] sm:$0xff]
        %288 = vst [vmem:[%s72 + $0x358] sm:$0xff] %v287
        %v289 = vld [vmem:[%s71 + $0x360] sm:$0xff]
        %290 = vst [vmem:[%s72 + $0x360] sm:$0xff] %v289
        %v291 = vld [vmem:[%s71 + $0x368] sm:$0xff]
        %292 = vst [vmem:[%s72 + $0x368] sm:$0xff] %v291
        %v293 = vld [vmem:[%s71 + $0x370] sm:$0xff]
        %294 = vst [vmem:[%s72 + $0x370] sm:$0xff] %v293
        %v295 = vld [vmem:[%s71 + $0x378] sm:$0xff]
        %296 = vst [vmem:[%s72 + $0x378] sm:$0xff] %v295
        %v297 = vld [vmem:[%s71 + $0x380] sm:$0xff]
        %298 = vst [vmem:[%s72 + $0x380] sm:$0xff] %v297
        %v299 = vld [vmem:[%s71 + $0x388] sm:$0xff]
        %300 = vst [vmem:[%s72 + $0x388] sm:$0xff] %v299
        %v301 = vld [vmem:[%s71 + $0x390] sm:$0xff]
        %302 = vst [vmem:[%s72 + $0x390] sm:$0xff] %v301
        %v303 = vld [vmem:[%s71 + $0x398] sm:$0xff]
        %304 = vst [vmem:[%s72 + $0x398] sm:$0xff] %v303
        %v305 = vld [vmem:[%s71 + $0x3a0] sm:$0xff]
        %306 = vst [vmem:[%s72 + $0x3a0] sm:$0xff] %v305
        %v307 = vld [vmem:[%s71 + $0x3a8] sm:$0xff]
        %308 = vst [vmem:[%s72 + $0x3a8] sm:$0xff] %v307
        %v309 = vld [vmem:[%s71 + $0x3b0] sm:$0xff]
        %310 = vst [vmem:[%s72 + $0x3b0] sm:$0xff] %v309
        %v311 = vld [vmem:[%s71 + $0x3b8] sm:$0xff]
        %312 = vst [vmem:[%s72 + $0x3b8] sm:$0xff] %v311
        %v313 = vld [vmem:[%s71 + $0x3c0] sm:$0xff]
        %314 = vst [vmem:[%s72 + $0x3c0] sm:$0xff] %v313
        %v315 = vld [vmem:[%s71 + $0x3c8] sm:$0xff]
        %316 = vst [vmem:[%s72 + $0x3c8] sm:$0xff] %v315
        %v317 = vld [vmem:[%s71 + $0x3d0] sm:$0xff]
        %318 = vst [vmem:[%s72 + $0x3d0] sm:$0xff] %v317
        %v319 = vld [vmem:[%s71 + $0x3d8] sm:$0xff]
        %320 = vst [vmem:[%s72 + $0x3d8] sm:$0xff] %v319
        %v321 = vld [vmem:[%s71 + $0x3e0] sm:$0xff]
        %322 = vst [vmem:[%s72 + $0x3e0] sm:$0xff] %v321
        %v323 = vld [vmem:[%s71 + $0x3e8] sm:$0xff]
        %324 = vst [vmem:[%s72 + $0x3e8] sm:$0xff] %v323
        %v325 = vld [vmem:[%s71 + $0x3f0] sm:$0xff]
        %326 = vst [vmem:[%s72 + $0x3f0] sm:$0xff] %v325
        %v327 = vld [vmem:[%s71 + $0x3f8] sm:$0xff]
        %328 = vst [vmem:[%s72 + $0x3f8] sm:$0xff] %v327
        %v329 = vld [vmem:[%s71 + $0x400] sm:$0xff]
        %330 = vst [vmem:[%s72 + $0x400] sm:$0xff] %v329
        %v331 = vld [vmem:[%s71 + $0x408] sm:$0xff]
        %332 = vst [vmem:[%s72 + $0x408] sm:$0xff] %v331
        %v333 = vld [vmem:[%s71 + $0x410] sm:$0xff]
        %334 = vst [vmem:[%s72 + $0x410] sm:$0xff] %v333
        %v335 = vld [vmem:[%s71 + $0x418] sm:$0xff]
        %336 = vst [vmem:[%s72 + $0x418] sm:$0xff] %v335
        %v337 = vld [vmem:[%s71 + $0x420] sm:$0xff]
        %338 = vst [vmem:[%s72 + $0x420] sm:$0xff] %v337
        %v339 = vld [vmem:[%s71 + $0x428] sm:$0xff]
        %340 = vst [vmem:[%s72 + $0x428] sm:$0xff] %v339
        %v341 = vld [vmem:[%s71 + $0x430] sm:$0xff]
        %342 = vst [vmem:[%s72 + $0x430] sm:$0xff] %v341
        %v343 = vld [vmem:[%s71 + $0x438] sm:$0xff]
        %344 = vst [vmem:[%s72 + $0x438] sm:$0xff] %v343
        %v345 = vld [vmem:[%s71 + $0x440] sm:$0xff]
        %346 = vst [vmem:[%s72 + $0x440] sm:$0xff] %v345
        %v347 = vld [vmem:[%s71 + $0x448] sm:$0xff]
        %348 = vst [vmem:[%s72 + $0x448] sm:$0xff] %v347
        %v349 = vld [vmem:[%s71 + $0x450] sm:$0xff]
        %350 = vst [vmem:[%s72 + $0x450] sm:$0xff] %v349
        %v351 = vld [vmem:[%s71 + $0x458] sm:$0xff]
        %352 = vst [vmem:[%s72 + $0x458] sm:$0xff] %v351
        %v353 = vld [vmem:[%s71 + $0x460] sm:$0xff]
        %354 = vst [vmem:[%s72 + $0x460] sm:$0xff] %v353
        %v355 = vld [vmem:[%s71 + $0x468] sm:$0xff]
        %356 = vst [vmem:[%s72 + $0x468] sm:$0xff] %v355
        %v357 = vld [vmem:[%s71 + $0x470] sm:$0xff]
        %358 = vst [vmem:[%s72 + $0x470] sm:$0xff] %v357
        %v359 = vld [vmem:[%s71 + $0x478] sm:$0xff]
        %360 = vst [vmem:[%s72 + $0x478] sm:$0xff] %v359
        %v361 = vld [vmem:[%s71 + $0x480] sm:$0xff]
        %362 = vst [vmem:[%s72 + $0x480] sm:$0xff] %v361
        %v363 = vld [vmem:[%s71 + $0x488] sm:$0xff]
        %364 = vst [vmem:[%s72 + $0x488] sm:$0xff] %v363
        %v365 = vld [vmem:[%s71 + $0x490] sm:$0xff]
        %366 = vst [vmem:[%s72 + $0x490] sm:$0xff] %v365
        %v367 = vld [vmem:[%s71 + $0x498] sm:$0xff]
        %368 = vst [vmem:[%s72 + $0x498] sm:$0xff] %v367
        %v369 = vld [vmem:[%s71 + $0x4a0] sm:$0xff]
        %370 = vst [vmem:[%s72 + $0x4a0] sm:$0xff] %v369
        %v371 = vld [vmem:[%s71 + $0x4a8] sm:$0xff]
        %372 = vst [vmem:[%s72 + $0x4a8] sm:$0xff] %v371
        %v373 = vld [vmem:[%s71 + $0x4b0] sm:$0xff]
        %374 = vst [vmem:[%s72 + $0x4b0] sm:$0xff] %v373
        %v375 = vld [vmem:[%s71 + $0x4b8] sm:$0xff]
        %376 = vst [vmem:[%s72 + $0x4b8] sm:$0xff] %v375
        %v377 = vld [vmem:[%s71 + $0x4c0] sm:$0xff]
        %378 = vst [vmem:[%s72 + $0x4c0] sm:$0xff] %v377
        %v379 = vld [vmem:[%s71 + $0x4c8] sm:$0xff]
        %380 = vst [vmem:[%s72 + $0x4c8] sm:$0xff] %v379
        %v381 = vld [vmem:[%s71 + $0x4d0] sm:$0xff]
        %382 = vst [vmem:[%s72 + $0x4d0] sm:$0xff] %v381
        %v383 = vld [vmem:[%s71 + $0x4d8] sm:$0xff]
        %384 = vst [vmem:[%s72 + $0x4d8] sm:$0xff] %v383
        %v385 = vld [vmem:[%s71 + $0x4e0] sm:$0xff]
        %386 = vst [vmem:[%s72 + $0x4e0] sm:$0xff] %v385
        %v387 = vld [vmem:[%s71 + $0x4e8] sm:$0xff]
        %388 = vst [vmem:[%s72 + $0x4e8] sm:$0xff] %v387
        %v389 = vld [vmem:[%s71 + $0x4f0] sm:$0xff]
        %390 = vst [vmem:[%s72 + $0x4f0] sm:$0xff] %v389
        %v391 = vld [vmem:[%s71 + $0x4f8] sm:$0xff]
        %392 = vst [vmem:[%s72 + $0x4f8] sm:$0xff] %v391
        %v393 = vld [vmem:[%s71 + $0x500] sm:$0xff]
        %394 = vst [vmem:[%s72 + $0x500] sm:$0xff] %v393
        %v395 = vld [vmem:[%s71 + $0x508] sm:$0xff]
        %396 = vst [vmem:[%s72 + $0x508] sm:$0xff] %v395
        %v397 = vld [vmem:[%s71 + $0x510] sm:$0xff]
        %398 = vst [vmem:[%s72 + $0x510] sm:$0xff] %v397
        %v399 = vld [vmem:[%s71 + $0x518] sm:$0xff]
        %400 = vst [vmem:[%s72 + $0x518] sm:$0xff] %v399
        %v401 = vld [vmem:[%s71 + $0x520] sm:$0xff]
        %402 = vst [vmem:[%s72 + $0x520] sm:$0xff] %v401
        %v403 = vld [vmem:[%s71 + $0x528] sm:$0xff]
        %404 = vst [vmem:[%s72 + $0x528] sm:$0xff] %v403
        %v405 = vld [vmem:[%s71 + $0x530] sm:$0xff]
        %406 = vst [vmem:[%s72 + $0x530] sm:$0xff] %v405
        %v407 = vld [vmem:[%s71 + $0x538] sm:$0xff]
        %408 = vst [vmem:[%s72 + $0x538] sm:$0xff] %v407
        %v409 = vld [vmem:[%s71 + $0x540] sm:$0xff]
        %410 = vst [vmem:[%s72 + $0x540] sm:$0xff] %v409
        %v411 = vld [vmem:[%s71 + $0x548] sm:$0xff]
        %412 = vst [vmem:[%s72 + $0x548] sm:$0xff] %v411
        %v413 = vld [vmem:[%s71 + $0x550] sm:$0xff]
        %414 = vst [vmem:[%s72 + $0x550] sm:$0xff] %v413
        %v415 = vld [vmem:[%s71 + $0x558] sm:$0xff]
        %416 = vst [vmem:[%s72 + $0x558] sm:$0xff] %v415
        %v417 = vld [vmem:[%s71 + $0x560] sm:$0xff]
        %418 = vst [vmem:[%s72 + $0x560] sm:$0xff] %v417
        %v419 = vld [vmem:[%s71 + $0x568] sm:$0xff]
        %420 = vst [vmem:[%s72 + $0x568] sm:$0xff] %v419
        %v421 = vld [vmem:[%s71 + $0x570] sm:$0xff]
        %422 = vst [vmem:[%s72 + $0x570] sm:$0xff] %v421
        %v423 = vld [vmem:[%s71 + $0x578] sm:$0xff]
        %424 = vst [vmem:[%s72 + $0x578] sm:$0xff] %v423
        %v425 = vld [vmem:[%s71 + $0x580] sm:$0xff]
        %426 = vst [vmem:[%s72 + $0x580] sm:$0xff] %v425
        %v427 = vld [vmem:[%s71 + $0x588] sm:$0xff]
        %428 = vst [vmem:[%s72 + $0x588] sm:$0xff] %v427
        %v429 = vld [vmem:[%s71 + $0x590] sm:$0xff]
        %430 = vst [vmem:[%s72 + $0x590] sm:$0xff] %v429
        %v431 = vld [vmem:[%s71 + $0x598] sm:$0xff]
        %432 = vst [vmem:[%s72 + $0x598] sm:$0xff] %v431
        %v433 = vld [vmem:[%s71 + $0x5a0] sm:$0xff]
        %434 = vst [vmem:[%s72 + $0x5a0] sm:$0xff] %v433
        %v435 = vld [vmem:[%s71 + $0x5a8] sm:$0xff]
        %436 = vst [vmem:[%s72 + $0x5a8] sm:$0xff] %v435
        %v437 = vld [vmem:[%s71 + $0x5b0] sm:$0xff]
        %438 = vst [vmem:[%s72 + $0x5b0] sm:$0xff] %v437
        %v439 = vld [vmem:[%s71 + $0x5b8] sm:$0xff]
        %440 = vst [vmem:[%s72 + $0x5b8] sm:$0xff] %v439
        %v441 = vld [vmem:[%s71 + $0x5c0] sm:$0xff]
        %442 = vst [vmem:[%s72 + $0x5c0] sm:$0xff] %v441
        %v443 = vld [vmem:[%s71 + $0x5c8] sm:$0xff]
        %444 = vst [vmem:[%s72 + $0x5c8] sm:$0xff] %v443
        %v445 = vld [vmem:[%s71 + $0x5d0] sm:$0xff]
        %446 = vst [vmem:[%s72 + $0x5d0] sm:$0xff] %v445
        %v447 = vld [vmem:[%s71 + $0x5d8] sm:$0xff]
        %448 = vst [vmem:[%s72 + $0x5d8] sm:$0xff] %v447
        %v449 = vld [vmem:[%s71 + $0x5e0] sm:$0xff]
        %450 = vst [vmem:[%s72 + $0x5e0] sm:$0xff] %v449
        %v451 = vld [vmem:[%s71 + $0x5e8] sm:$0xff]
        %452 = vst [vmem:[%s72 + $0x5e8] sm:$0xff] %v451
        %v453 = vld [vmem:[%s71 + $0x5f0] sm:$0xff]
        %454 = vst [vmem:[%s72 + $0x5f0] sm:$0xff] %v453
        %v455 = vld [vmem:[%s71 + $0x5f8] sm:$0xff]
        %456 = vst [vmem:[%s72 + $0x5f8] sm:$0xff] %v455
        %v457 = vld [vmem:[%s71 + $0x600] sm:$0xff]
        %458 = vst [vmem:[%s72 + $0x600] sm:$0xff] %v457
        %v459 = vld [vmem:[%s71 + $0x608] sm:$0xff]
        %460 = vst [vmem:[%s72 + $0x608] sm:$0xff] %v459
        %v461 = vld [vmem:[%s71 + $0x610] sm:$0xff]
        %462 = vst [vmem:[%s72 + $0x610] sm:$0xff] %v461
        %v463 = vld [vmem:[%s71 + $0x618] sm:$0xff]
        %464 = vst [vmem:[%s72 + $0x618] sm:$0xff] %v463
        %v465 = vld [vmem:[%s71 + $0x620] sm:$0xff]
        %466 = vst [vmem:[%s72 + $0x620] sm:$0xff] %v465
        %v467 = vld [vmem:[%s71 + $0x628] sm:$0xff]
        %468 = vst [vmem:[%s72 + $0x628] sm:$0xff] %v467
        %v469 = vld [vmem:[%s71 + $0x630] sm:$0xff]
        %470 = vst [vmem:[%s72 + $0x630] sm:$0xff] %v469
        %v471 = vld [vmem:[%s71 + $0x638] sm:$0xff]
        %472 = vst [vmem:[%s72 + $0x638] sm:$0xff] %v471
        %v473 = vld [vmem:[%s71 + $0x640] sm:$0xff]
        %474 = vst [vmem:[%s72 + $0x640] sm:$0xff] %v473
        %v475 = vld [vmem:[%s71 + $0x648] sm:$0xff]
        %476 = vst [vmem:[%s72 + $0x648] sm:$0xff] %v475
        %v477 = vld [vmem:[%s71 + $0x650] sm:$0xff]
        %478 = vst [vmem:[%s72 + $0x650] sm:$0xff] %v477
        %v479 = vld [vmem:[%s71 + $0x658] sm:$0xff]
        %480 = vst [vmem:[%s72 + $0x658] sm:$0xff] %v479
        %v481 = vld [vmem:[%s71 + $0x660] sm:$0xff]
        %482 = vst [vmem:[%s72 + $0x660] sm:$0xff] %v481
        %v483 = vld [vmem:[%s71 + $0x668] sm:$0xff]
        %484 = vst [vmem:[%s72 + $0x668] sm:$0xff] %v483
        %v485 = vld [vmem:[%s71 + $0x670] sm:$0xff]
        %486 = vst [vmem:[%s72 + $0x670] sm:$0xff] %v485
        %v487 = vld [vmem:[%s71 + $0x678] sm:$0xff]
        %488 = vst [vmem:[%s72 + $0x678] sm:$0xff] %v487
        %v489 = vld [vmem:[%s71 + $0x680] sm:$0xff]
        %490 = vst [vmem:[%s72 + $0x680] sm:$0xff] %v489
        %v491 = vld [vmem:[%s71 + $0x688] sm:$0xff]
        %492 = vst [vmem:[%s72 + $0x688] sm:$0xff] %v491
        %v493 = vld [vmem:[%s71 + $0x690] sm:$0xff]
        %494 = vst [vmem:[%s72 + $0x690] sm:$0xff] %v493
        %v495 = vld [vmem:[%s71 + $0x698] sm:$0xff]
        %496 = vst [vmem:[%s72 + $0x698] sm:$0xff] %v495
        %v497 = vld [vmem:[%s71 + $0x6a0] sm:$0xff]
        %498 = vst [vmem:[%s72 + $0x6a0] sm:$0xff] %v497
        %v499 = vld [vmem:[%s71 + $0x6a8] sm:$0xff]
        %500 = vst [vmem:[%s72 + $0x6a8] sm:$0xff] %v499
        %v501 = vld [vmem:[%s71 + $0x6b0] sm:$0xff]
        %502 = vst [vmem:[%s72 + $0x6b0] sm:$0xff] %v501
        %v503 = vld [vmem:[%s71 + $0x6b8] sm:$0xff]
        %504 = vst [vmem:[%s72 + $0x6b8] sm:$0xff] %v503
      $region65: #{critic_forward.1} parent=59 // loop_footer
        %s70 = sadd.s32 1, %s66
      $region66: #{critic_forward.1} parent=59 // loop_footer_branch
        %65 = sbr.rel target = $region62
      $region67: #{critic_forward.1} parent=59 // loop_exit
        _
    $region60: #{critic_forward.1} parent=44 // pred_fallthru
      _
    %p505 = pneg %p61
    // Predicated region
    $region68: #{critic_forward.1} parent=44 // pred_check
      _
    $region69: #{critic_forward.1} parent=44 // pred_check_branch
      %507 = sbr.rel (%p61) target = $region71
    $region70: #{critic_forward.1} parent=44 // pred_region
      %s508 = sand.u32 1728, 7
    $region71: #{critic_forward.1} parent=44 // pred_fallthru
      _
  $region45: #{critic_forward.1} parent=0 // pred_fallthru
    _
  // Predicated region
  $region46: #{critic_forward.1} parent=0 // pred_check
    %p45 = pneg %p41
  $region47: #{critic_forward.1} parent=0 // pred_check_branch
    %47 = sbr.rel (%p45) target = $region49
  $region48: #{critic_forward.1} parent=0 // pred_region
    %s48 = sshll.u32 1, 1728
    %s49 = ssub.s32 %s48, 1
    loop: start=0, step=1, limit=1
    $region50: #{critic_forward.1} parent=48 // loop_pre_header
      _
    $region51: #{critic_forward.1} parent=48 // loop_header
      %s51 = sphi 0, %s55
      %p52 = scmp.ge.s32.totalorder %s51, 1
      %s56 = sphi %s7, %s7
      %s57 = sphi [#allocation2], [#allocation2]
    $region52: #{critic_forward.1} parent=48 // loop_header_branch
      %54 = sbr.rel (%p52) target = $region56
    $region53: #{critic_forward.1} parent=48 // loop_body
      %v58 = vld [vmem:[%s56] sm:%s49]
      %59 = vst [vmem:[%s57] sm:%s49] %v58
    $region54: #{critic_forward.1} parent=48 // loop_footer
      %s55 = sadd.s32 1, %s51
    $region55: #{critic_forward.1} parent=48 // loop_footer_branch
      %50 = sbr.rel target = $region51
    $region56: #{critic_forward.1} parent=48 // loop_exit
      _
  $region49: #{critic_forward.1} parent=0 // pred_fallthru
    _
  // Predicated region
  $region72: #{critic_forward.1} parent=0 // pred_check
    _
  $region73: #{critic_forward.1} parent=0 // pred_check_branch
    %511 = sbr.rel (0) target = $region75
  $region74: #{critic_forward.1} parent=0 // pred_region
    %512 = vsyncadd [#allocation4], 27648
  $region75: #{critic_forward.1} parent=0 // pred_fallthru
    _
  %s513 = scalar_lea.sflag [#allocation4], 1
  %p515 = scmp.lt.u32.totalorder 768, 8
  %p516 = pneg %p515
  // Predicated region
  $region76: #{critic_forward.1} parent=0 // pred_check
    _
  $region77: #{critic_forward.1} parent=0 // pred_check_branch
    %518 = sbr.rel (%p515) target = $region79
  $region78: #{critic_forward.1} parent=0 // pred_region
    %s534 = sand.u32 768, 7
    %p535 = scmp.eq.s32.totalorder %s534, 0
    // Predicated region
    $region91: #{critic_forward.1} parent=78 // pred_check
      %p536 = pneg %p535
    $region92: #{critic_forward.1} parent=78 // pred_check_branch
      %538 = sbr.rel (%p536) target = $region94
    $region93: #{critic_forward.1} parent=78 // pred_region
      loop: start=0, step=1, limit=1
      $region95: #{critic_forward.1} parent=93 // loop_pre_header
        _
      $region96: #{critic_forward.1} parent=93 // loop_header
        %s540 = sphi 0, %s544
        %p541 = scmp.ge.s32.totalorder %s540, 1
        %s545 = sphi %s8, %s8
        %s546 = sphi [#allocation3], [#allocation3]
      $region97: #{critic_forward.1} parent=93 // loop_header_branch
        %543 = sbr.rel (%p541) target = $region101
      $region98: #{critic_forward.1} parent=93 // loop_body
        %v547 = vld [vmem:[%s545] sm:$0xff]
        %548 = vst [vmem:[%s546] sm:$0xff] %v547
        %v549 = vld [vmem:[%s545 + $0x8] sm:$0xff]
        %550 = vst [vmem:[%s546 + $0x8] sm:$0xff] %v549
        %v551 = vld [vmem:[%s545 + $0x10] sm:$0xff]
        %552 = vst [vmem:[%s546 + $0x10] sm:$0xff] %v551
        %v553 = vld [vmem:[%s545 + $0x18] sm:$0xff]
        %554 = vst [vmem:[%s546 + $0x18] sm:$0xff] %v553
        %v555 = vld [vmem:[%s545 + $0x20] sm:$0xff]
        %556 = vst [vmem:[%s546 + $0x20] sm:$0xff] %v555
        %v557 = vld [vmem:[%s545 + $0x28] sm:$0xff]
        %558 = vst [vmem:[%s546 + $0x28] sm:$0xff] %v557
        %v559 = vld [vmem:[%s545 + $0x30] sm:$0xff]
        %560 = vst [vmem:[%s546 + $0x30] sm:$0xff] %v559
        %v561 = vld [vmem:[%s545 + $0x38] sm:$0xff]
        %562 = vst [vmem:[%s546 + $0x38] sm:$0xff] %v561
        %v563 = vld [vmem:[%s545 + $0x40] sm:$0xff]
        %564 = vst [vmem:[%s546 + $0x40] sm:$0xff] %v563
        %v565 = vld [vmem:[%s545 + $0x48] sm:$0xff]
        %566 = vst [vmem:[%s546 + $0x48] sm:$0xff] %v565
        %v567 = vld [vmem:[%s545 + $0x50] sm:$0xff]
        %568 = vst [vmem:[%s546 + $0x50] sm:$0xff] %v567
        %v569 = vld [vmem:[%s545 + $0x58] sm:$0xff]
        %570 = vst [vmem:[%s546 + $0x58] sm:$0xff] %v569
        %v571 = vld [vmem:[%s545 + $0x60] sm:$0xff]
        %572 = vst [vmem:[%s546 + $0x60] sm:$0xff] %v571
        %v573 = vld [vmem:[%s545 + $0x68] sm:$0xff]
        %574 = vst [vmem:[%s546 + $0x68] sm:$0xff] %v573
        %v575 = vld [vmem:[%s545 + $0x70] sm:$0xff]
        %576 = vst [vmem:[%s546 + $0x70] sm:$0xff] %v575
        %v577 = vld [vmem:[%s545 + $0x78] sm:$0xff]
        %578 = vst [vmem:[%s546 + $0x78] sm:$0xff] %v577
        %v579 = vld [vmem:[%s545 + $0x80] sm:$0xff]
        %580 = vst [vmem:[%s546 + $0x80] sm:$0xff] %v579
        %v581 = vld [vmem:[%s545 + $0x88] sm:$0xff]
        %582 = vst [vmem:[%s546 + $0x88] sm:$0xff] %v581
        %v583 = vld [vmem:[%s545 + $0x90] sm:$0xff]
        %584 = vst [vmem:[%s546 + $0x90] sm:$0xff] %v583
        %v585 = vld [vmem:[%s545 + $0x98] sm:$0xff]
        %586 = vst [vmem:[%s546 + $0x98] sm:$0xff] %v585
        %v587 = vld [vmem:[%s545 + $0xa0] sm:$0xff]
        %588 = vst [vmem:[%s546 + $0xa0] sm:$0xff] %v587
        %v589 = vld [vmem:[%s545 + $0xa8] sm:$0xff]
        %590 = vst [vmem:[%s546 + $0xa8] sm:$0xff] %v589
        %v591 = vld [vmem:[%s545 + $0xb0] sm:$0xff]
        %592 = vst [vmem:[%s546 + $0xb0] sm:$0xff] %v591
        %v593 = vld [vmem:[%s545 + $0xb8] sm:$0xff]
        %594 = vst [vmem:[%s546 + $0xb8] sm:$0xff] %v593
        %v595 = vld [vmem:[%s545 + $0xc0] sm:$0xff]
        %596 = vst [vmem:[%s546 + $0xc0] sm:$0xff] %v595
        %v597 = vld [vmem:[%s545 + $0xc8] sm:$0xff]
        %598 = vst [vmem:[%s546 + $0xc8] sm:$0xff] %v597
        %v599 = vld [vmem:[%s545 + $0xd0] sm:$0xff]
        %600 = vst [vmem:[%s546 + $0xd0] sm:$0xff] %v599
        %v601 = vld [vmem:[%s545 + $0xd8] sm:$0xff]
        %602 = vst [vmem:[%s546 + $0xd8] sm:$0xff] %v601
        %v603 = vld [vmem:[%s545 + $0xe0] sm:$0xff]
        %604 = vst [vmem:[%s546 + $0xe0] sm:$0xff] %v603
        %v605 = vld [vmem:[%s545 + $0xe8] sm:$0xff]
        %606 = vst [vmem:[%s546 + $0xe8] sm:$0xff] %v605
        %v607 = vld [vmem:[%s545 + $0xf0] sm:$0xff]
        %608 = vst [vmem:[%s546 + $0xf0] sm:$0xff] %v607
        %v609 = vld [vmem:[%s545 + $0xf8] sm:$0xff]
        %610 = vst [vmem:[%s546 + $0xf8] sm:$0xff] %v609
        %v611 = vld [vmem:[%s545 + $0x100] sm:$0xff]
        %612 = vst [vmem:[%s546 + $0x100] sm:$0xff] %v611
        %v613 = vld [vmem:[%s545 + $0x108] sm:$0xff]
        %614 = vst [vmem:[%s546 + $0x108] sm:$0xff] %v613
        %v615 = vld [vmem:[%s545 + $0x110] sm:$0xff]
        %616 = vst [vmem:[%s546 + $0x110] sm:$0xff] %v615
        %v617 = vld [vmem:[%s545 + $0x118] sm:$0xff]
        %618 = vst [vmem:[%s546 + $0x118] sm:$0xff] %v617
        %v619 = vld [vmem:[%s545 + $0x120] sm:$0xff]
        %620 = vst [vmem:[%s546 + $0x120] sm:$0xff] %v619
        %v621 = vld [vmem:[%s545 + $0x128] sm:$0xff]
        %622 = vst [vmem:[%s546 + $0x128] sm:$0xff] %v621
        %v623 = vld [vmem:[%s545 + $0x130] sm:$0xff]
        %624 = vst [vmem:[%s546 + $0x130] sm:$0xff] %v623
        %v625 = vld [vmem:[%s545 + $0x138] sm:$0xff]
        %626 = vst [vmem:[%s546 + $0x138] sm:$0xff] %v625
        %v627 = vld [vmem:[%s545 + $0x140] sm:$0xff]
        %628 = vst [vmem:[%s546 + $0x140] sm:$0xff] %v627
        %v629 = vld [vmem:[%s545 + $0x148] sm:$0xff]
        %630 = vst [vmem:[%s546 + $0x148] sm:$0xff] %v629
        %v631 = vld [vmem:[%s545 + $0x150] sm:$0xff]
        %632 = vst [vmem:[%s546 + $0x150] sm:$0xff] %v631
        %v633 = vld [vmem:[%s545 + $0x158] sm:$0xff]
        %634 = vst [vmem:[%s546 + $0x158] sm:$0xff] %v633
        %v635 = vld [vmem:[%s545 + $0x160] sm:$0xff]
        %636 = vst [vmem:[%s546 + $0x160] sm:$0xff] %v635
        %v637 = vld [vmem:[%s545 + $0x168] sm:$0xff]
        %638 = vst [vmem:[%s546 + $0x168] sm:$0xff] %v637
        %v639 = vld [vmem:[%s545 + $0x170] sm:$0xff]
        %640 = vst [vmem:[%s546 + $0x170] sm:$0xff] %v639
        %v641 = vld [vmem:[%s545 + $0x178] sm:$0xff]
        %642 = vst [vmem:[%s546 + $0x178] sm:$0xff] %v641
        %v643 = vld [vmem:[%s545 + $0x180] sm:$0xff]
        %644 = vst [vmem:[%s546 + $0x180] sm:$0xff] %v643
        %v645 = vld [vmem:[%s545 + $0x188] sm:$0xff]
        %646 = vst [vmem:[%s546 + $0x188] sm:$0xff] %v645
        %v647 = vld [vmem:[%s545 + $0x190] sm:$0xff]
        %648 = vst [vmem:[%s546 + $0x190] sm:$0xff] %v647
        %v649 = vld [vmem:[%s545 + $0x198] sm:$0xff]
        %650 = vst [vmem:[%s546 + $0x198] sm:$0xff] %v649
        %v651 = vld [vmem:[%s545 + $0x1a0] sm:$0xff]
        %652 = vst [vmem:[%s546 + $0x1a0] sm:$0xff] %v651
        %v653 = vld [vmem:[%s545 + $0x1a8] sm:$0xff]
        %654 = vst [vmem:[%s546 + $0x1a8] sm:$0xff] %v653
        %v655 = vld [vmem:[%s545 + $0x1b0] sm:$0xff]
        %656 = vst [vmem:[%s546 + $0x1b0] sm:$0xff] %v655
        %v657 = vld [vmem:[%s545 + $0x1b8] sm:$0xff]
        %658 = vst [vmem:[%s546 + $0x1b8] sm:$0xff] %v657
        %v659 = vld [vmem:[%s545 + $0x1c0] sm:$0xff]
        %660 = vst [vmem:[%s546 + $0x1c0] sm:$0xff] %v659
        %v661 = vld [vmem:[%s545 + $0x1c8] sm:$0xff]
        %662 = vst [vmem:[%s546 + $0x1c8] sm:$0xff] %v661
        %v663 = vld [vmem:[%s545 + $0x1d0] sm:$0xff]
        %664 = vst [vmem:[%s546 + $0x1d0] sm:$0xff] %v663
        %v665 = vld [vmem:[%s545 + $0x1d8] sm:$0xff]
        %666 = vst [vmem:[%s546 + $0x1d8] sm:$0xff] %v665
        %v667 = vld [vmem:[%s545 + $0x1e0] sm:$0xff]
        %668 = vst [vmem:[%s546 + $0x1e0] sm:$0xff] %v667
        %v669 = vld [vmem:[%s545 + $0x1e8] sm:$0xff]
        %670 = vst [vmem:[%s546 + $0x1e8] sm:$0xff] %v669
        %v671 = vld [vmem:[%s545 + $0x1f0] sm:$0xff]
        %672 = vst [vmem:[%s546 + $0x1f0] sm:$0xff] %v671
        %v673 = vld [vmem:[%s545 + $0x1f8] sm:$0xff]
        %674 = vst [vmem:[%s546 + $0x1f8] sm:$0xff] %v673
        %v675 = vld [vmem:[%s545 + $0x200] sm:$0xff]
        %676 = vst [vmem:[%s546 + $0x200] sm:$0xff] %v675
        %v677 = vld [vmem:[%s545 + $0x208] sm:$0xff]
        %678 = vst [vmem:[%s546 + $0x208] sm:$0xff] %v677
        %v679 = vld [vmem:[%s545 + $0x210] sm:$0xff]
        %680 = vst [vmem:[%s546 + $0x210] sm:$0xff] %v679
        %v681 = vld [vmem:[%s545 + $0x218] sm:$0xff]
        %682 = vst [vmem:[%s546 + $0x218] sm:$0xff] %v681
        %v683 = vld [vmem:[%s545 + $0x220] sm:$0xff]
        %684 = vst [vmem:[%s546 + $0x220] sm:$0xff] %v683
        %v685 = vld [vmem:[%s545 + $0x228] sm:$0xff]
        %686 = vst [vmem:[%s546 + $0x228] sm:$0xff] %v685
        %v687 = vld [vmem:[%s545 + $0x230] sm:$0xff]
        %688 = vst [vmem:[%s546 + $0x230] sm:$0xff] %v687
        %v689 = vld [vmem:[%s545 + $0x238] sm:$0xff]
        %690 = vst [vmem:[%s546 + $0x238] sm:$0xff] %v689
        %v691 = vld [vmem:[%s545 + $0x240] sm:$0xff]
        %692 = vst [vmem:[%s546 + $0x240] sm:$0xff] %v691
        %v693 = vld [vmem:[%s545 + $0x248] sm:$0xff]
        %694 = vst [vmem:[%s546 + $0x248] sm:$0xff] %v693
        %v695 = vld [vmem:[%s545 + $0x250] sm:$0xff]
        %696 = vst [vmem:[%s546 + $0x250] sm:$0xff] %v695
        %v697 = vld [vmem:[%s545 + $0x258] sm:$0xff]
        %698 = vst [vmem:[%s546 + $0x258] sm:$0xff] %v697
        %v699 = vld [vmem:[%s545 + $0x260] sm:$0xff]
        %700 = vst [vmem:[%s546 + $0x260] sm:$0xff] %v699
        %v701 = vld [vmem:[%s545 + $0x268] sm:$0xff]
        %702 = vst [vmem:[%s546 + $0x268] sm:$0xff] %v701
        %v703 = vld [vmem:[%s545 + $0x270] sm:$0xff]
        %704 = vst [vmem:[%s546 + $0x270] sm:$0xff] %v703
        %v705 = vld [vmem:[%s545 + $0x278] sm:$0xff]
        %706 = vst [vmem:[%s546 + $0x278] sm:$0xff] %v705
        %v707 = vld [vmem:[%s545 + $0x280] sm:$0xff]
        %708 = vst [vmem:[%s546 + $0x280] sm:$0xff] %v707
        %v709 = vld [vmem:[%s545 + $0x288] sm:$0xff]
        %710 = vst [vmem:[%s546 + $0x288] sm:$0xff] %v709
        %v711 = vld [vmem:[%s545 + $0x290] sm:$0xff]
        %712 = vst [vmem:[%s546 + $0x290] sm:$0xff] %v711
        %v713 = vld [vmem:[%s545 + $0x298] sm:$0xff]
        %714 = vst [vmem:[%s546 + $0x298] sm:$0xff] %v713
        %v715 = vld [vmem:[%s545 + $0x2a0] sm:$0xff]
        %716 = vst [vmem:[%s546 + $0x2a0] sm:$0xff] %v715
        %v717 = vld [vmem:[%s545 + $0x2a8] sm:$0xff]
        %718 = vst [vmem:[%s546 + $0x2a8] sm:$0xff] %v717
        %v719 = vld [vmem:[%s545 + $0x2b0] sm:$0xff]
        %720 = vst [vmem:[%s546 + $0x2b0] sm:$0xff] %v719
        %v721 = vld [vmem:[%s545 + $0x2b8] sm:$0xff]
        %722 = vst [vmem:[%s546 + $0x2b8] sm:$0xff] %v721
        %v723 = vld [vmem:[%s545 + $0x2c0] sm:$0xff]
        %724 = vst [vmem:[%s546 + $0x2c0] sm:$0xff] %v723
        %v725 = vld [vmem:[%s545 + $0x2c8] sm:$0xff]
        %726 = vst [vmem:[%s546 + $0x2c8] sm:$0xff] %v725
        %v727 = vld [vmem:[%s545 + $0x2d0] sm:$0xff]
        %728 = vst [vmem:[%s546 + $0x2d0] sm:$0xff] %v727
        %v729 = vld [vmem:[%s545 + $0x2d8] sm:$0xff]
        %730 = vst [vmem:[%s546 + $0x2d8] sm:$0xff] %v729
        %v731 = vld [vmem:[%s545 + $0x2e0] sm:$0xff]
        %732 = vst [vmem:[%s546 + $0x2e0] sm:$0xff] %v731
        %v733 = vld [vmem:[%s545 + $0x2e8] sm:$0xff]
        %734 = vst [vmem:[%s546 + $0x2e8] sm:$0xff] %v733
        %v735 = vld [vmem:[%s545 + $0x2f0] sm:$0xff]
        %736 = vst [vmem:[%s546 + $0x2f0] sm:$0xff] %v735
        %v737 = vld [vmem:[%s545 + $0x2f8] sm:$0xff]
        %738 = vst [vmem:[%s546 + $0x2f8] sm:$0xff] %v737
      $region99: #{critic_forward.1} parent=93 // loop_footer
        %s544 = sadd.s32 1, %s540
      $region100: #{critic_forward.1} parent=93 // loop_footer_branch
        %539 = sbr.rel target = $region96
      $region101: #{critic_forward.1} parent=93 // loop_exit
        _
    $region94: #{critic_forward.1} parent=78 // pred_fallthru
      _
    %p739 = pneg %p535
    // Predicated region
    $region102: #{critic_forward.1} parent=78 // pred_check
      _
    $region103: #{critic_forward.1} parent=78 // pred_check_branch
      %741 = sbr.rel (%p535) target = $region105
    $region104: #{critic_forward.1} parent=78 // pred_region
      %s742 = sand.u32 768, 7
    $region105: #{critic_forward.1} parent=78 // pred_fallthru
      _
  $region79: #{critic_forward.1} parent=0 // pred_fallthru
    _
  // Predicated region
  $region80: #{critic_forward.1} parent=0 // pred_check
    %p519 = pneg %p515
  $region81: #{critic_forward.1} parent=0 // pred_check_branch
    %521 = sbr.rel (%p519) target = $region83
  $region82: #{critic_forward.1} parent=0 // pred_region
    %s522 = sshll.u32 1, 768
    %s523 = ssub.s32 %s522, 1
    loop: start=0, step=1, limit=1
    $region84: #{critic_forward.1} parent=82 // loop_pre_header
      _
    $region85: #{critic_forward.1} parent=82 // loop_header
      %s525 = sphi 0, %s529
      %p526 = scmp.ge.s32.totalorder %s525, 1
      %s530 = sphi %s8, %s8
      %s531 = sphi [#allocation3], [#allocation3]
    $region86: #{critic_forward.1} parent=82 // loop_header_branch
      %528 = sbr.rel (%p526) target = $region90
    $region87: #{critic_forward.1} parent=82 // loop_body
      %v532 = vld [vmem:[%s530] sm:%s523]
      %533 = vst [vmem:[%s531] sm:%s523] %v532
    $region88: #{critic_forward.1} parent=82 // loop_footer
      %s529 = sadd.s32 1, %s525
    $region89: #{critic_forward.1} parent=82 // loop_footer_branch
      %524 = sbr.rel target = $region85
    $region90: #{critic_forward.1} parent=82 // loop_exit
      _
  $region83: #{critic_forward.1} parent=0 // pred_fallthru
    _
  // Predicated region
  $region106: #{critic_forward.1} parent=0 // pred_check
    _
  $region107: #{critic_forward.1} parent=0 // pred_check_branch
    %745 = sbr.rel (0) target = $region109
  $region108: #{critic_forward.1} parent=0 // pred_region
    %746 = vsyncadd %s513, 12288
  $region109: #{critic_forward.1} parent=0 // pred_fallthru
    _
  %v747 = vld [vmem:[%s0] sm:$0xff]
  %v748 = vld [vmem:[%s0 + $0x8] sm:$0xff]
  %v749 = vpack.c.bf16 %v748, %v747
  %v750 = vld [vmem:[%s2] sm:$0xff]
  %v751 = vld [vmem:[%s2 + $0x8] sm:$0xff]
  %v752 = vld [vmem:[%s2 + $0x10] sm:$0xff]
  %v753 = vld [vmem:[%s2 + $0x18] sm:$0xff]
  %v754 = vld [vmem:[%s2 + $0x20] sm:$0xf]
  %v755 = vld [vmem:[%s2 + $0x24] sm:$0xff]
  %v756 = vld [vmem:[%s2 + $0x2c] sm:$0xff]
  %v757 = vld [vmem:[%s2 + $0x34] sm:$0xff]
  %v758 = vld [vmem:[%s2 + $0x3c] sm:$0xff]
  %v759 = vld [vmem:[%s2 + $0x44] sm:$0xf]
  %v760 = vld [vmem:[%s3] sm:$0xff]
  %v761 = vld [vmem:[%s3 + $0x8] sm:$0x1]
  %v764 = vlaneseq
  %v765 = vshrl.u32 %v764, 7
  %v766 = vsub.s32 0, %v765
  %v767 = vrot.slane %v760, %v766
  %v768 = vlaneseq
  %v769 = vshrl.u32 %v768, 7
  %v770 = vsub.s32 1, %v769
  %v771 = vrot.slane %v760, %v770
  %v772 = vlaneseq
  %v773 = vshrl.u32 %v772, 7
  %v774 = vsub.s32 2, %v773
  %v775 = vrot.slane %v760, %v774
  %v776 = vlaneseq
  %v777 = vshrl.u32 %v776, 7
  %v778 = vsub.s32 3, %v777
  %v779 = vrot.slane %v760, %v778
  %v780 = vlaneseq
  %v781 = vshrl.u32 %v780, 7
  %v782 = vsub.s32 4, %v781
  %v783 = vrot.slane %v760, %v782
  %v784 = vlaneseq
  %v785 = vshrl.u32 %v784, 7
  %v786 = vsub.s32 5, %v785
  %v787 = vrot.slane %v760, %v786
  %v788 = vlaneseq
  %v789 = vshrl.u32 %v788, 7
  %v790 = vsub.s32 6, %v789
  %v791 = vrot.slane %v760, %v790
  %v792 = vlaneseq
  %v793 = vshrl.u32 %v792, 7
  %v794 = vsub.s32 7, %v793
  %v795 = vrot.slane %v760, %v794
  %v796 = vlaneseq
  %v797 = vshrl.u32 %v796, 7
  %v798 = vsub.s32 0, %v797
  %v799 = vrot.slane %v761, %v798
  %v819 = vunpack.c.l.b16 %v750
  %v820 = vunpack.c.h.b16 %v750
  %v821 = vunpack.c.l.b16 %v751
  %v822 = vunpack.c.h.b16 %v751
  %v823 = vunpack.c.l.b16 %v752
  %v824 = vunpack.c.h.b16 %v752
  %v825 = vunpack.c.l.b16 %v753
  %v826 = vunpack.c.h.b16 %v753
  %v827 = vunpack.c.l.b16 %v754
  %v828 = vunpack.c.l.b16 %v755
  %v829 = vunpack.c.h.b16 %v755
  %v830 = vunpack.c.l.b16 %v756
  %v831 = vunpack.c.h.b16 %v756
  %v832 = vunpack.c.l.b16 %v757
  %v833 = vunpack.c.h.b16 %v757
  %v834 = vunpack.c.l.b16 %v758
  %v835 = vunpack.c.h.b16 %v758
  %v836 = vunpack.c.l.b16 %v759
  %v837 = vpack.c.b16 %v828, %v819
  %v838 = vpack.c.b16 %v829, %v820
  %v839 = vpack.c.b16 %v830, %v821
  %v840 = vpack.c.b16 %v831, %v822
  %v841 = vpack.c.b16 %v832, %v823
  %v842 = vpack.c.b16 %v833, %v824
  %v843 = vpack.c.b16 %v834, %v825
  %v844 = vpack.c.b16 %v835, %v826
  %v845 = vpack.c.b16 %v836, %v827
  %vm855 = vcmask 130048
  %v857 = vsel %vm855, %v749, 0
  %859 = vmatprep.subr.bf16.mxu0 0
  %860 = vmatpush1.bf16.msra.mxu0 0
  %861 = vmatprep.subr.bf16.mxu0 0
  %862 = vmatpush1.bf16.msra.mxu0 0
  %863 = vmatprep.subr.bf16.mxu0 0
  %864 = vmatpush1.bf16.msra.mxu0 0
  %865 = vmatprep.subr.bf16.mxu0 0
  %866 = vmatpush1.bf16.msra.mxu0 0
  %867 = vmatprep.subr.bf16.mxu0 0
  %868 = vmatpush1.bf16.msra.mxu0 0
  %869 = vmatprep.subr.bf16.mxu0 0
  %870 = vmatpush1.bf16.msra.mxu0 0
  %871 = vmatprep.subr.bf16.mxu0 0
  %872 = vmatpush1.bf16.msra.mxu0 0
  %873 = vmatprep.subr.bf16.mxu0 %v838
  %874 = vmatpush1.bf16.msra.mxu0 %v837
  %875 = vmatprep.subr.bf16.mxu0 0
  %876 = vmatpush2.bf16.msra.mxu0 0
  %877 = vmatprep.subr.bf16.mxu0 0
  %878 = vmatpush2.bf16.msra.mxu0 0
  %879 = vmatprep.subr.bf16.mxu0 0
  %880 = vmatpush2.bf16.msra.mxu0 0
  %881 = vmatprep.subr.bf16.mxu0 0
  %882 = vmatpush2.bf16.msra.mxu0 0
  %883 = vmatprep.subr.bf16.mxu0 0
  %884 = vmatpush2.bf16.msra.mxu0 0
  %885 = vmatprep.subr.bf16.mxu0 0
  %886 = vmatpush2.bf16.msra.mxu0 0
  %887 = vmatprep.subr.bf16.mxu0 0
  %888 = vmatpush2.bf16.msra.mxu0 0
  %889 = vmatprep.subr.bf16.mxu0 0
  %890 = vmatpush2.bf16.msra.mxu0 0
  %891 = vmatprep.mubr.bf16.mxu0 0
  %892 = vmatmul.mubr.bf16.gmra.mxu0 %v857
  %v893 = vpop.f32.mrf.mxu0
  %v894 = vadd.f32 %v767, %v893
  %v895 = vpop.f32.mrf.mxu0
  %v896 = vadd.f32 %v771, %v895
  %v897 = vpop.f32.mrf.mxu0
  %v898 = vadd.f32 %v767, %v897
  %v899 = vpop.f32.mrf.mxu0
  %v900 = vadd.f32 %v771, %v899
  %901 = vdwg.mxu0
  %902 = vmatprep.subr.bf16.mxu0 0
  %903 = vmatpush1.bf16.msra.mxu0 0
  %904 = vmatprep.subr.bf16.mxu0 0
  %905 = vmatpush1.bf16.msra.mxu0 0
  %906 = vmatprep.subr.bf16.mxu0 0
  %907 = vmatpush1.bf16.msra.mxu0 0
  %908 = vmatprep.subr.bf16.mxu0 0
  %909 = vmatpush1.bf16.msra.mxu0 0
  %910 = vmatprep.subr.bf16.mxu0 0
  %911 = vmatpush1.bf16.msra.mxu0 0
  %912 = vmatprep.subr.bf16.mxu0 0
  %913 = vmatpush1.bf16.msra.mxu0 0
  %914 = vmatprep.subr.bf16.mxu0 0
  %915 = vmatpush1.bf16.msra.mxu0 0
  %916 = vmatprep.subr.bf16.mxu0 %v840
  %917 = vmatpush1.bf16.msra.mxu0 %v839
  %918 = vmatprep.subr.bf16.mxu0 0
  %919 = vmatpush2.bf16.msra.mxu0 0
  %920 = vmatprep.subr.bf16.mxu0 0
  %921 = vmatpush2.bf16.msra.mxu0 0
  %922 = vmatprep.subr.bf16.mxu0 0
  %923 = vmatpush2.bf16.msra.mxu0 0
  %924 = vmatprep.subr.bf16.mxu0 0
  %925 = vmatpush2.bf16.msra.mxu0 0
  %926 = vmatprep.subr.bf16.mxu0 0
  %927 = vmatpush2.bf16.msra.mxu0 0
  %928 = vmatprep.subr.bf16.mxu0 0
  %929 = vmatpush2.bf16.msra.mxu0 0
  %930 = vmatprep.subr.bf16.mxu0 0
  %931 = vmatpush2.bf16.msra.mxu0 0
  %932 = vmatprep.subr.bf16.mxu0 0
  %933 = vmatpush2.bf16.msra.mxu0 0
  %934 = vmatprep.mubr.bf16.mxu0 0
  %935 = vmatmul.mubr.bf16.gmra.mxu0 %v857
  %v936 = vpop.f32.mrf.mxu0
  %v937 = vadd.f32 %v775, %v936
  %v938 = vpop.f32.mrf.mxu0
  %v939 = vadd.f32 %v779, %v938
  %v940 = vpop.f32.mrf.mxu0
  %v941 = vadd.f32 %v775, %v940
  %v942 = vpop.f32.mrf.mxu0
  %v943 = vadd.f32 %v779, %v942
  %944 = vdwg.mxu0
  %945 = vmatprep.subr.bf16.mxu0 0
  %946 = vmatpush1.bf16.msra.mxu0 0
  %947 = vmatprep.subr.bf16.mxu0 0
  %948 = vmatpush1.bf16.msra.mxu0 0
  %949 = vmatprep.subr.bf16.mxu0 0
  %950 = vmatpush1.bf16.msra.mxu0 0
  %951 = vmatprep.subr.bf16.mxu0 0
  %952 = vmatpush1.bf16.msra.mxu0 0
  %953 = vmatprep.subr.bf16.mxu0 0
  %954 = vmatpush1.bf16.msra.mxu0 0
  %955 = vmatprep.subr.bf16.mxu0 0
  %956 = vmatpush1.bf16.msra.mxu0 0
  %957 = vmatprep.subr.bf16.mxu0 0
  %958 = vmatpush1.bf16.msra.mxu0 0
  %959 = vmatprep.subr.bf16.mxu0 %v842
  %960 = vmatpush1.bf16.msra.mxu0 %v841
  %961 = vmatprep.subr.bf16.mxu0 0
  %962 = vmatpush2.bf16.msra.mxu0 0
  %963 = vmatprep.subr.bf16.mxu0 0
  %964 = vmatpush2.bf16.msra.mxu0 0
  %965 = vmatprep.subr.bf16.mxu0 0
  %966 = vmatpush2.bf16.msra.mxu0 0
  %967 = vmatprep.subr.bf16.mxu0 0
  %968 = vmatpush2.bf16.msra.mxu0 0
  %969 = vmatprep.subr.bf16.mxu0 0
  %970 = vmatpush2.bf16.msra.mxu0 0
  %971 = vmatprep.subr.bf16.mxu0 0
  %972 = vmatpush2.bf16.msra.mxu0 0
  %973 = vmatprep.subr.bf16.mxu0 0
  %974 = vmatpush2.bf16.msra.mxu0 0
  %975 = vmatprep.subr.bf16.mxu0 0
  %976 = vmatpush2.bf16.msra.mxu0 0
  %977 = vmatprep.mubr.bf16.mxu0 0
  %978 = vmatmul.mubr.bf16.gmra.mxu0 %v857
  %v979 = vpop.f32.mrf.mxu0
  %v980 = vadd.f32 %v783, %v979
  %v981 = vpop.f32.mrf.mxu0
  %v982 = vadd.f32 %v787, %v981
  %v983 = vpop.f32.mrf.mxu0
  %v984 = vadd.f32 %v783, %v983
  %v985 = vpop.f32.mrf.mxu0
  %v986 = vadd.f32 %v787, %v985
  %987 = vdwg.mxu0
  %988 = vmatprep.subr.bf16.mxu0 0
  %989 = vmatpush1.bf16.msra.mxu0 0
  %990 = vmatprep.subr.bf16.mxu0 0
  %991 = vmatpush1.bf16.msra.mxu0 0
  %992 = vmatprep.subr.bf16.mxu0 0
  %993 = vmatpush1.bf16.msra.mxu0 0
  %994 = vmatprep.subr.bf16.mxu0 0
  %995 = vmatpush1.bf16.msra.mxu0 0
  %996 = vmatprep.subr.bf16.mxu0 0
  %997 = vmatpush1.bf16.msra.mxu0 0
  %998 = vmatprep.subr.bf16.mxu0 0
  %999 = vmatpush1.bf16.msra.mxu0 0
  %1000 = vmatprep.subr.bf16.mxu0 0
  %1001 = vmatpush1.bf16.msra.mxu0 0
  %1002 = vmatprep.subr.bf16.mxu0 %v844
  %1003 = vmatpush1.bf16.msra.mxu0 %v843
  %1004 = vmatprep.subr.bf16.mxu0 0
  %1005 = vmatpush2.bf16.msra.mxu0 0
  %1006 = vmatprep.subr.bf16.mxu0 0
  %1007 = vmatpush2.bf16.msra.mxu0 0
  %1008 = vmatprep.subr.bf16.mxu0 0
  %1009 = vmatpush2.bf16.msra.mxu0 0
  %1010 = vmatprep.subr.bf16.mxu0 0
  %1011 = vmatpush2.bf16.msra.mxu0 0
  %1012 = vmatprep.subr.bf16.mxu0 0
  %1013 = vmatpush2.bf16.msra.mxu0 0
  %1014 = vmatprep.subr.bf16.mxu0 0
  %1015 = vmatpush2.bf16.msra.mxu0 0
  %1016 = vmatprep.subr.bf16.mxu0 0
  %1017 = vmatpush2.bf16.msra.mxu0 0
  %1018 = vmatprep.subr.bf16.mxu0 0
  %1019 = vmatpush2.bf16.msra.mxu0 0
  %1020 = vmatprep.mubr.bf16.mxu0 0
  %1021 = vmatmul.mubr.bf16.gmra.mxu0 %v857
  %v1022 = vpop.f32.mrf.mxu0
  %v1023 = vadd.f32 %v791, %v1022
  %v1024 = vpop.f32.mrf.mxu0
  %v1025 = vadd.f32 %v795, %v1024
  %v1026 = vpop.f32.mrf.mxu0
  %v1027 = vadd.f32 %v791, %v1026
  %v1028 = vpop.f32.mrf.mxu0
  %v1029 = vadd.f32 %v795, %v1028
  %1030 = vdwg.mxu0
  %1031 = vmatprep.subr.bf16.mxu0 0
  %1032 = vmatpush1.bf16.msra.mxu0 0
  %1033 = vmatprep.subr.bf16.mxu0 0
  %1034 = vmatpush1.bf16.msra.mxu0 0
  %1035 = vmatprep.subr.bf16.mxu0 0
  %1036 = vmatpush1.bf16.msra.mxu0 0
  %1037 = vmatprep.subr.bf16.mxu0 0
  %1038 = vmatpush1.bf16.msra.mxu0 0
  %1039 = vmatprep.subr.bf16.mxu0 0
  %1040 = vmatpush1.bf16.msra.mxu0 0
  %1041 = vmatprep.subr.bf16.mxu0 0
  %1042 = vmatpush1.bf16.msra.mxu0 0
  %1043 = vmatprep.subr.bf16.mxu0 0
  %1044 = vmatpush1.bf16.msra.mxu0 0
  %1045 = vmatprep.subr.bf16.mxu0 0
  %1046 = vmatpush1.bf16.msra.mxu0 %v845
  %1047 = vmatprep.subr.bf16.mxu0 0
  %1048 = vmatpush2.bf16.msra.mxu0 0
  %1049 = vmatprep.subr.bf16.mxu0 0
  %1050 = vmatpush2.bf16.msra.mxu0 0
  %1051 = vmatprep.subr.bf16.mxu0 0
  %1052 = vmatpush2.bf16.msra.mxu0 0
  %1053 = vmatprep.subr.bf16.mxu0 0
  %1054 = vmatpush2.bf16.msra.mxu0 0
  %1055 = vmatprep.subr.bf16.mxu0 0
  %1056 = vmatpush2.bf16.msra.mxu0 0
  %1057 = vmatprep.subr.bf16.mxu0 0
  %1058 = vmatpush2.bf16.msra.mxu0 0
  %1059 = vmatprep.subr.bf16.mxu0 0
  %1060 = vmatpush2.bf16.msra.mxu0 0
  %1061 = vmatprep.subr.bf16.mxu0 0
  %1062 = vmatpush2.bf16.msra.mxu0 0
  %1063 = vmatprep.mubr.bf16.mxu0 0
  %1064 = vmatmul.mubr.bf16.gmra.mxu0 %v857
  %v1065 = vpop.f32.mrf.mxu0
  %v1066 = vadd.f32 %v799, %v1065
  %v1067 = vpop.f32.mrf.mxu0
  %v1068 = vpop.f32.mrf.mxu0
  %v1069 = vadd.f32 %v799, %v1068
  %v1070 = vpop.f32.mrf.mxu0
  %1071 = vdwg.mxu0
  %v1072 = vld [vmem:[%s1] sm:$0x3]
  %v1073 = vpack.c.bf16 %v1072, %v1072
  %v1074 = vld [vmem:[%s5] sm:$0x3]
  %v1075 = vld [vmem:[%s6] sm:$0x1]
  %v1077 = vlaneseq
  %v1078 = vshrl.u32 %v1077, 7
  %v1079 = vsub.s32 0, %v1078
  %v1080 = vrot.slane %v1075, %v1079
  %vm1082 = vcmask 31744
  %v1084 = vsel %vm1082, %v1073, 0
  %vm1086 = vcmask 1041408
  %v1088 = vsel %vm1086, %v1074, 0
  %1090 = vmatprep.subr.bf16.mxu0 0
  %1091 = vmatpush1.bf16.msra.mxu0 0
  %1092 = vmatprep.subr.bf16.mxu0 0
  %1093 = vmatpush1.bf16.msra.mxu0 0
  %1094 = vmatprep.subr.bf16.mxu0 0
  %1095 = vmatpush1.bf16.msra.mxu0 0
  %1096 = vmatprep.subr.bf16.mxu0 0
  %1097 = vmatpush1.bf16.msra.mxu0 0
  %1098 = vmatprep.subr.bf16.mxu0 0
  %1099 = vmatpush1.bf16.msra.mxu0 0
  %1100 = vmatprep.subr.bf16.mxu0 0
  %1101 = vmatpush1.bf16.msra.mxu0 0
  %1102 = vmatprep.subr.bf16.mxu0 0
  %1103 = vmatpush1.bf16.msra.mxu0 0
  %1104 = vmatprep.subr.bf16.mxu0 0
  %1105 = vmatpush1.bf16.msra.mxu0 %v1088
  %1106 = vmatprep.subr.bf16.mxu0 0
  %1107 = vmatpush2.bf16.msra.mxu0 0
  %1108 = vmatprep.subr.bf16.mxu0 0
  %1109 = vmatpush2.bf16.msra.mxu0 0
  %1110 = vmatprep.subr.bf16.mxu0 0
  %1111 = vmatpush2.bf16.msra.mxu0 0
  %1112 = vmatprep.subr.bf16.mxu0 0
  %1113 = vmatpush2.bf16.msra.mxu0 0
  %1114 = vmatprep.subr.bf16.mxu0 0
  %1115 = vmatpush2.bf16.msra.mxu0 0
  %1116 = vmatprep.subr.bf16.mxu0 0
  %1117 = vmatpush2.bf16.msra.mxu0 0
  %1118 = vmatprep.subr.bf16.mxu0 0
  %1119 = vmatpush2.bf16.msra.mxu0 0
  %1120 = vmatprep.subr.bf16.mxu0 0
  %1121 = vmatpush2.bf16.msra.mxu0 0
  %1122 = vmatprep.mubr.bf16.mxu0 0
  %1123 = vmatmul.mubr.bf16.gmra.mxu0 %v1084
  %v1124 = vpop.f32.mrf.mxu0
  %v1125 = vadd.f32 %v1080, %v1124
  %v1126 = vpop.f32.mrf.mxu0
  %v1127 = vpop.f32.mrf.mxu0
  %v1128 = vpop.f32.mrf.mxu0
  %1129 = vdwg.mxu0
  %v1130 = vmax.f32 %v1125, 0.0
  %v1131 = vld [vmem:[%s4] sm:$0x7]
  %v1133 = vlaneseq
  %v1134 = vshrl.u32 %v1133, 7
  %v1135 = vsub.s32 0, %v1134
  %v1136 = vrot.slane %v1131, %v1135
  %v1137 = vlaneseq
  %v1138 = vshrl.u32 %v1137, 7
  %v1139 = vsub.s32 1, %v1138
  %v1140 = vrot.slane %v1131, %v1139
  %v1141 = vlaneseq
  %v1142 = vshrl.u32 %v1141, 7
  %v1143 = vsub.s32 2, %v1142
  %v1144 = vrot.slane %v1131, %v1143
  %s1148 = smul.u32 4, 48
  %s1149 = smul.u32 %s1148, 9
  %s1150 = sshll.u32 %s1149, 4
  %1151 = dma.done [#allocation4], %s1150
  %v1152 = vld [vmem:[#allocation2] sm:$0xff]
  %v1153 = vld [vmem:[#allocation2 + $0x8] sm:$0xff]
  %v1154 = vld [vmem:[#allocation2 + $0x10] sm:$0xff]
  %v1155 = vld [vmem:[#allocation2 + $0x18] sm:$0xff]
  %v1156 = vld [vmem:[#allocation2 + $0x20] sm:$0xf]
  %v1157 = vld [vmem:[#allocation2 + $0x24] sm:$0xff]
  %v1158 = vld [vmem:[#allocation2 + $0x2c] sm:$0xff]
  %v1159 = vld [vmem:[#allocation2 + $0x34] sm:$0xff]
  %v1160 = vld [vmem:[#allocation2 + $0x3c] sm:$0xff]
  %v1161 = vld [vmem:[#allocation2 + $0x44] sm:$0xf]
  %v1162 = vld [vmem:[#allocation2 + $0x48] sm:$0xff]
  %v1163 = vld [vmem:[#allocation2 + $0x50] sm:$0xff]
  %v1164 = vld [vmem:[#allocation2 + $0x58] sm:$0xff]
  %v1165 = vld [vmem:[#allocation2 + $0x60] sm:$0xff]
  %v1166 = vld [vmem:[#allocation2 + $0x68] sm:$0xf]
  %v1167 = vld [vmem:[#allocation2 + $0x6c] sm:$0xff]
  %v1168 = vld [vmem:[#allocation2 + $0x74] sm:$0xff]
  %v1169 = vld [vmem:[#allocation2 + $0x7c] sm:$0xff]
  %v1170 = vld [vmem:[#allocation2 + $0x84] sm:$0xff]
  %v1171 = vld [vmem:[#allocation2 + $0x8c] sm:$0xf]
  %v1172 = vld [vmem:[#allocation2 + $0x90] sm:$0xff]
  %v1173 = vld [vmem:[#allocation2 + $0x98] sm:$0xff]
  %v1174 = vld [vmem:[#allocation2 + $0xa0] sm:$0xff]
  %v1175 = vld [vmem:[#allocation2 + $0xa8] sm:$0xff]
  %v1176 = vld [vmem:[#allocation2 + $0xb0] sm:$0xf]
  %v1177 = vld [vmem:[#allocation2 + $0xb4] sm:$0xff]
  %v1178 = vld [vmem:[#allocation2 + $0xbc] sm:$0xff]
  %v1179 = vld [vmem:[#allocation2 + $0xc4] sm:$0xff]
  %v1180 = vld [vmem:[#allocation2 + $0xcc] sm:$0xff]
  %v1181 = vld [vmem:[#allocation2 + $0xd4] sm:$0xf]
  %v1182 = vld [vmem:[#allocation2 + $0xd8] sm:$0xff]
  %v1183 = vld [vmem:[#allocation2 + $0xe0] sm:$0xff]
  %v1184 = vld [vmem:[#allocation2 + $0xe8] sm:$0xff]
  %v1185 = vld [vmem:[#allocation2 + $0xf0] sm:$0xff]
  %v1186 = vld [vmem:[#allocation2 + $0xf8] sm:$0xf]
  %v1187 = vld [vmem:[#allocation2 + $0xfc] sm:$0xff]
  %v1188 = vld [vmem:[#allocation2 + $0x104] sm:$0xff]
  %v1189 = vld [vmem:[#allocation2 + $0x10c] sm:$0xff]
  %v1190 = vld [vmem:[#allocation2 + $0x114] sm:$0xff]
  %v1191 = vld [vmem:[#allocation2 + $0x11c] sm:$0xf]
  %v1192 = vld [vmem:[#allocation2 + $0x120] sm:$0xff]
  %v1193 = vld [vmem:[#allocation2 + $0x128] sm:$0xff]
  %v1194 = vld [vmem:[#allocation2 + $0x130] sm:$0xff]
  %v1195 = vld [vmem:[#allocation2 + $0x138] sm:$0xff]
  %v1196 = vld [vmem:[#allocation2 + $0x140] sm:$0xf]
  %v1197 = vld [vmem:[#allocation2 + $0x144] sm:$0xff]
  %v1198 = vld [vmem:[#allocation2 + $0x14c] sm:$0xff]
  %v1199 = vld [vmem:[#allocation2 + $0x154] sm:$0xff]
  %v1200 = vld [vmem:[#allocation2 + $0x15c] sm:$0xff]
  %v1201 = vld [vmem:[#allocation2 + $0x164] sm:$0xf]
  %v1202 = vld [vmem:[#allocation2 + $0x168] sm:$0xff]
  %v1203 = vld [vmem:[#allocation2 + $0x170] sm:$0xff]
  %v1204 = vld [vmem:[#allocation2 + $0x178] sm:$0xff]
  %v1205 = vld [vmem:[#allocation2 + $0x180] sm:$0xff]
  %v1206 = vld [vmem:[#allocation2 + $0x188] sm:$0xf]
  %v1207 = vld [vmem:[#allocation2 + $0x18c] sm:$0xff]
  %v1208 = vld [vmem:[#allocation2 + $0x194] sm:$0xff]
  %v1209 = vld [vmem:[#allocation2 + $0x19c] sm:$0xff]
  %v1210 = vld [vmem:[#allocation2 + $0x1a4] sm:$0xff]
  %v1211 = vld [vmem:[#allocation2 + $0x1ac] sm:$0xf]
  %v1212 = vld [vmem:[#allocation2 + $0x1b0] sm:$0xff]
  %v1213 = vld [vmem:[#allocation2 + $0x1b8] sm:$0xff]
  %v1214 = vld [vmem:[#allocation2 + $0x1c0] sm:$0xff]
  %v1215 = vld [vmem:[#allocation2 + $0x1c8] sm:$0xff]
  %v1216 = vld [vmem:[#allocation2 + $0x1d0] sm:$0xf]
  %v1217 = vld [vmem:[#allocation2 + $0x1d4] sm:$0xff]
  %v1218 = vld [vmem:[#allocation2 + $0x1dc] sm:$0xff]
  %v1219 = vld [vmem:[#allocation2 + $0x1e4] sm:$0xff]
  %v1220 = vld [vmem:[#allocation2 + $0x1ec] sm:$0xff]
  %v1221 = vld [vmem:[#allocation2 + $0x1f4] sm:$0xf]
  %v1222 = vld [vmem:[#allocation2 + $0x1f8] sm:$0xff]
  %v1223 = vld [vmem:[#allocation2 + $0x200] sm:$0xff]
  %v1224 = vld [vmem:[#allocation2 + $0x208] sm:$0xff]
  %v1225 = vld [vmem:[#allocation2 + $0x210] sm:$0xff]
  %v1226 = vld [vmem:[#allocation2 + $0x218] sm:$0xf]
  %v1227 = vld [vmem:[#allocation2 + $0x21c] sm:$0xff]
  %v1228 = vld [vmem:[#allocation2 + $0x224] sm:$0xff]
  %v1229 = vld [vmem:[#allocation2 + $0x22c] sm:$0xff]
  %v1230 = vld [vmem:[#allocation2 + $0x234] sm:$0xff]
  %v1231 = vld [vmem:[#allocation2 + $0x23c] sm:$0xf]
  %v1232 = vld [vmem:[#allocation2 + $0x240] sm:$0xff]
  %v1233 = vld [vmem:[#allocation2 + $0x248] sm:$0xff]
  %v1234 = vld [vmem:[#allocation2 + $0x250] sm:$0xff]
  %v1235 = vld [vmem:[#allocation2 + $0x258] sm:$0xff]
  %v1236 = vld [vmem:[#allocation2 + $0x260] sm:$0xf]
  %v1237 = vld [vmem:[#allocation2 + $0x264] sm:$0xff]
  %v1238 = vld [vmem:[#allocation2 + $0x26c] sm:$0xff]
  %v1239 = vld [vmem:[#allocation2 + $0x274] sm:$0xff]
  %v1240 = vld [vmem:[#allocation2 + $0x27c] sm:$0xff]
  %v1241 = vld [vmem:[#allocation2 + $0x284] sm:$0xf]
  %v1242 = vld [vmem:[#allocation2 + $0x288] sm:$0xff]
  %v1243 = vld [vmem:[#allocation2 + $0x290] sm:$0xff]
  %v1244 = vld [vmem:[#allocation2 + $0x298] sm:$0xff]
  %v1245 = vld [vmem:[#allocation2 + $0x2a0] sm:$0xff]
  %v1246 = vld [vmem:[#allocation2 + $0x2a8] sm:$0xf]
  %v1247 = vld [vmem:[#allocation2 + $0x2ac] sm:$0xff]
  %v1248 = vld [vmem:[#allocation2 + $0x2b4] sm:$0xff]
  %v1249 = vld [vmem:[#allocation2 + $0x2bc] sm:$0xff]
  %v1250 = vld [vmem:[#allocation2 + $0x2c4] sm:$0xff]
  %v1251 = vld [vmem:[#allocation2 + $0x2cc] sm:$0xf]
  %v1252 = vld [vmem:[#allocation2 + $0x2d0] sm:$0xff]
  %v1253 = vld [vmem:[#allocation2 + $0x2d8] sm:$0xff]
  %v1254 = vld [vmem:[#allocation2 + $0x2e0] sm:$0xff]
  %v1255 = vld [vmem:[#allocation2 + $0x2e8] sm:$0xff]
  %v1256 = vld [vmem:[#allocation2 + $0x2f0] sm:$0xf]
  %v1257 = vld [vmem:[#allocation2 + $0x2f4] sm:$0xff]
  %v1258 = vld [vmem:[#allocation2 + $0x2fc] sm:$0xff]
  %v1259 = vld [vmem:[#allocation2 + $0x304] sm:$0xff]
  %v1260 = vld [vmem:[#allocation2 + $0x30c] sm:$0xff]
  %v1261 = vld [vmem:[#allocation2 + $0x314] sm:$0xf]
  %v1262 = vld [vmem:[#allocation2 + $0x318] sm:$0xff]
  %v1263 = vld [vmem:[#allocation2 + $0x320] sm:$0xff]
  %v1264 = vld [vmem:[#allocation2 + $0x328] sm:$0xff]
  %v1265 = vld [vmem:[#allocation2 + $0x330] sm:$0xff]
  %v1266 = vld [vmem:[#allocation2 + $0x338] sm:$0xf]
  %v1267 = vld [vmem:[#allocation2 + $0x33c] sm:$0xff]
  %v1268 = vld [vmem:[#allocation2 + $0x344] sm:$0xff]
  %v1269 = vld [vmem:[#allocation2 + $0x34c] sm:$0xff]
  %v1270 = vld [vmem:[#allocation2 + $0x354] sm:$0xff]
  %v1271 = vld [vmem:[#allocation2 + $0x35c] sm:$0xf]
  %v1272 = vld [vmem:[#allocation2 + $0x360] sm:$0xff]
  %v1273 = vld [vmem:[#allocation2 + $0x368] sm:$0xff]
  %v1274 = vld [vmem:[#allocation2 + $0x370] sm:$0xff]
  %v1275 = vld [vmem:[#allocation2 + $0x378] sm:$0xff]
  %v1276 = vld [vmem:[#allocation2 + $0x380] sm:$0xf]
  %v1277 = vld [vmem:[#allocation2 + $0x384] sm:$0xff]
  %v1278 = vld [vmem:[#allocation2 + $0x38c] sm:$0xff]
  %v1279 = vld [vmem:[#allocation2 + $0x394] sm:$0xff]
  %v1280 = vld [vmem:[#allocation2 + $0x39c] sm:$0xff]
  %v1281 = vld [vmem:[#allocation2 + $0x3a4] sm:$0xf]
  %v1282 = vld [vmem:[#allocation2 + $0x3a8] sm:$0xff]
  %v1283 = vld [vmem:[#allocation2 + $0x3b0] sm:$0xff]
  %v1284 = vld [vmem:[#allocation2 + $0x3b8] sm:$0xff]
  %v1285 = vld [vmem:[#allocation2 + $0x3c0] sm:$0xff]
  %v1286 = vld [vmem:[#allocation2 + $0x3c8] sm:$0xf]
  %v1287 = vld [vmem:[#allocation2 + $0x3cc] sm:$0xff]
  %v1288 = vld [vmem:[#allocation2 + $0x3d4] sm:$0xff]
  %v1289 = vld [vmem:[#allocation2 + $0x3dc] sm:$0xff]
  %v1290 = vld [vmem:[#allocation2 + $0x3e4] sm:$0xff]
  %v1291 = vld [vmem:[#allocation2 + $0x3ec] sm:$0xf]
  %v1292 = vld [vmem:[#allocation2 + $0x3f0] sm:$0xff]
  %v1293 = vld [vmem:[#allocation2 + $0x3f8] sm:$0xff]
  %v1294 = vld [vmem:[#allocation2 + $0x400] sm:$0xff]
  %v1295 = vld [vmem:[#allocation2 + $0x408] sm:$0xff]
  %v1296 = vld [vmem:[#allocation2 + $0x410] sm:$0xf]
  %v1297 = vld [vmem:[#allocation2 + $0x414] sm:$0xff]
  %v1298 = vld [vmem:[#allocation2 + $0x41c] sm:$0xff]
  %v1299 = vld [vmem:[#allocation2 + $0x424] sm:$0xff]
  %v1300 = vld [vmem:[#allocation2 + $0x42c] sm:$0xff]
  %v1301 = vld [vmem:[#allocation2 + $0x434] sm:$0xf]
  %v1302 = vld [vmem:[#allocation2 + $0x438] sm:$0xff]
  %v1303 = vld [vmem:[#allocation2 + $0x440] sm:$0xff]
  %v1304 = vld [vmem:[#allocation2 + $0x448] sm:$0xff]
  %v1305 = vld [vmem:[#allocation2 + $0x450] sm:$0xff]
  %v1306 = vld [vmem:[#allocation2 + $0x458] sm:$0xf]
  %v1307 = vld [vmem:[#allocation2 + $0x45c] sm:$0xff]
  %v1308 = vld [vmem:[#allocation2 + $0x464] sm:$0xff]
  %v1309 = vld [vmem:[#allocation2 + $0x46c] sm:$0xff]
  %v1310 = vld [vmem:[#allocation2 + $0x474] sm:$0xff]
  %v1311 = vld [vmem:[#allocation2 + $0x47c] sm:$0xf]
  %v1312 = vld [vmem:[#allocation2 + $0x480] sm:$0xff]
  %v1313 = vld [vmem:[#allocation2 + $0x488] sm:$0xff]
  %v1314 = vld [vmem:[#allocation2 + $0x490] sm:$0xff]
  %v1315 = vld [vmem:[#allocation2 + $0x498] sm:$0xff]
  %v1316 = vld [vmem:[#allocation2 + $0x4a0] sm:$0xf]
  %v1317 = vld [vmem:[#allocation2 + $0x4a4] sm:$0xff]
  %v1318 = vld [vmem:[#allocation2 + $0x4ac] sm:$0xff]
  %v1319 = vld [vmem:[#allocation2 + $0x4b4] sm:$0xff]
  %v1320 = vld [vmem:[#allocation2 + $0x4bc] sm:$0xff]
  %v1321 = vld [vmem:[#allocation2 + $0x4c4] sm:$0xf]
  %v1322 = vld [vmem:[#allocation2 + $0x4c8] sm:$0xff]
  %v1323 = vld [vmem:[#allocation2 + $0x4d0] sm:$0xff]
  %v1324 = vld [vmem:[#allocation2 + $0x4d8] sm:$0xff]
  %v1325 = vld [vmem:[#allocation2 + $0x4e0] sm:$0xff]
  %v1326 = vld [vmem:[#allocation2 + $0x4e8] sm:$0xf]
  %v1327 = vld [vmem:[#allocation2 + $0x4ec] sm:$0xff]
  %v1328 = vld [vmem:[#allocation2 + $0x4f4] sm:$0xff]
  %v1329 = vld [vmem:[#allocation2 + $0x4fc] sm:$0xff]
  %v1330 = vld [vmem:[#allocation2 + $0x504] sm:$0xff]
  %v1331 = vld [vmem:[#allocation2 + $0x50c] sm:$0xf]
  %v1332 = vld [vmem:[#allocation2 + $0x510] sm:$0xff]
  %v1333 = vld [vmem:[#allocation2 + $0x518] sm:$0xff]
  %v1334 = vld [vmem:[#allocation2 + $0x520] sm:$0xff]
  %v1335 = vld [vmem:[#allocation2 + $0x528] sm:$0xff]
  %v1336 = vld [vmem:[#allocation2 + $0x530] sm:$0xf]
  %v1337 = vld [vmem:[#allocation2 + $0x534] sm:$0xff]
  %v1338 = vld [vmem:[#allocation2 + $0x53c] sm:$0xff]
  %v1339 = vld [vmem:[#allocation2 + $0x544] sm:$0xff]
  %v1340 = vld [vmem:[#allocation2 + $0x54c] sm:$0xff]
  %v1341 = vld [vmem:[#allocation2 + $0x554] sm:$0xf]
  %v1342 = vld [vmem:[#allocation2 + $0x558] sm:$0xff]
  %v1343 = vld [vmem:[#allocation2 + $0x560] sm:$0xff]
  %v1344 = vld [vmem:[#allocation2 + $0x568] sm:$0xff]
  %v1345 = vld [vmem:[#allocation2 + $0x570] sm:$0xff]
  %v1346 = vld [vmem:[#allocation2 + $0x578] sm:$0xf]
  %v1347 = vld [vmem:[#allocation2 + $0x57c] sm:$0xff]
  %v1348 = vld [vmem:[#allocation2 + $0x584] sm:$0xff]
  %v1349 = vld [vmem:[#allocation2 + $0x58c] sm:$0xff]
  %v1350 = vld [vmem:[#allocation2 + $0x594] sm:$0xff]
  %v1351 = vld [vmem:[#allocation2 + $0x59c] sm:$0xf]
  %v1352 = vld [vmem:[#allocation2 + $0x5a0] sm:$0xff]
  %v1353 = vld [vmem:[#allocation2 + $0x5a8] sm:$0xff]
  %v1354 = vld [vmem:[#allocation2 + $0x5b0] sm:$0xff]
  %v1355 = vld [vmem:[#allocation2 + $0x5b8] sm:$0xff]
  %v1356 = vld [vmem:[#allocation2 + $0x5c0] sm:$0xf]
  %v1357 = vld [vmem:[#allocation2 + $0x5c4] sm:$0xff]
  %v1358 = vld [vmem:[#allocation2 + $0x5cc] sm:$0xff]
  %v1359 = vld [vmem:[#allocation2 + $0x5d4] sm:$0xff]
  %v1360 = vld [vmem:[#allocation2 + $0x5dc] sm:$0xff]
  %v1361 = vld [vmem:[#allocation2 + $0x5e4] sm:$0xf]
  %v1362 = vld [vmem:[#allocation2 + $0x5e8] sm:$0xff]
  %v1363 = vld [vmem:[#allocation2 + $0x5f0] sm:$0xff]
  %v1364 = vld [vmem:[#allocation2 + $0x5f8] sm:$0xff]
  %v1365 = vld [vmem:[#allocation2 + $0x600] sm:$0xff]
  %v1366 = vld [vmem:[#allocation2 + $0x608] sm:$0xf]
  %v1367 = vld [vmem:[#allocation2 + $0x60c] sm:$0xff]
  %v1368 = vld [vmem:[#allocation2 + $0x614] sm:$0xff]
  %v1369 = vld [vmem:[#allocation2 + $0x61c] sm:$0xff]
  %v1370 = vld [vmem:[#allocation2 + $0x624] sm:$0xff]
  %v1371 = vld [vmem:[#allocation2 + $0x62c] sm:$0xf]
  %v1372 = vld [vmem:[#allocation2 + $0x630] sm:$0xff]
  %v1373 = vld [vmem:[#allocation2 + $0x638] sm:$0xff]
  %v1374 = vld [vmem:[#allocation2 + $0x640] sm:$0xff]
  %v1375 = vld [vmem:[#allocation2 + $0x648] sm:$0xff]
  %v1376 = vld [vmem:[#allocation2 + $0x650] sm:$0xf]
  %v1377 = vld [vmem:[#allocation2 + $0x654] sm:$0xff]
  %v1378 = vld [vmem:[#allocation2 + $0x65c] sm:$0xff]
  %v1379 = vld [vmem:[#allocation2 + $0x664] sm:$0xff]
  %v1380 = vld [vmem:[#allocation2 + $0x66c] sm:$0xff]
  %v1381 = vld [vmem:[#allocation2 + $0x674] sm:$0xf]
  %v1382 = vld [vmem:[#allocation2 + $0x678] sm:$0xff]
  %v1383 = vld [vmem:[#allocation2 + $0x680] sm:$0xff]
  %v1384 = vld [vmem:[#allocation2 + $0x688] sm:$0xff]
  %v1385 = vld [vmem:[#allocation2 + $0x690] sm:$0xff]
  %v1386 = vld [vmem:[#allocation2 + $0x698] sm:$0xf]
  %v1387 = vld [vmem:[#allocation2 + $0x69c] sm:$0xff]
  %v1388 = vld [vmem:[#allocation2 + $0x6a4] sm:$0xff]
  %v1389 = vld [vmem:[#allocation2 + $0x6ac] sm:$0xff]
  %v1390 = vld [vmem:[#allocation2 + $0x6b4] sm:$0xff]
  %v1391 = vld [vmem:[#allocation2 + $0x6bc] sm:$0xf]
  %v1632 = vunpack.c.l.b16 %v1152
  %v1633 = vunpack.c.h.b16 %v1152
  %v1634 = vunpack.c.l.b16 %v1153
  %v1635 = vunpack.c.h.b16 %v1153
  %v1636 = vunpack.c.l.b16 %v1154
  %v1637 = vunpack.c.h.b16 %v1154
  %v1638 = vunpack.c.l.b16 %v1155
  %v1639 = vunpack.c.h.b16 %v1155
  %v1640 = vunpack.c.l.b16 %v1156
  %v1641 = vunpack.c.l.b16 %v1157
  %v1642 = vunpack.c.h.b16 %v1157
  %v1643 = vunpack.c.l.b16 %v1158
  %v1644 = vunpack.c.h.b16 %v1158
  %v1645 = vunpack.c.l.b16 %v1159
  %v1646 = vunpack.c.h.b16 %v1159
  %v1647 = vunpack.c.l.b16 %v1160
  %v1648 = vunpack.c.h.b16 %v1160
  %v1649 = vunpack.c.l.b16 %v1161
  %v1650 = vunpack.c.l.b16 %v1162
  %v1651 = vunpack.c.h.b16 %v1162
  %v1652 = vunpack.c.l.b16 %v1163
  %v1653 = vunpack.c.h.b16 %v1163
  %v1654 = vunpack.c.l.b16 %v1164
  %v1655 = vunpack.c.h.b16 %v1164
  %v1656 = vunpack.c.l.b16 %v1165
  %v1657 = vunpack.c.h.b16 %v1165
  %v1658 = vunpack.c.l.b16 %v1166
  %v1659 = vunpack.c.l.b16 %v1167
  %v1660 = vunpack.c.h.b16 %v1167
  %v1661 = vunpack.c.l.b16 %v1168
  %v1662 = vunpack.c.h.b16 %v1168
  %v1663 = vunpack.c.l.b16 %v1169
  %v1664 = vunpack.c.h.b16 %v1169
  %v1665 = vunpack.c.l.b16 %v1170
  %v1666 = vunpack.c.h.b16 %v1170
  %v1667 = vunpack.c.l.b16 %v1171
  %v1668 = vunpack.c.l.b16 %v1172
  %v1669 = vunpack.c.h.b16 %v1172
  %v1670 = vunpack.c.l.b16 %v1173
  %v1671 = vunpack.c.h.b16 %v1173
  %v1672 = vunpack.c.l.b16 %v1174
  %v1673 = vunpack.c.h.b16 %v1174
  %v1674 = vunpack.c.l.b16 %v1175
  %v1675 = vunpack.c.h.b16 %v1175
  %v1676 = vunpack.c.l.b16 %v1176
  %v1677 = vunpack.c.l.b16 %v1177
  %v1678 = vunpack.c.h.b16 %v1177
  %v1679 = vunpack.c.l.b16 %v1178
  %v1680 = vunpack.c.h.b16 %v1178
  %v1681 = vunpack.c.l.b16 %v1179
  %v1682 = vunpack.c.h.b16 %v1179
  %v1683 = vunpack.c.l.b16 %v1180
  %v1684 = vunpack.c.h.b16 %v1180
  %v1685 = vunpack.c.l.b16 %v1181
  %v1686 = vunpack.c.l.b16 %v1182
  %v1687 = vunpack.c.h.b16 %v1182
  %v1688 = vunpack.c.l.b16 %v1183
  %v1689 = vunpack.c.h.b16 %v1183
  %v1690 = vunpack.c.l.b16 %v1184
  %v1691 = vunpack.c.h.b16 %v1184
  %v1692 = vunpack.c.l.b16 %v1185
  %v1693 = vunpack.c.h.b16 %v1185
  %v1694 = vunpack.c.l.b16 %v1186
  %v1695 = vunpack.c.l.b16 %v1187
  %v1696 = vunpack.c.h.b16 %v1187
  %v1697 = vunpack.c.l.b16 %v1188
  %v1698 = vunpack.c.h.b16 %v1188
  %v1699 = vunpack.c.l.b16 %v1189
  %v1700 = vunpack.c.h.b16 %v1189
  %v1701 = vunpack.c.l.b16 %v1190
  %v1702 = vunpack.c.h.b16 %v1190
  %v1703 = vunpack.c.l.b16 %v1191
  %v1704 = vunpack.c.l.b16 %v1192
  %v1705 = vunpack.c.h.b16 %v1192
  %v1706 = vunpack.c.l.b16 %v1193
  %v1707 = vunpack.c.h.b16 %v1193
  %v1708 = vunpack.c.l.b16 %v1194
  %v1709 = vunpack.c.h.b16 %v1194
  %v1710 = vunpack.c.l.b16 %v1195
  %v1711 = vunpack.c.h.b16 %v1195
  %v1712 = vunpack.c.l.b16 %v1196
  %v1713 = vunpack.c.l.b16 %v1197
  %v1714 = vunpack.c.h.b16 %v1197
  %v1715 = vunpack.c.l.b16 %v1198
  %v1716 = vunpack.c.h.b16 %v1198
  %v1717 = vunpack.c.l.b16 %v1199
  %v1718 = vunpack.c.h.b16 %v1199
  %v1719 = vunpack.c.l.b16 %v1200
  %v1720 = vunpack.c.h.b16 %v1200
  %v1721 = vunpack.c.l.b16 %v1201
  %v1722 = vunpack.c.l.b16 %v1202
  %v1723 = vunpack.c.h.b16 %v1202
  %v1724 = vunpack.c.l.b16 %v1203
  %v1725 = vunpack.c.h.b16 %v1203
  %v1726 = vunpack.c.l.b16 %v1204
  %v1727 = vunpack.c.h.b16 %v1204
  %v1728 = vunpack.c.l.b16 %v1205
  %v1729 = vunpack.c.h.b16 %v1205
  %v1730 = vunpack.c.l.b16 %v1206
  %v1731 = vunpack.c.l.b16 %v1207
  %v1732 = vunpack.c.h.b16 %v1207
  %v1733 = vunpack.c.l.b16 %v1208
  %v1734 = vunpack.c.h.b16 %v1208
  %v1735 = vunpack.c.l.b16 %v1209
  %v1736 = vunpack.c.h.b16 %v1209
  %v1737 = vunpack.c.l.b16 %v1210
  %v1738 = vunpack.c.h.b16 %v1210
  %v1739 = vunpack.c.l.b16 %v1211
  %v1740 = vunpack.c.l.b16 %v1212
  %v1741 = vunpack.c.h.b16 %v1212
  %v1742 = vunpack.c.l.b16 %v1213
  %v1743 = vunpack.c.h.b16 %v1213
  %v1744 = vunpack.c.l.b16 %v1214
  %v1745 = vunpack.c.h.b16 %v1214
  %v1746 = vunpack.c.l.b16 %v1215
  %v1747 = vunpack.c.h.b16 %v1215
  %v1748 = vunpack.c.l.b16 %v1216
  %v1749 = vunpack.c.l.b16 %v1217
  %v1750 = vunpack.c.h.b16 %v1217
  %v1751 = vunpack.c.l.b16 %v1218
  %v1752 = vunpack.c.h.b16 %v1218
  %v1753 = vunpack.c.l.b16 %v1219
  %v1754 = vunpack.c.h.b16 %v1219
  %v1755 = vunpack.c.l.b16 %v1220
  %v1756 = vunpack.c.h.b16 %v1220
  %v1757 = vunpack.c.l.b16 %v1221
  %v1758 = vunpack.c.l.b16 %v1222
  %v1759 = vunpack.c.h.b16 %v1222
  %v1760 = vunpack.c.l.b16 %v1223
  %v1761 = vunpack.c.h.b16 %v1223
  %v1762 = vunpack.c.l.b16 %v1224
  %v1763 = vunpack.c.h.b16 %v1224
  %v1764 = vunpack.c.l.b16 %v1225
  %v1765 = vunpack.c.h.b16 %v1225
  %v1766 = vunpack.c.l.b16 %v1226
  %v1767 = vunpack.c.l.b16 %v1227
  %v1768 = vunpack.c.h.b16 %v1227
  %v1769 = vunpack.c.l.b16 %v1228
  %v1770 = vunpack.c.h.b16 %v1228
  %v1771 = vunpack.c.l.b16 %v1229
  %v1772 = vunpack.c.h.b16 %v1229
  %v1773 = vunpack.c.l.b16 %v1230
  %v1774 = vunpack.c.h.b16 %v1230
  %v1775 = vunpack.c.l.b16 %v1231
  %v1776 = vunpack.c.l.b16 %v1232
  %v1777 = vunpack.c.h.b16 %v1232
  %v1778 = vunpack.c.l.b16 %v1233
  %v1779 = vunpack.c.h.b16 %v1233
  %v1780 = vunpack.c.l.b16 %v1234
  %v1781 = vunpack.c.h.b16 %v1234
  %v1782 = vunpack.c.l.b16 %v1235
  %v1783 = vunpack.c.h.b16 %v1235
  %v1784 = vunpack.c.l.b16 %v1236
  %v1785 = vunpack.c.l.b16 %v1237
  %v1786 = vunpack.c.h.b16 %v1237
  %v1787 = vunpack.c.l.b16 %v1238
  %v1788 = vunpack.c.h.b16 %v1238
  %v1789 = vunpack.c.l.b16 %v1239
  %v1790 = vunpack.c.h.b16 %v1239
  %v1791 = vunpack.c.l.b16 %v1240
  %v1792 = vunpack.c.h.b16 %v1240
  %v1793 = vunpack.c.l.b16 %v1241
  %v1794 = vunpack.c.l.b16 %v1242
  %v1795 = vunpack.c.h.b16 %v1242
  %v1796 = vunpack.c.l.b16 %v1243
  %v1797 = vunpack.c.h.b16 %v1243
  %v1798 = vunpack.c.l.b16 %v1244
  %v1799 = vunpack.c.h.b16 %v1244
  %v1800 = vunpack.c.l.b16 %v1245
  %v1801 = vunpack.c.h.b16 %v1245
  %v1802 = vunpack.c.l.b16 %v1246
  %v1803 = vunpack.c.l.b16 %v1247
  %v1804 = vunpack.c.h.b16 %v1247
  %v1805 = vunpack.c.l.b16 %v1248
  %v1806 = vunpack.c.h.b16 %v1248
  %v1807 = vunpack.c.l.b16 %v1249
  %v1808 = vunpack.c.h.b16 %v1249
  %v1809 = vunpack.c.l.b16 %v1250
  %v1810 = vunpack.c.h.b16 %v1250
  %v1811 = vunpack.c.l.b16 %v1251
  %v1812 = vunpack.c.l.b16 %v1252
  %v1813 = vunpack.c.h.b16 %v1252
  %v1814 = vunpack.c.l.b16 %v1253
  %v1815 = vunpack.c.h.b16 %v1253
  %v1816 = vunpack.c.l.b16 %v1254
  %v1817 = vunpack.c.h.b16 %v1254
  %v1818 = vunpack.c.l.b16 %v1255
  %v1819 = vunpack.c.h.b16 %v1255
  %v1820 = vunpack.c.l.b16 %v1256
  %v1821 = vunpack.c.l.b16 %v1257
  %v1822 = vunpack.c.h.b16 %v1257
  %v1823 = vunpack.c.l.b16 %v1258
  %v1824 = vunpack.c.h.b16 %v1258
  %v1825 = vunpack.c.l.b16 %v1259
  %v1826 = vunpack.c.h.b16 %v1259
  %v1827 = vunpack.c.l.b16 %v1260
  %v1828 = vunpack.c.h.b16 %v1260
  %v1829 = vunpack.c.l.b16 %v1261
  %v1830 = vunpack.c.l.b16 %v1262
  %v1831 = vunpack.c.h.b16 %v1262
  %v1832 = vunpack.c.l.b16 %v1263
  %v1833 = vunpack.c.h.b16 %v1263
  %v1834 = vunpack.c.l.b16 %v1264
  %v1835 = vunpack.c.h.b16 %v1264
  %v1836 = vunpack.c.l.b16 %v1265
  %v1837 = vunpack.c.h.b16 %v1265
  %v1838 = vunpack.c.l.b16 %v1266
  %v1839 = vunpack.c.l.b16 %v1267
  %v1840 = vunpack.c.h.b16 %v1267
  %v1841 = vunpack.c.l.b16 %v1268
  %v1842 = vunpack.c.h.b16 %v1268
  %v1843 = vunpack.c.l.b16 %v1269
  %v1844 = vunpack.c.h.b16 %v1269
  %v1845 = vunpack.c.l.b16 %v1270
  %v1846 = vunpack.c.h.b16 %v1270
  %v1847 = vunpack.c.l.b16 %v1271
  %v1848 = vunpack.c.l.b16 %v1272
  %v1849 = vunpack.c.h.b16 %v1272
  %v1850 = vunpack.c.l.b16 %v1273
  %v1851 = vunpack.c.h.b16 %v1273
  %v1852 = vunpack.c.l.b16 %v1274
  %v1853 = vunpack.c.h.b16 %v1274
  %v1854 = vunpack.c.l.b16 %v1275
  %v1855 = vunpack.c.h.b16 %v1275
  %v1856 = vunpack.c.l.b16 %v1276
  %v1857 = vunpack.c.l.b16 %v1277
  %v1858 = vunpack.c.h.b16 %v1277
  %v1859 = vunpack.c.l.b16 %v1278
  %v1860 = vunpack.c.h.b16 %v1278
  %v1861 = vunpack.c.l.b16 %v1279
  %v1862 = vunpack.c.h.b16 %v1279
  %v1863 = vunpack.c.l.b16 %v1280
  %v1864 = vunpack.c.h.b16 %v1280
  %v1865 = vunpack.c.l.b16 %v1281
  %v1866 = vunpack.c.l.b16 %v1282
  %v1867 = vunpack.c.h.b16 %v1282
  %v1868 = vunpack.c.l.b16 %v1283
  %v1869 = vunpack.c.h.b16 %v1283
  %v1870 = vunpack.c.l.b16 %v1284
  %v1871 = vunpack.c.h.b16 %v1284
  %v1872 = vunpack.c.l.b16 %v1285
  %v1873 = vunpack.c.h.b16 %v1285
  %v1874 = vunpack.c.l.b16 %v1286
  %v1875 = vunpack.c.l.b16 %v1287
  %v1876 = vunpack.c.h.b16 %v1287
  %v1877 = vunpack.c.l.b16 %v1288
  %v1878 = vunpack.c.h.b16 %v1288
  %v1879 = vunpack.c.l.b16 %v1289
  %v1880 = vunpack.c.h.b16 %v1289
  %v1881 = vunpack.c.l.b16 %v1290
  %v1882 = vunpack.c.h.b16 %v1290
  %v1883 = vunpack.c.l.b16 %v1291
  %v1884 = vunpack.c.l.b16 %v1292
  %v1885 = vunpack.c.h.b16 %v1292
  %v1886 = vunpack.c.l.b16 %v1293
  %v1887 = vunpack.c.h.b16 %v1293
  %v1888 = vunpack.c.l.b16 %v1294
  %v1889 = vunpack.c.h.b16 %v1294
  %v1890 = vunpack.c.l.b16 %v1295
  %v1891 = vunpack.c.h.b16 %v1295
  %v1892 = vunpack.c.l.b16 %v1296
  %v1893 = vunpack.c.l.b16 %v1297
  %v1894 = vunpack.c.h.b16 %v1297
  %v1895 = vunpack.c.l.b16 %v1298
  %v1896 = vunpack.c.h.b16 %v1298
  %v1897 = vunpack.c.l.b16 %v1299
  %v1898 = vunpack.c.h.b16 %v1299
  %v1899 = vunpack.c.l.b16 %v1300
  %v1900 = vunpack.c.h.b16 %v1300
  %v1901 = vunpack.c.l.b16 %v1301
  %v1902 = vunpack.c.l.b16 %v1302
  %v1903 = vunpack.c.h.b16 %v1302
  %v1904 = vunpack.c.l.b16 %v1303
  %v1905 = vunpack.c.h.b16 %v1303
  %v1906 = vunpack.c.l.b16 %v1304
  %v1907 = vunpack.c.h.b16 %v1304
  %v1908 = vunpack.c.l.b16 %v1305
  %v1909 = vunpack.c.h.b16 %v1305
  %v1910 = vunpack.c.l.b16 %v1306
  %v1911 = vunpack.c.l.b16 %v1307
  %v1912 = vunpack.c.h.b16 %v1307
  %v1913 = vunpack.c.l.b16 %v1308
  %v1914 = vunpack.c.h.b16 %v1308
  %v1915 = vunpack.c.l.b16 %v1309
  %v1916 = vunpack.c.h.b16 %v1309
  %v1917 = vunpack.c.l.b16 %v1310
  %v1918 = vunpack.c.h.b16 %v1310
  %v1919 = vunpack.c.l.b16 %v1311
  %v1920 = vunpack.c.l.b16 %v1312
  %v1921 = vunpack.c.h.b16 %v1312
  %v1922 = vunpack.c.l.b16 %v1313
  %v1923 = vunpack.c.h.b16 %v1313
  %v1924 = vunpack.c.l.b16 %v1314
  %v1925 = vunpack.c.h.b16 %v1314
  %v1926 = vunpack.c.l.b16 %v1315
  %v1927 = vunpack.c.h.b16 %v1315
  %v1928 = vunpack.c.l.b16 %v1316
  %v1929 = vunpack.c.l.b16 %v1317
  %v1930 = vunpack.c.h.b16 %v1317
  %v1931 = vunpack.c.l.b16 %v1318
  %v1932 = vunpack.c.h.b16 %v1318
  %v1933 = vunpack.c.l.b16 %v1319
  %v1934 = vunpack.c.h.b16 %v1319
  %v1935 = vunpack.c.l.b16 %v1320
  %v1936 = vunpack.c.h.b16 %v1320
  %v1937 = vunpack.c.l.b16 %v1321
  %v1938 = vunpack.c.l.b16 %v1322
  %v1939 = vunpack.c.h.b16 %v1322
  %v1940 = vunpack.c.l.b16 %v1323
  %v1941 = vunpack.c.h.b16 %v1323
  %v1942 = vunpack.c.l.b16 %v1324
  %v1943 = vunpack.c.h.b16 %v1324
  %v1944 = vunpack.c.l.b16 %v1325
  %v1945 = vunpack.c.h.b16 %v1325
  %v1946 = vunpack.c.l.b16 %v1326
  %v1947 = vunpack.c.l.b16 %v1327
  %v1948 = vunpack.c.h.b16 %v1327
  %v1949 = vunpack.c.l.b16 %v1328
  %v1950 = vunpack.c.h.b16 %v1328
  %v1951 = vunpack.c.l.b16 %v1329
  %v1952 = vunpack.c.h.b16 %v1329
  %v1953 = vunpack.c.l.b16 %v1330
  %v1954 = vunpack.c.h.b16 %v1330
  %v1955 = vunpack.c.l.b16 %v1331
  %v1956 = vunpack.c.l.b16 %v1332
  %v1957 = vunpack.c.h.b16 %v1332
  %v1958 = vunpack.c.l.b16 %v1333
  %v1959 = vunpack.c.h.b16 %v1333
  %v1960 = vunpack.c.l.b16 %v1334
  %v1961 = vunpack.c.h.b16 %v1334
  %v1962 = vunpack.c.l.b16 %v1335
  %v1963 = vunpack.c.h.b16 %v1335
  %v1964 = vunpack.c.l.b16 %v1336
  %v1965 = vunpack.c.l.b16 %v1337
  %v1966 = vunpack.c.h.b16 %v1337
  %v1967 = vunpack.c.l.b16 %v1338
  %v1968 = vunpack.c.h.b16 %v1338
  %v1969 = vunpack.c.l.b16 %v1339
  %v1970 = vunpack.c.h.b16 %v1339
  %v1971 = vunpack.c.l.b16 %v1340
  %v1972 = vunpack.c.h.b16 %v1340
  %v1973 = vunpack.c.l.b16 %v1341
  %v1974 = vunpack.c.l.b16 %v1342
  %v1975 = vunpack.c.h.b16 %v1342
  %v1976 = vunpack.c.l.b16 %v1343
  %v1977 = vunpack.c.h.b16 %v1343
  %v1978 = vunpack.c.l.b16 %v1344
  %v1979 = vunpack.c.h.b16 %v1344
  %v1980 = vunpack.c.l.b16 %v1345
  %v1981 = vunpack.c.h.b16 %v1345
  %v1982 = vunpack.c.l.b16 %v1346
  %v1983 = vunpack.c.l.b16 %v1347
  %v1984 = vunpack.c.h.b16 %v1347
  %v1985 = vunpack.c.l.b16 %v1348
  %v1986 = vunpack.c.h.b16 %v1348
  %v1987 = vunpack.c.l.b16 %v1349
  %v1988 = vunpack.c.h.b16 %v1349
  %v1989 = vunpack.c.l.b16 %v1350
  %v1990 = vunpack.c.h.b16 %v1350
  %v1991 = vunpack.c.l.b16 %v1351
  %v1992 = vunpack.c.l.b16 %v1352
  %v1993 = vunpack.c.h.b16 %v1352
  %v1994 = vunpack.c.l.b16 %v1353
  %v1995 = vunpack.c.h.b16 %v1353
  %v1996 = vunpack.c.l.b16 %v1354
  %v1997 = vunpack.c.h.b16 %v1354
  %v1998 = vunpack.c.l.b16 %v1355
  %v1999 = vunpack.c.h.b16 %v1355
  %v2000 = vunpack.c.l.b16 %v1356
  %v2001 = vunpack.c.l.b16 %v1357
  %v2002 = vunpack.c.h.b16 %v1357
  %v2003 = vunpack.c.l.b16 %v1358
  %v2004 = vunpack.c.h.b16 %v1358
  %v2005 = vunpack.c.l.b16 %v1359
  %v2006 = vunpack.c.h.b16 %v1359
  %v2007 = vunpack.c.l.b16 %v1360
  %v2008 = vunpack.c.h.b16 %v1360
  %v2009 = vunpack.c.l.b16 %v1361
  %v2010 = vunpack.c.l.b16 %v1362
  %v2011 = vunpack.c.h.b16 %v1362
  %v2012 = vunpack.c.l.b16 %v1363
  %v2013 = vunpack.c.h.b16 %v1363
  %v2014 = vunpack.c.l.b16 %v1364
  %v2015 = vunpack.c.h.b16 %v1364
  %v2016 = vunpack.c.l.b16 %v1365
  %v2017 = vunpack.c.h.b16 %v1365
  %v2018 = vunpack.c.l.b16 %v1366
  %v2019 = vunpack.c.l.b16 %v1367
  %v2020 = vunpack.c.h.b16 %v1367
  %v2021 = vunpack.c.l.b16 %v1368
  %v2022 = vunpack.c.h.b16 %v1368
  %v2023 = vunpack.c.l.b16 %v1369
  %v2024 = vunpack.c.h.b16 %v1369
  %v2025 = vunpack.c.l.b16 %v1370
  %v2026 = vunpack.c.h.b16 %v1370
  %v2027 = vunpack.c.l.b16 %v1371
  %v2028 = vunpack.c.l.b16 %v1372
  %v2029 = vunpack.c.h.b16 %v1372
  %v2030 = vunpack.c.l.b16 %v1373
  %v2031 = vunpack.c.h.b16 %v1373
  %v2032 = vunpack.c.l.b16 %v1374
  %v2033 = vunpack.c.h.b16 %v1374
  %v2034 = vunpack.c.l.b16 %v1375
  %v2035 = vunpack.c.h.b16 %v1375
  %v2036 = vunpack.c.l.b16 %v1376
  %v2037 = vunpack.c.l.b16 %v1377
  %v2038 = vunpack.c.h.b16 %v1377
  %v2039 = vunpack.c.l.b16 %v1378
  %v2040 = vunpack.c.h.b16 %v1378
  %v2041 = vunpack.c.l.b16 %v1379
  %v2042 = vunpack.c.h.b16 %v1379
  %v2043 = vunpack.c.l.b16 %v1380
  %v2044 = vunpack.c.h.b16 %v1380
  %v2045 = vunpack.c.l.b16 %v1381
  %v2046 = vunpack.c.l.b16 %v1382
  %v2047 = vunpack.c.h.b16 %v1382
  %v2048 = vunpack.c.l.b16 %v1383
  %v2049 = vunpack.c.h.b16 %v1383
  %v2050 = vunpack.c.l.b16 %v1384
  %v2051 = vunpack.c.h.b16 %v1384
  %v2052 = vunpack.c.l.b16 %v1385
  %v2053 = vunpack.c.h.b16 %v1385
  %v2054 = vunpack.c.l.b16 %v1386
  %v2055 = vunpack.c.l.b16 %v1387
  %v2056 = vunpack.c.h.b16 %v1387
  %v2057 = vunpack.c.l.b16 %v1388
  %v2058 = vunpack.c.h.b16 %v1388
  %v2059 = vunpack.c.l.b16 %v1389
  %v2060 = vunpack.c.h.b16 %v1389
  %v2061 = vunpack.c.l.b16 %v1390
  %v2062 = vunpack.c.h.b16 %v1390
  %v2063 = vunpack.c.l.b16 %v1391
  %v2064 = vpack.c.b16 %v1641, %v1632
  %v2065 = vpack.c.b16 %v1642, %v1633
  %v2066 = vpack.c.b16 %v1643, %v1634
  %v2067 = vpack.c.b16 %v1644, %v1635
  %v2068 = vpack.c.b16 %v1645, %v1636
  %v2069 = vpack.c.b16 %v1646, %v1637
  %v2070 = vpack.c.b16 %v1647, %v1638
  %v2071 = vpack.c.b16 %v1648, %v1639
  %v2072 = vpack.c.b16 %v1649, %v1640
  %v2073 = vpack.c.b16 %v1659, %v1650
  %v2074 = vpack.c.b16 %v1660, %v1651
  %v2075 = vpack.c.b16 %v1661, %v1652
  %v2076 = vpack.c.b16 %v1662, %v1653
  %v2077 = vpack.c.b16 %v1663, %v1654
  %v2078 = vpack.c.b16 %v1664, %v1655
  %v2079 = vpack.c.b16 %v1665, %v1656
  %v2080 = vpack.c.b16 %v1666, %v1657
  %v2081 = vpack.c.b16 %v1667, %v1658
  %v2082 = vpack.c.b16 %v1677, %v1668
  %v2083 = vpack.c.b16 %v1678, %v1669
  %v2084 = vpack.c.b16 %v1679, %v1670
  %v2085 = vpack.c.b16 %v1680, %v1671
  %v2086 = vpack.c.b16 %v1681, %v1672
  %v2087 = vpack.c.b16 %v1682, %v1673
  %v2088 = vpack.c.b16 %v1683, %v1674
  %v2089 = vpack.c.b16 %v1684, %v1675
  %v2090 = vpack.c.b16 %v1685, %v1676
  %v2091 = vpack.c.b16 %v1695, %v1686
  %v2092 = vpack.c.b16 %v1696, %v1687
  %v2093 = vpack.c.b16 %v1697, %v1688
  %v2094 = vpack.c.b16 %v1698, %v1689
  %v2095 = vpack.c.b16 %v1699, %v1690
  %v2096 = vpack.c.b16 %v1700, %v1691
  %v2097 = vpack.c.b16 %v1701, %v1692
  %v2098 = vpack.c.b16 %v1702, %v1693
  %v2099 = vpack.c.b16 %v1703, %v1694
  %v2100 = vpack.c.b16 %v1713, %v1704
  %v2101 = vpack.c.b16 %v1714, %v1705
  %v2102 = vpack.c.b16 %v1715, %v1706
  %v2103 = vpack.c.b16 %v1716, %v1707
  %v2104 = vpack.c.b16 %v1717, %v1708
  %v2105 = vpack.c.b16 %v1718, %v1709
  %v2106 = vpack.c.b16 %v1719, %v1710
  %v2107 = vpack.c.b16 %v1720, %v1711
  %v2108 = vpack.c.b16 %v1721, %v1712
  %v2109 = vpack.c.b16 %v1731, %v1722
  %v2110 = vpack.c.b16 %v1732, %v1723
  %v2111 = vpack.c.b16 %v1733, %v1724
  %v2112 = vpack.c.b16 %v1734, %v1725
  %v2113 = vpack.c.b16 %v1735, %v1726
  %v2114 = vpack.c.b16 %v1736, %v1727
  %v2115 = vpack.c.b16 %v1737, %v1728
  %v2116 = vpack.c.b16 %v1738, %v1729
  %v2117 = vpack.c.b16 %v1739, %v1730
  %v2118 = vpack.c.b16 %v1749, %v1740
  %v2119 = vpack.c.b16 %v1750, %v1741
  %v2120 = vpack.c.b16 %v1751, %v1742
  %v2121 = vpack.c.b16 %v1752, %v1743
  %v2122 = vpack.c.b16 %v1753, %v1744
  %v2123 = vpack.c.b16 %v1754, %v1745
  %v2124 = vpack.c.b16 %v1755, %v1746
  %v2125 = vpack.c.b16 %v1756, %v1747
  %v2126 = vpack.c.b16 %v1757, %v1748
  %v2127 = vpack.c.b16 %v1767, %v1758
  %v2128 = vpack.c.b16 %v1768, %v1759
  %v2129 = vpack.c.b16 %v1769, %v1760
  %v2130 = vpack.c.b16 %v1770, %v1761
  %v2131 = vpack.c.b16 %v1771, %v1762
  %v2132 = vpack.c.b16 %v1772, %v1763
  %v2133 = vpack.c.b16 %v1773, %v1764
  %v2134 = vpack.c.b16 %v1774, %v1765
  %v2135 = vpack.c.b16 %v1775, %v1766
  %v2136 = vpack.c.b16 %v1785, %v1776
  %v2137 = vpack.c.b16 %v1786, %v1777
  %v2138 = vpack.c.b16 %v1787, %v1778
  %v2139 = vpack.c.b16 %v1788, %v1779
  %v2140 = vpack.c.b16 %v1789, %v1780
  %v2141 = vpack.c.b16 %v1790, %v1781
  %v2142 = vpack.c.b16 %v1791, %v1782
  %v2143 = vpack.c.b16 %v1792, %v1783
  %v2144 = vpack.c.b16 %v1793, %v1784
  %v2145 = vpack.c.b16 %v1803, %v1794
  %v2146 = vpack.c.b16 %v1804, %v1795
  %v2147 = vpack.c.b16 %v1805, %v1796
  %v2148 = vpack.c.b16 %v1806, %v1797
  %v2149 = vpack.c.b16 %v1807, %v1798
  %v2150 = vpack.c.b16 %v1808, %v1799
  %v2151 = vpack.c.b16 %v1809, %v1800
  %v2152 = vpack.c.b16 %v1810, %v1801
  %v2153 = vpack.c.b16 %v1811, %v1802
  %v2154 = vpack.c.b16 %v1821, %v1812
  %v2155 = vpack.c.b16 %v1822, %v1813
  %v2156 = vpack.c.b16 %v1823, %v1814
  %v2157 = vpack.c.b16 %v1824, %v1815
  %v2158 = vpack.c.b16 %v1825, %v1816
  %v2159 = vpack.c.b16 %v1826, %v1817
  %v2160 = vpack.c.b16 %v1827, %v1818
  %v2161 = vpack.c.b16 %v1828, %v1819
  %v2162 = vpack.c.b16 %v1829, %v1820
  %v2163 = vpack.c.b16 %v1839, %v1830
  %v2164 = vpack.c.b16 %v1840, %v1831
  %v2165 = vpack.c.b16 %v1841, %v1832
  %v2166 = vpack.c.b16 %v1842, %v1833
  %v2167 = vpack.c.b16 %v1843, %v1834
  %v2168 = vpack.c.b16 %v1844, %v1835
  %v2169 = vpack.c.b16 %v1845, %v1836
  %v2170 = vpack.c.b16 %v1846, %v1837
  %v2171 = vpack.c.b16 %v1847, %v1838
  %v2172 = vpack.c.b16 %v1857, %v1848
  %v2173 = vpack.c.b16 %v1858, %v1849
  %v2174 = vpack.c.b16 %v1859, %v1850
  %v2175 = vpack.c.b16 %v1860, %v1851
  %v2176 = vpack.c.b16 %v1861, %v1852
  %v2177 = vpack.c.b16 %v1862, %v1853
  %v2178 = vpack.c.b16 %v1863, %v1854
  %v2179 = vpack.c.b16 %v1864, %v1855
  %v2180 = vpack.c.b16 %v1865, %v1856
  %v2181 = vpack.c.b16 %v1875, %v1866
  %v2182 = vpack.c.b16 %v1876, %v1867
  %v2183 = vpack.c.b16 %v1877, %v1868
  %v2184 = vpack.c.b16 %v1878, %v1869
  %v2185 = vpack.c.b16 %v1879, %v1870
  %v2186 = vpack.c.b16 %v1880, %v1871
  %v2187 = vpack.c.b16 %v1881, %v1872
  %v2188 = vpack.c.b16 %v1882, %v1873
  %v2189 = vpack.c.b16 %v1883, %v1874
  %v2190 = vpack.c.b16 %v1893, %v1884
  %v2191 = vpack.c.b16 %v1894, %v1885
  %v2192 = vpack.c.b16 %v1895, %v1886
  %v2193 = vpack.c.b16 %v1896, %v1887
  %v2194 = vpack.c.b16 %v1897, %v1888
  %v2195 = vpack.c.b16 %v1898, %v1889
  %v2196 = vpack.c.b16 %v1899, %v1890
  %v2197 = vpack.c.b16 %v1900, %v1891
  %v2198 = vpack.c.b16 %v1901, %v1892
  %v2199 = vpack.c.b16 %v1911, %v1902
  %v2200 = vpack.c.b16 %v1912, %v1903
  %v2201 = vpack.c.b16 %v1913, %v1904
  %v2202 = vpack.c.b16 %v1914, %v1905
  %v2203 = vpack.c.b16 %v1915, %v1906
  %v2204 = vpack.c.b16 %v1916, %v1907
  %v2205 = vpack.c.b16 %v1917, %v1908
  %v2206 = vpack.c.b16 %v1918, %v1909
  %v2207 = vpack.c.b16 %v1919, %v1910
  %v2208 = vpack.c.b16 %v1929, %v1920
  %v2209 = vpack.c.b16 %v1930, %v1921
  %v2210 = vpack.c.b16 %v1931, %v1922
  %v2211 = vpack.c.b16 %v1932, %v1923
  %v2212 = vpack.c.b16 %v1933, %v1924
  %v2213 = vpack.c.b16 %v1934, %v1925
  %v2214 = vpack.c.b16 %v1935, %v1926
  %v2215 = vpack.c.b16 %v1936, %v1927
  %v2216 = vpack.c.b16 %v1937, %v1928
  %v2217 = vpack.c.b16 %v1947, %v1938
  %v2218 = vpack.c.b16 %v1948, %v1939
  %v2219 = vpack.c.b16 %v1949, %v1940
  %v2220 = vpack.c.b16 %v1950, %v1941
  %v2221 = vpack.c.b16 %v1951, %v1942
  %v2222 = vpack.c.b16 %v1952, %v1943
  %v2223 = vpack.c.b16 %v1953, %v1944
  %v2224 = vpack.c.b16 %v1954, %v1945
  %v2225 = vpack.c.b16 %v1955, %v1946
  %v2226 = vpack.c.b16 %v1965, %v1956
  %v2227 = vpack.c.b16 %v1966, %v1957
  %v2228 = vpack.c.b16 %v1967, %v1958
  %v2229 = vpack.c.b16 %v1968, %v1959
  %v2230 = vpack.c.b16 %v1969, %v1960
  %v2231 = vpack.c.b16 %v1970, %v1961
  %v2232 = vpack.c.b16 %v1971, %v1962
  %v2233 = vpack.c.b16 %v1972, %v1963
  %v2234 = vpack.c.b16 %v1973, %v1964
  %v2235 = vpack.c.b16 %v1983, %v1974
  %v2236 = vpack.c.b16 %v1984, %v1975
  %v2237 = vpack.c.b16 %v1985, %v1976
  %v2238 = vpack.c.b16 %v1986, %v1977
  %v2239 = vpack.c.b16 %v1987, %v1978
  %v2240 = vpack.c.b16 %v1988, %v1979
  %v2241 = vpack.c.b16 %v1989, %v1980
  %v2242 = vpack.c.b16 %v1990, %v1981
  %v2243 = vpack.c.b16 %v1991, %v1982
  %v2244 = vpack.c.b16 %v2001, %v1992
  %v2245 = vpack.c.b16 %v2002, %v1993
  %v2246 = vpack.c.b16 %v2003, %v1994
  %v2247 = vpack.c.b16 %v2004, %v1995
  %v2248 = vpack.c.b16 %v2005, %v1996
  %v2249 = vpack.c.b16 %v2006, %v1997
  %v2250 = vpack.c.b16 %v2007, %v1998
  %v2251 = vpack.c.b16 %v2008, %v1999
  %v2252 = vpack.c.b16 %v2009, %v2000
  %v2253 = vpack.c.b16 %v2019, %v2010
  %v2254 = vpack.c.b16 %v2020, %v2011
  %v2255 = vpack.c.b16 %v2021, %v2012
  %v2256 = vpack.c.b16 %v2022, %v2013
  %v2257 = vpack.c.b16 %v2023, %v2014
  %v2258 = vpack.c.b16 %v2024, %v2015
  %v2259 = vpack.c.b16 %v2025, %v2016
  %v2260 = vpack.c.b16 %v2026, %v2017
  %v2261 = vpack.c.b16 %v2027, %v2018
  %v2262 = vpack.c.b16 %v2037, %v2028
  %v2263 = vpack.c.b16 %v2038, %v2029
  %v2264 = vpack.c.b16 %v2039, %v2030
  %v2265 = vpack.c.b16 %v2040, %v2031
  %v2266 = vpack.c.b16 %v2041, %v2032
  %v2267 = vpack.c.b16 %v2042, %v2033
  %v2268 = vpack.c.b16 %v2043, %v2034
  %v2269 = vpack.c.b16 %v2044, %v2035
  %v2270 = vpack.c.b16 %v2045, %v2036
  %v2271 = vpack.c.b16 %v2055, %v2046
  %v2272 = vpack.c.b16 %v2056, %v2047
  %v2273 = vpack.c.b16 %v2057, %v2048
  %v2274 = vpack.c.b16 %v2058, %v2049
  %v2275 = vpack.c.b16 %v2059, %v2050
  %v2276 = vpack.c.b16 %v2060, %v2051
  %v2277 = vpack.c.b16 %v2061, %v2052
  %v2278 = vpack.c.b16 %v2062, %v2053
  %v2279 = vpack.c.b16 %v2063, %v2054
  %2496 = vmatprep.subr.bf16.mxu0 %v2128
  %2497 = vmatpush1.bf16.msra.mxu0 %v2127
  %2498 = vmatprep.subr.bf16.mxu0 %v2119
  %2499 = vmatpush1.bf16.msra.mxu0 %v2118
  %2500 = vmatprep.subr.bf16.mxu0 %v2110
  %2501 = vmatpush1.bf16.msra.mxu0 %v2109
  %2502 = vmatprep.subr.bf16.mxu0 %v2101
  %2503 = vmatpush1.bf16.msra.mxu0 %v2100
  %2504 = vmatprep.subr.bf16.mxu0 %v2092
  %2505 = vmatpush1.bf16.msra.mxu0 %v2091
  %2506 = vmatprep.subr.bf16.mxu0 %v2083
  %2507 = vmatpush1.bf16.msra.mxu0 %v2082
  %2508 = vmatprep.subr.bf16.mxu0 %v2074
  %2509 = vmatpush1.bf16.msra.mxu0 %v2073
  %2510 = vmatprep.subr.bf16.mxu0 %v2065
  %2511 = vmatpush1.bf16.msra.mxu0 %v2064
  %2512 = vmatprep.subr.bf16.mxu0 %v2200
  %2513 = vmatpush2.bf16.msra.mxu0 %v2199
  %2514 = vmatprep.subr.bf16.mxu0 %v2191
  %2515 = vmatpush2.bf16.msra.mxu0 %v2190
  %2516 = vmatprep.subr.bf16.mxu0 %v2182
  %2517 = vmatpush2.bf16.msra.mxu0 %v2181
  %2518 = vmatprep.subr.bf16.mxu0 %v2173
  %2519 = vmatpush2.bf16.msra.mxu0 %v2172
  %2520 = vmatprep.subr.bf16.mxu0 %v2164
  %2521 = vmatpush2.bf16.msra.mxu0 %v2163
  %2522 = vmatprep.subr.bf16.mxu0 %v2155
  %2523 = vmatpush2.bf16.msra.mxu0 %v2154
  %2524 = vmatprep.subr.bf16.mxu0 %v2146
  %2525 = vmatpush2.bf16.msra.mxu0 %v2145
  %2526 = vmatprep.subr.bf16.mxu0 %v2137
  %2527 = vmatpush2.bf16.msra.mxu0 %v2136
  %2528 = vmatprep.mubr.bf16.mxu0 0
  %2529 = vmatmul.mubr.bf16.gmra.mxu0 0
  %v2530 = vpop.f32.mrf.mxu0
  %v2531 = vadd.f32 0.0, %v2530
  %v2532 = vpop.f32.mrf.mxu0
  %v2533 = vadd.f32 0.0, %v2532
  %v2534 = vpop.f32.mrf.mxu0
  %v2535 = vpop.f32.mrf.mxu0
  %2536 = vdwg.mxu0
  %2537 = vmatprep.subr.bf16.mxu0 %v2272
  %2538 = vmatpush1.bf16.msra.mxu0 %v2271
  %2539 = vmatprep.subr.bf16.mxu0 %v2263
  %2540 = vmatpush1.bf16.msra.mxu0 %v2262
  %2541 = vmatprep.subr.bf16.mxu0 %v2254
  %2542 = vmatpush1.bf16.msra.mxu0 %v2253
  %2543 = vmatprep.subr.bf16.mxu0 %v2245
  %2544 = vmatpush1.bf16.msra.mxu0 %v2244
  %2545 = vmatprep.subr.bf16.mxu0 %v2236
  %2546 = vmatpush1.bf16.msra.mxu0 %v2235
  %2547 = vmatprep.subr.bf16.mxu0 %v2227
  %2548 = vmatpush1.bf16.msra.mxu0 %v2226
  %2549 = vmatprep.subr.bf16.mxu0 %v2218
  %2550 = vmatpush1.bf16.msra.mxu0 %v2217
  %2551 = vmatprep.subr.bf16.mxu0 %v2209
  %2552 = vmatpush1.bf16.msra.mxu0 %v2208
  %2553 = vmatprep.subr.bf16.mxu0 0
  %2554 = vmatpush2.bf16.msra.mxu0 0
  %2555 = vmatprep.subr.bf16.mxu0 0
  %2556 = vmatpush2.bf16.msra.mxu0 0
  %2557 = vmatprep.subr.bf16.mxu0 0
  %2558 = vmatpush2.bf16.msra.mxu0 0
  %2559 = vmatprep.subr.bf16.mxu0 0
  %2560 = vmatpush2.bf16.msra.mxu0 0
  %2561 = vmatprep.subr.bf16.mxu0 0
  %2562 = vmatpush2.bf16.msra.mxu0 0
  %2563 = vmatprep.subr.bf16.mxu0 0
  %2564 = vmatpush2.bf16.msra.mxu0 0
  %2565 = vmatprep.subr.bf16.mxu0 0
  %2566 = vmatpush2.bf16.msra.mxu0 0
  %2567 = vmatprep.subr.bf16.mxu0 0
  %2568 = vmatpush2.bf16.msra.mxu0 0
  %2569 = vmatprep.mubr.bf16.mxu0 0
  %2570 = vmatmul.mubr.bf16.gmra.mxu0 0
  %v2571 = vpop.f32.mrf.mxu0
  %v2572 = vadd.f32 %v2531, %v2571
  %v2573 = vpop.f32.mrf.mxu0
  %v2574 = vadd.f32 %v2533, %v2573
  %v2575 = vpop.f32.mrf.mxu0
  %v2576 = vpop.f32.mrf.mxu0
  %2577 = vdwg.mxu0
  %2578 = vmatprep.subr.bf16.mxu0 %v2130
  %2579 = vmatpush1.bf16.msra.mxu0 %v2129
  %2580 = vmatprep.subr.bf16.mxu0 %v2121
  %2581 = vmatpush1.bf16.msra.mxu0 %v2120
  %2582 = vmatprep.subr.bf16.mxu0 %v2112
  %2583 = vmatpush1.bf16.msra.mxu0 %v2111
  %2584 = vmatprep.subr.bf16.mxu0 %v2103
  %2585 = vmatpush1.bf16.msra.mxu0 %v2102
  %2586 = vmatprep.subr.bf16.mxu0 %v2094
  %2587 = vmatpush1.bf16.msra.mxu0 %v2093
  %2588 = vmatprep.subr.bf16.mxu0 %v2085
  %2589 = vmatpush1.bf16.msra.mxu0 %v2084
  %2590 = vmatprep.subr.bf16.mxu0 %v2076
  %2591 = vmatpush1.bf16.msra.mxu0 %v2075
  %2592 = vmatprep.subr.bf16.mxu0 %v2067
  %2593 = vmatpush1.bf16.msra.mxu0 %v2066
  %2594 = vmatprep.subr.bf16.mxu0 %v2202
  %2595 = vmatpush2.bf16.msra.mxu0 %v2201
  %2596 = vmatprep.subr.bf16.mxu0 %v2193
  %2597 = vmatpush2.bf16.msra.mxu0 %v2192
  %2598 = vmatprep.subr.bf16.mxu0 %v2184
  %2599 = vmatpush2.bf16.msra.mxu0 %v2183
  %2600 = vmatprep.subr.bf16.mxu0 %v2175
  %2601 = vmatpush2.bf16.msra.mxu0 %v2174
  %2602 = vmatprep.subr.bf16.mxu0 %v2166
  %2603 = vmatpush2.bf16.msra.mxu0 %v2165
  %2604 = vmatprep.subr.bf16.mxu0 %v2157
  %2605 = vmatpush2.bf16.msra.mxu0 %v2156
  %2606 = vmatprep.subr.bf16.mxu0 %v2148
  %2607 = vmatpush2.bf16.msra.mxu0 %v2147
  %2608 = vmatprep.subr.bf16.mxu0 %v2139
  %2609 = vmatpush2.bf16.msra.mxu0 %v2138
  %2610 = vmatprep.mubr.bf16.mxu0 0
  %2611 = vmatmul.mubr.bf16.gmra.mxu0 0
  %v2612 = vpop.f32.mrf.mxu0
  %v2613 = vadd.f32 0.0, %v2612
  %v2614 = vpop.f32.mrf.mxu0
  %v2615 = vadd.f32 0.0, %v2614
  %v2616 = vpop.f32.mrf.mxu0
  %v2617 = vpop.f32.mrf.mxu0
  %2618 = vdwg.mxu0
  %2619 = vmatprep.subr.bf16.mxu0 %v2274
  %2620 = vmatpush1.bf16.msra.mxu0 %v2273
  %2621 = vmatprep.subr.bf16.mxu0 %v2265
  %2622 = vmatpush1.bf16.msra.mxu0 %v2264
  %2623 = vmatprep.subr.bf16.mxu0 %v2256
  %2624 = vmatpush1.bf16.msra.mxu0 %v2255
  %2625 = vmatprep.subr.bf16.mxu0 %v2247
  %2626 = vmatpush1.bf16.msra.mxu0 %v2246
  %2627 = vmatprep.subr.bf16.mxu0 %v2238
  %2628 = vmatpush1.bf16.msra.mxu0 %v2237
  %2629 = vmatprep.subr.bf16.mxu0 %v2229
  %2630 = vmatpush1.bf16.msra.mxu0 %v2228
  %2631 = vmatprep.subr.bf16.mxu0 %v2220
  %2632 = vmatpush1.bf16.msra.mxu0 %v2219
  %2633 = vmatprep.subr.bf16.mxu0 %v2211
  %2634 = vmatpush1.bf16.msra.mxu0 %v2210
  %2635 = vmatprep.subr.bf16.mxu0 0
  %2636 = vmatpush2.bf16.msra.mxu0 0
  %2637 = vmatprep.subr.bf16.mxu0 0
  %2638 = vmatpush2.bf16.msra.mxu0 0
  %2639 = vmatprep.subr.bf16.mxu0 0
  %2640 = vmatpush2.bf16.msra.mxu0 0
  %2641 = vmatprep.subr.bf16.mxu0 0
  %2642 = vmatpush2.bf16.msra.mxu0 0
  %2643 = vmatprep.subr.bf16.mxu0 0
  %2644 = vmatpush2.bf16.msra.mxu0 0
  %2645 = vmatprep.subr.bf16.mxu0 0
  %2646 = vmatpush2.bf16.msra.mxu0 0
  %2647 = vmatprep.subr.bf16.mxu0 0
  %2648 = vmatpush2.bf16.msra.mxu0 0
  %2649 = vmatprep.subr.bf16.mxu0 0
  %2650 = vmatpush2.bf16.msra.mxu0 0
  %2651 = vmatprep.mubr.bf16.mxu0 0
  %2652 = vmatmul.mubr.bf16.gmra.mxu0 0
  %v2653 = vpop.f32.mrf.mxu0
  %v2654 = vadd.f32 %v2613, %v2653
  %v2655 = vpop.f32.mrf.mxu0
  %v2656 = vadd.f32 %v2615, %v2655
  %v2657 = vpop.f32.mrf.mxu0
  %v2658 = vpop.f32.mrf.mxu0
  %2659 = vdwg.mxu0
  %2660 = vmatprep.subr.bf16.mxu0 %v2132
  %2661 = vmatpush1.bf16.msra.mxu0 %v2131
  %2662 = vmatprep.subr.bf16.mxu0 %v2123
  %2663 = vmatpush1.bf16.msra.mxu0 %v2122
  %2664 = vmatprep.subr.bf16.mxu0 %v2114
  %2665 = vmatpush1.bf16.msra.mxu0 %v2113
  %2666 = vmatprep.subr.bf16.mxu0 %v2105
  %2667 = vmatpush1.bf16.msra.mxu0 %v2104
  %2668 = vmatprep.subr.bf16.mxu0 %v2096
  %2669 = vmatpush1.bf16.msra.mxu0 %v2095
  %2670 = vmatprep.subr.bf16.mxu0 %v2087
  %2671 = vmatpush1.bf16.msra.mxu0 %v2086
  %2672 = vmatprep.subr.bf16.mxu0 %v2078
  %2673 = vmatpush1.bf16.msra.mxu0 %v2077
  %2674 = vmatprep.subr.bf16.mxu0 %v2069
  %2675 = vmatpush1.bf16.msra.mxu0 %v2068
  %2676 = vmatprep.subr.bf16.mxu0 %v2204
  %2677 = vmatpush2.bf16.msra.mxu0 %v2203
  %2678 = vmatprep.subr.bf16.mxu0 %v2195
  %2679 = vmatpush2.bf16.msra.mxu0 %v2194
  %2680 = vmatprep.subr.bf16.mxu0 %v2186
  %2681 = vmatpush2.bf16.msra.mxu0 %v2185
  %2682 = vmatprep.subr.bf16.mxu0 %v2177
  %2683 = vmatpush2.bf16.msra.mxu0 %v2176
  %2684 = vmatprep.subr.bf16.mxu0 %v2168
  %2685 = vmatpush2.bf16.msra.mxu0 %v2167
  %2686 = vmatprep.subr.bf16.mxu0 %v2159
  %2687 = vmatpush2.bf16.msra.mxu0 %v2158
  %2688 = vmatprep.subr.bf16.mxu0 %v2150
  %2689 = vmatpush2.bf16.msra.mxu0 %v2149
  %2690 = vmatprep.subr.bf16.mxu0 %v2141
  %2691 = vmatpush2.bf16.msra.mxu0 %v2140
  %2692 = vmatprep.mubr.bf16.mxu0 0
  %2693 = vmatmul.mubr.bf16.gmra.mxu0 0
  %v2694 = vpop.f32.mrf.mxu0
  %v2695 = vadd.f32 0.0, %v2694
  %v2696 = vpop.f32.mrf.mxu0
  %v2697 = vadd.f32 0.0, %v2696
  %v2698 = vpop.f32.mrf.mxu0
  %v2699 = vpop.f32.mrf.mxu0
  %2700 = vdwg.mxu0
  %2701 = vmatprep.subr.bf16.mxu0 %v2276
  %2702 = vmatpush1.bf16.msra.mxu0 %v2275
  %2703 = vmatprep.subr.bf16.mxu0 %v2267
  %2704 = vmatpush1.bf16.msra.mxu0 %v2266
  %2705 = vmatprep.subr.bf16.mxu0 %v2258
  %2706 = vmatpush1.bf16.msra.mxu0 %v2257
  %2707 = vmatprep.subr.bf16.mxu0 %v2249
  %2708 = vmatpush1.bf16.msra.mxu0 %v2248
  %2709 = vmatprep.subr.bf16.mxu0 %v2240
  %2710 = vmatpush1.bf16.msra.mxu0 %v2239
  %2711 = vmatprep.subr.bf16.mxu0 %v2231
  %2712 = vmatpush1.bf16.msra.mxu0 %v2230
  %2713 = vmatprep.subr.bf16.mxu0 %v2222
  %2714 = vmatpush1.bf16.msra.mxu0 %v2221
  %2715 = vmatprep.subr.bf16.mxu0 %v2213
  %2716 = vmatpush1.bf16.msra.mxu0 %v2212
  %2717 = vmatprep.subr.bf16.mxu0 0
  %2718 = vmatpush2.bf16.msra.mxu0 0
  %2719 = vmatprep.subr.bf16.mxu0 0
  %2720 = vmatpush2.bf16.msra.mxu0 0
  %2721 = vmatprep.subr.bf16.mxu0 0
  %2722 = vmatpush2.bf16.msra.mxu0 0
  %2723 = vmatprep.subr.bf16.mxu0 0
  %2724 = vmatpush2.bf16.msra.mxu0 0
  %2725 = vmatprep.subr.bf16.mxu0 0
  %2726 = vmatpush2.bf16.msra.mxu0 0
  %2727 = vmatprep.subr.bf16.mxu0 0
  %2728 = vmatpush2.bf16.msra.mxu0 0
  %2729 = vmatprep.subr.bf16.mxu0 0
  %2730 = vmatpush2.bf16.msra.mxu0 0
  %2731 = vmatprep.subr.bf16.mxu0 0
  %2732 = vmatpush2.bf16.msra.mxu0 0
  %2733 = vmatprep.mubr.bf16.mxu0 0
  %2734 = vmatmul.mubr.bf16.gmra.mxu0 0
  %v2735 = vpop.f32.mrf.mxu0
  %v2736 = vadd.f32 %v2695, %v2735
  %v2737 = vpop.f32.mrf.mxu0
  %v2738 = vadd.f32 %v2697, %v2737
  %v2739 = vpop.f32.mrf.mxu0
  %v2740 = vpop.f32.mrf.mxu0
  %2741 = vdwg.mxu0
  %2742 = vmatprep.subr.bf16.mxu0 %v2134
  %2743 = vmatpush1.bf16.msra.mxu0 %v2133
  %2744 = vmatprep.subr.bf16.mxu0 %v2125
  %2745 = vmatpush1.bf16.msra.mxu0 %v2124
  %2746 = vmatprep.subr.bf16.mxu0 %v2116
  %2747 = vmatpush1.bf16.msra.mxu0 %v2115
  %2748 = vmatprep.subr.bf16.mxu0 %v2107
  %2749 = vmatpush1.bf16.msra.mxu0 %v2106
  %2750 = vmatprep.subr.bf16.mxu0 %v2098
  %2751 = vmatpush1.bf16.msra.mxu0 %v2097
  %2752 = vmatprep.subr.bf16.mxu0 %v2089
  %2753 = vmatpush1.bf16.msra.mxu0 %v2088
  %2754 = vmatprep.subr.bf16.mxu0 %v2080
  %2755 = vmatpush1.bf16.msra.mxu0 %v2079
  %2756 = vmatprep.subr.bf16.mxu0 %v2071
  %2757 = vmatpush1.bf16.msra.mxu0 %v2070
  %2758 = vmatprep.subr.bf16.mxu0 %v2206
  %2759 = vmatpush2.bf16.msra.mxu0 %v2205
  %2760 = vmatprep.subr.bf16.mxu0 %v2197
  %2761 = vmatpush2.bf16.msra.mxu0 %v2196
  %2762 = vmatprep.subr.bf16.mxu0 %v2188
  %2763 = vmatpush2.bf16.msra.mxu0 %v2187
  %2764 = vmatprep.subr.bf16.mxu0 %v2179
  %2765 = vmatpush2.bf16.msra.mxu0 %v2178
  %2766 = vmatprep.subr.bf16.mxu0 %v2170
  %2767 = vmatpush2.bf16.msra.mxu0 %v2169
  %2768 = vmatprep.subr.bf16.mxu0 %v2161
  %2769 = vmatpush2.bf16.msra.mxu0 %v2160
  %2770 = vmatprep.subr.bf16.mxu0 %v2152
  %2771 = vmatpush2.bf16.msra.mxu0 %v2151
  %2772 = vmatprep.subr.bf16.mxu0 %v2143
  %2773 = vmatpush2.bf16.msra.mxu0 %v2142
  %2774 = vmatprep.mubr.bf16.mxu0 0
  %2775 = vmatmul.mubr.bf16.gmra.mxu0 0
  %v2776 = vpop.f32.mrf.mxu0
  %v2777 = vadd.f32 0.0, %v2776
  %v2778 = vpop.f32.mrf.mxu0
  %v2779 = vadd.f32 0.0, %v2778
  %v2780 = vpop.f32.mrf.mxu0
  %v2781 = vpop.f32.mrf.mxu0
  %2782 = vdwg.mxu0
  %2783 = vmatprep.subr.bf16.mxu0 %v2278
  %2784 = vmatpush1.bf16.msra.mxu0 %v2277
  %2785 = vmatprep.subr.bf16.mxu0 %v2269
  %2786 = vmatpush1.bf16.msra.mxu0 %v2268
  %2787 = vmatprep.subr.bf16.mxu0 %v2260
  %2788 = vmatpush1.bf16.msra.mxu0 %v2259
  %2789 = vmatprep.subr.bf16.mxu0 %v2251
  %2790 = vmatpush1.bf16.msra.mxu0 %v2250
  %2791 = vmatprep.subr.bf16.mxu0 %v2242
  %2792 = vmatpush1.bf16.msra.mxu0 %v2241
  %2793 = vmatprep.subr.bf16.mxu0 %v2233
  %2794 = vmatpush1.bf16.msra.mxu0 %v2232
  %2795 = vmatprep.subr.bf16.mxu0 %v2224
  %2796 = vmatpush1.bf16.msra.mxu0 %v2223
  %2797 = vmatprep.subr.bf16.mxu0 %v2215
  %2798 = vmatpush1.bf16.msra.mxu0 %v2214
  %2799 = vmatprep.subr.bf16.mxu0 0
  %2800 = vmatpush2.bf16.msra.mxu0 0
  %2801 = vmatprep.subr.bf16.mxu0 0
  %2802 = vmatpush2.bf16.msra.mxu0 0
  %2803 = vmatprep.subr.bf16.mxu0 0
  %2804 = vmatpush2.bf16.msra.mxu0 0
  %2805 = vmatprep.subr.bf16.mxu0 0
  %2806 = vmatpush2.bf16.msra.mxu0 0
  %2807 = vmatprep.subr.bf16.mxu0 0
  %2808 = vmatpush2.bf16.msra.mxu0 0
  %2809 = vmatprep.subr.bf16.mxu0 0
  %2810 = vmatpush2.bf16.msra.mxu0 0
  %2811 = vmatprep.subr.bf16.mxu0 0
  %2812 = vmatpush2.bf16.msra.mxu0 0
  %2813 = vmatprep.subr.bf16.mxu0 0
  %2814 = vmatpush2.bf16.msra.mxu0 0
  %2815 = vmatprep.mubr.bf16.mxu0 0
  %2816 = vmatmul.mubr.bf16.gmra.mxu0 0
  %v2817 = vpop.f32.mrf.mxu0
  %v2818 = vadd.f32 %v2777, %v2817
  %v2819 = vpop.f32.mrf.mxu0
  %v2820 = vadd.f32 %v2779, %v2819
  %v2821 = vpop.f32.mrf.mxu0
  %v2822 = vpop.f32.mrf.mxu0
  %2823 = vdwg.mxu0
  %2824 = vmatprep.subr.bf16.mxu0 0
  %2825 = vmatpush1.bf16.msra.mxu0 %v2135
  %2826 = vmatprep.subr.bf16.mxu0 0
  %2827 = vmatpush1.bf16.msra.mxu0 %v2126
  %2828 = vmatprep.subr.bf16.mxu0 0
  %2829 = vmatpush1.bf16.msra.mxu0 %v2117
  %2830 = vmatprep.subr.bf16.mxu0 0
  %2831 = vmatpush1.bf16.msra.mxu0 %v2108
  %2832 = vmatprep.subr.bf16.mxu0 0
  %2833 = vmatpush1.bf16.msra.mxu0 %v2099
  %2834 = vmatprep.subr.bf16.mxu0 0
  %2835 = vmatpush1.bf16.msra.mxu0 %v2090
  %2836 = vmatprep.subr.bf16.mxu0 0
  %2837 = vmatpush1.bf16.msra.mxu0 %v2081
  %2838 = vmatprep.subr.bf16.mxu0 0
  %2839 = vmatpush1.bf16.msra.mxu0 %v2072
  %2840 = vmatprep.subr.bf16.mxu0 0
  %2841 = vmatpush2.bf16.msra.mxu0 %v2207
  %2842 = vmatprep.subr.bf16.mxu0 0
  %2843 = vmatpush2.bf16.msra.mxu0 %v2198
  %2844 = vmatprep.subr.bf16.mxu0 0
  %2845 = vmatpush2.bf16.msra.mxu0 %v2189
  %2846 = vmatprep.subr.bf16.mxu0 0
  %2847 = vmatpush2.bf16.msra.mxu0 %v2180
  %2848 = vmatprep.subr.bf16.mxu0 0
  %2849 = vmatpush2.bf16.msra.mxu0 %v2171
  %2850 = vmatprep.subr.bf16.mxu0 0
  %2851 = vmatpush2.bf16.msra.mxu0 %v2162
  %2852 = vmatprep.subr.bf16.mxu0 0
  %2853 = vmatpush2.bf16.msra.mxu0 %v2153
  %2854 = vmatprep.subr.bf16.mxu0 0
  %2855 = vmatpush2.bf16.msra.mxu0 %v2144
  %2856 = vmatprep.mubr.bf16.mxu0 0
  %2857 = vmatmul.mubr.bf16.gmra.mxu0 0
  %v2858 = vpop.f32.mrf.mxu0
  %v2859 = vadd.f32 0.0, %v2858
  %v2860 = vpop.f32.mrf.mxu0
  %v2861 = vpop.f32.mrf.mxu0
  %v2862 = vpop.f32.mrf.mxu0
  %2863 = vdwg.mxu0
  %2864 = vmatprep.subr.bf16.mxu0 0
  %2865 = vmatpush1.bf16.msra.mxu0 %v2279
  %2866 = vmatprep.subr.bf16.mxu0 0
  %2867 = vmatpush1.bf16.msra.mxu0 %v2270
  %2868 = vmatprep.subr.bf16.mxu0 0
  %2869 = vmatpush1.bf16.msra.mxu0 %v2261
  %2870 = vmatprep.subr.bf16.mxu0 0
  %2871 = vmatpush1.bf16.msra.mxu0 %v2252
  %2872 = vmatprep.subr.bf16.mxu0 0
  %2873 = vmatpush1.bf16.msra.mxu0 %v2243
  %2874 = vmatprep.subr.bf16.mxu0 0
  %2875 = vmatpush1.bf16.msra.mxu0 %v2234
  %2876 = vmatprep.subr.bf16.mxu0 0
  %2877 = vmatpush1.bf16.msra.mxu0 %v2225
  %2878 = vmatprep.subr.bf16.mxu0 0
  %2879 = vmatpush1.bf16.msra.mxu0 %v2216
  %2880 = vmatprep.subr.bf16.mxu0 0
  %2881 = vmatpush2.bf16.msra.mxu0 0
  %2882 = vmatprep.subr.bf16.mxu0 0
  %2883 = vmatpush2.bf16.msra.mxu0 0
  %2884 = vmatprep.subr.bf16.mxu0 0
  %2885 = vmatpush2.bf16.msra.mxu0 0
  %2886 = vmatprep.subr.bf16.mxu0 0
  %2887 = vmatpush2.bf16.msra.mxu0 0
  %2888 = vmatprep.subr.bf16.mxu0 0
  %2889 = vmatpush2.bf16.msra.mxu0 0
  %2890 = vmatprep.subr.bf16.mxu0 0
  %2891 = vmatpush2.bf16.msra.mxu0 0
  %2892 = vmatprep.subr.bf16.mxu0 0
  %2893 = vmatpush2.bf16.msra.mxu0 0
  %2894 = vmatprep.subr.bf16.mxu0 0
  %2895 = vmatpush2.bf16.msra.mxu0 0
  %2896 = vmatprep.mubr.bf16.mxu0 0
  %2897 = vmatmul.mubr.bf16.gmra.mxu0 0
  %v2898 = vpop.f32.mrf.mxu0
  %v2899 = vadd.f32 %v2859, %v2898
  %v2900 = vpop.f32.mrf.mxu0
  %v2901 = vpop.f32.mrf.mxu0
  %v2902 = vpop.f32.mrf.mxu0
  %2903 = vdwg.mxu0
  %v2904 = vadd.f32 %v894, %v2572
  %v2905 = vadd.f32 %v896, %v2574
  %v2906 = vadd.f32 %v937, %v2654
  %v2907 = vxor.u32 %v2904, 2147483648
  %v2908 = vxor.u32 %v2905, 2147483648
  %v2909 = vxor.u32 %v2906, 2147483648
  %v2910 = vmul.f32 %v2907, 1.442695
  %v2911 = vpow.pop %v2910
  %v2912 = vmul.f32 %v2908, 1.442695
  %v2913 = vpow.pop %v2912
  %v2914 = vmul.f32 %v2909, 1.442695
  %v2915 = vpow.pop %v2914
  %v2916 = vadd.f32 %v2911, 1.0
  %v2917 = vadd.f32 %v2913, 1.0
  %v2918 = vadd.f32 %v2915, 1.0
  %v2919 = vrcp.pop %v2916
  %v2920 = vmul.f32 1.0, %v2919
  %v2921 = vrcp.pop %v2917
  %v2922 = vmul.f32 1.0, %v2921
  %v2923 = vrcp.pop %v2918
  %v2924 = vmul.f32 1.0, %v2923
  %v2925 = vadd.f32 %v939, %v2656
  %v2926 = vadd.f32 %v980, %v2736
  %v2927 = vadd.f32 %v982, %v2738
  %v2928 = vxor.u32 %v2925, 2147483648
  %v2929 = vxor.u32 %v2926, 2147483648
  %v2930 = vxor.u32 %v2927, 2147483648
  %v2931 = vmul.f32 %v2928, 1.442695
  %v2932 = vpow.pop %v2931
  %v2933 = vmul.f32 %v2929, 1.442695
  %v2934 = vpow.pop %v2933
  %v2935 = vmul.f32 %v2930, 1.442695
  %v2936 = vpow.pop %v2935
  %v2937 = vadd.f32 %v2932, 1.0
  %v2938 = vadd.f32 %v2934, 1.0
  %v2939 = vadd.f32 %v2936, 1.0
  %v2940 = vrcp.pop %v2937
  %v2941 = vmul.f32 1.0, %v2940
  %v2942 = vrcp.pop %v2938
  %v2943 = vmul.f32 1.0, %v2942
  %v2944 = vrcp.pop %v2939
  %v2945 = vmul.f32 1.0, %v2944
  %v2946 = vadd.f32 %v2818, %v1136
  %v2947 = vadd.f32 %v2820, %v1140
  %v2948 = vadd.f32 %v2899, %v1144
  %v2949 = vmul.f32 %v2920, %v2946
  %v2950 = vmul.f32 %v2922, %v2947
  %v2951 = vmul.f32 %v2924, %v2948
  %v2952 = vadd.f32 %v1023, %v2949
  %v2953 = vadd.f32 %v1025, %v2950
  %v2954 = vadd.f32 %v1066, %v2951
  %v2955 = vtanh.pop %v2952
  %v2956 = vtanh.pop %v2953
  %v2957 = vtanh.pop %v2954
  %v2958 = vsub.f32 1.0, %v2941
  %v2959 = vsub.f32 1.0, %v2943
  %v2960 = vsub.f32 1.0, %v2945
  %v2961 = vmul.f32 %v2958, %v2955
  %v2962 = vmul.f32 %v2959, %v2956
  %v2963 = vmul.f32 %v2960, %v2957
  %v2964 = vmul.f32 %v2941, 0.0
  %v2965 = vmul.f32 %v2943, 0.0
  %v2966 = vmul.f32 %v2945, 0.0
  %v2967 = vadd.f32 %v2961, %v2964
  %v2968 = vadd.f32 %v2962, %v2965
  %v2969 = vadd.f32 %v2963, %v2966
  %v2970 = vpack.c.bf16 %v2967, %v2967
  %v2971 = vpack.c.bf16 %v2968, %v2968
  %v2972 = vpack.c.bf16 %v2969, %v2969
  %2973 = vmatprep.subr.bf16.mxu0 %v2128
  %2974 = vmatpush1.bf16.msra.mxu0 %v2127
  %2975 = vmatprep.subr.bf16.mxu0 %v2119
  %2976 = vmatpush1.bf16.msra.mxu0 %v2118
  %2977 = vmatprep.subr.bf16.mxu0 %v2110
  %2978 = vmatpush1.bf16.msra.mxu0 %v2109
  %2979 = vmatprep.subr.bf16.mxu0 %v2101
  %2980 = vmatpush1.bf16.msra.mxu0 %v2100
  %2981 = vmatprep.subr.bf16.mxu0 %v2092
  %2982 = vmatpush1.bf16.msra.mxu0 %v2091
  %2983 = vmatprep.subr.bf16.mxu0 %v2083
  %2984 = vmatpush1.bf16.msra.mxu0 %v2082
  %2985 = vmatprep.subr.bf16.mxu0 %v2074
  %2986 = vmatpush1.bf16.msra.mxu0 %v2073
  %2987 = vmatprep.subr.bf16.mxu0 %v2065
  %2988 = vmatpush1.bf16.msra.mxu0 %v2064
  %2989 = vmatprep.subr.bf16.mxu0 %v2200
  %2990 = vmatpush2.bf16.msra.mxu0 %v2199
  %2991 = vmatprep.subr.bf16.mxu0 %v2191
  %2992 = vmatpush2.bf16.msra.mxu0 %v2190
  %2993 = vmatprep.subr.bf16.mxu0 %v2182
  %2994 = vmatpush2.bf16.msra.mxu0 %v2181
  %2995 = vmatprep.subr.bf16.mxu0 %v2173
  %2996 = vmatpush2.bf16.msra.mxu0 %v2172
  %2997 = vmatprep.subr.bf16.mxu0 %v2164
  %2998 = vmatpush2.bf16.msra.mxu0 %v2163
  %2999 = vmatprep.subr.bf16.mxu0 %v2155
  %3000 = vmatpush2.bf16.msra.mxu0 %v2154
  %3001 = vmatprep.subr.bf16.mxu0 %v2146
  %3002 = vmatpush2.bf16.msra.mxu0 %v2145
  %3003 = vmatprep.subr.bf16.mxu0 %v2137
  %3004 = vmatpush2.bf16.msra.mxu0 %v2136
  %3005 = vmatprep.mubr.bf16.mxu0 %v2971
  %3006 = vmatmul.mubr.bf16.gmra.mxu0 %v2970
  %v3007 = vpop.f32.mrf.mxu0
  %v3008 = vadd.f32 0.0, %v3007
  %v3009 = vpop.f32.mrf.mxu0
  %v3010 = vadd.f32 0.0, %v3009
  %v3011 = vpop.f32.mrf.mxu0
  %v3012 = vpop.f32.mrf.mxu0
  %3013 = vdwg.mxu0
  %3014 = vmatprep.subr.bf16.mxu0 %v2272
  %3015 = vmatpush1.bf16.msra.mxu0 %v2271
  %3016 = vmatprep.subr.bf16.mxu0 %v2263
  %3017 = vmatpush1.bf16.msra.mxu0 %v2262
  %3018 = vmatprep.subr.bf16.mxu0 %v2254
  %3019 = vmatpush1.bf16.msra.mxu0 %v2253
  %3020 = vmatprep.subr.bf16.mxu0 %v2245
  %3021 = vmatpush1.bf16.msra.mxu0 %v2244
  %3022 = vmatprep.subr.bf16.mxu0 %v2236
  %3023 = vmatpush1.bf16.msra.mxu0 %v2235
  %3024 = vmatprep.subr.bf16.mxu0 %v2227
  %3025 = vmatpush1.bf16.msra.mxu0 %v2226
  %3026 = vmatprep.subr.bf16.mxu0 %v2218
  %3027 = vmatpush1.bf16.msra.mxu0 %v2217
  %3028 = vmatprep.subr.bf16.mxu0 %v2209
  %3029 = vmatpush1.bf16.msra.mxu0 %v2208
  %3030 = vmatprep.subr.bf16.mxu0 0
  %3031 = vmatpush2.bf16.msra.mxu0 0
  %3032 = vmatprep.subr.bf16.mxu0 0
  %3033 = vmatpush2.bf16.msra.mxu0 0
  %3034 = vmatprep.subr.bf16.mxu0 0
  %3035 = vmatpush2.bf16.msra.mxu0 0
  %3036 = vmatprep.subr.bf16.mxu0 0
  %3037 = vmatpush2.bf16.msra.mxu0 0
  %3038 = vmatprep.subr.bf16.mxu0 0
  %3039 = vmatpush2.bf16.msra.mxu0 0
  %3040 = vmatprep.subr.bf16.mxu0 0
  %3041 = vmatpush2.bf16.msra.mxu0 0
  %3042 = vmatprep.subr.bf16.mxu0 0
  %3043 = vmatpush2.bf16.msra.mxu0 0
  %3044 = vmatprep.subr.bf16.mxu0 0
  %3045 = vmatpush2.bf16.msra.mxu0 0
  %3046 = vmatprep.mubr.bf16.mxu0 0
  %3047 = vmatmul.mubr.bf16.gmra.mxu0 %v2972
  %v3048 = vpop.f32.mrf.mxu0
  %v3049 = vadd.f32 %v3008, %v3048
  %v3050 = vpop.f32.mrf.mxu0
  %v3051 = vadd.f32 %v3010, %v3050
  %v3052 = vpop.f32.mrf.mxu0
  %v3053 = vpop.f32.mrf.mxu0
  %3054 = vdwg.mxu0
  %3055 = vmatprep.subr.bf16.mxu0 %v2130
  %3056 = vmatpush1.bf16.msra.mxu0 %v2129
  %3057 = vmatprep.subr.bf16.mxu0 %v2121
  %3058 = vmatpush1.bf16.msra.mxu0 %v2120
  %3059 = vmatprep.subr.bf16.mxu0 %v2112
  %3060 = vmatpush1.bf16.msra.mxu0 %v2111
  %3061 = vmatprep.subr.bf16.mxu0 %v2103
  %3062 = vmatpush1.bf16.msra.mxu0 %v2102
  %3063 = vmatprep.subr.bf16.mxu0 %v2094
  %3064 = vmatpush1.bf16.msra.mxu0 %v2093
  %3065 = vmatprep.subr.bf16.mxu0 %v2085
  %3066 = vmatpush1.bf16.msra.mxu0 %v2084
  %3067 = vmatprep.subr.bf16.mxu0 %v2076
  %3068 = vmatpush1.bf16.msra.mxu0 %v2075
  %3069 = vmatprep.subr.bf16.mxu0 %v2067
  %3070 = vmatpush1.bf16.msra.mxu0 %v2066
  %3071 = vmatprep.subr.bf16.mxu0 %v2202
  %3072 = vmatpush2.bf16.msra.mxu0 %v2201
  %3073 = vmatprep.subr.bf16.mxu0 %v2193
  %3074 = vmatpush2.bf16.msra.mxu0 %v2192
  %3075 = vmatprep.subr.bf16.mxu0 %v2184
  %3076 = vmatpush2.bf16.msra.mxu0 %v2183
  %3077 = vmatprep.subr.bf16.mxu0 %v2175
  %3078 = vmatpush2.bf16.msra.mxu0 %v2174
  %3079 = vmatprep.subr.bf16.mxu0 %v2166
  %3080 = vmatpush2.bf16.msra.mxu0 %v2165
  %3081 = vmatprep.subr.bf16.mxu0 %v2157
  %3082 = vmatpush2.bf16.msra.mxu0 %v2156
  %3083 = vmatprep.subr.bf16.mxu0 %v2148
  %3084 = vmatpush2.bf16.msra.mxu0 %v2147
  %3085 = vmatprep.subr.bf16.mxu0 %v2139
  %3086 = vmatpush2.bf16.msra.mxu0 %v2138
  %3087 = vmatprep.mubr.bf16.mxu0 %v2971
  %3088 = vmatmul.mubr.bf16.gmra.mxu0 %v2970
  %v3089 = vpop.f32.mrf.mxu0
  %v3090 = vadd.f32 0.0, %v3089
  %v3091 = vpop.f32.mrf.mxu0
  %v3092 = vadd.f32 0.0, %v3091
  %v3093 = vpop.f32.mrf.mxu0
  %v3094 = vpop.f32.mrf.mxu0
  %3095 = vdwg.mxu0
  %3096 = vmatprep.subr.bf16.mxu0 %v2274
  %3097 = vmatpush1.bf16.msra.mxu0 %v2273
  %3098 = vmatprep.subr.bf16.mxu0 %v2265
  %3099 = vmatpush1.bf16.msra.mxu0 %v2264
  %3100 = vmatprep.subr.bf16.mxu0 %v2256
  %3101 = vmatpush1.bf16.msra.mxu0 %v2255
  %3102 = vmatprep.subr.bf16.mxu0 %v2247
  %3103 = vmatpush1.bf16.msra.mxu0 %v2246
  %3104 = vmatprep.subr.bf16.mxu0 %v2238
  %3105 = vmatpush1.bf16.msra.mxu0 %v2237
  %3106 = vmatprep.subr.bf16.mxu0 %v2229
  %3107 = vmatpush1.bf16.msra.mxu0 %v2228
  %3108 = vmatprep.subr.bf16.mxu0 %v2220
  %3109 = vmatpush1.bf16.msra.mxu0 %v2219
  %3110 = vmatprep.subr.bf16.mxu0 %v2211
  %3111 = vmatpush1.bf16.msra.mxu0 %v2210
  %3112 = vmatprep.subr.bf16.mxu0 0
  %3113 = vmatpush2.bf16.msra.mxu0 0
  %3114 = vmatprep.subr.bf16.mxu0 0
  %3115 = vmatpush2.bf16.msra.mxu0 0
  %3116 = vmatprep.subr.bf16.mxu0 0
  %3117 = vmatpush2.bf16.msra.mxu0 0
  %3118 = vmatprep.subr.bf16.mxu0 0
  %3119 = vmatpush2.bf16.msra.mxu0 0
  %3120 = vmatprep.subr.bf16.mxu0 0
  %3121 = vmatpush2.bf16.msra.mxu0 0
  %3122 = vmatprep.subr.bf16.mxu0 0
  %3123 = vmatpush2.bf16.msra.mxu0 0
  %3124 = vmatprep.subr.bf16.mxu0 0
  %3125 = vmatpush2.bf16.msra.mxu0 0
  %3126 = vmatprep.subr.bf16.mxu0 0
  %3127 = vmatpush2.bf16.msra.mxu0 0
  %3128 = vmatprep.mubr.bf16.mxu0 0
  %3129 = vmatmul.mubr.bf16.gmra.mxu0 %v2972
  %v3130 = vpop.f32.mrf.mxu0
  %v3131 = vadd.f32 %v3090, %v3130
  %v3132 = vpop.f32.mrf.mxu0
  %v3133 = vadd.f32 %v3092, %v3132
  %v3134 = vpop.f32.mrf.mxu0
  %v3135 = vpop.f32.mrf.mxu0
  %3136 = vdwg.mxu0
  %3137 = vmatprep.subr.bf16.mxu0 %v2132
  %3138 = vmatpush1.bf16.msra.mxu0 %v2131
  %3139 = vmatprep.subr.bf16.mxu0 %v2123
  %3140 = vmatpush1.bf16.msra.mxu0 %v2122
  %3141 = vmatprep.subr.bf16.mxu0 %v2114
  %3142 = vmatpush1.bf16.msra.mxu0 %v2113
  %3143 = vmatprep.subr.bf16.mxu0 %v2105
  %3144 = vmatpush1.bf16.msra.mxu0 %v2104
  %3145 = vmatprep.subr.bf16.mxu0 %v2096
  %3146 = vmatpush1.bf16.msra.mxu0 %v2095
  %3147 = vmatprep.subr.bf16.mxu0 %v2087
  %3148 = vmatpush1.bf16.msra.mxu0 %v2086
  %3149 = vmatprep.subr.bf16.mxu0 %v2078
  %3150 = vmatpush1.bf16.msra.mxu0 %v2077
  %3151 = vmatprep.subr.bf16.mxu0 %v2069
  %3152 = vmatpush1.bf16.msra.mxu0 %v2068
  %3153 = vmatprep.subr.bf16.mxu0 %v2204
  %3154 = vmatpush2.bf16.msra.mxu0 %v2203
  %3155 = vmatprep.subr.bf16.mxu0 %v2195
  %3156 = vmatpush2.bf16.msra.mxu0 %v2194
  %3157 = vmatprep.subr.bf16.mxu0 %v2186
  %3158 = vmatpush2.bf16.msra.mxu0 %v2185
  %3159 = vmatprep.subr.bf16.mxu0 %v2177
  %3160 = vmatpush2.bf16.msra.mxu0 %v2176
  %3161 = vmatprep.subr.bf16.mxu0 %v2168
  %3162 = vmatpush2.bf16.msra.mxu0 %v2167
  %3163 = vmatprep.subr.bf16.mxu0 %v2159
  %3164 = vmatpush2.bf16.msra.mxu0 %v2158
  %3165 = vmatprep.subr.bf16.mxu0 %v2150
  %3166 = vmatpush2.bf16.msra.mxu0 %v2149
  %3167 = vmatprep.subr.bf16.mxu0 %v2141
  %3168 = vmatpush2.bf16.msra.mxu0 %v2140
  %3169 = vmatprep.mubr.bf16.mxu0 %v2971
  %3170 = vmatmul.mubr.bf16.gmra.mxu0 %v2970
  %v3171 = vpop.f32.mrf.mxu0
  %v3172 = vadd.f32 0.0, %v3171
  %v3173 = vpop.f32.mrf.mxu0
  %v3174 = vadd.f32 0.0, %v3173
  %v3175 = vpop.f32.mrf.mxu0
  %v3176 = vpop.f32.mrf.mxu0
  %3177 = vdwg.mxu0
  %3178 = vmatprep.subr.bf16.mxu0 %v2276
  %3179 = vmatpush1.bf16.msra.mxu0 %v2275
  %3180 = vmatprep.subr.bf16.mxu0 %v2267
  %3181 = vmatpush1.bf16.msra.mxu0 %v2266
  %3182 = vmatprep.subr.bf16.mxu0 %v2258
  %3183 = vmatpush1.bf16.msra.mxu0 %v2257
  %3184 = vmatprep.subr.bf16.mxu0 %v2249
  %3185 = vmatpush1.bf16.msra.mxu0 %v2248
  %3186 = vmatprep.subr.bf16.mxu0 %v2240
  %3187 = vmatpush1.bf16.msra.mxu0 %v2239
  %3188 = vmatprep.subr.bf16.mxu0 %v2231
  %3189 = vmatpush1.bf16.msra.mxu0 %v2230
  %3190 = vmatprep.subr.bf16.mxu0 %v2222
  %3191 = vmatpush1.bf16.msra.mxu0 %v2221
  %3192 = vmatprep.subr.bf16.mxu0 %v2213
  %3193 = vmatpush1.bf16.msra.mxu0 %v2212
  %3194 = vmatprep.subr.bf16.mxu0 0
  %3195 = vmatpush2.bf16.msra.mxu0 0
  %3196 = vmatprep.subr.bf16.mxu0 0
  %3197 = vmatpush2.bf16.msra.mxu0 0
  %3198 = vmatprep.subr.bf16.mxu0 0
  %3199 = vmatpush2.bf16.msra.mxu0 0
  %3200 = vmatprep.subr.bf16.mxu0 0
  %3201 = vmatpush2.bf16.msra.mxu0 0
  %3202 = vmatprep.subr.bf16.mxu0 0
  %3203 = vmatpush2.bf16.msra.mxu0 0
  %3204 = vmatprep.subr.bf16.mxu0 0
  %3205 = vmatpush2.bf16.msra.mxu0 0
  %3206 = vmatprep.subr.bf16.mxu0 0
  %3207 = vmatpush2.bf16.msra.mxu0 0
  %3208 = vmatprep.subr.bf16.mxu0 0
  %3209 = vmatpush2.bf16.msra.mxu0 0
  %3210 = vmatprep.mubr.bf16.mxu0 0
  %3211 = vmatmul.mubr.bf16.gmra.mxu0 %v2972
  %v3212 = vpop.f32.mrf.mxu0
  %v3213 = vadd.f32 %v3172, %v3212
  %v3214 = vpop.f32.mrf.mxu0
  %v3215 = vadd.f32 %v3174, %v3214
  %v3216 = vpop.f32.mrf.mxu0
  %v3217 = vpop.f32.mrf.mxu0
  %3218 = vdwg.mxu0
  %3219 = vmatprep.subr.bf16.mxu0 %v2134
  %3220 = vmatpush1.bf16.msra.mxu0 %v2133
  %3221 = vmatprep.subr.bf16.mxu0 %v2125
  %3222 = vmatpush1.bf16.msra.mxu0 %v2124
  %3223 = vmatprep.subr.bf16.mxu0 %v2116
  %3224 = vmatpush1.bf16.msra.mxu0 %v2115
  %3225 = vmatprep.subr.bf16.mxu0 %v2107
  %3226 = vmatpush1.bf16.msra.mxu0 %v2106
  %3227 = vmatprep.subr.bf16.mxu0 %v2098
  %3228 = vmatpush1.bf16.msra.mxu0 %v2097
  %3229 = vmatprep.subr.bf16.mxu0 %v2089
  %3230 = vmatpush1.bf16.msra.mxu0 %v2088
  %3231 = vmatprep.subr.bf16.mxu0 %v2080
  %3232 = vmatpush1.bf16.msra.mxu0 %v2079
  %3233 = vmatprep.subr.bf16.mxu0 %v2071
  %3234 = vmatpush1.bf16.msra.mxu0 %v2070
  %3235 = vmatprep.subr.bf16.mxu0 %v2206
  %3236 = vmatpush2.bf16.msra.mxu0 %v2205
  %3237 = vmatprep.subr.bf16.mxu0 %v2197
  %3238 = vmatpush2.bf16.msra.mxu0 %v2196
  %3239 = vmatprep.subr.bf16.mxu0 %v2188
  %3240 = vmatpush2.bf16.msra.mxu0 %v2187
  %3241 = vmatprep.subr.bf16.mxu0 %v2179
  %3242 = vmatpush2.bf16.msra.mxu0 %v2178
  %3243 = vmatprep.subr.bf16.mxu0 %v2170
  %3244 = vmatpush2.bf16.msra.mxu0 %v2169
  %3245 = vmatprep.subr.bf16.mxu0 %v2161
  %3246 = vmatpush2.bf16.msra.mxu0 %v2160
  %3247 = vmatprep.subr.bf16.mxu0 %v2152
  %3248 = vmatpush2.bf16.msra.mxu0 %v2151
  %3249 = vmatprep.subr.bf16.mxu0 %v2143
  %3250 = vmatpush2.bf16.msra.mxu0 %v2142
  %3251 = vmatprep.mubr.bf16.mxu0 %v2971
  %3252 = vmatmul.mubr.bf16.gmra.mxu0 %v2970
  %v3253 = vpop.f32.mrf.mxu0
  %v3254 = vadd.f32 0.0, %v3253
  %v3255 = vpop.f32.mrf.mxu0
  %v3256 = vadd.f32 0.0, %v3255
  %v3257 = vpop.f32.mrf.mxu0
  %v3258 = vpop.f32.mrf.mxu0
  %3259 = vdwg.mxu0
  %3260 = vmatprep.subr.bf16.mxu0 %v2278
  %3261 = vmatpush1.bf16.msra.mxu0 %v2277
  %3262 = vmatprep.subr.bf16.mxu0 %v2269
  %3263 = vmatpush1.bf16.msra.mxu0 %v2268
  %3264 = vmatprep.subr.bf16.mxu0 %v2260
  %3265 = vmatpush1.bf16.msra.mxu0 %v2259
  %3266 = vmatprep.subr.bf16.mxu0 %v2251
  %3267 = vmatpush1.bf16.msra.mxu0 %v2250
  %3268 = vmatprep.subr.bf16.mxu0 %v2242
  %3269 = vmatpush1.bf16.msra.mxu0 %v2241
  %3270 = vmatprep.subr.bf16.mxu0 %v2233
  %3271 = vmatpush1.bf16.msra.mxu0 %v2232
  %3272 = vmatprep.subr.bf16.mxu0 %v2224
  %3273 = vmatpush1.bf16.msra.mxu0 %v2223
  %3274 = vmatprep.subr.bf16.mxu0 %v2215
  %3275 = vmatpush1.bf16.msra.mxu0 %v2214
  %3276 = vmatprep.subr.bf16.mxu0 0
  %3277 = vmatpush2.bf16.msra.mxu0 0
  %3278 = vmatprep.subr.bf16.mxu0 0
  %3279 = vmatpush2.bf16.msra.mxu0 0
  %3280 = vmatprep.subr.bf16.mxu0 0
  %3281 = vmatpush2.bf16.msra.mxu0 0
  %3282 = vmatprep.subr.bf16.mxu0 0
  %3283 = vmatpush2.bf16.msra.mxu0 0
  %3284 = vmatprep.subr.bf16.mxu0 0
  %3285 = vmatpush2.bf16.msra.mxu0 0
  %3286 = vmatprep.subr.bf16.mxu0 0
  %3287 = vmatpush2.bf16.msra.mxu0 0
  %3288 = vmatprep.subr.bf16.mxu0 0
  %3289 = vmatpush2.bf16.msra.mxu0 0
  %3290 = vmatprep.subr.bf16.mxu0 0
  %3291 = vmatpush2.bf16.msra.mxu0 0
  %3292 = vmatprep.mubr.bf16.mxu0 0
  %3293 = vmatmul.mubr.bf16.gmra.mxu0 %v2972
  %v3294 = vpop.f32.mrf.mxu0
  %v3295 = vadd.f32 %v3254, %v3294
  %v3296 = vpop.f32.mrf.mxu0
  %v3297 = vadd.f32 %v3256, %v3296
  %v3298 = vpop.f32.mrf.mxu0
  %v3299 = vpop.f32.mrf.mxu0
  %3300 = vdwg.mxu0
  %3301 = vmatprep.subr.bf16.mxu0 0
  %3302 = vmatpush1.bf16.msra.mxu0 %v2135
  %3303 = vmatprep.subr.bf16.mxu0 0
  %3304 = vmatpush1.bf16.msra.mxu0 %v2126
  %3305 = vmatprep.subr.bf16.mxu0 0
  %3306 = vmatpush1.bf16.msra.mxu0 %v2117
  %3307 = vmatprep.subr.bf16.mxu0 0
  %3308 = vmatpush1.bf16.msra.mxu0 %v2108
  %3309 = vmatprep.subr.bf16.mxu0 0
  %3310 = vmatpush1.bf16.msra.mxu0 %v2099
  %3311 = vmatprep.subr.bf16.mxu0 0
  %3312 = vmatpush1.bf16.msra.mxu0 %v2090
  %3313 = vmatprep.subr.bf16.mxu0 0
  %3314 = vmatpush1.bf16.msra.mxu0 %v2081
  %3315 = vmatprep.subr.bf16.mxu0 0
  %3316 = vmatpush1.bf16.msra.mxu0 %v2072
  %3317 = vmatprep.subr.bf16.mxu0 0
  %3318 = vmatpush2.bf16.msra.mxu0 %v2207
  %3319 = vmatprep.subr.bf16.mxu0 0
  %3320 = vmatpush2.bf16.msra.mxu0 %v2198
  %3321 = vmatprep.subr.bf16.mxu0 0
  %3322 = vmatpush2.bf16.msra.mxu0 %v2189
  %3323 = vmatprep.subr.bf16.mxu0 0
  %3324 = vmatpush2.bf16.msra.mxu0 %v2180
  %3325 = vmatprep.subr.bf16.mxu0 0
  %3326 = vmatpush2.bf16.msra.mxu0 %v2171
  %3327 = vmatprep.subr.bf16.mxu0 0
  %3328 = vmatpush2.bf16.msra.mxu0 %v2162
  %3329 = vmatprep.subr.bf16.mxu0 0
  %3330 = vmatpush2.bf16.msra.mxu0 %v2153
  %3331 = vmatprep.subr.bf16.mxu0 0
  %3332 = vmatpush2.bf16.msra.mxu0 %v2144
  %3333 = vmatprep.mubr.bf16.mxu0 %v2971
  %3334 = vmatmul.mubr.bf16.gmra.mxu0 %v2970
  %v3335 = vpop.f32.mrf.mxu0
  %v3336 = vadd.f32 0.0, %v3335
  %v3337 = vpop.f32.mrf.mxu0
  %v3338 = vpop.f32.mrf.mxu0
  %v3339 = vpop.f32.mrf.mxu0
  %3340 = vdwg.mxu0
  %3341 = vmatprep.subr.bf16.mxu0 0
  %3342 = vmatpush1.bf16.msra.mxu0 %v2279
  %3343 = vmatprep.subr.bf16.mxu0 0
  %3344 = vmatpush1.bf16.msra.mxu0 %v2270
  %3345 = vmatprep.subr.bf16.mxu0 0
  %3346 = vmatpush1.bf16.msra.mxu0 %v2261
  %3347 = vmatprep.subr.bf16.mxu0 0
  %3348 = vmatpush1.bf16.msra.mxu0 %v2252
  %3349 = vmatprep.subr.bf16.mxu0 0
  %3350 = vmatpush1.bf16.msra.mxu0 %v2243
  %3351 = vmatprep.subr.bf16.mxu0 0
  %3352 = vmatpush1.bf16.msra.mxu0 %v2234
  %3353 = vmatprep.subr.bf16.mxu0 0
  %3354 = vmatpush1.bf16.msra.mxu0 %v2225
  %3355 = vmatprep.subr.bf16.mxu0 0
  %3356 = vmatpush1.bf16.msra.mxu0 %v2216
  %3357 = vmatprep.subr.bf16.mxu0 0
  %3358 = vmatpush2.bf16.msra.mxu0 0
  %3359 = vmatprep.subr.bf16.mxu0 0
  %3360 = vmatpush2.bf16.msra.mxu0 0
  %3361 = vmatprep.subr.bf16.mxu0 0
  %3362 = vmatpush2.bf16.msra.mxu0 0
  %3363 = vmatprep.subr.bf16.mxu0 0
  %3364 = vmatpush2.bf16.msra.mxu0 0
  %3365 = vmatprep.subr.bf16.mxu0 0
  %3366 = vmatpush2.bf16.msra.mxu0 0
  %3367 = vmatprep.subr.bf16.mxu0 0
  %3368 = vmatpush2.bf16.msra.mxu0 0
  %3369 = vmatprep.subr.bf16.mxu0 0
  %3370 = vmatpush2.bf16.msra.mxu0 0
  %3371 = vmatprep.subr.bf16.mxu0 0
  %3372 = vmatpush2.bf16.msra.mxu0 0
  %3373 = vmatprep.mubr.bf16.mxu0 0
  %3374 = vmatmul.mubr.bf16.gmra.mxu0 %v2972
  %v3375 = vpop.f32.mrf.mxu0
  %v3376 = vadd.f32 %v3336, %v3375
  %v3377 = vpop.f32.mrf.mxu0
  %v3378 = vpop.f32.mrf.mxu0
  %v3379 = vpop.f32.mrf.mxu0
  %3380 = vdwg.mxu0
  %v3384 = vrot.slane %v3049, 6
  %v3385 = vrot.slane %v3051, 6
  %v3386 = vrot.slane %v3131, 6
  %v3390 = vadd.f32 %v894, %v3384
  %v3391 = vadd.f32 %v896, %v3385
  %v3392 = vadd.f32 %v937, %v3386
  %v3393 = vxor.u32 %v3390, 2147483648
  %v3394 = vxor.u32 %v3391, 2147483648
  %v3395 = vxor.u32 %v3392, 2147483648
  %v3396 = vmul.f32 %v3393, 1.442695
  %v3397 = vpow.pop %v3396
  %v3398 = vmul.f32 %v3394, 1.442695
  %v3399 = vpow.pop %v3398
  %v3400 = vmul.f32 %v3395, 1.442695
  %v3401 = vpow.pop %v3400
  %v3402 = vadd.f32 %v3397, 1.0
  %v3403 = vadd.f32 %v3399, 1.0
  %v3404 = vadd.f32 %v3401, 1.0
  %v3405 = vrcp.pop %v3402
  %v3406 = vmul.f32 1.0, %v3405
  %v3407 = vrcp.pop %v3403
  %v3408 = vmul.f32 1.0, %v3407
  %v3409 = vrcp.pop %v3404
  %v3410 = vmul.f32 1.0, %v3409
  %v3414 = vrot.slane %v3133, 6
  %v3415 = vrot.slane %v3213, 6
  %v3416 = vrot.slane %v3215, 6
  %v3420 = vadd.f32 %v939, %v3414
  %v3421 = vadd.f32 %v980, %v3415
  %v3422 = vadd.f32 %v982, %v3416
  %v3423 = vxor.u32 %v3420, 2147483648
  %v3424 = vxor.u32 %v3421, 2147483648
  %v3425 = vxor.u32 %v3422, 2147483648
  %v3426 = vmul.f32 %v3423, 1.442695
  %v3427 = vpow.pop %v3426
  %v3428 = vmul.f32 %v3424, 1.442695
  %v3429 = vpow.pop %v3428
  %v3430 = vmul.f32 %v3425, 1.442695
  %v3431 = vpow.pop %v3430
  %v3432 = vadd.f32 %v3427, 1.0
  %v3433 = vadd.f32 %v3429, 1.0
  %v3434 = vadd.f32 %v3431, 1.0
  %v3435 = vrcp.pop %v3432
  %v3436 = vmul.f32 1.0, %v3435
  %v3437 = vrcp.pop %v3433
  %v3438 = vmul.f32 1.0, %v3437
  %v3439 = vrcp.pop %v3434
  %v3440 = vmul.f32 1.0, %v3439
  %v3441 = vadd.f32 %v3295, %v1136
  %v3442 = vadd.f32 %v3297, %v1140
  %v3443 = vadd.f32 %v3376, %v1144
  %v3447 = vrot.slane %v3441, 6
  %v3448 = vrot.slane %v3442, 6
  %v3449 = vrot.slane %v3443, 6
  %v3453 = vmul.f32 %v3406, %v3447
  %v3454 = vmul.f32 %v3408, %v3448
  %v3455 = vmul.f32 %v3410, %v3449
  %v3456 = vadd.f32 %v1023, %v3453
  %v3457 = vadd.f32 %v1025, %v3454
  %v3458 = vadd.f32 %v1066, %v3455
  %v3459 = vtanh.pop %v3456
  %v3460 = vtanh.pop %v3457
  %v3461 = vtanh.pop %v3458
  %v3462 = vsub.f32 1.0, %v3436
  %v3463 = vsub.f32 1.0, %v3438
  %v3464 = vsub.f32 1.0, %v3440
  %v3465 = vmul.f32 %v3462, %v3459
  %v3466 = vmul.f32 %v3463, %v3460
  %v3467 = vmul.f32 %v3464, %v3461
  %v3471 = vrot.slane %v2967, 6
  %v3472 = vrot.slane %v2968, 6
  %v3473 = vrot.slane %v2969, 6
  %v3477 = vmul.f32 %v3436, %v3471
  %v3478 = vmul.f32 %v3438, %v3472
  %v3479 = vmul.f32 %v3440, %v3473
  %v3480 = vadd.f32 %v3465, %v3477
  %v3481 = vadd.f32 %v3466, %v3478
  %v3482 = vadd.f32 %v3467, %v3479
  %v3483 = vpack.c.bf16 %v3480, %v3480
  %v3484 = vpack.c.bf16 %v3481, %v3481
  %v3485 = vpack.c.bf16 %v3482, %v3482
  %v3489 = vrot.slane %v3483, 1
  %v3490 = vrot.slane %v3484, 1
  %v3491 = vrot.slane %v3485, 1
  %3495 = vmatprep.subr.bf16.mxu0 %v2128
  %3496 = vmatpush1.bf16.msra.mxu0 %v2127
  %3497 = vmatprep.subr.bf16.mxu0 %v2119
  %3498 = vmatpush1.bf16.msra.mxu0 %v2118
  %3499 = vmatprep.subr.bf16.mxu0 %v2110
  %3500 = vmatpush1.bf16.msra.mxu0 %v2109
  %3501 = vmatprep.subr.bf16.mxu0 %v2101
  %3502 = vmatpush1.bf16.msra.mxu0 %v2100
  %3503 = vmatprep.subr.bf16.mxu0 %v2092
  %3504 = vmatpush1.bf16.msra.mxu0 %v2091
  %3505 = vmatprep.subr.bf16.mxu0 %v2083
  %3506 = vmatpush1.bf16.msra.mxu0 %v2082
  %3507 = vmatprep.subr.bf16.mxu0 %v2074
  %3508 = vmatpush1.bf16.msra.mxu0 %v2073
  %3509 = vmatprep.subr.bf16.mxu0 %v2065
  %3510 = vmatpush1.bf16.msra.mxu0 %v2064
  %3511 = vmatprep.subr.bf16.mxu0 %v2200
  %3512 = vmatpush2.bf16.msra.mxu0 %v2199
  %3513 = vmatprep.subr.bf16.mxu0 %v2191
  %3514 = vmatpush2.bf16.msra.mxu0 %v2190
  %3515 = vmatprep.subr.bf16.mxu0 %v2182
  %3516 = vmatpush2.bf16.msra.mxu0 %v2181
  %3517 = vmatprep.subr.bf16.mxu0 %v2173
  %3518 = vmatpush2.bf16.msra.mxu0 %v2172
  %3519 = vmatprep.subr.bf16.mxu0 %v2164
  %3520 = vmatpush2.bf16.msra.mxu0 %v2163
  %3521 = vmatprep.subr.bf16.mxu0 %v2155
  %3522 = vmatpush2.bf16.msra.mxu0 %v2154
  %3523 = vmatprep.subr.bf16.mxu0 %v2146
  %3524 = vmatpush2.bf16.msra.mxu0 %v2145
  %3525 = vmatprep.subr.bf16.mxu0 %v2137
  %3526 = vmatpush2.bf16.msra.mxu0 %v2136
  %3527 = vmatprep.mubr.bf16.mxu0 %v3490
  %3528 = vmatmul.mubr.bf16.gmra.mxu0 %v3489
  %v3529 = vpop.f32.mrf.mxu0
  %v3530 = vadd.f32 0.0, %v3529
  %v3531 = vpop.f32.mrf.mxu0
  %v3532 = vadd.f32 0.0, %v3531
  %v3533 = vpop.f32.mrf.mxu0
  %v3534 = vpop.f32.mrf.mxu0
  %3535 = vdwg.mxu0
  %3536 = vmatprep.subr.bf16.mxu0 %v2272
  %3537 = vmatpush1.bf16.msra.mxu0 %v2271
  %3538 = vmatprep.subr.bf16.mxu0 %v2263
  %3539 = vmatpush1.bf16.msra.mxu0 %v2262
  %3540 = vmatprep.subr.bf16.mxu0 %v2254
  %3541 = vmatpush1.bf16.msra.mxu0 %v2253
  %3542 = vmatprep.subr.bf16.mxu0 %v2245
  %3543 = vmatpush1.bf16.msra.mxu0 %v2244
  %3544 = vmatprep.subr.bf16.mxu0 %v2236
  %3545 = vmatpush1.bf16.msra.mxu0 %v2235
  %3546 = vmatprep.subr.bf16.mxu0 %v2227
  %3547 = vmatpush1.bf16.msra.mxu0 %v2226
  %3548 = vmatprep.subr.bf16.mxu0 %v2218
  %3549 = vmatpush1.bf16.msra.mxu0 %v2217
  %3550 = vmatprep.subr.bf16.mxu0 %v2209
  %3551 = vmatpush1.bf16.msra.mxu0 %v2208
  %3552 = vmatprep.subr.bf16.mxu0 0
  %3553 = vmatpush2.bf16.msra.mxu0 0
  %3554 = vmatprep.subr.bf16.mxu0 0
  %3555 = vmatpush2.bf16.msra.mxu0 0
  %3556 = vmatprep.subr.bf16.mxu0 0
  %3557 = vmatpush2.bf16.msra.mxu0 0
  %3558 = vmatprep.subr.bf16.mxu0 0
  %3559 = vmatpush2.bf16.msra.mxu0 0
  %3560 = vmatprep.subr.bf16.mxu0 0
  %3561 = vmatpush2.bf16.msra.mxu0 0
  %3562 = vmatprep.subr.bf16.mxu0 0
  %3563 = vmatpush2.bf16.msra.mxu0 0
  %3564 = vmatprep.subr.bf16.mxu0 0
  %3565 = vmatpush2.bf16.msra.mxu0 0
  %3566 = vmatprep.subr.bf16.mxu0 0
  %3567 = vmatpush2.bf16.msra.mxu0 0
  %3568 = vmatprep.mubr.bf16.mxu0 0
  %3569 = vmatmul.mubr.bf16.gmra.mxu0 %v3491
  %v3570 = vpop.f32.mrf.mxu0
  %v3571 = vadd.f32 %v3530, %v3570
  %v3572 = vpop.f32.mrf.mxu0
  %v3573 = vadd.f32 %v3532, %v3572
  %v3574 = vpop.f32.mrf.mxu0
  %v3575 = vpop.f32.mrf.mxu0
  %3576 = vdwg.mxu0
  %3577 = vmatprep.subr.bf16.mxu0 %v2130
  %3578 = vmatpush1.bf16.msra.mxu0 %v2129
  %3579 = vmatprep.subr.bf16.mxu0 %v2121
  %3580 = vmatpush1.bf16.msra.mxu0 %v2120
  %3581 = vmatprep.subr.bf16.mxu0 %v2112
  %3582 = vmatpush1.bf16.msra.mxu0 %v2111
  %3583 = vmatprep.subr.bf16.mxu0 %v2103
  %3584 = vmatpush1.bf16.msra.mxu0 %v2102
  %3585 = vmatprep.subr.bf16.mxu0 %v2094
  %3586 = vmatpush1.bf16.msra.mxu0 %v2093
  %3587 = vmatprep.subr.bf16.mxu0 %v2085
  %3588 = vmatpush1.bf16.msra.mxu0 %v2084
  %3589 = vmatprep.subr.bf16.mxu0 %v2076
  %3590 = vmatpush1.bf16.msra.mxu0 %v2075
  %3591 = vmatprep.subr.bf16.mxu0 %v2067
  %3592 = vmatpush1.bf16.msra.mxu0 %v2066
  %3593 = vmatprep.subr.bf16.mxu0 %v2202
  %3594 = vmatpush2.bf16.msra.mxu0 %v2201
  %3595 = vmatprep.subr.bf16.mxu0 %v2193
  %3596 = vmatpush2.bf16.msra.mxu0 %v2192
  %3597 = vmatprep.subr.bf16.mxu0 %v2184
  %3598 = vmatpush2.bf16.msra.mxu0 %v2183
  %3599 = vmatprep.subr.bf16.mxu0 %v2175
  %3600 = vmatpush2.bf16.msra.mxu0 %v2174
  %3601 = vmatprep.subr.bf16.mxu0 %v2166
  %3602 = vmatpush2.bf16.msra.mxu0 %v2165
  %3603 = vmatprep.subr.bf16.mxu0 %v2157
  %3604 = vmatpush2.bf16.msra.mxu0 %v2156
  %3605 = vmatprep.subr.bf16.mxu0 %v2148
  %3606 = vmatpush2.bf16.msra.mxu0 %v2147
  %3607 = vmatprep.subr.bf16.mxu0 %v2139
  %3608 = vmatpush2.bf16.msra.mxu0 %v2138
  %3609 = vmatprep.mubr.bf16.mxu0 %v3490
  %3610 = vmatmul.mubr.bf16.gmra.mxu0 %v3489
  %v3611 = vpop.f32.mrf.mxu0
  %v3612 = vadd.f32 0.0, %v3611
  %v3613 = vpop.f32.mrf.mxu0
  %v3614 = vadd.f32 0.0, %v3613
  %v3615 = vpop.f32.mrf.mxu0
  %v3616 = vpop.f32.mrf.mxu0
  %3617 = vdwg.mxu0
  %3618 = vmatprep.subr.bf16.mxu0 %v2274
  %3619 = vmatpush1.bf16.msra.mxu0 %v2273
  %3620 = vmatprep.subr.bf16.mxu0 %v2265
  %3621 = vmatpush1.bf16.msra.mxu0 %v2264
  %3622 = vmatprep.subr.bf16.mxu0 %v2256
  %3623 = vmatpush1.bf16.msra.mxu0 %v2255
  %3624 = vmatprep.subr.bf16.mxu0 %v2247
  %3625 = vmatpush1.bf16.msra.mxu0 %v2246
  %3626 = vmatprep.subr.bf16.mxu0 %v2238
  %3627 = vmatpush1.bf16.msra.mxu0 %v2237
  %3628 = vmatprep.subr.bf16.mxu0 %v2229
  %3629 = vmatpush1.bf16.msra.mxu0 %v2228
  %3630 = vmatprep.subr.bf16.mxu0 %v2220
  %3631 = vmatpush1.bf16.msra.mxu0 %v2219
  %3632 = vmatprep.subr.bf16.mxu0 %v2211
  %3633 = vmatpush1.bf16.msra.mxu0 %v2210
  %3634 = vmatprep.subr.bf16.mxu0 0
  %3635 = vmatpush2.bf16.msra.mxu0 0
  %3636 = vmatprep.subr.bf16.mxu0 0
  %3637 = vmatpush2.bf16.msra.mxu0 0
  %3638 = vmatprep.subr.bf16.mxu0 0
  %3639 = vmatpush2.bf16.msra.mxu0 0
  %3640 = vmatprep.subr.bf16.mxu0 0
  %3641 = vmatpush2.bf16.msra.mxu0 0
  %3642 = vmatprep.subr.bf16.mxu0 0
  %3643 = vmatpush2.bf16.msra.mxu0 0
  %3644 = vmatprep.subr.bf16.mxu0 0
  %3645 = vmatpush2.bf16.msra.mxu0 0
  %3646 = vmatprep.subr.bf16.mxu0 0
  %3647 = vmatpush2.bf16.msra.mxu0 0
  %3648 = vmatprep.subr.bf16.mxu0 0
  %3649 = vmatpush2.bf16.msra.mxu0 0
  %3650 = vmatprep.mubr.bf16.mxu0 0
  %3651 = vmatmul.mubr.bf16.gmra.mxu0 %v3491
  %v3652 = vpop.f32.mrf.mxu0
  %v3653 = vadd.f32 %v3612, %v3652
  %v3654 = vpop.f32.mrf.mxu0
  %v3655 = vadd.f32 %v3614, %v3654
  %v3656 = vpop.f32.mrf.mxu0
  %v3657 = vpop.f32.mrf.mxu0
  %3658 = vdwg.mxu0
  %3659 = vmatprep.subr.bf16.mxu0 %v2132
  %3660 = vmatpush1.bf16.msra.mxu0 %v2131
  %3661 = vmatprep.subr.bf16.mxu0 %v2123
  %3662 = vmatpush1.bf16.msra.mxu0 %v2122
  %3663 = vmatprep.subr.bf16.mxu0 %v2114
  %3664 = vmatpush1.bf16.msra.mxu0 %v2113
  %3665 = vmatprep.subr.bf16.mxu0 %v2105
  %3666 = vmatpush1.bf16.msra.mxu0 %v2104
  %3667 = vmatprep.subr.bf16.mxu0 %v2096
  %3668 = vmatpush1.bf16.msra.mxu0 %v2095
  %3669 = vmatprep.subr.bf16.mxu0 %v2087
  %3670 = vmatpush1.bf16.msra.mxu0 %v2086
  %3671 = vmatprep.subr.bf16.mxu0 %v2078
  %3672 = vmatpush1.bf16.msra.mxu0 %v2077
  %3673 = vmatprep.subr.bf16.mxu0 %v2069
  %3674 = vmatpush1.bf16.msra.mxu0 %v2068
  %3675 = vmatprep.subr.bf16.mxu0 %v2204
  %3676 = vmatpush2.bf16.msra.mxu0 %v2203
  %3677 = vmatprep.subr.bf16.mxu0 %v2195
  %3678 = vmatpush2.bf16.msra.mxu0 %v2194
  %3679 = vmatprep.subr.bf16.mxu0 %v2186
  %3680 = vmatpush2.bf16.msra.mxu0 %v2185
  %3681 = vmatprep.subr.bf16.mxu0 %v2177
  %3682 = vmatpush2.bf16.msra.mxu0 %v2176
  %3683 = vmatprep.subr.bf16.mxu0 %v2168
  %3684 = vmatpush2.bf16.msra.mxu0 %v2167
  %3685 = vmatprep.subr.bf16.mxu0 %v2159
  %3686 = vmatpush2.bf16.msra.mxu0 %v2158
  %3687 = vmatprep.subr.bf16.mxu0 %v2150
  %3688 = vmatpush2.bf16.msra.mxu0 %v2149
  %3689 = vmatprep.subr.bf16.mxu0 %v2141
  %3690 = vmatpush2.bf16.msra.mxu0 %v2140
  %3691 = vmatprep.mubr.bf16.mxu0 %v3490
  %3692 = vmatmul.mubr.bf16.gmra.mxu0 %v3489
  %v3693 = vpop.f32.mrf.mxu0
  %v3694 = vadd.f32 0.0, %v3693
  %v3695 = vpop.f32.mrf.mxu0
  %v3696 = vadd.f32 0.0, %v3695
  %v3697 = vpop.f32.mrf.mxu0
  %v3698 = vpop.f32.mrf.mxu0
  %3699 = vdwg.mxu0
  %3700 = vmatprep.subr.bf16.mxu0 %v2276
  %3701 = vmatpush1.bf16.msra.mxu0 %v2275
  %3702 = vmatprep.subr.bf16.mxu0 %v2267
  %3703 = vmatpush1.bf16.msra.mxu0 %v2266
  %3704 = vmatprep.subr.bf16.mxu0 %v2258
  %3705 = vmatpush1.bf16.msra.mxu0 %v2257
  %3706 = vmatprep.subr.bf16.mxu0 %v2249
  %3707 = vmatpush1.bf16.msra.mxu0 %v2248
  %3708 = vmatprep.subr.bf16.mxu0 %v2240
  %3709 = vmatpush1.bf16.msra.mxu0 %v2239
  %3710 = vmatprep.subr.bf16.mxu0 %v2231
  %3711 = vmatpush1.bf16.msra.mxu0 %v2230
  %3712 = vmatprep.subr.bf16.mxu0 %v2222
  %3713 = vmatpush1.bf16.msra.mxu0 %v2221
  %3714 = vmatprep.subr.bf16.mxu0 %v2213
  %3715 = vmatpush1.bf16.msra.mxu0 %v2212
  %3716 = vmatprep.subr.bf16.mxu0 0
  %3717 = vmatpush2.bf16.msra.mxu0 0
  %3718 = vmatprep.subr.bf16.mxu0 0
  %3719 = vmatpush2.bf16.msra.mxu0 0
  %3720 = vmatprep.subr.bf16.mxu0 0
  %3721 = vmatpush2.bf16.msra.mxu0 0
  %3722 = vmatprep.subr.bf16.mxu0 0
  %3723 = vmatpush2.bf16.msra.mxu0 0
  %3724 = vmatprep.subr.bf16.mxu0 0
  %3725 = vmatpush2.bf16.msra.mxu0 0
  %3726 = vmatprep.subr.bf16.mxu0 0
  %3727 = vmatpush2.bf16.msra.mxu0 0
  %3728 = vmatprep.subr.bf16.mxu0 0
  %3729 = vmatpush2.bf16.msra.mxu0 0
  %3730 = vmatprep.subr.bf16.mxu0 0
  %3731 = vmatpush2.bf16.msra.mxu0 0
  %3732 = vmatprep.mubr.bf16.mxu0 0
  %3733 = vmatmul.mubr.bf16.gmra.mxu0 %v3491
  %v3734 = vpop.f32.mrf.mxu0
  %v3735 = vadd.f32 %v3694, %v3734
  %v3736 = vpop.f32.mrf.mxu0
  %v3737 = vadd.f32 %v3696, %v3736
  %v3738 = vpop.f32.mrf.mxu0
  %v3739 = vpop.f32.mrf.mxu0
  %3740 = vdwg.mxu0
  %3741 = vmatprep.subr.bf16.mxu0 %v2134
  %3742 = vmatpush1.bf16.msra.mxu0 %v2133
  %3743 = vmatprep.subr.bf16.mxu0 %v2125
  %3744 = vmatpush1.bf16.msra.mxu0 %v2124
  %3745 = vmatprep.subr.bf16.mxu0 %v2116
  %3746 = vmatpush1.bf16.msra.mxu0 %v2115
  %3747 = vmatprep.subr.bf16.mxu0 %v2107
  %3748 = vmatpush1.bf16.msra.mxu0 %v2106
  %3749 = vmatprep.subr.bf16.mxu0 %v2098
  %3750 = vmatpush1.bf16.msra.mxu0 %v2097
  %3751 = vmatprep.subr.bf16.mxu0 %v2089
  %3752 = vmatpush1.bf16.msra.mxu0 %v2088
  %3753 = vmatprep.subr.bf16.mxu0 %v2080
  %3754 = vmatpush1.bf16.msra.mxu0 %v2079
  %3755 = vmatprep.subr.bf16.mxu0 %v2071
  %3756 = vmatpush1.bf16.msra.mxu0 %v2070
  %3757 = vmatprep.subr.bf16.mxu0 %v2206
  %3758 = vmatpush2.bf16.msra.mxu0 %v2205
  %3759 = vmatprep.subr.bf16.mxu0 %v2197
  %3760 = vmatpush2.bf16.msra.mxu0 %v2196
  %3761 = vmatprep.subr.bf16.mxu0 %v2188
  %3762 = vmatpush2.bf16.msra.mxu0 %v2187
  %3763 = vmatprep.subr.bf16.mxu0 %v2179
  %3764 = vmatpush2.bf16.msra.mxu0 %v2178
  %3765 = vmatprep.subr.bf16.mxu0 %v2170
  %3766 = vmatpush2.bf16.msra.mxu0 %v2169
  %3767 = vmatprep.subr.bf16.mxu0 %v2161
  %3768 = vmatpush2.bf16.msra.mxu0 %v2160
  %3769 = vmatprep.subr.bf16.mxu0 %v2152
  %3770 = vmatpush2.bf16.msra.mxu0 %v2151
  %3771 = vmatprep.subr.bf16.mxu0 %v2143
  %3772 = vmatpush2.bf16.msra.mxu0 %v2142
  %3773 = vmatprep.mubr.bf16.mxu0 %v3490
  %3774 = vmatmul.mubr.bf16.gmra.mxu0 %v3489
  %v3775 = vpop.f32.mrf.mxu0
  %v3776 = vadd.f32 0.0, %v3775
  %v3777 = vpop.f32.mrf.mxu0
  %v3778 = vadd.f32 0.0, %v3777
  %v3779 = vpop.f32.mrf.mxu0
  %v3780 = vpop.f32.mrf.mxu0
  %3781 = vdwg.mxu0
  %3782 = vmatprep.subr.bf16.mxu0 %v2278
  %3783 = vmatpush1.bf16.msra.mxu0 %v2277
  %3784 = vmatprep.subr.bf16.mxu0 %v2269
  %3785 = vmatpush1.bf16.msra.mxu0 %v2268
  %3786 = vmatprep.subr.bf16.mxu0 %v2260
  %3787 = vmatpush1.bf16.msra.mxu0 %v2259
  %3788 = vmatprep.subr.bf16.mxu0 %v2251
  %3789 = vmatpush1.bf16.msra.mxu0 %v2250
  %3790 = vmatprep.subr.bf16.mxu0 %v2242
  %3791 = vmatpush1.bf16.msra.mxu0 %v2241
  %3792 = vmatprep.subr.bf16.mxu0 %v2233
  %3793 = vmatpush1.bf16.msra.mxu0 %v2232
  %3794 = vmatprep.subr.bf16.mxu0 %v2224
  %3795 = vmatpush1.bf16.msra.mxu0 %v2223
  %3796 = vmatprep.subr.bf16.mxu0 %v2215
  %3797 = vmatpush1.bf16.msra.mxu0 %v2214
  %3798 = vmatprep.subr.bf16.mxu0 0
  %3799 = vmatpush2.bf16.msra.mxu0 0
  %3800 = vmatprep.subr.bf16.mxu0 0
  %3801 = vmatpush2.bf16.msra.mxu0 0
  %3802 = vmatprep.subr.bf16.mxu0 0
  %3803 = vmatpush2.bf16.msra.mxu0 0
  %3804 = vmatprep.subr.bf16.mxu0 0
  %3805 = vmatpush2.bf16.msra.mxu0 0
  %3806 = vmatprep.subr.bf16.mxu0 0
  %3807 = vmatpush2.bf16.msra.mxu0 0
  %3808 = vmatprep.subr.bf16.mxu0 0
  %3809 = vmatpush2.bf16.msra.mxu0 0
  %3810 = vmatprep.subr.bf16.mxu0 0
  %3811 = vmatpush2.bf16.msra.mxu0 0
  %3812 = vmatprep.subr.bf16.mxu0 0
  %3813 = vmatpush2.bf16.msra.mxu0 0
  %3814 = vmatprep.mubr.bf16.mxu0 0
  %3815 = vmatmul.mubr.bf16.gmra.mxu0 %v3491
  %v3816 = vpop.f32.mrf.mxu0
  %v3817 = vadd.f32 %v3776, %v3816
  %v3818 = vpop.f32.mrf.mxu0
  %v3819 = vadd.f32 %v3778, %v3818
  %v3820 = vpop.f32.mrf.mxu0
  %v3821 = vpop.f32.mrf.mxu0
  %3822 = vdwg.mxu0
  %3823 = vmatprep.subr.bf16.mxu0 0
  %3824 = vmatpush1.bf16.msra.mxu0 %v2135
  %3825 = vmatprep.subr.bf16.mxu0 0
  %3826 = vmatpush1.bf16.msra.mxu0 %v2126
  %3827 = vmatprep.subr.bf16.mxu0 0
  %3828 = vmatpush1.bf16.msra.mxu0 %v2117
  %3829 = vmatprep.subr.bf16.mxu0 0
  %3830 = vmatpush1.bf16.msra.mxu0 %v2108
  %3831 = vmatprep.subr.bf16.mxu0 0
  %3832 = vmatpush1.bf16.msra.mxu0 %v2099
  %3833 = vmatprep.subr.bf16.mxu0 0
  %3834 = vmatpush1.bf16.msra.mxu0 %v2090
  %3835 = vmatprep.subr.bf16.mxu0 0
  %3836 = vmatpush1.bf16.msra.mxu0 %v2081
  %3837 = vmatprep.subr.bf16.mxu0 0
  %3838 = vmatpush1.bf16.msra.mxu0 %v2072
  %3839 = vmatprep.subr.bf16.mxu0 0
  %3840 = vmatpush2.bf16.msra.mxu0 %v2207
  %3841 = vmatprep.subr.bf16.mxu0 0
  %3842 = vmatpush2.bf16.msra.mxu0 %v2198
  %3843 = vmatprep.subr.bf16.mxu0 0
  %3844 = vmatpush2.bf16.msra.mxu0 %v2189
  %3845 = vmatprep.subr.bf16.mxu0 0
  %3846 = vmatpush2.bf16.msra.mxu0 %v2180
  %3847 = vmatprep.subr.bf16.mxu0 0
  %3848 = vmatpush2.bf16.msra.mxu0 %v2171
  %3849 = vmatprep.subr.bf16.mxu0 0
  %3850 = vmatpush2.bf16.msra.mxu0 %v2162
  %3851 = vmatprep.subr.bf16.mxu0 0
  %3852 = vmatpush2.bf16.msra.mxu0 %v2153
  %3853 = vmatprep.subr.bf16.mxu0 0
  %3854 = vmatpush2.bf16.msra.mxu0 %v2144
  %3855 = vmatprep.mubr.bf16.mxu0 %v3490
  %3856 = vmatmul.mubr.bf16.gmra.mxu0 %v3489
  %v3857 = vpop.f32.mrf.mxu0
  %v3858 = vadd.f32 0.0, %v3857
  %v3859 = vpop.f32.mrf.mxu0
  %v3860 = vpop.f32.mrf.mxu0
  %v3861 = vpop.f32.mrf.mxu0
  %3862 = vdwg.mxu0
  %3863 = vmatprep.subr.bf16.mxu0 0
  %3864 = vmatpush1.bf16.msra.mxu0 %v2279
  %3865 = vmatprep.subr.bf16.mxu0 0
  %3866 = vmatpush1.bf16.msra.mxu0 %v2270
  %3867 = vmatprep.subr.bf16.mxu0 0
  %3868 = vmatpush1.bf16.msra.mxu0 %v2261
  %3869 = vmatprep.subr.bf16.mxu0 0
  %3870 = vmatpush1.bf16.msra.mxu0 %v2252
  %3871 = vmatprep.subr.bf16.mxu0 0
  %3872 = vmatpush1.bf16.msra.mxu0 %v2243
  %3873 = vmatprep.subr.bf16.mxu0 0
  %3874 = vmatpush1.bf16.msra.mxu0 %v2234
  %3875 = vmatprep.subr.bf16.mxu0 0
  %3876 = vmatpush1.bf16.msra.mxu0 %v2225
  %3877 = vmatprep.subr.bf16.mxu0 0
  %3878 = vmatpush1.bf16.msra.mxu0 %v2216
  %3879 = vmatprep.subr.bf16.mxu0 0
  %3880 = vmatpush2.bf16.msra.mxu0 0
  %3881 = vmatprep.subr.bf16.mxu0 0
  %3882 = vmatpush2.bf16.msra.mxu0 0
  %3883 = vmatprep.subr.bf16.mxu0 0
  %3884 = vmatpush2.bf16.msra.mxu0 0
  %3885 = vmatprep.subr.bf16.mxu0 0
  %3886 = vmatpush2.bf16.msra.mxu0 0
  %3887 = vmatprep.subr.bf16.mxu0 0
  %3888 = vmatpush2.bf16.msra.mxu0 0
  %3889 = vmatprep.subr.bf16.mxu0 0
  %3890 = vmatpush2.bf16.msra.mxu0 0
  %3891 = vmatprep.subr.bf16.mxu0 0
  %3892 = vmatpush2.bf16.msra.mxu0 0
  %3893 = vmatprep.subr.bf16.mxu0 0
  %3894 = vmatpush2.bf16.msra.mxu0 0
  %3895 = vmatprep.mubr.bf16.mxu0 0
  %3896 = vmatmul.mubr.bf16.gmra.mxu0 %v3491
  %v3897 = vpop.f32.mrf.mxu0
  %v3898 = vadd.f32 %v3858, %v3897
  %v3899 = vpop.f32.mrf.mxu0
  %v3900 = vpop.f32.mrf.mxu0
  %v3901 = vpop.f32.mrf.mxu0
  %3902 = vdwg.mxu0
  %v3906 = vrot.slane %v3571, 4
  %v3907 = vrot.slane %v3573, 4
  %v3908 = vrot.slane %v3653, 4
  %v3912 = vadd.f32 %v894, %v3906
  %v3913 = vadd.f32 %v896, %v3907
  %v3914 = vadd.f32 %v937, %v3908
  %v3915 = vxor.u32 %v3912, 2147483648
  %v3916 = vxor.u32 %v3913, 2147483648
  %v3917 = vxor.u32 %v3914, 2147483648
  %v3918 = vmul.f32 %v3915, 1.442695
  %v3919 = vpow.pop %v3918
  %v3920 = vmul.f32 %v3916, 1.442695
  %v3921 = vpow.pop %v3920
  %v3922 = vmul.f32 %v3917, 1.442695
  %v3923 = vpow.pop %v3922
  %v3924 = vadd.f32 %v3919, 1.0
  %v3925 = vadd.f32 %v3921, 1.0
  %v3926 = vadd.f32 %v3923, 1.0
  %v3927 = vrcp.pop %v3924
  %v3928 = vmul.f32 1.0, %v3927
  %v3929 = vrcp.pop %v3925
  %v3930 = vmul.f32 1.0, %v3929
  %v3931 = vrcp.pop %v3926
  %v3932 = vmul.f32 1.0, %v3931
  %v3936 = vrot.slane %v3655, 4
  %v3937 = vrot.slane %v3735, 4
  %v3938 = vrot.slane %v3737, 4
  %v3942 = vadd.f32 %v939, %v3936
  %v3943 = vadd.f32 %v980, %v3937
  %v3944 = vadd.f32 %v982, %v3938
  %v3945 = vxor.u32 %v3942, 2147483648
  %v3946 = vxor.u32 %v3943, 2147483648
  %v3947 = vxor.u32 %v3944, 2147483648
  %v3948 = vmul.f32 %v3945, 1.442695
  %v3949 = vpow.pop %v3948
  %v3950 = vmul.f32 %v3946, 1.442695
  %v3951 = vpow.pop %v3950
  %v3952 = vmul.f32 %v3947, 1.442695
  %v3953 = vpow.pop %v3952
  %v3954 = vadd.f32 %v3949, 1.0
  %v3955 = vadd.f32 %v3951, 1.0
  %v3956 = vadd.f32 %v3953, 1.0
  %v3957 = vrcp.pop %v3954
  %v3958 = vmul.f32 1.0, %v3957
  %v3959 = vrcp.pop %v3955
  %v3960 = vmul.f32 1.0, %v3959
  %v3961 = vrcp.pop %v3956
  %v3962 = vmul.f32 1.0, %v3961
  %v3963 = vadd.f32 %v3817, %v1136
  %v3964 = vadd.f32 %v3819, %v1140
  %v3965 = vadd.f32 %v3898, %v1144
  %v3969 = vrot.slane %v3963, 4
  %v3970 = vrot.slane %v3964, 4
  %v3971 = vrot.slane %v3965, 4
  %v3975 = vmul.f32 %v3928, %v3969
  %v3976 = vmul.f32 %v3930, %v3970
  %v3977 = vmul.f32 %v3932, %v3971
  %v3978 = vadd.f32 %v1023, %v3975
  %v3979 = vadd.f32 %v1025, %v3976
  %v3980 = vadd.f32 %v1066, %v3977
  %v3981 = vtanh.pop %v3978
  %v3982 = vtanh.pop %v3979
  %v3983 = vtanh.pop %v3980
  %v3984 = vsub.f32 1.0, %v3958
  %v3985 = vsub.f32 1.0, %v3960
  %v3986 = vsub.f32 1.0, %v3962
  %v3987 = vmul.f32 %v3984, %v3981
  %v3988 = vmul.f32 %v3985, %v3982
  %v3989 = vmul.f32 %v3986, %v3983
  %v3993 = vrot.slane %v3480, 6
  %v3994 = vrot.slane %v3481, 6
  %v3995 = vrot.slane %v3482, 6
  %v3999 = vmul.f32 %v3958, %v3993
  %v4000 = vmul.f32 %v3960, %v3994
  %v4001 = vmul.f32 %v3962, %v3995
  %v4002 = vadd.f32 %v3987, %v3999
  %v4003 = vadd.f32 %v3988, %v4000
  %v4004 = vadd.f32 %v3989, %v4001
  %v4005 = vpack.c.bf16 %v4002, %v4002
  %v4006 = vpack.c.bf16 %v4003, %v4003
  %v4007 = vpack.c.bf16 %v4004, %v4004
  %v4011 = vrot.slane %v4005, 2
  %v4012 = vrot.slane %v4006, 2
  %v4013 = vrot.slane %v4007, 2
  %4017 = vmatprep.subr.bf16.mxu0 %v2128
  %4018 = vmatpush1.bf16.msra.mxu0 %v2127
  %4019 = vmatprep.subr.bf16.mxu0 %v2119
  %4020 = vmatpush1.bf16.msra.mxu0 %v2118
  %4021 = vmatprep.subr.bf16.mxu0 %v2110
  %4022 = vmatpush1.bf16.msra.mxu0 %v2109
  %4023 = vmatprep.subr.bf16.mxu0 %v2101
  %4024 = vmatpush1.bf16.msra.mxu0 %v2100
  %4025 = vmatprep.subr.bf16.mxu0 %v2092
  %4026 = vmatpush1.bf16.msra.mxu0 %v2091
  %4027 = vmatprep.subr.bf16.mxu0 %v2083
  %4028 = vmatpush1.bf16.msra.mxu0 %v2082
  %4029 = vmatprep.subr.bf16.mxu0 %v2074
  %4030 = vmatpush1.bf16.msra.mxu0 %v2073
  %4031 = vmatprep.subr.bf16.mxu0 %v2065
  %4032 = vmatpush1.bf16.msra.mxu0 %v2064
  %4033 = vmatprep.subr.bf16.mxu0 %v2200
  %4034 = vmatpush2.bf16.msra.mxu0 %v2199
  %4035 = vmatprep.subr.bf16.mxu0 %v2191
  %4036 = vmatpush2.bf16.msra.mxu0 %v2190
  %4037 = vmatprep.subr.bf16.mxu0 %v2182
  %4038 = vmatpush2.bf16.msra.mxu0 %v2181
  %4039 = vmatprep.subr.bf16.mxu0 %v2173
  %4040 = vmatpush2.bf16.msra.mxu0 %v2172
  %4041 = vmatprep.subr.bf16.mxu0 %v2164
  %4042 = vmatpush2.bf16.msra.mxu0 %v2163
  %4043 = vmatprep.subr.bf16.mxu0 %v2155
  %4044 = vmatpush2.bf16.msra.mxu0 %v2154
  %4045 = vmatprep.subr.bf16.mxu0 %v2146
  %4046 = vmatpush2.bf16.msra.mxu0 %v2145
  %4047 = vmatprep.subr.bf16.mxu0 %v2137
  %4048 = vmatpush2.bf16.msra.mxu0 %v2136
  %4049 = vmatprep.mubr.bf16.mxu0 %v4012
  %4050 = vmatmul.mubr.bf16.gmra.mxu0 %v4011
  %v4051 = vpop.f32.mrf.mxu0
  %v4052 = vadd.f32 0.0, %v4051
  %v4053 = vpop.f32.mrf.mxu0
  %v4054 = vadd.f32 0.0, %v4053
  %v4055 = vpop.f32.mrf.mxu0
  %v4056 = vpop.f32.mrf.mxu0
  %4057 = vdwg.mxu0
  %4058 = vmatprep.subr.bf16.mxu0 %v2272
  %4059 = vmatpush1.bf16.msra.mxu0 %v2271
  %4060 = vmatprep.subr.bf16.mxu0 %v2263
  %4061 = vmatpush1.bf16.msra.mxu0 %v2262
  %4062 = vmatprep.subr.bf16.mxu0 %v2254
  %4063 = vmatpush1.bf16.msra.mxu0 %v2253
  %4064 = vmatprep.subr.bf16.mxu0 %v2245
  %4065 = vmatpush1.bf16.msra.mxu0 %v2244
  %4066 = vmatprep.subr.bf16.mxu0 %v2236
  %4067 = vmatpush1.bf16.msra.mxu0 %v2235
  %4068 = vmatprep.subr.bf16.mxu0 %v2227
  %4069 = vmatpush1.bf16.msra.mxu0 %v2226
  %4070 = vmatprep.subr.bf16.mxu0 %v2218
  %4071 = vmatpush1.bf16.msra.mxu0 %v2217
  %4072 = vmatprep.subr.bf16.mxu0 %v2209
  %4073 = vmatpush1.bf16.msra.mxu0 %v2208
  %4074 = vmatprep.subr.bf16.mxu0 0
  %4075 = vmatpush2.bf16.msra.mxu0 0
  %4076 = vmatprep.subr.bf16.mxu0 0
  %4077 = vmatpush2.bf16.msra.mxu0 0
  %4078 = vmatprep.subr.bf16.mxu0 0
  %4079 = vmatpush2.bf16.msra.mxu0 0
  %4080 = vmatprep.subr.bf16.mxu0 0
  %4081 = vmatpush2.bf16.msra.mxu0 0
  %4082 = vmatprep.subr.bf16.mxu0 0
  %4083 = vmatpush2.bf16.msra.mxu0 0
  %4084 = vmatprep.subr.bf16.mxu0 0
  %4085 = vmatpush2.bf16.msra.mxu0 0
  %4086 = vmatprep.subr.bf16.mxu0 0
  %4087 = vmatpush2.bf16.msra.mxu0 0
  %4088 = vmatprep.subr.bf16.mxu0 0
  %4089 = vmatpush2.bf16.msra.mxu0 0
  %4090 = vmatprep.mubr.bf16.mxu0 0
  %4091 = vmatmul.mubr.bf16.gmra.mxu0 %v4013
  %v4092 = vpop.f32.mrf.mxu0
  %v4093 = vadd.f32 %v4052, %v4092
  %v4094 = vpop.f32.mrf.mxu0
  %v4095 = vadd.f32 %v4054, %v4094
  %v4096 = vpop.f32.mrf.mxu0
  %v4097 = vpop.f32.mrf.mxu0
  %4098 = vdwg.mxu0
  %4099 = vmatprep.subr.bf16.mxu0 %v2130
  %4100 = vmatpush1.bf16.msra.mxu0 %v2129
  %4101 = vmatprep.subr.bf16.mxu0 %v2121
  %4102 = vmatpush1.bf16.msra.mxu0 %v2120
  %4103 = vmatprep.subr.bf16.mxu0 %v2112
  %4104 = vmatpush1.bf16.msra.mxu0 %v2111
  %4105 = vmatprep.subr.bf16.mxu0 %v2103
  %4106 = vmatpush1.bf16.msra.mxu0 %v2102
  %4107 = vmatprep.subr.bf16.mxu0 %v2094
  %4108 = vmatpush1.bf16.msra.mxu0 %v2093
  %4109 = vmatprep.subr.bf16.mxu0 %v2085
  %4110 = vmatpush1.bf16.msra.mxu0 %v2084
  %4111 = vmatprep.subr.bf16.mxu0 %v2076
  %4112 = vmatpush1.bf16.msra.mxu0 %v2075
  %4113 = vmatprep.subr.bf16.mxu0 %v2067
  %4114 = vmatpush1.bf16.msra.mxu0 %v2066
  %4115 = vmatprep.subr.bf16.mxu0 %v2202
  %4116 = vmatpush2.bf16.msra.mxu0 %v2201
  %4117 = vmatprep.subr.bf16.mxu0 %v2193
  %4118 = vmatpush2.bf16.msra.mxu0 %v2192
  %4119 = vmatprep.subr.bf16.mxu0 %v2184
  %4120 = vmatpush2.bf16.msra.mxu0 %v2183
  %4121 = vmatprep.subr.bf16.mxu0 %v2175
  %4122 = vmatpush2.bf16.msra.mxu0 %v2174
  %4123 = vmatprep.subr.bf16.mxu0 %v2166
  %4124 = vmatpush2.bf16.msra.mxu0 %v2165
  %4125 = vmatprep.subr.bf16.mxu0 %v2157
  %4126 = vmatpush2.bf16.msra.mxu0 %v2156
  %4127 = vmatprep.subr.bf16.mxu0 %v2148
  %4128 = vmatpush2.bf16.msra.mxu0 %v2147
  %4129 = vmatprep.subr.bf16.mxu0 %v2139
  %4130 = vmatpush2.bf16.msra.mxu0 %v2138
  %4131 = vmatprep.mubr.bf16.mxu0 %v4012
  %4132 = vmatmul.mubr.bf16.gmra.mxu0 %v4011
  %v4133 = vpop.f32.mrf.mxu0
  %v4134 = vadd.f32 0.0, %v4133
  %v4135 = vpop.f32.mrf.mxu0
  %v4136 = vadd.f32 0.0, %v4135
  %v4137 = vpop.f32.mrf.mxu0
  %v4138 = vpop.f32.mrf.mxu0
  %4139 = vdwg.mxu0
  %4140 = vmatprep.subr.bf16.mxu0 %v2274
  %4141 = vmatpush1.bf16.msra.mxu0 %v2273
  %4142 = vmatprep.subr.bf16.mxu0 %v2265
  %4143 = vmatpush1.bf16.msra.mxu0 %v2264
  %4144 = vmatprep.subr.bf16.mxu0 %v2256
  %4145 = vmatpush1.bf16.msra.mxu0 %v2255
  %4146 = vmatprep.subr.bf16.mxu0 %v2247
  %4147 = vmatpush1.bf16.msra.mxu0 %v2246
  %4148 = vmatprep.subr.bf16.mxu0 %v2238
  %4149 = vmatpush1.bf16.msra.mxu0 %v2237
  %4150 = vmatprep.subr.bf16.mxu0 %v2229
  %4151 = vmatpush1.bf16.msra.mxu0 %v2228
  %4152 = vmatprep.subr.bf16.mxu0 %v2220
  %4153 = vmatpush1.bf16.msra.mxu0 %v2219
  %4154 = vmatprep.subr.bf16.mxu0 %v2211
  %4155 = vmatpush1.bf16.msra.mxu0 %v2210
  %4156 = vmatprep.subr.bf16.mxu0 0
  %4157 = vmatpush2.bf16.msra.mxu0 0
  %4158 = vmatprep.subr.bf16.mxu0 0
  %4159 = vmatpush2.bf16.msra.mxu0 0
  %4160 = vmatprep.subr.bf16.mxu0 0
  %4161 = vmatpush2.bf16.msra.mxu0 0
  %4162 = vmatprep.subr.bf16.mxu0 0
  %4163 = vmatpush2.bf16.msra.mxu0 0
  %4164 = vmatprep.subr.bf16.mxu0 0
  %4165 = vmatpush2.bf16.msra.mxu0 0
  %4166 = vmatprep.subr.bf16.mxu0 0
  %4167 = vmatpush2.bf16.msra.mxu0 0
  %4168 = vmatprep.subr.bf16.mxu0 0
  %4169 = vmatpush2.bf16.msra.mxu0 0
  %4170 = vmatprep.subr.bf16.mxu0 0
  %4171 = vmatpush2.bf16.msra.mxu0 0
  %4172 = vmatprep.mubr.bf16.mxu0 0
  %4173 = vmatmul.mubr.bf16.gmra.mxu0 %v4013
  %v4174 = vpop.f32.mrf.mxu0
  %v4175 = vadd.f32 %v4134, %v4174
  %v4176 = vpop.f32.mrf.mxu0
  %v4177 = vadd.f32 %v4136, %v4176
  %v4178 = vpop.f32.mrf.mxu0
  %v4179 = vpop.f32.mrf.mxu0
  %4180 = vdwg.mxu0
  %4181 = vmatprep.subr.bf16.mxu0 %v2132
  %4182 = vmatpush1.bf16.msra.mxu0 %v2131
  %4183 = vmatprep.subr.bf16.mxu0 %v2123
  %4184 = vmatpush1.bf16.msra.mxu0 %v2122
  %4185 = vmatprep.subr.bf16.mxu0 %v2114
  %4186 = vmatpush1.bf16.msra.mxu0 %v2113
  %4187 = vmatprep.subr.bf16.mxu0 %v2105
  %4188 = vmatpush1.bf16.msra.mxu0 %v2104
  %4189 = vmatprep.subr.bf16.mxu0 %v2096
  %4190 = vmatpush1.bf16.msra.mxu0 %v2095
  %4191 = vmatprep.subr.bf16.mxu0 %v2087
  %4192 = vmatpush1.bf16.msra.mxu0 %v2086
  %4193 = vmatprep.subr.bf16.mxu0 %v2078
  %4194 = vmatpush1.bf16.msra.mxu0 %v2077
  %4195 = vmatprep.subr.bf16.mxu0 %v2069
  %4196 = vmatpush1.bf16.msra.mxu0 %v2068
  %4197 = vmatprep.subr.bf16.mxu0 %v2204
  %4198 = vmatpush2.bf16.msra.mxu0 %v2203
  %4199 = vmatprep.subr.bf16.mxu0 %v2195
  %4200 = vmatpush2.bf16.msra.mxu0 %v2194
  %4201 = vmatprep.subr.bf16.mxu0 %v2186
  %4202 = vmatpush2.bf16.msra.mxu0 %v2185
  %4203 = vmatprep.subr.bf16.mxu0 %v2177
  %4204 = vmatpush2.bf16.msra.mxu0 %v2176
  %4205 = vmatprep.subr.bf16.mxu0 %v2168
  %4206 = vmatpush2.bf16.msra.mxu0 %v2167
  %4207 = vmatprep.subr.bf16.mxu0 %v2159
  %4208 = vmatpush2.bf16.msra.mxu0 %v2158
  %4209 = vmatprep.subr.bf16.mxu0 %v2150
  %4210 = vmatpush2.bf16.msra.mxu0 %v2149
  %4211 = vmatprep.subr.bf16.mxu0 %v2141
  %4212 = vmatpush2.bf16.msra.mxu0 %v2140
  %4213 = vmatprep.mubr.bf16.mxu0 %v4012
  %4214 = vmatmul.mubr.bf16.gmra.mxu0 %v4011
  %v4215 = vpop.f32.mrf.mxu0
  %v4216 = vadd.f32 0.0, %v4215
  %v4217 = vpop.f32.mrf.mxu0
  %v4218 = vadd.f32 0.0, %v4217
  %v4219 = vpop.f32.mrf.mxu0
  %v4220 = vpop.f32.mrf.mxu0
  %4221 = vdwg.mxu0
  %4222 = vmatprep.subr.bf16.mxu0 %v2276
  %4223 = vmatpush1.bf16.msra.mxu0 %v2275
  %4224 = vmatprep.subr.bf16.mxu0 %v2267
  %4225 = vmatpush1.bf16.msra.mxu0 %v2266
  %4226 = vmatprep.subr.bf16.mxu0 %v2258
  %4227 = vmatpush1.bf16.msra.mxu0 %v2257
  %4228 = vmatprep.subr.bf16.mxu0 %v2249
  %4229 = vmatpush1.bf16.msra.mxu0 %v2248
  %4230 = vmatprep.subr.bf16.mxu0 %v2240
  %4231 = vmatpush1.bf16.msra.mxu0 %v2239
  %4232 = vmatprep.subr.bf16.mxu0 %v2231
  %4233 = vmatpush1.bf16.msra.mxu0 %v2230
  %4234 = vmatprep.subr.bf16.mxu0 %v2222
  %4235 = vmatpush1.bf16.msra.mxu0 %v2221
  %4236 = vmatprep.subr.bf16.mxu0 %v2213
  %4237 = vmatpush1.bf16.msra.mxu0 %v2212
  %4238 = vmatprep.subr.bf16.mxu0 0
  %4239 = vmatpush2.bf16.msra.mxu0 0
  %4240 = vmatprep.subr.bf16.mxu0 0
  %4241 = vmatpush2.bf16.msra.mxu0 0
  %4242 = vmatprep.subr.bf16.mxu0 0
  %4243 = vmatpush2.bf16.msra.mxu0 0
  %4244 = vmatprep.subr.bf16.mxu0 0
  %4245 = vmatpush2.bf16.msra.mxu0 0
  %4246 = vmatprep.subr.bf16.mxu0 0
  %4247 = vmatpush2.bf16.msra.mxu0 0
  %4248 = vmatprep.subr.bf16.mxu0 0
  %4249 = vmatpush2.bf16.msra.mxu0 0
  %4250 = vmatprep.subr.bf16.mxu0 0
  %4251 = vmatpush2.bf16.msra.mxu0 0
  %4252 = vmatprep.subr.bf16.mxu0 0
  %4253 = vmatpush2.bf16.msra.mxu0 0
  %4254 = vmatprep.mubr.bf16.mxu0 0
  %4255 = vmatmul.mubr.bf16.gmra.mxu0 %v4013
  %v4256 = vpop.f32.mrf.mxu0
  %v4257 = vadd.f32 %v4216, %v4256
  %v4258 = vpop.f32.mrf.mxu0
  %v4259 = vadd.f32 %v4218, %v4258
  %v4260 = vpop.f32.mrf.mxu0
  %v4261 = vpop.f32.mrf.mxu0
  %4262 = vdwg.mxu0
  %4263 = vmatprep.subr.bf16.mxu0 %v2134
  %4264 = vmatpush1.bf16.msra.mxu0 %v2133
  %4265 = vmatprep.subr.bf16.mxu0 %v2125
  %4266 = vmatpush1.bf16.msra.mxu0 %v2124
  %4267 = vmatprep.subr.bf16.mxu0 %v2116
  %4268 = vmatpush1.bf16.msra.mxu0 %v2115
  %4269 = vmatprep.subr.bf16.mxu0 %v2107
  %4270 = vmatpush1.bf16.msra.mxu0 %v2106
  %4271 = vmatprep.subr.bf16.mxu0 %v2098
  %4272 = vmatpush1.bf16.msra.mxu0 %v2097
  %4273 = vmatprep.subr.bf16.mxu0 %v2089
  %4274 = vmatpush1.bf16.msra.mxu0 %v2088
  %4275 = vmatprep.subr.bf16.mxu0 %v2080
  %4276 = vmatpush1.bf16.msra.mxu0 %v2079
  %4277 = vmatprep.subr.bf16.mxu0 %v2071
  %4278 = vmatpush1.bf16.msra.mxu0 %v2070
  %4279 = vmatprep.subr.bf16.mxu0 %v2206
  %4280 = vmatpush2.bf16.msra.mxu0 %v2205
  %4281 = vmatprep.subr.bf16.mxu0 %v2197
  %4282 = vmatpush2.bf16.msra.mxu0 %v2196
  %4283 = vmatprep.subr.bf16.mxu0 %v2188
  %4284 = vmatpush2.bf16.msra.mxu0 %v2187
  %4285 = vmatprep.subr.bf16.mxu0 %v2179
  %4286 = vmatpush2.bf16.msra.mxu0 %v2178
  %4287 = vmatprep.subr.bf16.mxu0 %v2170
  %4288 = vmatpush2.bf16.msra.mxu0 %v2169
  %4289 = vmatprep.subr.bf16.mxu0 %v2161
  %4290 = vmatpush2.bf16.msra.mxu0 %v2160
  %4291 = vmatprep.subr.bf16.mxu0 %v2152
  %4292 = vmatpush2.bf16.msra.mxu0 %v2151
  %4293 = vmatprep.subr.bf16.mxu0 %v2143
  %4294 = vmatpush2.bf16.msra.mxu0 %v2142
  %4295 = vmatprep.mubr.bf16.mxu0 %v4012
  %4296 = vmatmul.mubr.bf16.gmra.mxu0 %v4011
  %v4297 = vpop.f32.mrf.mxu0
  %v4298 = vadd.f32 0.0, %v4297
  %v4299 = vpop.f32.mrf.mxu0
  %v4300 = vadd.f32 0.0, %v4299
  %v4301 = vpop.f32.mrf.mxu0
  %v4302 = vpop.f32.mrf.mxu0
  %4303 = vdwg.mxu0
  %4304 = vmatprep.subr.bf16.mxu0 %v2278
  %4305 = vmatpush1.bf16.msra.mxu0 %v2277
  %4306 = vmatprep.subr.bf16.mxu0 %v2269
  %4307 = vmatpush1.bf16.msra.mxu0 %v2268
  %4308 = vmatprep.subr.bf16.mxu0 %v2260
  %4309 = vmatpush1.bf16.msra.mxu0 %v2259
  %4310 = vmatprep.subr.bf16.mxu0 %v2251
  %4311 = vmatpush1.bf16.msra.mxu0 %v2250
  %4312 = vmatprep.subr.bf16.mxu0 %v2242
  %4313 = vmatpush1.bf16.msra.mxu0 %v2241
  %4314 = vmatprep.subr.bf16.mxu0 %v2233
  %4315 = vmatpush1.bf16.msra.mxu0 %v2232
  %4316 = vmatprep.subr.bf16.mxu0 %v2224
  %4317 = vmatpush1.bf16.msra.mxu0 %v2223
  %4318 = vmatprep.subr.bf16.mxu0 %v2215
  %4319 = vmatpush1.bf16.msra.mxu0 %v2214
  %4320 = vmatprep.subr.bf16.mxu0 0
  %4321 = vmatpush2.bf16.msra.mxu0 0
  %4322 = vmatprep.subr.bf16.mxu0 0
  %4323 = vmatpush2.bf16.msra.mxu0 0
  %4324 = vmatprep.subr.bf16.mxu0 0
  %4325 = vmatpush2.bf16.msra.mxu0 0
  %4326 = vmatprep.subr.bf16.mxu0 0
  %4327 = vmatpush2.bf16.msra.mxu0 0
  %4328 = vmatprep.subr.bf16.mxu0 0
  %4329 = vmatpush2.bf16.msra.mxu0 0
  %4330 = vmatprep.subr.bf16.mxu0 0
  %4331 = vmatpush2.bf16.msra.mxu0 0
  %4332 = vmatprep.subr.bf16.mxu0 0
  %4333 = vmatpush2.bf16.msra.mxu0 0
  %4334 = vmatprep.subr.bf16.mxu0 0
  %4335 = vmatpush2.bf16.msra.mxu0 0
  %4336 = vmatprep.mubr.bf16.mxu0 0
  %4337 = vmatmul.mubr.bf16.gmra.mxu0 %v4013
  %v4338 = vpop.f32.mrf.mxu0
  %v4339 = vadd.f32 %v4298, %v4338
  %v4340 = vpop.f32.mrf.mxu0
  %v4341 = vadd.f32 %v4300, %v4340
  %v4342 = vpop.f32.mrf.mxu0
  %v4343 = vpop.f32.mrf.mxu0
  %4344 = vdwg.mxu0
  %4345 = vmatprep.subr.bf16.mxu0 0
  %4346 = vmatpush1.bf16.msra.mxu0 %v2135
  %4347 = vmatprep.subr.bf16.mxu0 0
  %4348 = vmatpush1.bf16.msra.mxu0 %v2126
  %4349 = vmatprep.subr.bf16.mxu0 0
  %4350 = vmatpush1.bf16.msra.mxu0 %v2117
  %4351 = vmatprep.subr.bf16.mxu0 0
  %4352 = vmatpush1.bf16.msra.mxu0 %v2108
  %4353 = vmatprep.subr.bf16.mxu0 0
  %4354 = vmatpush1.bf16.msra.mxu0 %v2099
  %4355 = vmatprep.subr.bf16.mxu0 0
  %4356 = vmatpush1.bf16.msra.mxu0 %v2090
  %4357 = vmatprep.subr.bf16.mxu0 0
  %4358 = vmatpush1.bf16.msra.mxu0 %v2081
  %4359 = vmatprep.subr.bf16.mxu0 0
  %4360 = vmatpush1.bf16.msra.mxu0 %v2072
  %4361 = vmatprep.subr.bf16.mxu0 0
  %4362 = vmatpush2.bf16.msra.mxu0 %v2207
  %4363 = vmatprep.subr.bf16.mxu0 0
  %4364 = vmatpush2.bf16.msra.mxu0 %v2198
  %4365 = vmatprep.subr.bf16.mxu0 0
  %4366 = vmatpush2.bf16.msra.mxu0 %v2189
  %4367 = vmatprep.subr.bf16.mxu0 0
  %4368 = vmatpush2.bf16.msra.mxu0 %v2180
  %4369 = vmatprep.subr.bf16.mxu0 0
  %4370 = vmatpush2.bf16.msra.mxu0 %v2171
  %4371 = vmatprep.subr.bf16.mxu0 0
  %4372 = vmatpush2.bf16.msra.mxu0 %v2162
  %4373 = vmatprep.subr.bf16.mxu0 0
  %4374 = vmatpush2.bf16.msra.mxu0 %v2153
  %4375 = vmatprep.subr.bf16.mxu0 0
  %4376 = vmatpush2.bf16.msra.mxu0 %v2144
  %4377 = vmatprep.mubr.bf16.mxu0 %v4012
  %4378 = vmatmul.mubr.bf16.gmra.mxu0 %v4011
  %v4379 = vpop.f32.mrf.mxu0
  %v4380 = vadd.f32 0.0, %v4379
  %v4381 = vpop.f32.mrf.mxu0
  %v4382 = vpop.f32.mrf.mxu0
  %v4383 = vpop.f32.mrf.mxu0
  %4384 = vdwg.mxu0
  %4385 = vmatprep.subr.bf16.mxu0 0
  %4386 = vmatpush1.bf16.msra.mxu0 %v2279
  %4387 = vmatprep.subr.bf16.mxu0 0
  %4388 = vmatpush1.bf16.msra.mxu0 %v2270
  %4389 = vmatprep.subr.bf16.mxu0 0
  %4390 = vmatpush1.bf16.msra.mxu0 %v2261
  %4391 = vmatprep.subr.bf16.mxu0 0
  %4392 = vmatpush1.bf16.msra.mxu0 %v2252
  %4393 = vmatprep.subr.bf16.mxu0 0
  %4394 = vmatpush1.bf16.msra.mxu0 %v2243
  %4395 = vmatprep.subr.bf16.mxu0 0
  %4396 = vmatpush1.bf16.msra.mxu0 %v2234
  %4397 = vmatprep.subr.bf16.mxu0 0
  %4398 = vmatpush1.bf16.msra.mxu0 %v2225
  %4399 = vmatprep.subr.bf16.mxu0 0
  %4400 = vmatpush1.bf16.msra.mxu0 %v2216
  %4401 = vmatprep.subr.bf16.mxu0 0
  %4402 = vmatpush2.bf16.msra.mxu0 0
  %4403 = vmatprep.subr.bf16.mxu0 0
  %4404 = vmatpush2.bf16.msra.mxu0 0
  %4405 = vmatprep.subr.bf16.mxu0 0
  %4406 = vmatpush2.bf16.msra.mxu0 0
  %4407 = vmatprep.subr.bf16.mxu0 0
  %4408 = vmatpush2.bf16.msra.mxu0 0
  %4409 = vmatprep.subr.bf16.mxu0 0
  %4410 = vmatpush2.bf16.msra.mxu0 0
  %4411 = vmatprep.subr.bf16.mxu0 0
  %4412 = vmatpush2.bf16.msra.mxu0 0
  %4413 = vmatprep.subr.bf16.mxu0 0
  %4414 = vmatpush2.bf16.msra.mxu0 0
  %4415 = vmatprep.subr.bf16.mxu0 0
  %4416 = vmatpush2.bf16.msra.mxu0 0
  %4417 = vmatprep.mubr.bf16.mxu0 0
  %4418 = vmatmul.mubr.bf16.gmra.mxu0 %v4013
  %v4419 = vpop.f32.mrf.mxu0
  %v4420 = vadd.f32 %v4380, %v4419
  %v4421 = vpop.f32.mrf.mxu0
  %v4422 = vpop.f32.mrf.mxu0
  %v4423 = vpop.f32.mrf.mxu0
  %4424 = vdwg.mxu0
  %v4428 = vrot.slane %v4093, 2
  %v4429 = vrot.slane %v4095, 2
  %v4430 = vrot.slane %v4175, 2
  %v4434 = vadd.f32 %v894, %v4428
  %v4435 = vadd.f32 %v896, %v4429
  %v4436 = vadd.f32 %v937, %v4430
  %v4437 = vxor.u32 %v4434, 2147483648
  %v4438 = vxor.u32 %v4435, 2147483648
  %v4439 = vxor.u32 %v4436, 2147483648
  %v4440 = vmul.f32 %v4437, 1.442695
  %v4441 = vpow.pop %v4440
  %v4442 = vmul.f32 %v4438, 1.442695
  %v4443 = vpow.pop %v4442
  %v4444 = vmul.f32 %v4439, 1.442695
  %v4445 = vpow.pop %v4444
  %v4446 = vadd.f32 %v4441, 1.0
  %v4447 = vadd.f32 %v4443, 1.0
  %v4448 = vadd.f32 %v4445, 1.0
  %v4449 = vrcp.pop %v4446
  %v4450 = vmul.f32 1.0, %v4449
  %v4451 = vrcp.pop %v4447
  %v4452 = vmul.f32 1.0, %v4451
  %v4453 = vrcp.pop %v4448
  %v4454 = vmul.f32 1.0, %v4453
  %v4458 = vrot.slane %v4177, 2
  %v4459 = vrot.slane %v4257, 2
  %v4460 = vrot.slane %v4259, 2
  %v4464 = vadd.f32 %v939, %v4458
  %v4465 = vadd.f32 %v980, %v4459
  %v4466 = vadd.f32 %v982, %v4460
  %v4467 = vxor.u32 %v4464, 2147483648
  %v4468 = vxor.u32 %v4465, 2147483648
  %v4469 = vxor.u32 %v4466, 2147483648
  %v4470 = vmul.f32 %v4467, 1.442695
  %v4471 = vpow.pop %v4470
  %v4472 = vmul.f32 %v4468, 1.442695
  %v4473 = vpow.pop %v4472
  %v4474 = vmul.f32 %v4469, 1.442695
  %v4475 = vpow.pop %v4474
  %v4476 = vadd.f32 %v4471, 1.0
  %v4477 = vadd.f32 %v4473, 1.0
  %v4478 = vadd.f32 %v4475, 1.0
  %v4479 = vrcp.pop %v4476
  %v4480 = vmul.f32 1.0, %v4479
  %v4481 = vrcp.pop %v4477
  %v4482 = vmul.f32 1.0, %v4481
  %v4483 = vrcp.pop %v4478
  %v4484 = vmul.f32 1.0, %v4483
  %v4485 = vadd.f32 %v4339, %v1136
  %v4486 = vadd.f32 %v4341, %v1140
  %v4487 = vadd.f32 %v4420, %v1144
  %v4491 = vrot.slane %v4485, 2
  %v4492 = vrot.slane %v4486, 2
  %v4493 = vrot.slane %v4487, 2
  %v4497 = vmul.f32 %v4450, %v4491
  %v4498 = vmul.f32 %v4452, %v4492
  %v4499 = vmul.f32 %v4454, %v4493
  %v4500 = vadd.f32 %v1023, %v4497
  %v4501 = vadd.f32 %v1025, %v4498
  %v4502 = vadd.f32 %v1066, %v4499
  %v4503 = vtanh.pop %v4500
  %v4504 = vtanh.pop %v4501
  %v4505 = vtanh.pop %v4502
  %v4506 = vsub.f32 1.0, %v4480
  %v4507 = vsub.f32 1.0, %v4482
  %v4508 = vsub.f32 1.0, %v4484
  %v4509 = vmul.f32 %v4506, %v4503
  %v4510 = vmul.f32 %v4507, %v4504
  %v4511 = vmul.f32 %v4508, %v4505
  %v4515 = vrot.slane %v4002, 6
  %v4516 = vrot.slane %v4003, 6
  %v4517 = vrot.slane %v4004, 6
  %v4521 = vmul.f32 %v4480, %v4515
  %v4522 = vmul.f32 %v4482, %v4516
  %v4523 = vmul.f32 %v4484, %v4517
  %v4524 = vadd.f32 %v4509, %v4521
  %v4525 = vadd.f32 %v4510, %v4522
  %v4526 = vadd.f32 %v4511, %v4523
  %v4527 = vpack.c.bf16 %v4524, %v4524
  %v4528 = vpack.c.bf16 %v4525, %v4525
  %v4529 = vpack.c.bf16 %v4526, %v4526
  %v4533 = vrot.slane %v4527, 3
  %v4534 = vrot.slane %v4528, 3
  %v4535 = vrot.slane %v4529, 3
  %4539 = vmatprep.subr.bf16.mxu0 %v2128
  %4540 = vmatpush1.bf16.msra.mxu0 %v2127
  %4541 = vmatprep.subr.bf16.mxu0 %v2119
  %4542 = vmatpush1.bf16.msra.mxu0 %v2118
  %4543 = vmatprep.subr.bf16.mxu0 %v2110
  %4544 = vmatpush1.bf16.msra.mxu0 %v2109
  %4545 = vmatprep.subr.bf16.mxu0 %v2101
  %4546 = vmatpush1.bf16.msra.mxu0 %v2100
  %4547 = vmatprep.subr.bf16.mxu0 %v2092
  %4548 = vmatpush1.bf16.msra.mxu0 %v2091
  %4549 = vmatprep.subr.bf16.mxu0 %v2083
  %4550 = vmatpush1.bf16.msra.mxu0 %v2082
  %4551 = vmatprep.subr.bf16.mxu0 %v2074
  %4552 = vmatpush1.bf16.msra.mxu0 %v2073
  %4553 = vmatprep.subr.bf16.mxu0 %v2065
  %4554 = vmatpush1.bf16.msra.mxu0 %v2064
  %4555 = vmatprep.subr.bf16.mxu0 %v2200
  %4556 = vmatpush2.bf16.msra.mxu0 %v2199
  %4557 = vmatprep.subr.bf16.mxu0 %v2191
  %4558 = vmatpush2.bf16.msra.mxu0 %v2190
  %4559 = vmatprep.subr.bf16.mxu0 %v2182
  %4560 = vmatpush2.bf16.msra.mxu0 %v2181
  %4561 = vmatprep.subr.bf16.mxu0 %v2173
  %4562 = vmatpush2.bf16.msra.mxu0 %v2172
  %4563 = vmatprep.subr.bf16.mxu0 %v2164
  %4564 = vmatpush2.bf16.msra.mxu0 %v2163
  %4565 = vmatprep.subr.bf16.mxu0 %v2155
  %4566 = vmatpush2.bf16.msra.mxu0 %v2154
  %4567 = vmatprep.subr.bf16.mxu0 %v2146
  %4568 = vmatpush2.bf16.msra.mxu0 %v2145
  %4569 = vmatprep.subr.bf16.mxu0 %v2137
  %4570 = vmatpush2.bf16.msra.mxu0 %v2136
  %4571 = vmatprep.mubr.bf16.mxu0 %v4534
  %4572 = vmatmul.mubr.bf16.gmra.mxu0 %v4533
  %v4573 = vpop.f32.mrf.mxu0
  %v4574 = vadd.f32 0.0, %v4573
  %v4575 = vpop.f32.mrf.mxu0
  %v4576 = vadd.f32 0.0, %v4575
  %v4577 = vpop.f32.mrf.mxu0
  %v4578 = vpop.f32.mrf.mxu0
  %4579 = vdwg.mxu0
  %4580 = vmatprep.subr.bf16.mxu0 %v2272
  %4581 = vmatpush1.bf16.msra.mxu0 %v2271
  %4582 = vmatprep.subr.bf16.mxu0 %v2263
  %4583 = vmatpush1.bf16.msra.mxu0 %v2262
  %4584 = vmatprep.subr.bf16.mxu0 %v2254
  %4585 = vmatpush1.bf16.msra.mxu0 %v2253
  %4586 = vmatprep.subr.bf16.mxu0 %v2245
  %4587 = vmatpush1.bf16.msra.mxu0 %v2244
  %4588 = vmatprep.subr.bf16.mxu0 %v2236
  %4589 = vmatpush1.bf16.msra.mxu0 %v2235
  %4590 = vmatprep.subr.bf16.mxu0 %v2227
  %4591 = vmatpush1.bf16.msra.mxu0 %v2226
  %4592 = vmatprep.subr.bf16.mxu0 %v2218
  %4593 = vmatpush1.bf16.msra.mxu0 %v2217
  %4594 = vmatprep.subr.bf16.mxu0 %v2209
  %4595 = vmatpush1.bf16.msra.mxu0 %v2208
  %4596 = vmatprep.subr.bf16.mxu0 0
  %4597 = vmatpush2.bf16.msra.mxu0 0
  %4598 = vmatprep.subr.bf16.mxu0 0
  %4599 = vmatpush2.bf16.msra.mxu0 0
  %4600 = vmatprep.subr.bf16.mxu0 0
  %4601 = vmatpush2.bf16.msra.mxu0 0
  %4602 = vmatprep.subr.bf16.mxu0 0
  %4603 = vmatpush2.bf16.msra.mxu0 0
  %4604 = vmatprep.subr.bf16.mxu0 0
  %4605 = vmatpush2.bf16.msra.mxu0 0
  %4606 = vmatprep.subr.bf16.mxu0 0
  %4607 = vmatpush2.bf16.msra.mxu0 0
  %4608 = vmatprep.subr.bf16.mxu0 0
  %4609 = vmatpush2.bf16.msra.mxu0 0
  %4610 = vmatprep.subr.bf16.mxu0 0
  %4611 = vmatpush2.bf16.msra.mxu0 0
  %4612 = vmatprep.mubr.bf16.mxu0 0
  %4613 = vmatmul.mubr.bf16.gmra.mxu0 %v4535
  %v4614 = vpop.f32.mrf.mxu0
  %v4615 = vadd.f32 %v4574, %v4614
  %v4616 = vpop.f32.mrf.mxu0
  %v4617 = vadd.f32 %v4576, %v4616
  %v4618 = vpop.f32.mrf.mxu0
  %v4619 = vpop.f32.mrf.mxu0
  %4620 = vdwg.mxu0
  %4621 = vmatprep.subr.bf16.mxu0 %v2130
  %4622 = vmatpush1.bf16.msra.mxu0 %v2129
  %4623 = vmatprep.subr.bf16.mxu0 %v2121
  %4624 = vmatpush1.bf16.msra.mxu0 %v2120
  %4625 = vmatprep.subr.bf16.mxu0 %v2112
  %4626 = vmatpush1.bf16.msra.mxu0 %v2111
  %4627 = vmatprep.subr.bf16.mxu0 %v2103
  %4628 = vmatpush1.bf16.msra.mxu0 %v2102
  %4629 = vmatprep.subr.bf16.mxu0 %v2094
  %4630 = vmatpush1.bf16.msra.mxu0 %v2093
  %4631 = vmatprep.subr.bf16.mxu0 %v2085
  %4632 = vmatpush1.bf16.msra.mxu0 %v2084
  %4633 = vmatprep.subr.bf16.mxu0 %v2076
  %4634 = vmatpush1.bf16.msra.mxu0 %v2075
  %4635 = vmatprep.subr.bf16.mxu0 %v2067
  %4636 = vmatpush1.bf16.msra.mxu0 %v2066
  %4637 = vmatprep.subr.bf16.mxu0 %v2202
  %4638 = vmatpush2.bf16.msra.mxu0 %v2201
  %4639 = vmatprep.subr.bf16.mxu0 %v2193
  %4640 = vmatpush2.bf16.msra.mxu0 %v2192
  %4641 = vmatprep.subr.bf16.mxu0 %v2184
  %4642 = vmatpush2.bf16.msra.mxu0 %v2183
  %4643 = vmatprep.subr.bf16.mxu0 %v2175
  %4644 = vmatpush2.bf16.msra.mxu0 %v2174
  %4645 = vmatprep.subr.bf16.mxu0 %v2166
  %4646 = vmatpush2.bf16.msra.mxu0 %v2165
  %4647 = vmatprep.subr.bf16.mxu0 %v2157
  %4648 = vmatpush2.bf16.msra.mxu0 %v2156
  %4649 = vmatprep.subr.bf16.mxu0 %v2148
  %4650 = vmatpush2.bf16.msra.mxu0 %v2147
  %4651 = vmatprep.subr.bf16.mxu0 %v2139
  %4652 = vmatpush2.bf16.msra.mxu0 %v2138
  %4653 = vmatprep.mubr.bf16.mxu0 %v4534
  %4654 = vmatmul.mubr.bf16.gmra.mxu0 %v4533
  %v4655 = vpop.f32.mrf.mxu0
  %v4656 = vadd.f32 0.0, %v4655
  %v4657 = vpop.f32.mrf.mxu0
  %v4658 = vadd.f32 0.0, %v4657
  %v4659 = vpop.f32.mrf.mxu0
  %v4660 = vpop.f32.mrf.mxu0
  %4661 = vdwg.mxu0
  %4662 = vmatprep.subr.bf16.mxu0 %v2274
  %4663 = vmatpush1.bf16.msra.mxu0 %v2273
  %4664 = vmatprep.subr.bf16.mxu0 %v2265
  %4665 = vmatpush1.bf16.msra.mxu0 %v2264
  %4666 = vmatprep.subr.bf16.mxu0 %v2256
  %4667 = vmatpush1.bf16.msra.mxu0 %v2255
  %4668 = vmatprep.subr.bf16.mxu0 %v2247
  %4669 = vmatpush1.bf16.msra.mxu0 %v2246
  %4670 = vmatprep.subr.bf16.mxu0 %v2238
  %4671 = vmatpush1.bf16.msra.mxu0 %v2237
  %4672 = vmatprep.subr.bf16.mxu0 %v2229
  %4673 = vmatpush1.bf16.msra.mxu0 %v2228
  %4674 = vmatprep.subr.bf16.mxu0 %v2220
  %4675 = vmatpush1.bf16.msra.mxu0 %v2219
  %4676 = vmatprep.subr.bf16.mxu0 %v2211
  %4677 = vmatpush1.bf16.msra.mxu0 %v2210
  %4678 = vmatprep.subr.bf16.mxu0 0
  %4679 = vmatpush2.bf16.msra.mxu0 0
  %4680 = vmatprep.subr.bf16.mxu0 0
  %4681 = vmatpush2.bf16.msra.mxu0 0
  %4682 = vmatprep.subr.bf16.mxu0 0
  %4683 = vmatpush2.bf16.msra.mxu0 0
  %4684 = vmatprep.subr.bf16.mxu0 0
  %4685 = vmatpush2.bf16.msra.mxu0 0
  %4686 = vmatprep.subr.bf16.mxu0 0
  %4687 = vmatpush2.bf16.msra.mxu0 0
  %4688 = vmatprep.subr.bf16.mxu0 0
  %4689 = vmatpush2.bf16.msra.mxu0 0
  %4690 = vmatprep.subr.bf16.mxu0 0
  %4691 = vmatpush2.bf16.msra.mxu0 0
  %4692 = vmatprep.subr.bf16.mxu0 0
  %4693 = vmatpush2.bf16.msra.mxu0 0
  %4694 = vmatprep.mubr.bf16.mxu0 0
  %4695 = vmatmul.mubr.bf16.gmra.mxu0 %v4535
  %v4696 = vpop.f32.mrf.mxu0
  %v4697 = vadd.f32 %v4656, %v4696
  %v4698 = vpop.f32.mrf.mxu0
  %v4699 = vadd.f32 %v4658, %v4698
  %v4700 = vpop.f32.mrf.mxu0
  %v4701 = vpop.f32.mrf.mxu0
  %4702 = vdwg.mxu0
  %4703 = vmatprep.subr.bf16.mxu0 %v2132
  %4704 = vmatpush1.bf16.msra.mxu0 %v2131
  %4705 = vmatprep.subr.bf16.mxu0 %v2123
  %4706 = vmatpush1.bf16.msra.mxu0 %v2122
  %4707 = vmatprep.subr.bf16.mxu0 %v2114
  %4708 = vmatpush1.bf16.msra.mxu0 %v2113
  %4709 = vmatprep.subr.bf16.mxu0 %v2105
  %4710 = vmatpush1.bf16.msra.mxu0 %v2104
  %4711 = vmatprep.subr.bf16.mxu0 %v2096
  %4712 = vmatpush1.bf16.msra.mxu0 %v2095
  %4713 = vmatprep.subr.bf16.mxu0 %v2087
  %4714 = vmatpush1.bf16.msra.mxu0 %v2086
  %4715 = vmatprep.subr.bf16.mxu0 %v2078
  %4716 = vmatpush1.bf16.msra.mxu0 %v2077
  %4717 = vmatprep.subr.bf16.mxu0 %v2069
  %4718 = vmatpush1.bf16.msra.mxu0 %v2068
  %4719 = vmatprep.subr.bf16.mxu0 %v2204
  %4720 = vmatpush2.bf16.msra.mxu0 %v2203
  %4721 = vmatprep.subr.bf16.mxu0 %v2195
  %4722 = vmatpush2.bf16.msra.mxu0 %v2194
  %4723 = vmatprep.subr.bf16.mxu0 %v2186
  %4724 = vmatpush2.bf16.msra.mxu0 %v2185
  %4725 = vmatprep.subr.bf16.mxu0 %v2177
  %4726 = vmatpush2.bf16.msra.mxu0 %v2176
  %4727 = vmatprep.subr.bf16.mxu0 %v2168
  %4728 = vmatpush2.bf16.msra.mxu0 %v2167
  %4729 = vmatprep.subr.bf16.mxu0 %v2159
  %4730 = vmatpush2.bf16.msra.mxu0 %v2158
  %4731 = vmatprep.subr.bf16.mxu0 %v2150
  %4732 = vmatpush2.bf16.msra.mxu0 %v2149
  %4733 = vmatprep.subr.bf16.mxu0 %v2141
  %4734 = vmatpush2.bf16.msra.mxu0 %v2140
  %4735 = vmatprep.mubr.bf16.mxu0 %v4534
  %4736 = vmatmul.mubr.bf16.gmra.mxu0 %v4533
  %v4737 = vpop.f32.mrf.mxu0
  %v4738 = vadd.f32 0.0, %v4737
  %v4739 = vpop.f32.mrf.mxu0
  %v4740 = vadd.f32 0.0, %v4739
  %v4741 = vpop.f32.mrf.mxu0
  %v4742 = vpop.f32.mrf.mxu0
  %4743 = vdwg.mxu0
  %4744 = vmatprep.subr.bf16.mxu0 %v2276
  %4745 = vmatpush1.bf16.msra.mxu0 %v2275
  %4746 = vmatprep.subr.bf16.mxu0 %v2267
  %4747 = vmatpush1.bf16.msra.mxu0 %v2266
  %4748 = vmatprep.subr.bf16.mxu0 %v2258
  %4749 = vmatpush1.bf16.msra.mxu0 %v2257
  %4750 = vmatprep.subr.bf16.mxu0 %v2249
  %4751 = vmatpush1.bf16.msra.mxu0 %v2248
  %4752 = vmatprep.subr.bf16.mxu0 %v2240
  %4753 = vmatpush1.bf16.msra.mxu0 %v2239
  %4754 = vmatprep.subr.bf16.mxu0 %v2231
  %4755 = vmatpush1.bf16.msra.mxu0 %v2230
  %4756 = vmatprep.subr.bf16.mxu0 %v2222
  %4757 = vmatpush1.bf16.msra.mxu0 %v2221
  %4758 = vmatprep.subr.bf16.mxu0 %v2213
  %4759 = vmatpush1.bf16.msra.mxu0 %v2212
  %4760 = vmatprep.subr.bf16.mxu0 0
  %4761 = vmatpush2.bf16.msra.mxu0 0
  %4762 = vmatprep.subr.bf16.mxu0 0
  %4763 = vmatpush2.bf16.msra.mxu0 0
  %4764 = vmatprep.subr.bf16.mxu0 0
  %4765 = vmatpush2.bf16.msra.mxu0 0
  %4766 = vmatprep.subr.bf16.mxu0 0
  %4767 = vmatpush2.bf16.msra.mxu0 0
  %4768 = vmatprep.subr.bf16.mxu0 0
  %4769 = vmatpush2.bf16.msra.mxu0 0
  %4770 = vmatprep.subr.bf16.mxu0 0
  %4771 = vmatpush2.bf16.msra.mxu0 0
  %4772 = vmatprep.subr.bf16.mxu0 0
  %4773 = vmatpush2.bf16.msra.mxu0 0
  %4774 = vmatprep.subr.bf16.mxu0 0
  %4775 = vmatpush2.bf16.msra.mxu0 0
  %4776 = vmatprep.mubr.bf16.mxu0 0
  %4777 = vmatmul.mubr.bf16.gmra.mxu0 %v4535
  %v4778 = vpop.f32.mrf.mxu0
  %v4779 = vadd.f32 %v4738, %v4778
  %v4780 = vpop.f32.mrf.mxu0
  %v4781 = vadd.f32 %v4740, %v4780
  %v4782 = vpop.f32.mrf.mxu0
  %v4783 = vpop.f32.mrf.mxu0
  %4784 = vdwg.mxu0
  %4785 = vmatprep.subr.bf16.mxu0 %v2134
  %4786 = vmatpush1.bf16.msra.mxu0 %v2133
  %4787 = vmatprep.subr.bf16.mxu0 %v2125
  %4788 = vmatpush1.bf16.msra.mxu0 %v2124
  %4789 = vmatprep.subr.bf16.mxu0 %v2116
  %4790 = vmatpush1.bf16.msra.mxu0 %v2115
  %4791 = vmatprep.subr.bf16.mxu0 %v2107
  %4792 = vmatpush1.bf16.msra.mxu0 %v2106
  %4793 = vmatprep.subr.bf16.mxu0 %v2098
  %4794 = vmatpush1.bf16.msra.mxu0 %v2097
  %4795 = vmatprep.subr.bf16.mxu0 %v2089
  %4796 = vmatpush1.bf16.msra.mxu0 %v2088
  %4797 = vmatprep.subr.bf16.mxu0 %v2080
  %4798 = vmatpush1.bf16.msra.mxu0 %v2079
  %4799 = vmatprep.subr.bf16.mxu0 %v2071
  %4800 = vmatpush1.bf16.msra.mxu0 %v2070
  %4801 = vmatprep.subr.bf16.mxu0 %v2206
  %4802 = vmatpush2.bf16.msra.mxu0 %v2205
  %4803 = vmatprep.subr.bf16.mxu0 %v2197
  %4804 = vmatpush2.bf16.msra.mxu0 %v2196
  %4805 = vmatprep.subr.bf16.mxu0 %v2188
  %4806 = vmatpush2.bf16.msra.mxu0 %v2187
  %4807 = vmatprep.subr.bf16.mxu0 %v2179
  %4808 = vmatpush2.bf16.msra.mxu0 %v2178
  %4809 = vmatprep.subr.bf16.mxu0 %v2170
  %4810 = vmatpush2.bf16.msra.mxu0 %v2169
  %4811 = vmatprep.subr.bf16.mxu0 %v2161
  %4812 = vmatpush2.bf16.msra.mxu0 %v2160
  %4813 = vmatprep.subr.bf16.mxu0 %v2152
  %4814 = vmatpush2.bf16.msra.mxu0 %v2151
  %4815 = vmatprep.subr.bf16.mxu0 %v2143
  %4816 = vmatpush2.bf16.msra.mxu0 %v2142
  %4817 = vmatprep.mubr.bf16.mxu0 %v4534
  %4818 = vmatmul.mubr.bf16.gmra.mxu0 %v4533
  %v4819 = vpop.f32.mrf.mxu0
  %v4820 = vadd.f32 0.0, %v4819
  %v4821 = vpop.f32.mrf.mxu0
  %v4822 = vadd.f32 0.0, %v4821
  %v4823 = vpop.f32.mrf.mxu0
  %v4824 = vpop.f32.mrf.mxu0
  %4825 = vdwg.mxu0
  %4826 = vmatprep.subr.bf16.mxu0 %v2278
  %4827 = vmatpush1.bf16.msra.mxu0 %v2277
  %4828 = vmatprep.subr.bf16.mxu0 %v2269
  %4829 = vmatpush1.bf16.msra.mxu0 %v2268
  %4830 = vmatprep.subr.bf16.mxu0 %v2260
  %4831 = vmatpush1.bf16.msra.mxu0 %v2259
  %4832 = vmatprep.subr.bf16.mxu0 %v2251
  %4833 = vmatpush1.bf16.msra.mxu0 %v2250
  %4834 = vmatprep.subr.bf16.mxu0 %v2242
  %4835 = vmatpush1.bf16.msra.mxu0 %v2241
  %4836 = vmatprep.subr.bf16.mxu0 %v2233
  %4837 = vmatpush1.bf16.msra.mxu0 %v2232
  %4838 = vmatprep.subr.bf16.mxu0 %v2224
  %4839 = vmatpush1.bf16.msra.mxu0 %v2223
  %4840 = vmatprep.subr.bf16.mxu0 %v2215
  %4841 = vmatpush1.bf16.msra.mxu0 %v2214
  %4842 = vmatprep.subr.bf16.mxu0 0
  %4843 = vmatpush2.bf16.msra.mxu0 0
  %4844 = vmatprep.subr.bf16.mxu0 0
  %4845 = vmatpush2.bf16.msra.mxu0 0
  %4846 = vmatprep.subr.bf16.mxu0 0
  %4847 = vmatpush2.bf16.msra.mxu0 0
  %4848 = vmatprep.subr.bf16.mxu0 0
  %4849 = vmatpush2.bf16.msra.mxu0 0
  %4850 = vmatprep.subr.bf16.mxu0 0
  %4851 = vmatpush2.bf16.msra.mxu0 0
  %4852 = vmatprep.subr.bf16.mxu0 0
  %4853 = vmatpush2.bf16.msra.mxu0 0
  %4854 = vmatprep.subr.bf16.mxu0 0
  %4855 = vmatpush2.bf16.msra.mxu0 0
  %4856 = vmatprep.subr.bf16.mxu0 0
  %4857 = vmatpush2.bf16.msra.mxu0 0
  %4858 = vmatprep.mubr.bf16.mxu0 0
  %4859 = vmatmul.mubr.bf16.gmra.mxu0 %v4535
  %v4860 = vpop.f32.mrf.mxu0
  %v4861 = vadd.f32 %v4820, %v4860
  %v4862 = vpop.f32.mrf.mxu0
  %v4863 = vadd.f32 %v4822, %v4862
  %v4864 = vpop.f32.mrf.mxu0
  %v4865 = vpop.f32.mrf.mxu0
  %4866 = vdwg.mxu0
  %4867 = vmatprep.subr.bf16.mxu0 0
  %4868 = vmatpush1.bf16.msra.mxu0 %v2135
  %4869 = vmatprep.subr.bf16.mxu0 0
  %4870 = vmatpush1.bf16.msra.mxu0 %v2126
  %4871 = vmatprep.subr.bf16.mxu0 0
  %4872 = vmatpush1.bf16.msra.mxu0 %v2117
  %4873 = vmatprep.subr.bf16.mxu0 0
  %4874 = vmatpush1.bf16.msra.mxu0 %v2108
  %4875 = vmatprep.subr.bf16.mxu0 0
  %4876 = vmatpush1.bf16.msra.mxu0 %v2099
  %4877 = vmatprep.subr.bf16.mxu0 0
  %4878 = vmatpush1.bf16.msra.mxu0 %v2090
  %4879 = vmatprep.subr.bf16.mxu0 0
  %4880 = vmatpush1.bf16.msra.mxu0 %v2081
  %4881 = vmatprep.subr.bf16.mxu0 0
  %4882 = vmatpush1.bf16.msra.mxu0 %v2072
  %4883 = vmatprep.subr.bf16.mxu0 0
  %4884 = vmatpush2.bf16.msra.mxu0 %v2207
  %4885 = vmatprep.subr.bf16.mxu0 0
  %4886 = vmatpush2.bf16.msra.mxu0 %v2198
  %4887 = vmatprep.subr.bf16.mxu0 0
  %4888 = vmatpush2.bf16.msra.mxu0 %v2189
  %4889 = vmatprep.subr.bf16.mxu0 0
  %4890 = vmatpush2.bf16.msra.mxu0 %v2180
  %4891 = vmatprep.subr.bf16.mxu0 0
  %4892 = vmatpush2.bf16.msra.mxu0 %v2171
  %4893 = vmatprep.subr.bf16.mxu0 0
  %4894 = vmatpush2.bf16.msra.mxu0 %v2162
  %4895 = vmatprep.subr.bf16.mxu0 0
  %4896 = vmatpush2.bf16.msra.mxu0 %v2153
  %4897 = vmatprep.subr.bf16.mxu0 0
  %4898 = vmatpush2.bf16.msra.mxu0 %v2144
  %4899 = vmatprep.mubr.bf16.mxu0 %v4534
  %4900 = vmatmul.mubr.bf16.gmra.mxu0 %v4533
  %v4901 = vpop.f32.mrf.mxu0
  %v4902 = vadd.f32 0.0, %v4901
  %v4903 = vpop.f32.mrf.mxu0
  %v4904 = vpop.f32.mrf.mxu0
  %v4905 = vpop.f32.mrf.mxu0
  %4906 = vdwg.mxu0
  %4907 = vmatprep.subr.bf16.mxu0 0
  %4908 = vmatpush1.bf16.msra.mxu0 %v2279
  %4909 = vmatprep.subr.bf16.mxu0 0
  %4910 = vmatpush1.bf16.msra.mxu0 %v2270
  %4911 = vmatprep.subr.bf16.mxu0 0
  %4912 = vmatpush1.bf16.msra.mxu0 %v2261
  %4913 = vmatprep.subr.bf16.mxu0 0
  %4914 = vmatpush1.bf16.msra.mxu0 %v2252
  %4915 = vmatprep.subr.bf16.mxu0 0
  %4916 = vmatpush1.bf16.msra.mxu0 %v2243
  %4917 = vmatprep.subr.bf16.mxu0 0
  %4918 = vmatpush1.bf16.msra.mxu0 %v2234
  %4919 = vmatprep.subr.bf16.mxu0 0
  %4920 = vmatpush1.bf16.msra.mxu0 %v2225
  %4921 = vmatprep.subr.bf16.mxu0 0
  %4922 = vmatpush1.bf16.msra.mxu0 %v2216
  %4923 = vmatprep.subr.bf16.mxu0 0
  %4924 = vmatpush2.bf16.msra.mxu0 0
  %4925 = vmatprep.subr.bf16.mxu0 0
  %4926 = vmatpush2.bf16.msra.mxu0 0
  %4927 = vmatprep.subr.bf16.mxu0 0
  %4928 = vmatpush2.bf16.msra.mxu0 0
  %4929 = vmatprep.subr.bf16.mxu0 0
  %4930 = vmatpush2.bf16.msra.mxu0 0
  %4931 = vmatprep.subr.bf16.mxu0 0
  %4932 = vmatpush2.bf16.msra.mxu0 0
  %4933 = vmatprep.subr.bf16.mxu0 0
  %4934 = vmatpush2.bf16.msra.mxu0 0
  %4935 = vmatprep.subr.bf16.mxu0 0
  %4936 = vmatpush2.bf16.msra.mxu0 0
  %4937 = vmatprep.subr.bf16.mxu0 0
  %4938 = vmatpush2.bf16.msra.mxu0 0
  %4939 = vmatprep.mubr.bf16.mxu0 0
  %4940 = vmatmul.mubr.bf16.gmra.mxu0 %v4535
  %v4941 = vpop.f32.mrf.mxu0
  %v4942 = vadd.f32 %v4902, %v4941
  %v4943 = vpop.f32.mrf.mxu0
  %v4944 = vpop.f32.mrf.mxu0
  %v4945 = vpop.f32.mrf.mxu0
  %4946 = vdwg.mxu0
  %v4947 = vadd.f32 %v898, %v4615
  %v4948 = vadd.f32 %v900, %v4617
  %v4949 = vadd.f32 %v941, %v4697
  %v4950 = vxor.u32 %v4947, 2147483648
  %v4951 = vxor.u32 %v4948, 2147483648
  %v4952 = vxor.u32 %v4949, 2147483648
  %v4953 = vmul.f32 %v4950, 1.442695
  %v4954 = vpow.pop %v4953
  %v4955 = vmul.f32 %v4951, 1.442695
  %v4956 = vpow.pop %v4955
  %v4957 = vmul.f32 %v4952, 1.442695
  %v4958 = vpow.pop %v4957
  %v4959 = vadd.f32 %v4954, 1.0
  %v4960 = vadd.f32 %v4956, 1.0
  %v4961 = vadd.f32 %v4958, 1.0
  %v4962 = vrcp.pop %v4959
  %v4963 = vmul.f32 1.0, %v4962
  %v4964 = vrcp.pop %v4960
  %v4965 = vmul.f32 1.0, %v4964
  %v4966 = vrcp.pop %v4961
  %v4967 = vmul.f32 1.0, %v4966
  %v4968 = vadd.f32 %v943, %v4699
  %v4969 = vadd.f32 %v984, %v4779
  %v4970 = vadd.f32 %v986, %v4781
  %v4971 = vxor.u32 %v4968, 2147483648
  %v4972 = vxor.u32 %v4969, 2147483648
  %v4973 = vxor.u32 %v4970, 2147483648
  %v4974 = vmul.f32 %v4971, 1.442695
  %v4975 = vpow.pop %v4974
  %v4976 = vmul.f32 %v4972, 1.442695
  %v4977 = vpow.pop %v4976
  %v4978 = vmul.f32 %v4973, 1.442695
  %v4979 = vpow.pop %v4978
  %v4980 = vadd.f32 %v4975, 1.0
  %v4981 = vadd.f32 %v4977, 1.0
  %v4982 = vadd.f32 %v4979, 1.0
  %v4983 = vrcp.pop %v4980
  %v4984 = vmul.f32 1.0, %v4983
  %v4985 = vrcp.pop %v4981
  %v4986 = vmul.f32 1.0, %v4985
  %v4987 = vrcp.pop %v4982
  %v4988 = vmul.f32 1.0, %v4987
  %v4989 = vadd.f32 %v4861, %v1136
  %v4990 = vadd.f32 %v4863, %v1140
  %v4991 = vadd.f32 %v4942, %v1144
  %v4992 = vmul.f32 %v4963, %v4989
  %v4993 = vmul.f32 %v4965, %v4990
  %v4994 = vmul.f32 %v4967, %v4991
  %v4995 = vadd.f32 %v1027, %v4992
  %v4996 = vadd.f32 %v1029, %v4993
  %v4997 = vadd.f32 %v1069, %v4994
  %v4998 = vtanh.pop %v4995
  %v4999 = vtanh.pop %v4996
  %v5000 = vtanh.pop %v4997
  %v5001 = vsub.f32 1.0, %v4984
  %v5002 = vsub.f32 1.0, %v4986
  %v5003 = vsub.f32 1.0, %v4988
  %v5004 = vmul.f32 %v5001, %v4998
  %v5005 = vmul.f32 %v5002, %v4999
  %v5006 = vmul.f32 %v5003, %v5000
  %v5010 = vrot.slane %v4524, 6
  %v5011 = vrot.slane %v4525, 6
  %v5012 = vrot.slane %v4526, 6
  %v5016 = vmul.f32 %v4984, %v5010
  %v5017 = vmul.f32 %v4986, %v5011
  %v5018 = vmul.f32 %v4988, %v5012
  %v5019 = vadd.f32 %v5004, %v5016
  %v5020 = vadd.f32 %v5005, %v5017
  %v5021 = vadd.f32 %v5006, %v5018
  %v5022 = vpack.c.bf16 %v5019, %v5019
  %v5023 = vpack.c.bf16 %v5020, %v5020
  %v5024 = vpack.c.bf16 %v5021, %v5021
  %5025 = vmatprep.subr.bf16.mxu0 %v2128
  %5026 = vmatpush1.bf16.msra.mxu0 %v2127
  %5027 = vmatprep.subr.bf16.mxu0 %v2119
  %5028 = vmatpush1.bf16.msra.mxu0 %v2118
  %5029 = vmatprep.subr.bf16.mxu0 %v2110
  %5030 = vmatpush1.bf16.msra.mxu0 %v2109
  %5031 = vmatprep.subr.bf16.mxu0 %v2101
  %5032 = vmatpush1.bf16.msra.mxu0 %v2100
  %5033 = vmatprep.subr.bf16.mxu0 %v2092
  %5034 = vmatpush1.bf16.msra.mxu0 %v2091
  %5035 = vmatprep.subr.bf16.mxu0 %v2083
  %5036 = vmatpush1.bf16.msra.mxu0 %v2082
  %5037 = vmatprep.subr.bf16.mxu0 %v2074
  %5038 = vmatpush1.bf16.msra.mxu0 %v2073
  %5039 = vmatprep.subr.bf16.mxu0 %v2065
  %5040 = vmatpush1.bf16.msra.mxu0 %v2064
  %5041 = vmatprep.subr.bf16.mxu0 %v2200
  %5042 = vmatpush2.bf16.msra.mxu0 %v2199
  %5043 = vmatprep.subr.bf16.mxu0 %v2191
  %5044 = vmatpush2.bf16.msra.mxu0 %v2190
  %5045 = vmatprep.subr.bf16.mxu0 %v2182
  %5046 = vmatpush2.bf16.msra.mxu0 %v2181
  %5047 = vmatprep.subr.bf16.mxu0 %v2173
  %5048 = vmatpush2.bf16.msra.mxu0 %v2172
  %5049 = vmatprep.subr.bf16.mxu0 %v2164
  %5050 = vmatpush2.bf16.msra.mxu0 %v2163
  %5051 = vmatprep.subr.bf16.mxu0 %v2155
  %5052 = vmatpush2.bf16.msra.mxu0 %v2154
  %5053 = vmatprep.subr.bf16.mxu0 %v2146
  %5054 = vmatpush2.bf16.msra.mxu0 %v2145
  %5055 = vmatprep.subr.bf16.mxu0 %v2137
  %5056 = vmatpush2.bf16.msra.mxu0 %v2136
  %5057 = vmatprep.mubr.bf16.mxu0 %v5023
  %5058 = vmatmul.mubr.bf16.gmra.mxu0 %v5022
  %v5059 = vpop.f32.mrf.mxu0
  %v5060 = vadd.f32 0.0, %v5059
  %v5061 = vpop.f32.mrf.mxu0
  %v5062 = vadd.f32 0.0, %v5061
  %v5063 = vpop.f32.mrf.mxu0
  %v5064 = vpop.f32.mrf.mxu0
  %5065 = vdwg.mxu0
  %5066 = vmatprep.subr.bf16.mxu0 %v2272
  %5067 = vmatpush1.bf16.msra.mxu0 %v2271
  %5068 = vmatprep.subr.bf16.mxu0 %v2263
  %5069 = vmatpush1.bf16.msra.mxu0 %v2262
  %5070 = vmatprep.subr.bf16.mxu0 %v2254
  %5071 = vmatpush1.bf16.msra.mxu0 %v2253
  %5072 = vmatprep.subr.bf16.mxu0 %v2245
  %5073 = vmatpush1.bf16.msra.mxu0 %v2244
  %5074 = vmatprep.subr.bf16.mxu0 %v2236
  %5075 = vmatpush1.bf16.msra.mxu0 %v2235
  %5076 = vmatprep.subr.bf16.mxu0 %v2227
  %5077 = vmatpush1.bf16.msra.mxu0 %v2226
  %5078 = vmatprep.subr.bf16.mxu0 %v2218
  %5079 = vmatpush1.bf16.msra.mxu0 %v2217
  %5080 = vmatprep.subr.bf16.mxu0 %v2209
  %5081 = vmatpush1.bf16.msra.mxu0 %v2208
  %5082 = vmatprep.subr.bf16.mxu0 0
  %5083 = vmatpush2.bf16.msra.mxu0 0
  %5084 = vmatprep.subr.bf16.mxu0 0
  %5085 = vmatpush2.bf16.msra.mxu0 0
  %5086 = vmatprep.subr.bf16.mxu0 0
  %5087 = vmatpush2.bf16.msra.mxu0 0
  %5088 = vmatprep.subr.bf16.mxu0 0
  %5089 = vmatpush2.bf16.msra.mxu0 0
  %5090 = vmatprep.subr.bf16.mxu0 0
  %5091 = vmatpush2.bf16.msra.mxu0 0
  %5092 = vmatprep.subr.bf16.mxu0 0
  %5093 = vmatpush2.bf16.msra.mxu0 0
  %5094 = vmatprep.subr.bf16.mxu0 0
  %5095 = vmatpush2.bf16.msra.mxu0 0
  %5096 = vmatprep.subr.bf16.mxu0 0
  %5097 = vmatpush2.bf16.msra.mxu0 0
  %5098 = vmatprep.mubr.bf16.mxu0 0
  %5099 = vmatmul.mubr.bf16.gmra.mxu0 %v5024
  %v5100 = vpop.f32.mrf.mxu0
  %v5101 = vadd.f32 %v5060, %v5100
  %v5102 = vpop.f32.mrf.mxu0
  %v5103 = vadd.f32 %v5062, %v5102
  %v5104 = vpop.f32.mrf.mxu0
  %v5105 = vpop.f32.mrf.mxu0
  %5106 = vdwg.mxu0
  %5107 = vmatprep.subr.bf16.mxu0 %v2130
  %5108 = vmatpush1.bf16.msra.mxu0 %v2129
  %5109 = vmatprep.subr.bf16.mxu0 %v2121
  %5110 = vmatpush1.bf16.msra.mxu0 %v2120
  %5111 = vmatprep.subr.bf16.mxu0 %v2112
  %5112 = vmatpush1.bf16.msra.mxu0 %v2111
  %5113 = vmatprep.subr.bf16.mxu0 %v2103
  %5114 = vmatpush1.bf16.msra.mxu0 %v2102
  %5115 = vmatprep.subr.bf16.mxu0 %v2094
  %5116 = vmatpush1.bf16.msra.mxu0 %v2093
  %5117 = vmatprep.subr.bf16.mxu0 %v2085
  %5118 = vmatpush1.bf16.msra.mxu0 %v2084
  %5119 = vmatprep.subr.bf16.mxu0 %v2076
  %5120 = vmatpush1.bf16.msra.mxu0 %v2075
  %5121 = vmatprep.subr.bf16.mxu0 %v2067
  %5122 = vmatpush1.bf16.msra.mxu0 %v2066
  %5123 = vmatprep.subr.bf16.mxu0 %v2202
  %5124 = vmatpush2.bf16.msra.mxu0 %v2201
  %5125 = vmatprep.subr.bf16.mxu0 %v2193
  %5126 = vmatpush2.bf16.msra.mxu0 %v2192
  %5127 = vmatprep.subr.bf16.mxu0 %v2184
  %5128 = vmatpush2.bf16.msra.mxu0 %v2183
  %5129 = vmatprep.subr.bf16.mxu0 %v2175
  %5130 = vmatpush2.bf16.msra.mxu0 %v2174
  %5131 = vmatprep.subr.bf16.mxu0 %v2166
  %5132 = vmatpush2.bf16.msra.mxu0 %v2165
  %5133 = vmatprep.subr.bf16.mxu0 %v2157
  %5134 = vmatpush2.bf16.msra.mxu0 %v2156
  %5135 = vmatprep.subr.bf16.mxu0 %v2148
  %5136 = vmatpush2.bf16.msra.mxu0 %v2147
  %5137 = vmatprep.subr.bf16.mxu0 %v2139
  %5138 = vmatpush2.bf16.msra.mxu0 %v2138
  %5139 = vmatprep.mubr.bf16.mxu0 %v5023
  %5140 = vmatmul.mubr.bf16.gmra.mxu0 %v5022
  %v5141 = vpop.f32.mrf.mxu0
  %v5142 = vadd.f32 0.0, %v5141
  %v5143 = vpop.f32.mrf.mxu0
  %v5144 = vadd.f32 0.0, %v5143
  %v5145 = vpop.f32.mrf.mxu0
  %v5146 = vpop.f32.mrf.mxu0
  %5147 = vdwg.mxu0
  %5148 = vmatprep.subr.bf16.mxu0 %v2274
  %5149 = vmatpush1.bf16.msra.mxu0 %v2273
  %5150 = vmatprep.subr.bf16.mxu0 %v2265
  %5151 = vmatpush1.bf16.msra.mxu0 %v2264
  %5152 = vmatprep.subr.bf16.mxu0 %v2256
  %5153 = vmatpush1.bf16.msra.mxu0 %v2255
  %5154 = vmatprep.subr.bf16.mxu0 %v2247
  %5155 = vmatpush1.bf16.msra.mxu0 %v2246
  %5156 = vmatprep.subr.bf16.mxu0 %v2238
  %5157 = vmatpush1.bf16.msra.mxu0 %v2237
  %5158 = vmatprep.subr.bf16.mxu0 %v2229
  %5159 = vmatpush1.bf16.msra.mxu0 %v2228
  %5160 = vmatprep.subr.bf16.mxu0 %v2220
  %5161 = vmatpush1.bf16.msra.mxu0 %v2219
  %5162 = vmatprep.subr.bf16.mxu0 %v2211
  %5163 = vmatpush1.bf16.msra.mxu0 %v2210
  %5164 = vmatprep.subr.bf16.mxu0 0
  %5165 = vmatpush2.bf16.msra.mxu0 0
  %5166 = vmatprep.subr.bf16.mxu0 0
  %5167 = vmatpush2.bf16.msra.mxu0 0
  %5168 = vmatprep.subr.bf16.mxu0 0
  %5169 = vmatpush2.bf16.msra.mxu0 0
  %5170 = vmatprep.subr.bf16.mxu0 0
  %5171 = vmatpush2.bf16.msra.mxu0 0
  %5172 = vmatprep.subr.bf16.mxu0 0
  %5173 = vmatpush2.bf16.msra.mxu0 0
  %5174 = vmatprep.subr.bf16.mxu0 0
  %5175 = vmatpush2.bf16.msra.mxu0 0
  %5176 = vmatprep.subr.bf16.mxu0 0
  %5177 = vmatpush2.bf16.msra.mxu0 0
  %5178 = vmatprep.subr.bf16.mxu0 0
  %5179 = vmatpush2.bf16.msra.mxu0 0
  %5180 = vmatprep.mubr.bf16.mxu0 0
  %5181 = vmatmul.mubr.bf16.gmra.mxu0 %v5024
  %v5182 = vpop.f32.mrf.mxu0
  %v5183 = vadd.f32 %v5142, %v5182
  %v5184 = vpop.f32.mrf.mxu0
  %v5185 = vadd.f32 %v5144, %v5184
  %v5186 = vpop.f32.mrf.mxu0
  %v5187 = vpop.f32.mrf.mxu0
  %5188 = vdwg.mxu0
  %5189 = vmatprep.subr.bf16.mxu0 %v2132
  %5190 = vmatpush1.bf16.msra.mxu0 %v2131
  %5191 = vmatprep.subr.bf16.mxu0 %v2123
  %5192 = vmatpush1.bf16.msra.mxu0 %v2122
  %5193 = vmatprep.subr.bf16.mxu0 %v2114
  %5194 = vmatpush1.bf16.msra.mxu0 %v2113
  %5195 = vmatprep.subr.bf16.mxu0 %v2105
  %5196 = vmatpush1.bf16.msra.mxu0 %v2104
  %5197 = vmatprep.subr.bf16.mxu0 %v2096
  %5198 = vmatpush1.bf16.msra.mxu0 %v2095
  %5199 = vmatprep.subr.bf16.mxu0 %v2087
  %5200 = vmatpush1.bf16.msra.mxu0 %v2086
  %5201 = vmatprep.subr.bf16.mxu0 %v2078
  %5202 = vmatpush1.bf16.msra.mxu0 %v2077
  %5203 = vmatprep.subr.bf16.mxu0 %v2069
  %5204 = vmatpush1.bf16.msra.mxu0 %v2068
  %5205 = vmatprep.subr.bf16.mxu0 %v2204
  %5206 = vmatpush2.bf16.msra.mxu0 %v2203
  %5207 = vmatprep.subr.bf16.mxu0 %v2195
  %5208 = vmatpush2.bf16.msra.mxu0 %v2194
  %5209 = vmatprep.subr.bf16.mxu0 %v2186
  %5210 = vmatpush2.bf16.msra.mxu0 %v2185
  %5211 = vmatprep.subr.bf16.mxu0 %v2177
  %5212 = vmatpush2.bf16.msra.mxu0 %v2176
  %5213 = vmatprep.subr.bf16.mxu0 %v2168
  %5214 = vmatpush2.bf16.msra.mxu0 %v2167
  %5215 = vmatprep.subr.bf16.mxu0 %v2159
  %5216 = vmatpush2.bf16.msra.mxu0 %v2158
  %5217 = vmatprep.subr.bf16.mxu0 %v2150
  %5218 = vmatpush2.bf16.msra.mxu0 %v2149
  %5219 = vmatprep.subr.bf16.mxu0 %v2141
  %5220 = vmatpush2.bf16.msra.mxu0 %v2140
  %5221 = vmatprep.mubr.bf16.mxu0 %v5023
  %5222 = vmatmul.mubr.bf16.gmra.mxu0 %v5022
  %v5223 = vpop.f32.mrf.mxu0
  %v5224 = vadd.f32 0.0, %v5223
  %v5225 = vpop.f32.mrf.mxu0
  %v5226 = vadd.f32 0.0, %v5225
  %v5227 = vpop.f32.mrf.mxu0
  %v5228 = vpop.f32.mrf.mxu0
  %5229 = vdwg.mxu0
  %5230 = vmatprep.subr.bf16.mxu0 %v2276
  %5231 = vmatpush1.bf16.msra.mxu0 %v2275
  %5232 = vmatprep.subr.bf16.mxu0 %v2267
  %5233 = vmatpush1.bf16.msra.mxu0 %v2266
  %5234 = vmatprep.subr.bf16.mxu0 %v2258
  %5235 = vmatpush1.bf16.msra.mxu0 %v2257
  %5236 = vmatprep.subr.bf16.mxu0 %v2249
  %5237 = vmatpush1.bf16.msra.mxu0 %v2248
  %5238 = vmatprep.subr.bf16.mxu0 %v2240
  %5239 = vmatpush1.bf16.msra.mxu0 %v2239
  %5240 = vmatprep.subr.bf16.mxu0 %v2231
  %5241 = vmatpush1.bf16.msra.mxu0 %v2230
  %5242 = vmatprep.subr.bf16.mxu0 %v2222
  %5243 = vmatpush1.bf16.msra.mxu0 %v2221
  %5244 = vmatprep.subr.bf16.mxu0 %v2213
  %5245 = vmatpush1.bf16.msra.mxu0 %v2212
  %5246 = vmatprep.subr.bf16.mxu0 0
  %5247 = vmatpush2.bf16.msra.mxu0 0
  %5248 = vmatprep.subr.bf16.mxu0 0
  %5249 = vmatpush2.bf16.msra.mxu0 0
  %5250 = vmatprep.subr.bf16.mxu0 0
  %5251 = vmatpush2.bf16.msra.mxu0 0
  %5252 = vmatprep.subr.bf16.mxu0 0
  %5253 = vmatpush2.bf16.msra.mxu0 0
  %5254 = vmatprep.subr.bf16.mxu0 0
  %5255 = vmatpush2.bf16.msra.mxu0 0
  %5256 = vmatprep.subr.bf16.mxu0 0
  %5257 = vmatpush2.bf16.msra.mxu0 0
  %5258 = vmatprep.subr.bf16.mxu0 0
  %5259 = vmatpush2.bf16.msra.mxu0 0
  %5260 = vmatprep.subr.bf16.mxu0 0
  %5261 = vmatpush2.bf16.msra.mxu0 0
  %5262 = vmatprep.mubr.bf16.mxu0 0
  %5263 = vmatmul.mubr.bf16.gmra.mxu0 %v5024
  %v5264 = vpop.f32.mrf.mxu0
  %v5265 = vadd.f32 %v5224, %v5264
  %v5266 = vpop.f32.mrf.mxu0
  %v5267 = vadd.f32 %v5226, %v5266
  %v5268 = vpop.f32.mrf.mxu0
  %v5269 = vpop.f32.mrf.mxu0
  %5270 = vdwg.mxu0
  %5271 = vmatprep.subr.bf16.mxu0 %v2134
  %5272 = vmatpush1.bf16.msra.mxu0 %v2133
  %5273 = vmatprep.subr.bf16.mxu0 %v2125
  %5274 = vmatpush1.bf16.msra.mxu0 %v2124
  %5275 = vmatprep.subr.bf16.mxu0 %v2116
  %5276 = vmatpush1.bf16.msra.mxu0 %v2115
  %5277 = vmatprep.subr.bf16.mxu0 %v2107
  %5278 = vmatpush1.bf16.msra.mxu0 %v2106
  %5279 = vmatprep.subr.bf16.mxu0 %v2098
  %5280 = vmatpush1.bf16.msra.mxu0 %v2097
  %5281 = vmatprep.subr.bf16.mxu0 %v2089
  %5282 = vmatpush1.bf16.msra.mxu0 %v2088
  %5283 = vmatprep.subr.bf16.mxu0 %v2080
  %5284 = vmatpush1.bf16.msra.mxu0 %v2079
  %5285 = vmatprep.subr.bf16.mxu0 %v2071
  %5286 = vmatpush1.bf16.msra.mxu0 %v2070
  %5287 = vmatprep.subr.bf16.mxu0 %v2206
  %5288 = vmatpush2.bf16.msra.mxu0 %v2205
  %5289 = vmatprep.subr.bf16.mxu0 %v2197
  %5290 = vmatpush2.bf16.msra.mxu0 %v2196
  %5291 = vmatprep.subr.bf16.mxu0 %v2188
  %5292 = vmatpush2.bf16.msra.mxu0 %v2187
  %5293 = vmatprep.subr.bf16.mxu0 %v2179
  %5294 = vmatpush2.bf16.msra.mxu0 %v2178
  %5295 = vmatprep.subr.bf16.mxu0 %v2170
  %5296 = vmatpush2.bf16.msra.mxu0 %v2169
  %5297 = vmatprep.subr.bf16.mxu0 %v2161
  %5298 = vmatpush2.bf16.msra.mxu0 %v2160
  %5299 = vmatprep.subr.bf16.mxu0 %v2152
  %5300 = vmatpush2.bf16.msra.mxu0 %v2151
  %5301 = vmatprep.subr.bf16.mxu0 %v2143
  %5302 = vmatpush2.bf16.msra.mxu0 %v2142
  %5303 = vmatprep.mubr.bf16.mxu0 %v5023
  %5304 = vmatmul.mubr.bf16.gmra.mxu0 %v5022
  %v5305 = vpop.f32.mrf.mxu0
  %v5306 = vadd.f32 0.0, %v5305
  %v5307 = vpop.f32.mrf.mxu0
  %v5308 = vadd.f32 0.0, %v5307
  %v5309 = vpop.f32.mrf.mxu0
  %v5310 = vpop.f32.mrf.mxu0
  %5311 = vdwg.mxu0
  %5312 = vmatprep.subr.bf16.mxu0 %v2278
  %5313 = vmatpush1.bf16.msra.mxu0 %v2277
  %5314 = vmatprep.subr.bf16.mxu0 %v2269
  %5315 = vmatpush1.bf16.msra.mxu0 %v2268
  %5316 = vmatprep.subr.bf16.mxu0 %v2260
  %5317 = vmatpush1.bf16.msra.mxu0 %v2259
  %5318 = vmatprep.subr.bf16.mxu0 %v2251
  %5319 = vmatpush1.bf16.msra.mxu0 %v2250
  %5320 = vmatprep.subr.bf16.mxu0 %v2242
  %5321 = vmatpush1.bf16.msra.mxu0 %v2241
  %5322 = vmatprep.subr.bf16.mxu0 %v2233
  %5323 = vmatpush1.bf16.msra.mxu0 %v2232
  %5324 = vmatprep.subr.bf16.mxu0 %v2224
  %5325 = vmatpush1.bf16.msra.mxu0 %v2223
  %5326 = vmatprep.subr.bf16.mxu0 %v2215
  %5327 = vmatpush1.bf16.msra.mxu0 %v2214
  %5328 = vmatprep.subr.bf16.mxu0 0
  %5329 = vmatpush2.bf16.msra.mxu0 0
  %5330 = vmatprep.subr.bf16.mxu0 0
  %5331 = vmatpush2.bf16.msra.mxu0 0
  %5332 = vmatprep.subr.bf16.mxu0 0
  %5333 = vmatpush2.bf16.msra.mxu0 0
  %5334 = vmatprep.subr.bf16.mxu0 0
  %5335 = vmatpush2.bf16.msra.mxu0 0
  %5336 = vmatprep.subr.bf16.mxu0 0
  %5337 = vmatpush2.bf16.msra.mxu0 0
  %5338 = vmatprep.subr.bf16.mxu0 0
  %5339 = vmatpush2.bf16.msra.mxu0 0
  %5340 = vmatprep.subr.bf16.mxu0 0
  %5341 = vmatpush2.bf16.msra.mxu0 0
  %5342 = vmatprep.subr.bf16.mxu0 0
  %5343 = vmatpush2.bf16.msra.mxu0 0
  %5344 = vmatprep.mubr.bf16.mxu0 0
  %5345 = vmatmul.mubr.bf16.gmra.mxu0 %v5024
  %v5346 = vpop.f32.mrf.mxu0
  %v5347 = vadd.f32 %v5306, %v5346
  %v5348 = vpop.f32.mrf.mxu0
  %v5349 = vadd.f32 %v5308, %v5348
  %v5350 = vpop.f32.mrf.mxu0
  %v5351 = vpop.f32.mrf.mxu0
  %5352 = vdwg.mxu0
  %5353 = vmatprep.subr.bf16.mxu0 0
  %5354 = vmatpush1.bf16.msra.mxu0 %v2135
  %5355 = vmatprep.subr.bf16.mxu0 0
  %5356 = vmatpush1.bf16.msra.mxu0 %v2126
  %5357 = vmatprep.subr.bf16.mxu0 0
  %5358 = vmatpush1.bf16.msra.mxu0 %v2117
  %5359 = vmatprep.subr.bf16.mxu0 0
  %5360 = vmatpush1.bf16.msra.mxu0 %v2108
  %5361 = vmatprep.subr.bf16.mxu0 0
  %5362 = vmatpush1.bf16.msra.mxu0 %v2099
  %5363 = vmatprep.subr.bf16.mxu0 0
  %5364 = vmatpush1.bf16.msra.mxu0 %v2090
  %5365 = vmatprep.subr.bf16.mxu0 0
  %5366 = vmatpush1.bf16.msra.mxu0 %v2081
  %5367 = vmatprep.subr.bf16.mxu0 0
  %5368 = vmatpush1.bf16.msra.mxu0 %v2072
  %5369 = vmatprep.subr.bf16.mxu0 0
  %5370 = vmatpush2.bf16.msra.mxu0 %v2207
  %5371 = vmatprep.subr.bf16.mxu0 0
  %5372 = vmatpush2.bf16.msra.mxu0 %v2198
  %5373 = vmatprep.subr.bf16.mxu0 0
  %5374 = vmatpush2.bf16.msra.mxu0 %v2189
  %5375 = vmatprep.subr.bf16.mxu0 0
  %5376 = vmatpush2.bf16.msra.mxu0 %v2180
  %5377 = vmatprep.subr.bf16.mxu0 0
  %5378 = vmatpush2.bf16.msra.mxu0 %v2171
  %5379 = vmatprep.subr.bf16.mxu0 0
  %5380 = vmatpush2.bf16.msra.mxu0 %v2162
  %5381 = vmatprep.subr.bf16.mxu0 0
  %5382 = vmatpush2.bf16.msra.mxu0 %v2153
  %5383 = vmatprep.subr.bf16.mxu0 0
  %5384 = vmatpush2.bf16.msra.mxu0 %v2144
  %5385 = vmatprep.mubr.bf16.mxu0 %v5023
  %5386 = vmatmul.mubr.bf16.gmra.mxu0 %v5022
  %v5387 = vpop.f32.mrf.mxu0
  %v5388 = vadd.f32 0.0, %v5387
  %v5389 = vpop.f32.mrf.mxu0
  %v5390 = vpop.f32.mrf.mxu0
  %v5391 = vpop.f32.mrf.mxu0
  %5392 = vdwg.mxu0
  %5393 = vmatprep.subr.bf16.mxu0 0
  %5394 = vmatpush1.bf16.msra.mxu0 %v2279
  %5395 = vmatprep.subr.bf16.mxu0 0
  %5396 = vmatpush1.bf16.msra.mxu0 %v2270
  %5397 = vmatprep.subr.bf16.mxu0 0
  %5398 = vmatpush1.bf16.msra.mxu0 %v2261
  %5399 = vmatprep.subr.bf16.mxu0 0
  %5400 = vmatpush1.bf16.msra.mxu0 %v2252
  %5401 = vmatprep.subr.bf16.mxu0 0
  %5402 = vmatpush1.bf16.msra.mxu0 %v2243
  %5403 = vmatprep.subr.bf16.mxu0 0
  %5404 = vmatpush1.bf16.msra.mxu0 %v2234
  %5405 = vmatprep.subr.bf16.mxu0 0
  %5406 = vmatpush1.bf16.msra.mxu0 %v2225
  %5407 = vmatprep.subr.bf16.mxu0 0
  %5408 = vmatpush1.bf16.msra.mxu0 %v2216
  %5409 = vmatprep.subr.bf16.mxu0 0
  %5410 = vmatpush2.bf16.msra.mxu0 0
  %5411 = vmatprep.subr.bf16.mxu0 0
  %5412 = vmatpush2.bf16.msra.mxu0 0
  %5413 = vmatprep.subr.bf16.mxu0 0
  %5414 = vmatpush2.bf16.msra.mxu0 0
  %5415 = vmatprep.subr.bf16.mxu0 0
  %5416 = vmatpush2.bf16.msra.mxu0 0
  %5417 = vmatprep.subr.bf16.mxu0 0
  %5418 = vmatpush2.bf16.msra.mxu0 0
  %5419 = vmatprep.subr.bf16.mxu0 0
  %5420 = vmatpush2.bf16.msra.mxu0 0
  %5421 = vmatprep.subr.bf16.mxu0 0
  %5422 = vmatpush2.bf16.msra.mxu0 0
  %5423 = vmatprep.subr.bf16.mxu0 0
  %5424 = vmatpush2.bf16.msra.mxu0 0
  %5425 = vmatprep.mubr.bf16.mxu0 0
  %5426 = vmatmul.mubr.bf16.gmra.mxu0 %v5024
  %v5427 = vpop.f32.mrf.mxu0
  %v5428 = vadd.f32 %v5388, %v5427
  %v5429 = vpop.f32.mrf.mxu0
  %v5430 = vpop.f32.mrf.mxu0
  %v5431 = vpop.f32.mrf.mxu0
  %5432 = vdwg.mxu0
  %v5436 = vrot.slane %v5101, 6
  %v5437 = vrot.slane %v5103, 6
  %v5438 = vrot.slane %v5183, 6
  %v5442 = vadd.f32 %v898, %v5436
  %v5443 = vadd.f32 %v900, %v5437
  %v5444 = vadd.f32 %v941, %v5438
  %v5445 = vxor.u32 %v5442, 2147483648
  %v5446 = vxor.u32 %v5443, 2147483648
  %v5447 = vxor.u32 %v5444, 2147483648
  %v5448 = vmul.f32 %v5445, 1.442695
  %v5449 = vpow.pop %v5448
  %v5450 = vmul.f32 %v5446, 1.442695
  %v5451 = vpow.pop %v5450
  %v5452 = vmul.f32 %v5447, 1.442695
  %v5453 = vpow.pop %v5452
  %v5454 = vadd.f32 %v5449, 1.0
  %v5455 = vadd.f32 %v5451, 1.0
  %v5456 = vadd.f32 %v5453, 1.0
  %v5457 = vrcp.pop %v5454
  %v5458 = vmul.f32 1.0, %v5457
  %v5459 = vrcp.pop %v5455
  %v5460 = vmul.f32 1.0, %v5459
  %v5461 = vrcp.pop %v5456
  %v5462 = vmul.f32 1.0, %v5461
  %v5466 = vrot.slane %v5185, 6
  %v5467 = vrot.slane %v5265, 6
  %v5468 = vrot.slane %v5267, 6
  %v5472 = vadd.f32 %v943, %v5466
  %v5473 = vadd.f32 %v984, %v5467
  %v5474 = vadd.f32 %v986, %v5468
  %v5475 = vxor.u32 %v5472, 2147483648
  %v5476 = vxor.u32 %v5473, 2147483648
  %v5477 = vxor.u32 %v5474, 2147483648
  %v5478 = vmul.f32 %v5475, 1.442695
  %v5479 = vpow.pop %v5478
  %v5480 = vmul.f32 %v5476, 1.442695
  %v5481 = vpow.pop %v5480
  %v5482 = vmul.f32 %v5477, 1.442695
  %v5483 = vpow.pop %v5482
  %v5484 = vadd.f32 %v5479, 1.0
  %v5485 = vadd.f32 %v5481, 1.0
  %v5486 = vadd.f32 %v5483, 1.0
  %v5487 = vrcp.pop %v5484
  %v5488 = vmul.f32 1.0, %v5487
  %v5489 = vrcp.pop %v5485
  %v5490 = vmul.f32 1.0, %v5489
  %v5491 = vrcp.pop %v5486
  %v5492 = vmul.f32 1.0, %v5491
  %v5493 = vadd.f32 %v5347, %v1136
  %v5494 = vadd.f32 %v5349, %v1140
  %v5495 = vadd.f32 %v5428, %v1144
  %v5499 = vrot.slane %v5493, 6
  %v5500 = vrot.slane %v5494, 6
  %v5501 = vrot.slane %v5495, 6
  %v5505 = vmul.f32 %v5458, %v5499
  %v5506 = vmul.f32 %v5460, %v5500
  %v5507 = vmul.f32 %v5462, %v5501
  %v5508 = vadd.f32 %v1027, %v5505
  %v5509 = vadd.f32 %v1029, %v5506
  %v5510 = vadd.f32 %v1069, %v5507
  %v5511 = vtanh.pop %v5508
  %v5512 = vtanh.pop %v5509
  %v5513 = vtanh.pop %v5510
  %v5514 = vsub.f32 1.0, %v5488
  %v5515 = vsub.f32 1.0, %v5490
  %v5516 = vsub.f32 1.0, %v5492
  %v5517 = vmul.f32 %v5514, %v5511
  %v5518 = vmul.f32 %v5515, %v5512
  %v5519 = vmul.f32 %v5516, %v5513
  %v5523 = vrot.slane %v5019, 6
  %v5524 = vrot.slane %v5020, 6
  %v5525 = vrot.slane %v5021, 6
  %v5529 = vmul.f32 %v5488, %v5523
  %v5530 = vmul.f32 %v5490, %v5524
  %v5531 = vmul.f32 %v5492, %v5525
  %v5532 = vadd.f32 %v5517, %v5529
  %v5533 = vadd.f32 %v5518, %v5530
  %v5534 = vadd.f32 %v5519, %v5531
  %v5535 = vpack.c.bf16 %v5532, %v5532
  %v5536 = vpack.c.bf16 %v5533, %v5533
  %v5537 = vpack.c.bf16 %v5534, %v5534
  %v5541 = vrot.slane %v5535, 1
  %v5542 = vrot.slane %v5536, 1
  %v5543 = vrot.slane %v5537, 1
  %5547 = vmatprep.subr.bf16.mxu0 %v2128
  %5548 = vmatpush1.bf16.msra.mxu0 %v2127
  %5549 = vmatprep.subr.bf16.mxu0 %v2119
  %5550 = vmatpush1.bf16.msra.mxu0 %v2118
  %5551 = vmatprep.subr.bf16.mxu0 %v2110
  %5552 = vmatpush1.bf16.msra.mxu0 %v2109
  %5553 = vmatprep.subr.bf16.mxu0 %v2101
  %5554 = vmatpush1.bf16.msra.mxu0 %v2100
  %5555 = vmatprep.subr.bf16.mxu0 %v2092
  %5556 = vmatpush1.bf16.msra.mxu0 %v2091
  %5557 = vmatprep.subr.bf16.mxu0 %v2083
  %5558 = vmatpush1.bf16.msra.mxu0 %v2082
  %5559 = vmatprep.subr.bf16.mxu0 %v2074
  %5560 = vmatpush1.bf16.msra.mxu0 %v2073
  %5561 = vmatprep.subr.bf16.mxu0 %v2065
  %5562 = vmatpush1.bf16.msra.mxu0 %v2064
  %5563 = vmatprep.subr.bf16.mxu0 %v2200
  %5564 = vmatpush2.bf16.msra.mxu0 %v2199
  %5565 = vmatprep.subr.bf16.mxu0 %v2191
  %5566 = vmatpush2.bf16.msra.mxu0 %v2190
  %5567 = vmatprep.subr.bf16.mxu0 %v2182
  %5568 = vmatpush2.bf16.msra.mxu0 %v2181
  %5569 = vmatprep.subr.bf16.mxu0 %v2173
  %5570 = vmatpush2.bf16.msra.mxu0 %v2172
  %5571 = vmatprep.subr.bf16.mxu0 %v2164
  %5572 = vmatpush2.bf16.msra.mxu0 %v2163
  %5573 = vmatprep.subr.bf16.mxu0 %v2155
  %5574 = vmatpush2.bf16.msra.mxu0 %v2154
  %5575 = vmatprep.subr.bf16.mxu0 %v2146
  %5576 = vmatpush2.bf16.msra.mxu0 %v2145
  %5577 = vmatprep.subr.bf16.mxu0 %v2137
  %5578 = vmatpush2.bf16.msra.mxu0 %v2136
  %5579 = vmatprep.mubr.bf16.mxu0 %v5542
  %5580 = vmatmul.mubr.bf16.gmra.mxu0 %v5541
  %v5581 = vpop.f32.mrf.mxu0
  %v5582 = vadd.f32 0.0, %v5581
  %v5583 = vpop.f32.mrf.mxu0
  %v5584 = vadd.f32 0.0, %v5583
  %v5585 = vpop.f32.mrf.mxu0
  %v5586 = vpop.f32.mrf.mxu0
  %5587 = vdwg.mxu0
  %5588 = vmatprep.subr.bf16.mxu0 %v2272
  %5589 = vmatpush1.bf16.msra.mxu0 %v2271
  %5590 = vmatprep.subr.bf16.mxu0 %v2263
  %5591 = vmatpush1.bf16.msra.mxu0 %v2262
  %5592 = vmatprep.subr.bf16.mxu0 %v2254
  %5593 = vmatpush1.bf16.msra.mxu0 %v2253
  %5594 = vmatprep.subr.bf16.mxu0 %v2245
  %5595 = vmatpush1.bf16.msra.mxu0 %v2244
  %5596 = vmatprep.subr.bf16.mxu0 %v2236
  %5597 = vmatpush1.bf16.msra.mxu0 %v2235
  %5598 = vmatprep.subr.bf16.mxu0 %v2227
  %5599 = vmatpush1.bf16.msra.mxu0 %v2226
  %5600 = vmatprep.subr.bf16.mxu0 %v2218
  %5601 = vmatpush1.bf16.msra.mxu0 %v2217
  %5602 = vmatprep.subr.bf16.mxu0 %v2209
  %5603 = vmatpush1.bf16.msra.mxu0 %v2208
  %5604 = vmatprep.subr.bf16.mxu0 0
  %5605 = vmatpush2.bf16.msra.mxu0 0
  %5606 = vmatprep.subr.bf16.mxu0 0
  %5607 = vmatpush2.bf16.msra.mxu0 0
  %5608 = vmatprep.subr.bf16.mxu0 0
  %5609 = vmatpush2.bf16.msra.mxu0 0
  %5610 = vmatprep.subr.bf16.mxu0 0
  %5611 = vmatpush2.bf16.msra.mxu0 0
  %5612 = vmatprep.subr.bf16.mxu0 0
  %5613 = vmatpush2.bf16.msra.mxu0 0
  %5614 = vmatprep.subr.bf16.mxu0 0
  %5615 = vmatpush2.bf16.msra.mxu0 0
  %5616 = vmatprep.subr.bf16.mxu0 0
  %5617 = vmatpush2.bf16.msra.mxu0 0
  %5618 = vmatprep.subr.bf16.mxu0 0
  %5619 = vmatpush2.bf16.msra.mxu0 0
  %5620 = vmatprep.mubr.bf16.mxu0 0
  %5621 = vmatmul.mubr.bf16.gmra.mxu0 %v5543
  %v5622 = vpop.f32.mrf.mxu0
  %v5623 = vadd.f32 %v5582, %v5622
  %v5624 = vpop.f32.mrf.mxu0
  %v5625 = vadd.f32 %v5584, %v5624
  %v5626 = vpop.f32.mrf.mxu0
  %v5627 = vpop.f32.mrf.mxu0
  %5628 = vdwg.mxu0
  %5629 = vmatprep.subr.bf16.mxu0 %v2130
  %5630 = vmatpush1.bf16.msra.mxu0 %v2129
  %5631 = vmatprep.subr.bf16.mxu0 %v2121
  %5632 = vmatpush1.bf16.msra.mxu0 %v2120
  %5633 = vmatprep.subr.bf16.mxu0 %v2112
  %5634 = vmatpush1.bf16.msra.mxu0 %v2111
  %5635 = vmatprep.subr.bf16.mxu0 %v2103
  %5636 = vmatpush1.bf16.msra.mxu0 %v2102
  %5637 = vmatprep.subr.bf16.mxu0 %v2094
  %5638 = vmatpush1.bf16.msra.mxu0 %v2093
  %5639 = vmatprep.subr.bf16.mxu0 %v2085
  %5640 = vmatpush1.bf16.msra.mxu0 %v2084
  %5641 = vmatprep.subr.bf16.mxu0 %v2076
  %5642 = vmatpush1.bf16.msra.mxu0 %v2075
  %5643 = vmatprep.subr.bf16.mxu0 %v2067
  %5644 = vmatpush1.bf16.msra.mxu0 %v2066
  %5645 = vmatprep.subr.bf16.mxu0 %v2202
  %5646 = vmatpush2.bf16.msra.mxu0 %v2201
  %5647 = vmatprep.subr.bf16.mxu0 %v2193
  %5648 = vmatpush2.bf16.msra.mxu0 %v2192
  %5649 = vmatprep.subr.bf16.mxu0 %v2184
  %5650 = vmatpush2.bf16.msra.mxu0 %v2183
  %5651 = vmatprep.subr.bf16.mxu0 %v2175
  %5652 = vmatpush2.bf16.msra.mxu0 %v2174
  %5653 = vmatprep.subr.bf16.mxu0 %v2166
  %5654 = vmatpush2.bf16.msra.mxu0 %v2165
  %5655 = vmatprep.subr.bf16.mxu0 %v2157
  %5656 = vmatpush2.bf16.msra.mxu0 %v2156
  %5657 = vmatprep.subr.bf16.mxu0 %v2148
  %5658 = vmatpush2.bf16.msra.mxu0 %v2147
  %5659 = vmatprep.subr.bf16.mxu0 %v2139
  %5660 = vmatpush2.bf16.msra.mxu0 %v2138
  %5661 = vmatprep.mubr.bf16.mxu0 %v5542
  %5662 = vmatmul.mubr.bf16.gmra.mxu0 %v5541
  %v5663 = vpop.f32.mrf.mxu0
  %v5664 = vadd.f32 0.0, %v5663
  %v5665 = vpop.f32.mrf.mxu0
  %v5666 = vadd.f32 0.0, %v5665
  %v5667 = vpop.f32.mrf.mxu0
  %v5668 = vpop.f32.mrf.mxu0
  %5669 = vdwg.mxu0
  %5670 = vmatprep.subr.bf16.mxu0 %v2274
  %5671 = vmatpush1.bf16.msra.mxu0 %v2273
  %5672 = vmatprep.subr.bf16.mxu0 %v2265
  %5673 = vmatpush1.bf16.msra.mxu0 %v2264
  %5674 = vmatprep.subr.bf16.mxu0 %v2256
  %5675 = vmatpush1.bf16.msra.mxu0 %v2255
  %5676 = vmatprep.subr.bf16.mxu0 %v2247
  %5677 = vmatpush1.bf16.msra.mxu0 %v2246
  %5678 = vmatprep.subr.bf16.mxu0 %v2238
  %5679 = vmatpush1.bf16.msra.mxu0 %v2237
  %5680 = vmatprep.subr.bf16.mxu0 %v2229
  %5681 = vmatpush1.bf16.msra.mxu0 %v2228
  %5682 = vmatprep.subr.bf16.mxu0 %v2220
  %5683 = vmatpush1.bf16.msra.mxu0 %v2219
  %5684 = vmatprep.subr.bf16.mxu0 %v2211
  %5685 = vmatpush1.bf16.msra.mxu0 %v2210
  %5686 = vmatprep.subr.bf16.mxu0 0
  %5687 = vmatpush2.bf16.msra.mxu0 0
  %5688 = vmatprep.subr.bf16.mxu0 0
  %5689 = vmatpush2.bf16.msra.mxu0 0
  %5690 = vmatprep.subr.bf16.mxu0 0
  %5691 = vmatpush2.bf16.msra.mxu0 0
  %5692 = vmatprep.subr.bf16.mxu0 0
  %5693 = vmatpush2.bf16.msra.mxu0 0
  %5694 = vmatprep.subr.bf16.mxu0 0
  %5695 = vmatpush2.bf16.msra.mxu0 0
  %5696 = vmatprep.subr.bf16.mxu0 0
  %5697 = vmatpush2.bf16.msra.mxu0 0
  %5698 = vmatprep.subr.bf16.mxu0 0
  %5699 = vmatpush2.bf16.msra.mxu0 0
  %5700 = vmatprep.subr.bf16.mxu0 0
  %5701 = vmatpush2.bf16.msra.mxu0 0
  %5702 = vmatprep.mubr.bf16.mxu0 0
  %5703 = vmatmul.mubr.bf16.gmra.mxu0 %v5543
  %v5704 = vpop.f32.mrf.mxu0
  %v5705 = vadd.f32 %v5664, %v5704
  %v5706 = vpop.f32.mrf.mxu0
  %v5707 = vadd.f32 %v5666, %v5706
  %v5708 = vpop.f32.mrf.mxu0
  %v5709 = vpop.f32.mrf.mxu0
  %5710 = vdwg.mxu0
  %5711 = vmatprep.subr.bf16.mxu0 %v2132
  %5712 = vmatpush1.bf16.msra.mxu0 %v2131
  %5713 = vmatprep.subr.bf16.mxu0 %v2123
  %5714 = vmatpush1.bf16.msra.mxu0 %v2122
  %5715 = vmatprep.subr.bf16.mxu0 %v2114
  %5716 = vmatpush1.bf16.msra.mxu0 %v2113
  %5717 = vmatprep.subr.bf16.mxu0 %v2105
  %5718 = vmatpush1.bf16.msra.mxu0 %v2104
  %5719 = vmatprep.subr.bf16.mxu0 %v2096
  %5720 = vmatpush1.bf16.msra.mxu0 %v2095
  %5721 = vmatprep.subr.bf16.mxu0 %v2087
  %5722 = vmatpush1.bf16.msra.mxu0 %v2086
  %5723 = vmatprep.subr.bf16.mxu0 %v2078
  %5724 = vmatpush1.bf16.msra.mxu0 %v2077
  %5725 = vmatprep.subr.bf16.mxu0 %v2069
  %5726 = vmatpush1.bf16.msra.mxu0 %v2068
  %5727 = vmatprep.subr.bf16.mxu0 %v2204
  %5728 = vmatpush2.bf16.msra.mxu0 %v2203
  %5729 = vmatprep.subr.bf16.mxu0 %v2195
  %5730 = vmatpush2.bf16.msra.mxu0 %v2194
  %5731 = vmatprep.subr.bf16.mxu0 %v2186
  %5732 = vmatpush2.bf16.msra.mxu0 %v2185
  %5733 = vmatprep.subr.bf16.mxu0 %v2177
  %5734 = vmatpush2.bf16.msra.mxu0 %v2176
  %5735 = vmatprep.subr.bf16.mxu0 %v2168
  %5736 = vmatpush2.bf16.msra.mxu0 %v2167
  %5737 = vmatprep.subr.bf16.mxu0 %v2159
  %5738 = vmatpush2.bf16.msra.mxu0 %v2158
  %5739 = vmatprep.subr.bf16.mxu0 %v2150
  %5740 = vmatpush2.bf16.msra.mxu0 %v2149
  %5741 = vmatprep.subr.bf16.mxu0 %v2141
  %5742 = vmatpush2.bf16.msra.mxu0 %v2140
  %5743 = vmatprep.mubr.bf16.mxu0 %v5542
  %5744 = vmatmul.mubr.bf16.gmra.mxu0 %v5541
  %v5745 = vpop.f32.mrf.mxu0
  %v5746 = vadd.f32 0.0, %v5745
  %v5747 = vpop.f32.mrf.mxu0
  %v5748 = vadd.f32 0.0, %v5747
  %v5749 = vpop.f32.mrf.mxu0
  %v5750 = vpop.f32.mrf.mxu0
  %5751 = vdwg.mxu0
  %5752 = vmatprep.subr.bf16.mxu0 %v2276
  %5753 = vmatpush1.bf16.msra.mxu0 %v2275
  %5754 = vmatprep.subr.bf16.mxu0 %v2267
  %5755 = vmatpush1.bf16.msra.mxu0 %v2266
  %5756 = vmatprep.subr.bf16.mxu0 %v2258
  %5757 = vmatpush1.bf16.msra.mxu0 %v2257
  %5758 = vmatprep.subr.bf16.mxu0 %v2249
  %5759 = vmatpush1.bf16.msra.mxu0 %v2248
  %5760 = vmatprep.subr.bf16.mxu0 %v2240
  %5761 = vmatpush1.bf16.msra.mxu0 %v2239
  %5762 = vmatprep.subr.bf16.mxu0 %v2231
  %5763 = vmatpush1.bf16.msra.mxu0 %v2230
  %5764 = vmatprep.subr.bf16.mxu0 %v2222
  %5765 = vmatpush1.bf16.msra.mxu0 %v2221
  %5766 = vmatprep.subr.bf16.mxu0 %v2213
  %5767 = vmatpush1.bf16.msra.mxu0 %v2212
  %5768 = vmatprep.subr.bf16.mxu0 0
  %5769 = vmatpush2.bf16.msra.mxu0 0
  %5770 = vmatprep.subr.bf16.mxu0 0
  %5771 = vmatpush2.bf16.msra.mxu0 0
  %5772 = vmatprep.subr.bf16.mxu0 0
  %5773 = vmatpush2.bf16.msra.mxu0 0
  %5774 = vmatprep.subr.bf16.mxu0 0
  %5775 = vmatpush2.bf16.msra.mxu0 0
  %5776 = vmatprep.subr.bf16.mxu0 0
  %5777 = vmatpush2.bf16.msra.mxu0 0
  %5778 = vmatprep.subr.bf16.mxu0 0
  %5779 = vmatpush2.bf16.msra.mxu0 0
  %5780 = vmatprep.subr.bf16.mxu0 0
  %5781 = vmatpush2.bf16.msra.mxu0 0
  %5782 = vmatprep.subr.bf16.mxu0 0
  %5783 = vmatpush2.bf16.msra.mxu0 0
  %5784 = vmatprep.mubr.bf16.mxu0 0
  %5785 = vmatmul.mubr.bf16.gmra.mxu0 %v5543
  %v5786 = vpop.f32.mrf.mxu0
  %v5787 = vadd.f32 %v5746, %v5786
  %v5788 = vpop.f32.mrf.mxu0
  %v5789 = vadd.f32 %v5748, %v5788
  %v5790 = vpop.f32.mrf.mxu0
  %v5791 = vpop.f32.mrf.mxu0
  %5792 = vdwg.mxu0
  %5793 = vmatprep.subr.bf16.mxu0 %v2134
  %5794 = vmatpush1.bf16.msra.mxu0 %v2133
  %5795 = vmatprep.subr.bf16.mxu0 %v2125
  %5796 = vmatpush1.bf16.msra.mxu0 %v2124
  %5797 = vmatprep.subr.bf16.mxu0 %v2116
  %5798 = vmatpush1.bf16.msra.mxu0 %v2115
  %5799 = vmatprep.subr.bf16.mxu0 %v2107
  %5800 = vmatpush1.bf16.msra.mxu0 %v2106
  %5801 = vmatprep.subr.bf16.mxu0 %v2098
  %5802 = vmatpush1.bf16.msra.mxu0 %v2097
  %5803 = vmatprep.subr.bf16.mxu0 %v2089
  %5804 = vmatpush1.bf16.msra.mxu0 %v2088
  %5805 = vmatprep.subr.bf16.mxu0 %v2080
  %5806 = vmatpush1.bf16.msra.mxu0 %v2079
  %5807 = vmatprep.subr.bf16.mxu0 %v2071
  %5808 = vmatpush1.bf16.msra.mxu0 %v2070
  %5809 = vmatprep.subr.bf16.mxu0 %v2206
  %5810 = vmatpush2.bf16.msra.mxu0 %v2205
  %5811 = vmatprep.subr.bf16.mxu0 %v2197
  %5812 = vmatpush2.bf16.msra.mxu0 %v2196
  %5813 = vmatprep.subr.bf16.mxu0 %v2188
  %5814 = vmatpush2.bf16.msra.mxu0 %v2187
  %5815 = vmatprep.subr.bf16.mxu0 %v2179
  %5816 = vmatpush2.bf16.msra.mxu0 %v2178
  %5817 = vmatprep.subr.bf16.mxu0 %v2170
  %5818 = vmatpush2.bf16.msra.mxu0 %v2169
  %5819 = vmatprep.subr.bf16.mxu0 %v2161
  %5820 = vmatpush2.bf16.msra.mxu0 %v2160
  %5821 = vmatprep.subr.bf16.mxu0 %v2152
  %5822 = vmatpush2.bf16.msra.mxu0 %v2151
  %5823 = vmatprep.subr.bf16.mxu0 %v2143
  %5824 = vmatpush2.bf16.msra.mxu0 %v2142
  %5825 = vmatprep.mubr.bf16.mxu0 %v5542
  %5826 = vmatmul.mubr.bf16.gmra.mxu0 %v5541
  %v5827 = vpop.f32.mrf.mxu0
  %v5828 = vadd.f32 0.0, %v5827
  %v5829 = vpop.f32.mrf.mxu0
  %v5830 = vadd.f32 0.0, %v5829
  %v5831 = vpop.f32.mrf.mxu0
  %v5832 = vpop.f32.mrf.mxu0
  %5833 = vdwg.mxu0
  %5834 = vmatprep.subr.bf16.mxu0 %v2278
  %5835 = vmatpush1.bf16.msra.mxu0 %v2277
  %5836 = vmatprep.subr.bf16.mxu0 %v2269
  %5837 = vmatpush1.bf16.msra.mxu0 %v2268
  %5838 = vmatprep.subr.bf16.mxu0 %v2260
  %5839 = vmatpush1.bf16.msra.mxu0 %v2259
  %5840 = vmatprep.subr.bf16.mxu0 %v2251
  %5841 = vmatpush1.bf16.msra.mxu0 %v2250
  %5842 = vmatprep.subr.bf16.mxu0 %v2242
  %5843 = vmatpush1.bf16.msra.mxu0 %v2241
  %5844 = vmatprep.subr.bf16.mxu0 %v2233
  %5845 = vmatpush1.bf16.msra.mxu0 %v2232
  %5846 = vmatprep.subr.bf16.mxu0 %v2224
  %5847 = vmatpush1.bf16.msra.mxu0 %v2223
  %5848 = vmatprep.subr.bf16.mxu0 %v2215
  %5849 = vmatpush1.bf16.msra.mxu0 %v2214
  %5850 = vmatprep.subr.bf16.mxu0 0
  %5851 = vmatpush2.bf16.msra.mxu0 0
  %5852 = vmatprep.subr.bf16.mxu0 0
  %5853 = vmatpush2.bf16.msra.mxu0 0
  %5854 = vmatprep.subr.bf16.mxu0 0
  %5855 = vmatpush2.bf16.msra.mxu0 0
  %5856 = vmatprep.subr.bf16.mxu0 0
  %5857 = vmatpush2.bf16.msra.mxu0 0
  %5858 = vmatprep.subr.bf16.mxu0 0
  %5859 = vmatpush2.bf16.msra.mxu0 0
  %5860 = vmatprep.subr.bf16.mxu0 0
  %5861 = vmatpush2.bf16.msra.mxu0 0
  %5862 = vmatprep.subr.bf16.mxu0 0
  %5863 = vmatpush2.bf16.msra.mxu0 0
  %5864 = vmatprep.subr.bf16.mxu0 0
  %5865 = vmatpush2.bf16.msra.mxu0 0
  %5866 = vmatprep.mubr.bf16.mxu0 0
  %5867 = vmatmul.mubr.bf16.gmra.mxu0 %v5543
  %v5868 = vpop.f32.mrf.mxu0
  %v5869 = vadd.f32 %v5828, %v5868
  %v5870 = vpop.f32.mrf.mxu0
  %v5871 = vadd.f32 %v5830, %v5870
  %v5872 = vpop.f32.mrf.mxu0
  %v5873 = vpop.f32.mrf.mxu0
  %5874 = vdwg.mxu0
  %5875 = vmatprep.subr.bf16.mxu0 0
  %5876 = vmatpush1.bf16.msra.mxu0 %v2135
  %5877 = vmatprep.subr.bf16.mxu0 0
  %5878 = vmatpush1.bf16.msra.mxu0 %v2126
  %5879 = vmatprep.subr.bf16.mxu0 0
  %5880 = vmatpush1.bf16.msra.mxu0 %v2117
  %5881 = vmatprep.subr.bf16.mxu0 0
  %5882 = vmatpush1.bf16.msra.mxu0 %v2108
  %5883 = vmatprep.subr.bf16.mxu0 0
  %5884 = vmatpush1.bf16.msra.mxu0 %v2099
  %5885 = vmatprep.subr.bf16.mxu0 0
  %5886 = vmatpush1.bf16.msra.mxu0 %v2090
  %5887 = vmatprep.subr.bf16.mxu0 0
  %5888 = vmatpush1.bf16.msra.mxu0 %v2081
  %5889 = vmatprep.subr.bf16.mxu0 0
  %5890 = vmatpush1.bf16.msra.mxu0 %v2072
  %5891 = vmatprep.subr.bf16.mxu0 0
  %5892 = vmatpush2.bf16.msra.mxu0 %v2207
  %5893 = vmatprep.subr.bf16.mxu0 0
  %5894 = vmatpush2.bf16.msra.mxu0 %v2198
  %5895 = vmatprep.subr.bf16.mxu0 0
  %5896 = vmatpush2.bf16.msra.mxu0 %v2189
  %5897 = vmatprep.subr.bf16.mxu0 0
  %5898 = vmatpush2.bf16.msra.mxu0 %v2180
  %5899 = vmatprep.subr.bf16.mxu0 0
  %5900 = vmatpush2.bf16.msra.mxu0 %v2171
  %5901 = vmatprep.subr.bf16.mxu0 0
  %5902 = vmatpush2.bf16.msra.mxu0 %v2162
  %5903 = vmatprep.subr.bf16.mxu0 0
  %5904 = vmatpush2.bf16.msra.mxu0 %v2153
  %5905 = vmatprep.subr.bf16.mxu0 0
  %5906 = vmatpush2.bf16.msra.mxu0 %v2144
  %5907 = vmatprep.mubr.bf16.mxu0 %v5542
  %5908 = vmatmul.mubr.bf16.gmra.mxu0 %v5541
  %v5909 = vpop.f32.mrf.mxu0
  %v5910 = vadd.f32 0.0, %v5909
  %v5911 = vpop.f32.mrf.mxu0
  %v5912 = vpop.f32.mrf.mxu0
  %v5913 = vpop.f32.mrf.mxu0
  %5914 = vdwg.mxu0
  %5915 = vmatprep.subr.bf16.mxu0 0
  %5916 = vmatpush1.bf16.msra.mxu0 %v2279
  %5917 = vmatprep.subr.bf16.mxu0 0
  %5918 = vmatpush1.bf16.msra.mxu0 %v2270
  %5919 = vmatprep.subr.bf16.mxu0 0
  %5920 = vmatpush1.bf16.msra.mxu0 %v2261
  %5921 = vmatprep.subr.bf16.mxu0 0
  %5922 = vmatpush1.bf16.msra.mxu0 %v2252
  %5923 = vmatprep.subr.bf16.mxu0 0
  %5924 = vmatpush1.bf16.msra.mxu0 %v2243
  %5925 = vmatprep.subr.bf16.mxu0 0
  %5926 = vmatpush1.bf16.msra.mxu0 %v2234
  %5927 = vmatprep.subr.bf16.mxu0 0
  %5928 = vmatpush1.bf16.msra.mxu0 %v2225
  %5929 = vmatprep.subr.bf16.mxu0 0
  %5930 = vmatpush1.bf16.msra.mxu0 %v2216
  %5931 = vmatprep.subr.bf16.mxu0 0
  %5932 = vmatpush2.bf16.msra.mxu0 0
  %5933 = vmatprep.subr.bf16.mxu0 0
  %5934 = vmatpush2.bf16.msra.mxu0 0
  %5935 = vmatprep.subr.bf16.mxu0 0
  %5936 = vmatpush2.bf16.msra.mxu0 0
  %5937 = vmatprep.subr.bf16.mxu0 0
  %5938 = vmatpush2.bf16.msra.mxu0 0
  %5939 = vmatprep.subr.bf16.mxu0 0
  %5940 = vmatpush2.bf16.msra.mxu0 0
  %5941 = vmatprep.subr.bf16.mxu0 0
  %5942 = vmatpush2.bf16.msra.mxu0 0
  %5943 = vmatprep.subr.bf16.mxu0 0
  %5944 = vmatpush2.bf16.msra.mxu0 0
  %5945 = vmatprep.subr.bf16.mxu0 0
  %5946 = vmatpush2.bf16.msra.mxu0 0
  %5947 = vmatprep.mubr.bf16.mxu0 0
  %5948 = vmatmul.mubr.bf16.gmra.mxu0 %v5543
  %v5949 = vpop.f32.mrf.mxu0
  %v5950 = vadd.f32 %v5910, %v5949
  %v5951 = vpop.f32.mrf.mxu0
  %v5952 = vpop.f32.mrf.mxu0
  %v5953 = vpop.f32.mrf.mxu0
  %5954 = vdwg.mxu0
  %v5958 = vrot.slane %v5623, 4
  %v5959 = vrot.slane %v5625, 4
  %v5960 = vrot.slane %v5705, 4
  %v5964 = vadd.f32 %v898, %v5958
  %v5965 = vadd.f32 %v900, %v5959
  %v5966 = vadd.f32 %v941, %v5960
  %v5967 = vxor.u32 %v5964, 2147483648
  %v5968 = vxor.u32 %v5965, 2147483648
  %v5969 = vxor.u32 %v5966, 2147483648
  %v5970 = vmul.f32 %v5967, 1.442695
  %v5971 = vpow.pop %v5970
  %v5972 = vmul.f32 %v5968, 1.442695
  %v5973 = vpow.pop %v5972
  %v5974 = vmul.f32 %v5969, 1.442695
  %v5975 = vpow.pop %v5974
  %v5976 = vadd.f32 %v5971, 1.0
  %v5977 = vadd.f32 %v5973, 1.0
  %v5978 = vadd.f32 %v5975, 1.0
  %v5979 = vrcp.pop %v5976
  %v5980 = vmul.f32 1.0, %v5979
  %v5981 = vrcp.pop %v5977
  %v5982 = vmul.f32 1.0, %v5981
  %v5983 = vrcp.pop %v5978
  %v5984 = vmul.f32 1.0, %v5983
  %v5988 = vrot.slane %v5707, 4
  %v5989 = vrot.slane %v5787, 4
  %v5990 = vrot.slane %v5789, 4
  %v5994 = vadd.f32 %v943, %v5988
  %v5995 = vadd.f32 %v984, %v5989
  %v5996 = vadd.f32 %v986, %v5990
  %v5997 = vxor.u32 %v5994, 2147483648
  %v5998 = vxor.u32 %v5995, 2147483648
  %v5999 = vxor.u32 %v5996, 2147483648
  %v6000 = vmul.f32 %v5997, 1.442695
  %v6001 = vpow.pop %v6000
  %v6002 = vmul.f32 %v5998, 1.442695
  %v6003 = vpow.pop %v6002
  %v6004 = vmul.f32 %v5999, 1.442695
  %v6005 = vpow.pop %v6004
  %v6006 = vadd.f32 %v6001, 1.0
  %v6007 = vadd.f32 %v6003, 1.0
  %v6008 = vadd.f32 %v6005, 1.0
  %v6009 = vrcp.pop %v6006
  %v6010 = vmul.f32 1.0, %v6009
  %v6011 = vrcp.pop %v6007
  %v6012 = vmul.f32 1.0, %v6011
  %v6013 = vrcp.pop %v6008
  %v6014 = vmul.f32 1.0, %v6013
  %v6015 = vadd.f32 %v5869, %v1136
  %v6016 = vadd.f32 %v5871, %v1140
  %v6017 = vadd.f32 %v5950, %v1144
  %v6021 = vrot.slane %v6015, 4
  %v6022 = vrot.slane %v6016, 4
  %v6023 = vrot.slane %v6017, 4
  %v6027 = vmul.f32 %v5980, %v6021
  %v6028 = vmul.f32 %v5982, %v6022
  %v6029 = vmul.f32 %v5984, %v6023
  %v6030 = vadd.f32 %v1027, %v6027
  %v6031 = vadd.f32 %v1029, %v6028
  %v6032 = vadd.f32 %v1069, %v6029
  %v6033 = vtanh.pop %v6030
  %v6034 = vtanh.pop %v6031
  %v6035 = vtanh.pop %v6032
  %v6036 = vsub.f32 1.0, %v6010
  %v6037 = vsub.f32 1.0, %v6012
  %v6038 = vsub.f32 1.0, %v6014
  %v6039 = vmul.f32 %v6036, %v6033
  %v6040 = vmul.f32 %v6037, %v6034
  %v6041 = vmul.f32 %v6038, %v6035
  %v6045 = vrot.slane %v5532, 6
  %v6046 = vrot.slane %v5533, 6
  %v6047 = vrot.slane %v5534, 6
  %v6051 = vmul.f32 %v6010, %v6045
  %v6052 = vmul.f32 %v6012, %v6046
  %v6053 = vmul.f32 %v6014, %v6047
  %v6054 = vadd.f32 %v6039, %v6051
  %v6055 = vadd.f32 %v6040, %v6052
  %v6056 = vadd.f32 %v6041, %v6053
  %v6057 = vpack.c.bf16 %v6054, %v6054
  %v6058 = vpack.c.bf16 %v6055, %v6055
  %v6059 = vpack.c.bf16 %v6056, %v6056
  %v6063 = vrot.slane %v6057, 2
  %v6064 = vrot.slane %v6058, 2
  %v6065 = vrot.slane %v6059, 2
  %6069 = vmatprep.subr.bf16.mxu0 %v2128
  %6070 = vmatpush1.bf16.msra.mxu0 %v2127
  %6071 = vmatprep.subr.bf16.mxu0 %v2119
  %6072 = vmatpush1.bf16.msra.mxu0 %v2118
  %6073 = vmatprep.subr.bf16.mxu0 %v2110
  %6074 = vmatpush1.bf16.msra.mxu0 %v2109
  %6075 = vmatprep.subr.bf16.mxu0 %v2101
  %6076 = vmatpush1.bf16.msra.mxu0 %v2100
  %6077 = vmatprep.subr.bf16.mxu0 %v2092
  %6078 = vmatpush1.bf16.msra.mxu0 %v2091
  %6079 = vmatprep.subr.bf16.mxu0 %v2083
  %6080 = vmatpush1.bf16.msra.mxu0 %v2082
  %6081 = vmatprep.subr.bf16.mxu0 %v2074
  %6082 = vmatpush1.bf16.msra.mxu0 %v2073
  %6083 = vmatprep.subr.bf16.mxu0 %v2065
  %6084 = vmatpush1.bf16.msra.mxu0 %v2064
  %6085 = vmatprep.subr.bf16.mxu0 %v2200
  %6086 = vmatpush2.bf16.msra.mxu0 %v2199
  %6087 = vmatprep.subr.bf16.mxu0 %v2191
  %6088 = vmatpush2.bf16.msra.mxu0 %v2190
  %6089 = vmatprep.subr.bf16.mxu0 %v2182
  %6090 = vmatpush2.bf16.msra.mxu0 %v2181
  %6091 = vmatprep.subr.bf16.mxu0 %v2173
  %6092 = vmatpush2.bf16.msra.mxu0 %v2172
  %6093 = vmatprep.subr.bf16.mxu0 %v2164
  %6094 = vmatpush2.bf16.msra.mxu0 %v2163
  %6095 = vmatprep.subr.bf16.mxu0 %v2155
  %6096 = vmatpush2.bf16.msra.mxu0 %v2154
  %6097 = vmatprep.subr.bf16.mxu0 %v2146
  %6098 = vmatpush2.bf16.msra.mxu0 %v2145
  %6099 = vmatprep.subr.bf16.mxu0 %v2137
  %6100 = vmatpush2.bf16.msra.mxu0 %v2136
  %6101 = vmatprep.mubr.bf16.mxu0 %v6064
  %6102 = vmatmul.mubr.bf16.gmra.mxu0 %v6063
  %v6103 = vpop.f32.mrf.mxu0
  %v6104 = vadd.f32 0.0, %v6103
  %v6105 = vpop.f32.mrf.mxu0
  %v6106 = vadd.f32 0.0, %v6105
  %v6107 = vpop.f32.mrf.mxu0
  %v6108 = vpop.f32.mrf.mxu0
  %6109 = vdwg.mxu0
  %6110 = vmatprep.subr.bf16.mxu0 %v2272
  %6111 = vmatpush1.bf16.msra.mxu0 %v2271
  %6112 = vmatprep.subr.bf16.mxu0 %v2263
  %6113 = vmatpush1.bf16.msra.mxu0 %v2262
  %6114 = vmatprep.subr.bf16.mxu0 %v2254
  %6115 = vmatpush1.bf16.msra.mxu0 %v2253
  %6116 = vmatprep.subr.bf16.mxu0 %v2245
  %6117 = vmatpush1.bf16.msra.mxu0 %v2244
  %6118 = vmatprep.subr.bf16.mxu0 %v2236
  %6119 = vmatpush1.bf16.msra.mxu0 %v2235
  %6120 = vmatprep.subr.bf16.mxu0 %v2227
  %6121 = vmatpush1.bf16.msra.mxu0 %v2226
  %6122 = vmatprep.subr.bf16.mxu0 %v2218
  %6123 = vmatpush1.bf16.msra.mxu0 %v2217
  %6124 = vmatprep.subr.bf16.mxu0 %v2209
  %6125 = vmatpush1.bf16.msra.mxu0 %v2208
  %6126 = vmatprep.subr.bf16.mxu0 0
  %6127 = vmatpush2.bf16.msra.mxu0 0
  %6128 = vmatprep.subr.bf16.mxu0 0
  %6129 = vmatpush2.bf16.msra.mxu0 0
  %6130 = vmatprep.subr.bf16.mxu0 0
  %6131 = vmatpush2.bf16.msra.mxu0 0
  %6132 = vmatprep.subr.bf16.mxu0 0
  %6133 = vmatpush2.bf16.msra.mxu0 0
  %6134 = vmatprep.subr.bf16.mxu0 0
  %6135 = vmatpush2.bf16.msra.mxu0 0
  %6136 = vmatprep.subr.bf16.mxu0 0
  %6137 = vmatpush2.bf16.msra.mxu0 0
  %6138 = vmatprep.subr.bf16.mxu0 0
  %6139 = vmatpush2.bf16.msra.mxu0 0
  %6140 = vmatprep.subr.bf16.mxu0 0
  %6141 = vmatpush2.bf16.msra.mxu0 0
  %6142 = vmatprep.mubr.bf16.mxu0 0
  %6143 = vmatmul.mubr.bf16.gmra.mxu0 %v6065
  %v6144 = vpop.f32.mrf.mxu0
  %v6145 = vadd.f32 %v6104, %v6144
  %v6146 = vpop.f32.mrf.mxu0
  %v6147 = vadd.f32 %v6106, %v6146
  %v6148 = vpop.f32.mrf.mxu0
  %v6149 = vpop.f32.mrf.mxu0
  %6150 = vdwg.mxu0
  %6151 = vmatprep.subr.bf16.mxu0 %v2130
  %6152 = vmatpush1.bf16.msra.mxu0 %v2129
  %6153 = vmatprep.subr.bf16.mxu0 %v2121
  %6154 = vmatpush1.bf16.msra.mxu0 %v2120
  %6155 = vmatprep.subr.bf16.mxu0 %v2112
  %6156 = vmatpush1.bf16.msra.mxu0 %v2111
  %6157 = vmatprep.subr.bf16.mxu0 %v2103
  %6158 = vmatpush1.bf16.msra.mxu0 %v2102
  %6159 = vmatprep.subr.bf16.mxu0 %v2094
  %6160 = vmatpush1.bf16.msra.mxu0 %v2093
  %6161 = vmatprep.subr.bf16.mxu0 %v2085
  %6162 = vmatpush1.bf16.msra.mxu0 %v2084
  %6163 = vmatprep.subr.bf16.mxu0 %v2076
  %6164 = vmatpush1.bf16.msra.mxu0 %v2075
  %6165 = vmatprep.subr.bf16.mxu0 %v2067
  %6166 = vmatpush1.bf16.msra.mxu0 %v2066
  %6167 = vmatprep.subr.bf16.mxu0 %v2202
  %6168 = vmatpush2.bf16.msra.mxu0 %v2201
  %6169 = vmatprep.subr.bf16.mxu0 %v2193
  %6170 = vmatpush2.bf16.msra.mxu0 %v2192
  %6171 = vmatprep.subr.bf16.mxu0 %v2184
  %6172 = vmatpush2.bf16.msra.mxu0 %v2183
  %6173 = vmatprep.subr.bf16.mxu0 %v2175
  %6174 = vmatpush2.bf16.msra.mxu0 %v2174
  %6175 = vmatprep.subr.bf16.mxu0 %v2166
  %6176 = vmatpush2.bf16.msra.mxu0 %v2165
  %6177 = vmatprep.subr.bf16.mxu0 %v2157
  %6178 = vmatpush2.bf16.msra.mxu0 %v2156
  %6179 = vmatprep.subr.bf16.mxu0 %v2148
  %6180 = vmatpush2.bf16.msra.mxu0 %v2147
  %6181 = vmatprep.subr.bf16.mxu0 %v2139
  %6182 = vmatpush2.bf16.msra.mxu0 %v2138
  %6183 = vmatprep.mubr.bf16.mxu0 %v6064
  %6184 = vmatmul.mubr.bf16.gmra.mxu0 %v6063
  %v6185 = vpop.f32.mrf.mxu0
  %v6186 = vadd.f32 0.0, %v6185
  %v6187 = vpop.f32.mrf.mxu0
  %v6188 = vadd.f32 0.0, %v6187
  %v6189 = vpop.f32.mrf.mxu0
  %v6190 = vpop.f32.mrf.mxu0
  %6191 = vdwg.mxu0
  %6192 = vmatprep.subr.bf16.mxu0 %v2274
  %6193 = vmatpush1.bf16.msra.mxu0 %v2273
  %6194 = vmatprep.subr.bf16.mxu0 %v2265
  %6195 = vmatpush1.bf16.msra.mxu0 %v2264
  %6196 = vmatprep.subr.bf16.mxu0 %v2256
  %6197 = vmatpush1.bf16.msra.mxu0 %v2255
  %6198 = vmatprep.subr.bf16.mxu0 %v2247
  %6199 = vmatpush1.bf16.msra.mxu0 %v2246
  %6200 = vmatprep.subr.bf16.mxu0 %v2238
  %6201 = vmatpush1.bf16.msra.mxu0 %v2237
  %6202 = vmatprep.subr.bf16.mxu0 %v2229
  %6203 = vmatpush1.bf16.msra.mxu0 %v2228
  %6204 = vmatprep.subr.bf16.mxu0 %v2220
  %6205 = vmatpush1.bf16.msra.mxu0 %v2219
  %6206 = vmatprep.subr.bf16.mxu0 %v2211
  %6207 = vmatpush1.bf16.msra.mxu0 %v2210
  %6208 = vmatprep.subr.bf16.mxu0 0
  %6209 = vmatpush2.bf16.msra.mxu0 0
  %6210 = vmatprep.subr.bf16.mxu0 0
  %6211 = vmatpush2.bf16.msra.mxu0 0
  %6212 = vmatprep.subr.bf16.mxu0 0
  %6213 = vmatpush2.bf16.msra.mxu0 0
  %6214 = vmatprep.subr.bf16.mxu0 0
  %6215 = vmatpush2.bf16.msra.mxu0 0
  %6216 = vmatprep.subr.bf16.mxu0 0
  %6217 = vmatpush2.bf16.msra.mxu0 0
  %6218 = vmatprep.subr.bf16.mxu0 0
  %6219 = vmatpush2.bf16.msra.mxu0 0
  %6220 = vmatprep.subr.bf16.mxu0 0
  %6221 = vmatpush2.bf16.msra.mxu0 0
  %6222 = vmatprep.subr.bf16.mxu0 0
  %6223 = vmatpush2.bf16.msra.mxu0 0
  %6224 = vmatprep.mubr.bf16.mxu0 0
  %6225 = vmatmul.mubr.bf16.gmra.mxu0 %v6065
  %v6226 = vpop.f32.mrf.mxu0
  %v6227 = vadd.f32 %v6186, %v6226
  %v6228 = vpop.f32.mrf.mxu0
  %v6229 = vadd.f32 %v6188, %v6228
  %v6230 = vpop.f32.mrf.mxu0
  %v6231 = vpop.f32.mrf.mxu0
  %6232 = vdwg.mxu0
  %6233 = vmatprep.subr.bf16.mxu0 %v2132
  %6234 = vmatpush1.bf16.msra.mxu0 %v2131
  %6235 = vmatprep.subr.bf16.mxu0 %v2123
  %6236 = vmatpush1.bf16.msra.mxu0 %v2122
  %6237 = vmatprep.subr.bf16.mxu0 %v2114
  %6238 = vmatpush1.bf16.msra.mxu0 %v2113
  %6239 = vmatprep.subr.bf16.mxu0 %v2105
  %6240 = vmatpush1.bf16.msra.mxu0 %v2104
  %6241 = vmatprep.subr.bf16.mxu0 %v2096
  %6242 = vmatpush1.bf16.msra.mxu0 %v2095
  %6243 = vmatprep.subr.bf16.mxu0 %v2087
  %6244 = vmatpush1.bf16.msra.mxu0 %v2086
  %6245 = vmatprep.subr.bf16.mxu0 %v2078
  %6246 = vmatpush1.bf16.msra.mxu0 %v2077
  %6247 = vmatprep.subr.bf16.mxu0 %v2069
  %6248 = vmatpush1.bf16.msra.mxu0 %v2068
  %6249 = vmatprep.subr.bf16.mxu0 %v2204
  %6250 = vmatpush2.bf16.msra.mxu0 %v2203
  %6251 = vmatprep.subr.bf16.mxu0 %v2195
  %6252 = vmatpush2.bf16.msra.mxu0 %v2194
  %6253 = vmatprep.subr.bf16.mxu0 %v2186
  %6254 = vmatpush2.bf16.msra.mxu0 %v2185
  %6255 = vmatprep.subr.bf16.mxu0 %v2177
  %6256 = vmatpush2.bf16.msra.mxu0 %v2176
  %6257 = vmatprep.subr.bf16.mxu0 %v2168
  %6258 = vmatpush2.bf16.msra.mxu0 %v2167
  %6259 = vmatprep.subr.bf16.mxu0 %v2159
  %6260 = vmatpush2.bf16.msra.mxu0 %v2158
  %6261 = vmatprep.subr.bf16.mxu0 %v2150
  %6262 = vmatpush2.bf16.msra.mxu0 %v2149
  %6263 = vmatprep.subr.bf16.mxu0 %v2141
  %6264 = vmatpush2.bf16.msra.mxu0 %v2140
  %6265 = vmatprep.mubr.bf16.mxu0 %v6064
  %6266 = vmatmul.mubr.bf16.gmra.mxu0 %v6063
  %v6267 = vpop.f32.mrf.mxu0
  %v6268 = vadd.f32 0.0, %v6267
  %v6269 = vpop.f32.mrf.mxu0
  %v6270 = vadd.f32 0.0, %v6269
  %v6271 = vpop.f32.mrf.mxu0
  %v6272 = vpop.f32.mrf.mxu0
  %6273 = vdwg.mxu0
  %6274 = vmatprep.subr.bf16.mxu0 %v2276
  %6275 = vmatpush1.bf16.msra.mxu0 %v2275
  %6276 = vmatprep.subr.bf16.mxu0 %v2267
  %6277 = vmatpush1.bf16.msra.mxu0 %v2266
  %6278 = vmatprep.subr.bf16.mxu0 %v2258
  %6279 = vmatpush1.bf16.msra.mxu0 %v2257
  %6280 = vmatprep.subr.bf16.mxu0 %v2249
  %6281 = vmatpush1.bf16.msra.mxu0 %v2248
  %6282 = vmatprep.subr.bf16.mxu0 %v2240
  %6283 = vmatpush1.bf16.msra.mxu0 %v2239
  %6284 = vmatprep.subr.bf16.mxu0 %v2231
  %6285 = vmatpush1.bf16.msra.mxu0 %v2230
  %6286 = vmatprep.subr.bf16.mxu0 %v2222
  %6287 = vmatpush1.bf16.msra.mxu0 %v2221
  %6288 = vmatprep.subr.bf16.mxu0 %v2213
  %6289 = vmatpush1.bf16.msra.mxu0 %v2212
  %6290 = vmatprep.subr.bf16.mxu0 0
  %6291 = vmatpush2.bf16.msra.mxu0 0
  %6292 = vmatprep.subr.bf16.mxu0 0
  %6293 = vmatpush2.bf16.msra.mxu0 0
  %6294 = vmatprep.subr.bf16.mxu0 0
  %6295 = vmatpush2.bf16.msra.mxu0 0
  %6296 = vmatprep.subr.bf16.mxu0 0
  %6297 = vmatpush2.bf16.msra.mxu0 0
  %6298 = vmatprep.subr.bf16.mxu0 0
  %6299 = vmatpush2.bf16.msra.mxu0 0
  %6300 = vmatprep.subr.bf16.mxu0 0
  %6301 = vmatpush2.bf16.msra.mxu0 0
  %6302 = vmatprep.subr.bf16.mxu0 0
  %6303 = vmatpush2.bf16.msra.mxu0 0
  %6304 = vmatprep.subr.bf16.mxu0 0
  %6305 = vmatpush2.bf16.msra.mxu0 0
  %6306 = vmatprep.mubr.bf16.mxu0 0
  %6307 = vmatmul.mubr.bf16.gmra.mxu0 %v6065
  %v6308 = vpop.f32.mrf.mxu0
  %v6309 = vadd.f32 %v6268, %v6308
  %v6310 = vpop.f32.mrf.mxu0
  %v6311 = vadd.f32 %v6270, %v6310
  %v6312 = vpop.f32.mrf.mxu0
  %v6313 = vpop.f32.mrf.mxu0
  %6314 = vdwg.mxu0
  %6315 = vmatprep.subr.bf16.mxu0 %v2134
  %6316 = vmatpush1.bf16.msra.mxu0 %v2133
  %6317 = vmatprep.subr.bf16.mxu0 %v2125
  %6318 = vmatpush1.bf16.msra.mxu0 %v2124
  %6319 = vmatprep.subr.bf16.mxu0 %v2116
  %6320 = vmatpush1.bf16.msra.mxu0 %v2115
  %6321 = vmatprep.subr.bf16.mxu0 %v2107
  %6322 = vmatpush1.bf16.msra.mxu0 %v2106
  %6323 = vmatprep.subr.bf16.mxu0 %v2098
  %6324 = vmatpush1.bf16.msra.mxu0 %v2097
  %6325 = vmatprep.subr.bf16.mxu0 %v2089
  %6326 = vmatpush1.bf16.msra.mxu0 %v2088
  %6327 = vmatprep.subr.bf16.mxu0 %v2080
  %6328 = vmatpush1.bf16.msra.mxu0 %v2079
  %6329 = vmatprep.subr.bf16.mxu0 %v2071
  %6330 = vmatpush1.bf16.msra.mxu0 %v2070
  %6331 = vmatprep.subr.bf16.mxu0 %v2206
  %6332 = vmatpush2.bf16.msra.mxu0 %v2205
  %6333 = vmatprep.subr.bf16.mxu0 %v2197
  %6334 = vmatpush2.bf16.msra.mxu0 %v2196
  %6335 = vmatprep.subr.bf16.mxu0 %v2188
  %6336 = vmatpush2.bf16.msra.mxu0 %v2187
  %6337 = vmatprep.subr.bf16.mxu0 %v2179
  %6338 = vmatpush2.bf16.msra.mxu0 %v2178
  %6339 = vmatprep.subr.bf16.mxu0 %v2170
  %6340 = vmatpush2.bf16.msra.mxu0 %v2169
  %6341 = vmatprep.subr.bf16.mxu0 %v2161
  %6342 = vmatpush2.bf16.msra.mxu0 %v2160
  %6343 = vmatprep.subr.bf16.mxu0 %v2152
  %6344 = vmatpush2.bf16.msra.mxu0 %v2151
  %6345 = vmatprep.subr.bf16.mxu0 %v2143
  %6346 = vmatpush2.bf16.msra.mxu0 %v2142
  %6347 = vmatprep.mubr.bf16.mxu0 %v6064
  %6348 = vmatmul.mubr.bf16.gmra.mxu0 %v6063
  %v6349 = vpop.f32.mrf.mxu0
  %v6350 = vadd.f32 0.0, %v6349
  %v6351 = vpop.f32.mrf.mxu0
  %v6352 = vadd.f32 0.0, %v6351
  %v6353 = vpop.f32.mrf.mxu0
  %v6354 = vpop.f32.mrf.mxu0
  %6355 = vdwg.mxu0
  %6356 = vmatprep.subr.bf16.mxu0 %v2278
  %6357 = vmatpush1.bf16.msra.mxu0 %v2277
  %6358 = vmatprep.subr.bf16.mxu0 %v2269
  %6359 = vmatpush1.bf16.msra.mxu0 %v2268
  %6360 = vmatprep.subr.bf16.mxu0 %v2260
  %6361 = vmatpush1.bf16.msra.mxu0 %v2259
  %6362 = vmatprep.subr.bf16.mxu0 %v2251
  %6363 = vmatpush1.bf16.msra.mxu0 %v2250
  %6364 = vmatprep.subr.bf16.mxu0 %v2242
  %6365 = vmatpush1.bf16.msra.mxu0 %v2241
  %6366 = vmatprep.subr.bf16.mxu0 %v2233
  %6367 = vmatpush1.bf16.msra.mxu0 %v2232
  %6368 = vmatprep.subr.bf16.mxu0 %v2224
  %6369 = vmatpush1.bf16.msra.mxu0 %v2223
  %6370 = vmatprep.subr.bf16.mxu0 %v2215
  %6371 = vmatpush1.bf16.msra.mxu0 %v2214
  %6372 = vmatprep.subr.bf16.mxu0 0
  %6373 = vmatpush2.bf16.msra.mxu0 0
  %6374 = vmatprep.subr.bf16.mxu0 0
  %6375 = vmatpush2.bf16.msra.mxu0 0
  %6376 = vmatprep.subr.bf16.mxu0 0
  %6377 = vmatpush2.bf16.msra.mxu0 0
  %6378 = vmatprep.subr.bf16.mxu0 0
  %6379 = vmatpush2.bf16.msra.mxu0 0
  %6380 = vmatprep.subr.bf16.mxu0 0
  %6381 = vmatpush2.bf16.msra.mxu0 0
  %6382 = vmatprep.subr.bf16.mxu0 0
  %6383 = vmatpush2.bf16.msra.mxu0 0
  %6384 = vmatprep.subr.bf16.mxu0 0
  %6385 = vmatpush2.bf16.msra.mxu0 0
  %6386 = vmatprep.subr.bf16.mxu0 0
  %6387 = vmatpush2.bf16.msra.mxu0 0
  %6388 = vmatprep.mubr.bf16.mxu0 0
  %6389 = vmatmul.mubr.bf16.gmra.mxu0 %v6065
  %v6390 = vpop.f32.mrf.mxu0
  %v6391 = vadd.f32 %v6350, %v6390
  %v6392 = vpop.f32.mrf.mxu0
  %v6393 = vadd.f32 %v6352, %v6392
  %v6394 = vpop.f32.mrf.mxu0
  %v6395 = vpop.f32.mrf.mxu0
  %6396 = vdwg.mxu0
  %6397 = vmatprep.subr.bf16.mxu0 0
  %6398 = vmatpush1.bf16.msra.mxu0 %v2135
  %6399 = vmatprep.subr.bf16.mxu0 0
  %6400 = vmatpush1.bf16.msra.mxu0 %v2126
  %6401 = vmatprep.subr.bf16.mxu0 0
  %6402 = vmatpush1.bf16.msra.mxu0 %v2117
  %6403 = vmatprep.subr.bf16.mxu0 0
  %6404 = vmatpush1.bf16.msra.mxu0 %v2108
  %6405 = vmatprep.subr.bf16.mxu0 0
  %6406 = vmatpush1.bf16.msra.mxu0 %v2099
  %6407 = vmatprep.subr.bf16.mxu0 0
  %6408 = vmatpush1.bf16.msra.mxu0 %v2090
  %6409 = vmatprep.subr.bf16.mxu0 0
  %6410 = vmatpush1.bf16.msra.mxu0 %v2081
  %6411 = vmatprep.subr.bf16.mxu0 0
  %6412 = vmatpush1.bf16.msra.mxu0 %v2072
  %6413 = vmatprep.subr.bf16.mxu0 0
  %6414 = vmatpush2.bf16.msra.mxu0 %v2207
  %6415 = vmatprep.subr.bf16.mxu0 0
  %6416 = vmatpush2.bf16.msra.mxu0 %v2198
  %6417 = vmatprep.subr.bf16.mxu0 0
  %6418 = vmatpush2.bf16.msra.mxu0 %v2189
  %6419 = vmatprep.subr.bf16.mxu0 0
  %6420 = vmatpush2.bf16.msra.mxu0 %v2180
  %6421 = vmatprep.subr.bf16.mxu0 0
  %6422 = vmatpush2.bf16.msra.mxu0 %v2171
  %6423 = vmatprep.subr.bf16.mxu0 0
  %6424 = vmatpush2.bf16.msra.mxu0 %v2162
  %6425 = vmatprep.subr.bf16.mxu0 0
  %6426 = vmatpush2.bf16.msra.mxu0 %v2153
  %6427 = vmatprep.subr.bf16.mxu0 0
  %6428 = vmatpush2.bf16.msra.mxu0 %v2144
  %6429 = vmatprep.mubr.bf16.mxu0 %v6064
  %6430 = vmatmul.mubr.bf16.gmra.mxu0 %v6063
  %v6431 = vpop.f32.mrf.mxu0
  %v6432 = vadd.f32 0.0, %v6431
  %v6433 = vpop.f32.mrf.mxu0
  %v6434 = vpop.f32.mrf.mxu0
  %v6435 = vpop.f32.mrf.mxu0
  %6436 = vdwg.mxu0
  %6437 = vmatprep.subr.bf16.mxu0 0
  %6438 = vmatpush1.bf16.msra.mxu0 %v2279
  %6439 = vmatprep.subr.bf16.mxu0 0
  %6440 = vmatpush1.bf16.msra.mxu0 %v2270
  %6441 = vmatprep.subr.bf16.mxu0 0
  %6442 = vmatpush1.bf16.msra.mxu0 %v2261
  %6443 = vmatprep.subr.bf16.mxu0 0
  %6444 = vmatpush1.bf16.msra.mxu0 %v2252
  %6445 = vmatprep.subr.bf16.mxu0 0
  %6446 = vmatpush1.bf16.msra.mxu0 %v2243
  %6447 = vmatprep.subr.bf16.mxu0 0
  %6448 = vmatpush1.bf16.msra.mxu0 %v2234
  %6449 = vmatprep.subr.bf16.mxu0 0
  %6450 = vmatpush1.bf16.msra.mxu0 %v2225
  %6451 = vmatprep.subr.bf16.mxu0 0
  %6452 = vmatpush1.bf16.msra.mxu0 %v2216
  %6453 = vmatprep.subr.bf16.mxu0 0
  %6454 = vmatpush2.bf16.msra.mxu0 0
  %6455 = vmatprep.subr.bf16.mxu0 0
  %6456 = vmatpush2.bf16.msra.mxu0 0
  %6457 = vmatprep.subr.bf16.mxu0 0
  %6458 = vmatpush2.bf16.msra.mxu0 0
  %6459 = vmatprep.subr.bf16.mxu0 0
  %6460 = vmatpush2.bf16.msra.mxu0 0
  %6461 = vmatprep.subr.bf16.mxu0 0
  %6462 = vmatpush2.bf16.msra.mxu0 0
  %6463 = vmatprep.subr.bf16.mxu0 0
  %6464 = vmatpush2.bf16.msra.mxu0 0
  %6465 = vmatprep.subr.bf16.mxu0 0
  %6466 = vmatpush2.bf16.msra.mxu0 0
  %6467 = vmatprep.subr.bf16.mxu0 0
  %6468 = vmatpush2.bf16.msra.mxu0 0
  %6469 = vmatprep.mubr.bf16.mxu0 0
  %6470 = vmatmul.mubr.bf16.gmra.mxu0 %v6065
  %v6471 = vpop.f32.mrf.mxu0
  %v6472 = vadd.f32 %v6432, %v6471
  %v6473 = vpop.f32.mrf.mxu0
  %v6474 = vpop.f32.mrf.mxu0
  %v6475 = vpop.f32.mrf.mxu0
  %6476 = vdwg.mxu0
  %v6480 = vrot.slane %v6145, 2
  %v6481 = vrot.slane %v6147, 2
  %v6482 = vrot.slane %v6227, 2
  %v6486 = vadd.f32 %v898, %v6480
  %v6487 = vadd.f32 %v900, %v6481
  %v6488 = vadd.f32 %v941, %v6482
  %v6489 = vxor.u32 %v6486, 2147483648
  %v6490 = vxor.u32 %v6487, 2147483648
  %v6491 = vxor.u32 %v6488, 2147483648
  %v6492 = vmul.f32 %v6489, 1.442695
  %v6493 = vpow.pop %v6492
  %v6494 = vmul.f32 %v6490, 1.442695
  %v6495 = vpow.pop %v6494
  %v6496 = vmul.f32 %v6491, 1.442695
  %v6497 = vpow.pop %v6496
  %v6498 = vadd.f32 %v6493, 1.0
  %v6499 = vadd.f32 %v6495, 1.0
  %v6500 = vadd.f32 %v6497, 1.0
  %v6501 = vrcp.pop %v6498
  %v6502 = vmul.f32 1.0, %v6501
  %v6503 = vrcp.pop %v6499
  %v6504 = vmul.f32 1.0, %v6503
  %v6505 = vrcp.pop %v6500
  %v6506 = vmul.f32 1.0, %v6505
  %v6510 = vrot.slane %v6229, 2
  %v6511 = vrot.slane %v6309, 2
  %v6512 = vrot.slane %v6311, 2
  %v6516 = vadd.f32 %v943, %v6510
  %v6517 = vadd.f32 %v984, %v6511
  %v6518 = vadd.f32 %v986, %v6512
  %v6519 = vxor.u32 %v6516, 2147483648
  %v6520 = vxor.u32 %v6517, 2147483648
  %v6521 = vxor.u32 %v6518, 2147483648
  %v6522 = vmul.f32 %v6519, 1.442695
  %v6523 = vpow.pop %v6522
  %v6524 = vmul.f32 %v6520, 1.442695
  %v6525 = vpow.pop %v6524
  %v6526 = vmul.f32 %v6521, 1.442695
  %v6527 = vpow.pop %v6526
  %v6528 = vadd.f32 %v6523, 1.0
  %v6529 = vadd.f32 %v6525, 1.0
  %v6530 = vadd.f32 %v6527, 1.0
  %v6531 = vrcp.pop %v6528
  %v6532 = vmul.f32 1.0, %v6531
  %v6533 = vrcp.pop %v6529
  %v6534 = vmul.f32 1.0, %v6533
  %v6535 = vrcp.pop %v6530
  %v6536 = vmul.f32 1.0, %v6535
  %v6537 = vadd.f32 %v6391, %v1136
  %v6538 = vadd.f32 %v6393, %v1140
  %v6539 = vadd.f32 %v6472, %v1144
  %v6543 = vrot.slane %v6537, 2
  %v6544 = vrot.slane %v6538, 2
  %v6545 = vrot.slane %v6539, 2
  %v6549 = vmul.f32 %v6502, %v6543
  %v6550 = vmul.f32 %v6504, %v6544
  %v6551 = vmul.f32 %v6506, %v6545
  %v6552 = vadd.f32 %v1027, %v6549
  %v6553 = vadd.f32 %v1029, %v6550
  %v6554 = vadd.f32 %v1069, %v6551
  %v6555 = vtanh.pop %v6552
  %v6556 = vtanh.pop %v6553
  %v6557 = vtanh.pop %v6554
  %v6558 = vsub.f32 1.0, %v6532
  %v6559 = vsub.f32 1.0, %v6534
  %v6560 = vsub.f32 1.0, %v6536
  %v6561 = vmul.f32 %v6558, %v6555
  %v6562 = vmul.f32 %v6559, %v6556
  %v6563 = vmul.f32 %v6560, %v6557
  %v6567 = vrot.slane %v6054, 6
  %v6568 = vrot.slane %v6055, 6
  %v6569 = vrot.slane %v6056, 6
  %v6573 = vmul.f32 %v6532, %v6567
  %v6574 = vmul.f32 %v6534, %v6568
  %v6575 = vmul.f32 %v6536, %v6569
  %v6576 = vadd.f32 %v6561, %v6573
  %v6577 = vadd.f32 %v6562, %v6574
  %v6578 = vadd.f32 %v6563, %v6575
  %s6579 = smul.u32 4, 64
  %s6580 = smul.u32 %s6579, 3
  %s6581 = sshll.u32 %s6580, 4
  %6582 = dma.done %s513, %s6581
  %v6583 = vpack.c.bf16 %v6576, %v6576
  %v6584 = vpack.c.bf16 %v6577, %v6577
  %v6585 = vpack.c.bf16 %v6578, %v6578
  %v6586 = vpack.c.bf16 %v1130, %v1130
  %v6588 = vrot.slane %v6586, 5
  %v6589 = vld [vmem:[#allocation3] sm:$0xff]
  %v6590 = vld [vmem:[#allocation3 + $0x8] sm:$0xf]
  %v6591 = vld [vmem:[#allocation3 + $0xc] sm:$0xff]
  %v6592 = vld [vmem:[#allocation3 + $0x14] sm:$0xf]
  %v6593 = vld [vmem:[#allocation3 + $0x18] sm:$0xff]
  %v6594 = vld [vmem:[#allocation3 + $0x20] sm:$0xf]
  %v6595 = vld [vmem:[#allocation3 + $0x24] sm:$0xff]
  %v6596 = vld [vmem:[#allocation3 + $0x2c] sm:$0xf]
  %v6597 = vld [vmem:[#allocation3 + $0x30] sm:$0xff]
  %v6598 = vld [vmem:[#allocation3 + $0x38] sm:$0xf]
  %v6599 = vld [vmem:[#allocation3 + $0x3c] sm:$0xff]
  %v6600 = vld [vmem:[#allocation3 + $0x44] sm:$0xf]
  %v6601 = vld [vmem:[#allocation3 + $0x48] sm:$0xff]
  %v6602 = vld [vmem:[#allocation3 + $0x50] sm:$0xf]
  %v6603 = vld [vmem:[#allocation3 + $0x54] sm:$0xff]
  %v6604 = vld [vmem:[#allocation3 + $0x5c] sm:$0xf]
  %v6605 = vld [vmem:[#allocation3 + $0x60] sm:$0xff]
  %v6606 = vld [vmem:[#allocation3 + $0x68] sm:$0xf]
  %v6607 = vld [vmem:[#allocation3 + $0x6c] sm:$0xff]
  %v6608 = vld [vmem:[#allocation3 + $0x74] sm:$0xf]
  %v6609 = vld [vmem:[#allocation3 + $0x78] sm:$0xff]
  %v6610 = vld [vmem:[#allocation3 + $0x80] sm:$0xf]
  %v6611 = vld [vmem:[#allocation3 + $0x84] sm:$0xff]
  %v6612 = vld [vmem:[#allocation3 + $0x8c] sm:$0xf]
  %v6613 = vld [vmem:[#allocation3 + $0x90] sm:$0xff]
  %v6614 = vld [vmem:[#allocation3 + $0x98] sm:$0xf]
  %v6615 = vld [vmem:[#allocation3 + $0x9c] sm:$0xff]
  %v6616 = vld [vmem:[#allocation3 + $0xa4] sm:$0xf]
  %v6617 = vld [vmem:[#allocation3 + $0xa8] sm:$0xff]
  %v6618 = vld [vmem:[#allocation3 + $0xb0] sm:$0xf]
  %v6619 = vld [vmem:[#allocation3 + $0xb4] sm:$0xff]
  %v6620 = vld [vmem:[#allocation3 + $0xbc] sm:$0xf]
  %v6621 = vld [vmem:[#allocation3 + $0xc0] sm:$0xff]
  %v6622 = vld [vmem:[#allocation3 + $0xc8] sm:$0xf]
  %v6623 = vld [vmem:[#allocation3 + $0xcc] sm:$0xff]
  %v6624 = vld [vmem:[#allocation3 + $0xd4] sm:$0xf]
  %v6625 = vld [vmem:[#allocation3 + $0xd8] sm:$0xff]
  %v6626 = vld [vmem:[#allocation3 + $0xe0] sm:$0xf]
  %v6627 = vld [vmem:[#allocation3 + $0xe4] sm:$0xff]
  %v6628 = vld [vmem:[#allocation3 + $0xec] sm:$0xf]
  %v6629 = vld [vmem:[#allocation3 + $0xf0] sm:$0xff]
  %v6630 = vld [vmem:[#allocation3 + $0xf8] sm:$0xf]
  %v6631 = vld [vmem:[#allocation3 + $0xfc] sm:$0xff]
  %v6632 = vld [vmem:[#allocation3 + $0x104] sm:$0xf]
  %v6633 = vld [vmem:[#allocation3 + $0x108] sm:$0xff]
  %v6634 = vld [vmem:[#allocation3 + $0x110] sm:$0xf]
  %v6635 = vld [vmem:[#allocation3 + $0x114] sm:$0xff]
  %v6636 = vld [vmem:[#allocation3 + $0x11c] sm:$0xf]
  %v6637 = vld [vmem:[#allocation3 + $0x120] sm:$0xff]
  %v6638 = vld [vmem:[#allocation3 + $0x128] sm:$0xf]
  %v6639 = vld [vmem:[#allocation3 + $0x12c] sm:$0xff]
  %v6640 = vld [vmem:[#allocation3 + $0x134] sm:$0xf]
  %v6641 = vld [vmem:[#allocation3 + $0x138] sm:$0xff]
  %v6642 = vld [vmem:[#allocation3 + $0x140] sm:$0xf]
  %v6643 = vld [vmem:[#allocation3 + $0x144] sm:$0xff]
  %v6644 = vld [vmem:[#allocation3 + $0x14c] sm:$0xf]
  %v6645 = vld [vmem:[#allocation3 + $0x150] sm:$0xff]
  %v6646 = vld [vmem:[#allocation3 + $0x158] sm:$0xf]
  %v6647 = vld [vmem:[#allocation3 + $0x15c] sm:$0xff]
  %v6648 = vld [vmem:[#allocation3 + $0x164] sm:$0xf]
  %v6649 = vld [vmem:[#allocation3 + $0x168] sm:$0xff]
  %v6650 = vld [vmem:[#allocation3 + $0x170] sm:$0xf]
  %v6651 = vld [vmem:[#allocation3 + $0x174] sm:$0xff]
  %v6652 = vld [vmem:[#allocation3 + $0x17c] sm:$0xf]
  %v6653 = vld [vmem:[#allocation3 + $0x180] sm:$0xff]
  %v6654 = vld [vmem:[#allocation3 + $0x188] sm:$0xf]
  %v6655 = vld [vmem:[#allocation3 + $0x18c] sm:$0xff]
  %v6656 = vld [vmem:[#allocation3 + $0x194] sm:$0xf]
  %v6657 = vld [vmem:[#allocation3 + $0x198] sm:$0xff]
  %v6658 = vld [vmem:[#allocation3 + $0x1a0] sm:$0xf]
  %v6659 = vld [vmem:[#allocation3 + $0x1a4] sm:$0xff]
  %v6660 = vld [vmem:[#allocation3 + $0x1ac] sm:$0xf]
  %v6661 = vld [vmem:[#allocation3 + $0x1b0] sm:$0xff]
  %v6662 = vld [vmem:[#allocation3 + $0x1b8] sm:$0xf]
  %v6663 = vld [vmem:[#allocation3 + $0x1bc] sm:$0xff]
  %v6664 = vld [vmem:[#allocation3 + $0x1c4] sm:$0xf]
  %v6665 = vld [vmem:[#allocation3 + $0x1c8] sm:$0xff]
  %v6666 = vld [vmem:[#allocation3 + $0x1d0] sm:$0xf]
  %v6667 = vld [vmem:[#allocation3 + $0x1d4] sm:$0xff]
  %v6668 = vld [vmem:[#allocation3 + $0x1dc] sm:$0xf]
  %v6669 = vld [vmem:[#allocation3 + $0x1e0] sm:$0xff]
  %v6670 = vld [vmem:[#allocation3 + $0x1e8] sm:$0xf]
  %v6671 = vld [vmem:[#allocation3 + $0x1ec] sm:$0xff]
  %v6672 = vld [vmem:[#allocation3 + $0x1f4] sm:$0xf]
  %v6673 = vld [vmem:[#allocation3 + $0x1f8] sm:$0xff]
  %v6674 = vld [vmem:[#allocation3 + $0x200] sm:$0xf]
  %v6675 = vld [vmem:[#allocation3 + $0x204] sm:$0xff]
  %v6676 = vld [vmem:[#allocation3 + $0x20c] sm:$0xf]
  %v6677 = vld [vmem:[#allocation3 + $0x210] sm:$0xff]
  %v6678 = vld [vmem:[#allocation3 + $0x218] sm:$0xf]
  %v6679 = vld [vmem:[#allocation3 + $0x21c] sm:$0xff]
  %v6680 = vld [vmem:[#allocation3 + $0x224] sm:$0xf]
  %v6681 = vld [vmem:[#allocation3 + $0x228] sm:$0xff]
  %v6682 = vld [vmem:[#allocation3 + $0x230] sm:$0xf]
  %v6683 = vld [vmem:[#allocation3 + $0x234] sm:$0xff]
  %v6684 = vld [vmem:[#allocation3 + $0x23c] sm:$0xf]
  %v6685 = vld [vmem:[#allocation3 + $0x240] sm:$0xff]
  %v6686 = vld [vmem:[#allocation3 + $0x248] sm:$0xf]
  %v6687 = vld [vmem:[#allocation3 + $0x24c] sm:$0xff]
  %v6688 = vld [vmem:[#allocation3 + $0x254] sm:$0xf]
  %v6689 = vld [vmem:[#allocation3 + $0x258] sm:$0xff]
  %v6690 = vld [vmem:[#allocation3 + $0x260] sm:$0xf]
  %v6691 = vld [vmem:[#allocation3 + $0x264] sm:$0xff]
  %v6692 = vld [vmem:[#allocation3 + $0x26c] sm:$0xf]
  %v6693 = vld [vmem:[#allocation3 + $0x270] sm:$0xff]
  %v6694 = vld [vmem:[#allocation3 + $0x278] sm:$0xf]
  %v6695 = vld [vmem:[#allocation3 + $0x27c] sm:$0xff]
  %v6696 = vld [vmem:[#allocation3 + $0x284] sm:$0xf]
  %v6697 = vld [vmem:[#allocation3 + $0x288] sm:$0xff]
  %v6698 = vld [vmem:[#allocation3 + $0x290] sm:$0xf]
  %v6699 = vld [vmem:[#allocation3 + $0x294] sm:$0xff]
  %v6700 = vld [vmem:[#allocation3 + $0x29c] sm:$0xf]
  %v6701 = vld [vmem:[#allocation3 + $0x2a0] sm:$0xff]
  %v6702 = vld [vmem:[#allocation3 + $0x2a8] sm:$0xf]
  %v6703 = vld [vmem:[#allocation3 + $0x2ac] sm:$0xff]
  %v6704 = vld [vmem:[#allocation3 + $0x2b4] sm:$0xf]
  %v6705 = vld [vmem:[#allocation3 + $0x2b8] sm:$0xff]
  %v6706 = vld [vmem:[#allocation3 + $0x2c0] sm:$0xf]
  %v6707 = vld [vmem:[#allocation3 + $0x2c4] sm:$0xff]
  %v6708 = vld [vmem:[#allocation3 + $0x2cc] sm:$0xf]
  %v6709 = vld [vmem:[#allocation3 + $0x2d0] sm:$0xff]
  %v6710 = vld [vmem:[#allocation3 + $0x2d8] sm:$0xf]
  %v6711 = vld [vmem:[#allocation3 + $0x2dc] sm:$0xff]
  %v6712 = vld [vmem:[#allocation3 + $0x2e4] sm:$0xf]
  %v6713 = vld [vmem:[#allocation3 + $0x2e8] sm:$0xff]
  %v6714 = vld [vmem:[#allocation3 + $0x2f0] sm:$0xf]
  %v6715 = vld [vmem:[#allocation3 + $0x2f4] sm:$0xff]
  %v6716 = vld [vmem:[#allocation3 + $0x2fc] sm:$0xf]
  %v6717 = vld [vmem:[%s9] sm:$0x7]
  %v6719 = vlaneseq
  %v6720 = vshrl.u32 %v6719, 7
  %v6721 = vsub.s32 0, %v6720
  %v6722 = vrot.slane %v6717, %v6721
  %v6723 = vlaneseq
  %v6724 = vshrl.u32 %v6723, 7
  %v6725 = vsub.s32 1, %v6724
  %v6726 = vrot.slane %v6717, %v6725
  %v6727 = vlaneseq
  %v6728 = vshrl.u32 %v6727, 7
  %v6729 = vsub.s32 2, %v6728
  %v6730 = vrot.slane %v6717, %v6729
  %v6737 = vrot.slane %v6583, 3
  %v6738 = vrot.slane %v6584, 3
  %v6739 = vrot.slane %v6585, 3
  %v6740 = vrot.slane %v6588, 3
  %v6873 = vunpack.c.l.b16 %v6589
  %v6874 = vunpack.c.h.b16 %v6589
  %v6875 = vunpack.c.l.b16 %v6590
  %v6876 = vunpack.c.l.b16 %v6591
  %v6877 = vunpack.c.h.b16 %v6591
  %v6878 = vunpack.c.l.b16 %v6592
  %v6879 = vunpack.c.l.b16 %v6593
  %v6880 = vunpack.c.h.b16 %v6593
  %v6881 = vunpack.c.l.b16 %v6594
  %v6882 = vunpack.c.l.b16 %v6595
  %v6883 = vunpack.c.h.b16 %v6595
  %v6884 = vunpack.c.l.b16 %v6596
  %v6885 = vunpack.c.l.b16 %v6597
  %v6886 = vunpack.c.h.b16 %v6597
  %v6887 = vunpack.c.l.b16 %v6598
  %v6888 = vunpack.c.l.b16 %v6599
  %v6889 = vunpack.c.h.b16 %v6599
  %v6890 = vunpack.c.l.b16 %v6600
  %v6891 = vunpack.c.l.b16 %v6601
  %v6892 = vunpack.c.h.b16 %v6601
  %v6893 = vunpack.c.l.b16 %v6602
  %v6894 = vunpack.c.l.b16 %v6603
  %v6895 = vunpack.c.h.b16 %v6603
  %v6896 = vunpack.c.l.b16 %v6604
  %v6897 = vunpack.c.l.b16 %v6605
  %v6898 = vunpack.c.h.b16 %v6605
  %v6899 = vunpack.c.l.b16 %v6606
  %v6900 = vunpack.c.l.b16 %v6607
  %v6901 = vunpack.c.h.b16 %v6607
  %v6902 = vunpack.c.l.b16 %v6608
  %v6903 = vunpack.c.l.b16 %v6609
  %v6904 = vunpack.c.h.b16 %v6609
  %v6905 = vunpack.c.l.b16 %v6610
  %v6906 = vunpack.c.l.b16 %v6611
  %v6907 = vunpack.c.h.b16 %v6611
  %v6908 = vunpack.c.l.b16 %v6612
  %v6909 = vunpack.c.l.b16 %v6613
  %v6910 = vunpack.c.h.b16 %v6613
  %v6911 = vunpack.c.l.b16 %v6614
  %v6912 = vunpack.c.l.b16 %v6615
  %v6913 = vunpack.c.h.b16 %v6615
  %v6914 = vunpack.c.l.b16 %v6616
  %v6915 = vunpack.c.l.b16 %v6617
  %v6916 = vunpack.c.h.b16 %v6617
  %v6917 = vunpack.c.l.b16 %v6618
  %v6918 = vunpack.c.l.b16 %v6619
  %v6919 = vunpack.c.h.b16 %v6619
  %v6920 = vunpack.c.l.b16 %v6620
  %v6921 = vunpack.c.l.b16 %v6621
  %v6922 = vunpack.c.h.b16 %v6621
  %v6923 = vunpack.c.l.b16 %v6622
  %v6924 = vunpack.c.l.b16 %v6623
  %v6925 = vunpack.c.h.b16 %v6623
  %v6926 = vunpack.c.l.b16 %v6624
  %v6927 = vunpack.c.l.b16 %v6625
  %v6928 = vunpack.c.h.b16 %v6625
  %v6929 = vunpack.c.l.b16 %v6626
  %v6930 = vunpack.c.l.b16 %v6627
  %v6931 = vunpack.c.h.b16 %v6627
  %v6932 = vunpack.c.l.b16 %v6628
  %v6933 = vunpack.c.l.b16 %v6629
  %v6934 = vunpack.c.h.b16 %v6629
  %v6935 = vunpack.c.l.b16 %v6630
  %v6936 = vunpack.c.l.b16 %v6631
  %v6937 = vunpack.c.h.b16 %v6631
  %v6938 = vunpack.c.l.b16 %v6632
  %v6939 = vunpack.c.l.b16 %v6633
  %v6940 = vunpack.c.h.b16 %v6633
  %v6941 = vunpack.c.l.b16 %v6634
  %v6942 = vunpack.c.l.b16 %v6635
  %v6943 = vunpack.c.h.b16 %v6635
  %v6944 = vunpack.c.l.b16 %v6636
  %v6945 = vunpack.c.l.b16 %v6637
  %v6946 = vunpack.c.h.b16 %v6637
  %v6947 = vunpack.c.l.b16 %v6638
  %v6948 = vunpack.c.l.b16 %v6639
  %v6949 = vunpack.c.h.b16 %v6639
  %v6950 = vunpack.c.l.b16 %v6640
  %v6951 = vunpack.c.l.b16 %v6641
  %v6952 = vunpack.c.h.b16 %v6641
  %v6953 = vunpack.c.l.b16 %v6642
  %v6954 = vunpack.c.l.b16 %v6643
  %v6955 = vunpack.c.h.b16 %v6643
  %v6956 = vunpack.c.l.b16 %v6644
  %v6957 = vunpack.c.l.b16 %v6645
  %v6958 = vunpack.c.h.b16 %v6645
  %v6959 = vunpack.c.l.b16 %v6646
  %v6960 = vunpack.c.l.b16 %v6647
  %v6961 = vunpack.c.h.b16 %v6647
  %v6962 = vunpack.c.l.b16 %v6648
  %v6963 = vunpack.c.l.b16 %v6649
  %v6964 = vunpack.c.h.b16 %v6649
  %v6965 = vunpack.c.l.b16 %v6650
  %v6966 = vunpack.c.l.b16 %v6651
  %v6967 = vunpack.c.h.b16 %v6651
  %v6968 = vunpack.c.l.b16 %v6652
  %v6969 = vunpack.c.l.b16 %v6653
  %v6970 = vunpack.c.h.b16 %v6653
  %v6971 = vunpack.c.l.b16 %v6654
  %v6972 = vunpack.c.l.b16 %v6655
  %v6973 = vunpack.c.h.b16 %v6655
  %v6974 = vunpack.c.l.b16 %v6656
  %v6975 = vunpack.c.l.b16 %v6657
  %v6976 = vunpack.c.h.b16 %v6657
  %v6977 = vunpack.c.l.b16 %v6658
  %v6978 = vunpack.c.l.b16 %v6659
  %v6979 = vunpack.c.h.b16 %v6659
  %v6980 = vunpack.c.l.b16 %v6660
  %v6981 = vunpack.c.l.b16 %v6661
  %v6982 = vunpack.c.h.b16 %v6661
  %v6983 = vunpack.c.l.b16 %v6662
  %v6984 = vunpack.c.l.b16 %v6663
  %v6985 = vunpack.c.h.b16 %v6663
  %v6986 = vunpack.c.l.b16 %v6664
  %v6987 = vunpack.c.l.b16 %v6665
  %v6988 = vunpack.c.h.b16 %v6665
  %v6989 = vunpack.c.l.b16 %v6666
  %v6990 = vunpack.c.l.b16 %v6667
  %v6991 = vunpack.c.h.b16 %v6667
  %v6992 = vunpack.c.l.b16 %v6668
  %v6993 = vunpack.c.l.b16 %v6669
  %v6994 = vunpack.c.h.b16 %v6669
  %v6995 = vunpack.c.l.b16 %v6670
  %v6996 = vunpack.c.l.b16 %v6671
  %v6997 = vunpack.c.h.b16 %v6671
  %v6998 = vunpack.c.l.b16 %v6672
  %v6999 = vunpack.c.l.b16 %v6673
  %v7000 = vunpack.c.h.b16 %v6673
  %v7001 = vunpack.c.l.b16 %v6674
  %v7002 = vunpack.c.l.b16 %v6675
  %v7003 = vunpack.c.h.b16 %v6675
  %v7004 = vunpack.c.l.b16 %v6676
  %v7005 = vunpack.c.l.b16 %v6677
  %v7006 = vunpack.c.h.b16 %v6677
  %v7007 = vunpack.c.l.b16 %v6678
  %v7008 = vunpack.c.l.b16 %v6679
  %v7009 = vunpack.c.h.b16 %v6679
  %v7010 = vunpack.c.l.b16 %v6680
  %v7011 = vunpack.c.l.b16 %v6681
  %v7012 = vunpack.c.h.b16 %v6681
  %v7013 = vunpack.c.l.b16 %v6682
  %v7014 = vunpack.c.l.b16 %v6683
  %v7015 = vunpack.c.h.b16 %v6683
  %v7016 = vunpack.c.l.b16 %v6684
  %v7017 = vunpack.c.l.b16 %v6685
  %v7018 = vunpack.c.h.b16 %v6685
  %v7019 = vunpack.c.l.b16 %v6686
  %v7020 = vunpack.c.l.b16 %v6687
  %v7021 = vunpack.c.h.b16 %v6687
  %v7022 = vunpack.c.l.b16 %v6688
  %v7023 = vunpack.c.l.b16 %v6689
  %v7024 = vunpack.c.h.b16 %v6689
  %v7025 = vunpack.c.l.b16 %v6690
  %v7026 = vunpack.c.l.b16 %v6691
  %v7027 = vunpack.c.h.b16 %v6691
  %v7028 = vunpack.c.l.b16 %v6692
  %v7029 = vunpack.c.l.b16 %v6693
  %v7030 = vunpack.c.h.b16 %v6693
  %v7031 = vunpack.c.l.b16 %v6694
  %v7032 = vunpack.c.l.b16 %v6695
  %v7033 = vunpack.c.h.b16 %v6695
  %v7034 = vunpack.c.l.b16 %v6696
  %v7035 = vunpack.c.l.b16 %v6697
  %v7036 = vunpack.c.h.b16 %v6697
  %v7037 = vunpack.c.l.b16 %v6698
  %v7038 = vunpack.c.l.b16 %v6699
  %v7039 = vunpack.c.h.b16 %v6699
  %v7040 = vunpack.c.l.b16 %v6700
  %v7041 = vunpack.c.l.b16 %v6701
  %v7042 = vunpack.c.h.b16 %v6701
  %v7043 = vunpack.c.l.b16 %v6702
  %v7044 = vunpack.c.l.b16 %v6703
  %v7045 = vunpack.c.h.b16 %v6703
  %v7046 = vunpack.c.l.b16 %v6704
  %v7047 = vunpack.c.l.b16 %v6705
  %v7048 = vunpack.c.h.b16 %v6705
  %v7049 = vunpack.c.l.b16 %v6706
  %v7050 = vunpack.c.l.b16 %v6707
  %v7051 = vunpack.c.h.b16 %v6707
  %v7052 = vunpack.c.l.b16 %v6708
  %v7053 = vunpack.c.l.b16 %v6709
  %v7054 = vunpack.c.h.b16 %v6709
  %v7055 = vunpack.c.l.b16 %v6710
  %v7056 = vunpack.c.l.b16 %v6711
  %v7057 = vunpack.c.h.b16 %v6711
  %v7058 = vunpack.c.l.b16 %v6712
  %v7059 = vunpack.c.l.b16 %v6713
  %v7060 = vunpack.c.h.b16 %v6713
  %v7061 = vunpack.c.l.b16 %v6714
  %v7062 = vunpack.c.l.b16 %v6715
  %v7063 = vunpack.c.h.b16 %v6715
  %v7064 = vunpack.c.l.b16 %v6716
  %v7065 = vpack.c.b16 %v6876, %v6873
  %v7066 = vpack.c.b16 %v6877, %v6874
  %v7067 = vpack.c.b16 %v6878, %v6875
  %v7068 = vpack.c.b16 %v6882, %v6879
  %v7069 = vpack.c.b16 %v6883, %v6880
  %v7070 = vpack.c.b16 %v6884, %v6881
  %v7071 = vpack.c.b16 %v6888, %v6885
  %v7072 = vpack.c.b16 %v6889, %v6886
  %v7073 = vpack.c.b16 %v6890, %v6887
  %v7074 = vpack.c.b16 %v6894, %v6891
  %v7075 = vpack.c.b16 %v6895, %v6892
  %v7076 = vpack.c.b16 %v6896, %v6893
  %v7077 = vpack.c.b16 %v6900, %v6897
  %v7078 = vpack.c.b16 %v6901, %v6898
  %v7079 = vpack.c.b16 %v6902, %v6899
  %v7080 = vpack.c.b16 %v6906, %v6903
  %v7081 = vpack.c.b16 %v6907, %v6904
  %v7082 = vpack.c.b16 %v6908, %v6905
  %v7083 = vpack.c.b16 %v6912, %v6909
  %v7084 = vpack.c.b16 %v6913, %v6910
  %v7085 = vpack.c.b16 %v6914, %v6911
  %v7086 = vpack.c.b16 %v6918, %v6915
  %v7087 = vpack.c.b16 %v6919, %v6916
  %v7088 = vpack.c.b16 %v6920, %v6917
  %v7089 = vpack.c.b16 %v6924, %v6921
  %v7090 = vpack.c.b16 %v6925, %v6922
  %v7091 = vpack.c.b16 %v6926, %v6923
  %v7092 = vpack.c.b16 %v6930, %v6927
  %v7093 = vpack.c.b16 %v6931, %v6928
  %v7094 = vpack.c.b16 %v6932, %v6929
  %v7095 = vpack.c.b16 %v6936, %v6933
  %v7096 = vpack.c.b16 %v6937, %v6934
  %v7097 = vpack.c.b16 %v6938, %v6935
  %v7098 = vpack.c.b16 %v6942, %v6939
  %v7099 = vpack.c.b16 %v6943, %v6940
  %v7100 = vpack.c.b16 %v6944, %v6941
  %v7101 = vpack.c.b16 %v6948, %v6945
  %v7102 = vpack.c.b16 %v6949, %v6946
  %v7103 = vpack.c.b16 %v6950, %v6947
  %v7104 = vpack.c.b16 %v6954, %v6951
  %v7105 = vpack.c.b16 %v6955, %v6952
  %v7106 = vpack.c.b16 %v6956, %v6953
  %v7107 = vpack.c.b16 %v6960, %v6957
  %v7108 = vpack.c.b16 %v6961, %v6958
  %v7109 = vpack.c.b16 %v6962, %v6959
  %v7110 = vpack.c.b16 %v6966, %v6963
  %v7111 = vpack.c.b16 %v6967, %v6964
  %v7112 = vpack.c.b16 %v6968, %v6965
  %v7113 = vpack.c.b16 %v6972, %v6969
  %v7114 = vpack.c.b16 %v6973, %v6970
  %v7115 = vpack.c.b16 %v6974, %v6971
  %v7116 = vpack.c.b16 %v6978, %v6975
  %v7117 = vpack.c.b16 %v6979, %v6976
  %v7118 = vpack.c.b16 %v6980, %v6977
  %v7119 = vpack.c.b16 %v6984, %v6981
  %v7120 = vpack.c.b16 %v6985, %v6982
  %v7121 = vpack.c.b16 %v6986, %v6983
  %v7122 = vpack.c.b16 %v6990, %v6987
  %v7123 = vpack.c.b16 %v6991, %v6988
  %v7124 = vpack.c.b16 %v6992, %v6989
  %v7125 = vpack.c.b16 %v6996, %v6993
  %v7126 = vpack.c.b16 %v6997, %v6994
  %v7127 = vpack.c.b16 %v6998, %v6995
  %v7128 = vpack.c.b16 %v7002, %v6999
  %v7129 = vpack.c.b16 %v7003, %v7000
  %v7130 = vpack.c.b16 %v7004, %v7001
  %v7131 = vpack.c.b16 %v7008, %v7005
  %v7132 = vpack.c.b16 %v7009, %v7006
  %v7133 = vpack.c.b16 %v7010, %v7007
  %v7134 = vpack.c.b16 %v7014, %v7011
  %v7135 = vpack.c.b16 %v7015, %v7012
  %v7136 = vpack.c.b16 %v7016, %v7013
  %v7137 = vpack.c.b16 %v7020, %v7017
  %v7138 = vpack.c.b16 %v7021, %v7018
  %v7139 = vpack.c.b16 %v7022, %v7019
  %v7140 = vpack.c.b16 %v7026, %v7023
  %v7141 = vpack.c.b16 %v7027, %v7024
  %v7142 = vpack.c.b16 %v7028, %v7025
  %v7143 = vpack.c.b16 %v7032, %v7029
  %v7144 = vpack.c.b16 %v7033, %v7030
  %v7145 = vpack.c.b16 %v7034, %v7031
  %v7146 = vpack.c.b16 %v7038, %v7035
  %v7147 = vpack.c.b16 %v7039, %v7036
  %v7148 = vpack.c.b16 %v7040, %v7037
  %v7149 = vpack.c.b16 %v7044, %v7041
  %v7150 = vpack.c.b16 %v7045, %v7042
  %v7151 = vpack.c.b16 %v7046, %v7043
  %v7152 = vpack.c.b16 %v7050, %v7047
  %v7153 = vpack.c.b16 %v7051, %v7048
  %v7154 = vpack.c.b16 %v7052, %v7049
  %v7155 = vpack.c.b16 %v7056, %v7053
  %v7156 = vpack.c.b16 %v7057, %v7054
  %v7157 = vpack.c.b16 %v7058, %v7055
  %v7158 = vpack.c.b16 %v7062, %v7059
  %v7159 = vpack.c.b16 %v7063, %v7060
  %v7160 = vpack.c.b16 %v7064, %v7061
  %7257 = vmatprep.subr.bf16.mxu0 %v7087
  %7258 = vmatpush1.bf16.msra.mxu0 %v7086
  %7259 = vmatprep.subr.bf16.mxu0 %v7084
  %7260 = vmatpush1.bf16.msra.mxu0 %v7083
  %7261 = vmatprep.subr.bf16.mxu0 %v7081
  %7262 = vmatpush1.bf16.msra.mxu0 %v7080
  %7263 = vmatprep.subr.bf16.mxu0 %v7078
  %7264 = vmatpush1.bf16.msra.mxu0 %v7077
  %7265 = vmatprep.subr.bf16.mxu0 %v7075
  %7266 = vmatpush1.bf16.msra.mxu0 %v7074
  %7267 = vmatprep.subr.bf16.mxu0 %v7072
  %7268 = vmatpush1.bf16.msra.mxu0 %v7071
  %7269 = vmatprep.subr.bf16.mxu0 %v7069
  %7270 = vmatpush1.bf16.msra.mxu0 %v7068
  %7271 = vmatprep.subr.bf16.mxu0 %v7066
  %7272 = vmatpush1.bf16.msra.mxu0 %v7065
  %7273 = vmatprep.subr.bf16.mxu0 %v7111
  %7274 = vmatpush2.bf16.msra.mxu0 %v7110
  %7275 = vmatprep.subr.bf16.mxu0 %v7108
  %7276 = vmatpush2.bf16.msra.mxu0 %v7107
  %7277 = vmatprep.subr.bf16.mxu0 %v7105
  %7278 = vmatpush2.bf16.msra.mxu0 %v7104
  %7279 = vmatprep.subr.bf16.mxu0 %v7102
  %7280 = vmatpush2.bf16.msra.mxu0 %v7101
  %7281 = vmatprep.subr.bf16.mxu0 %v7099
  %7282 = vmatpush2.bf16.msra.mxu0 %v7098
  %7283 = vmatprep.subr.bf16.mxu0 %v7096
  %7284 = vmatpush2.bf16.msra.mxu0 %v7095
  %7285 = vmatprep.subr.bf16.mxu0 %v7093
  %7286 = vmatpush2.bf16.msra.mxu0 %v7092
  %7287 = vmatprep.subr.bf16.mxu0 %v7090
  %7288 = vmatpush2.bf16.msra.mxu0 %v7089
  %7289 = vmatprep.mubr.bf16.mxu0 %v6738
  %7290 = vmatmul.mubr.bf16.gmra.mxu0 %v6737
  %v7291 = vpop.f32.mrf.mxu0
  %v7292 = vadd.f32 %v6722, %v7291
  %v7293 = vpop.f32.mrf.mxu0
  %v7294 = vadd.f32 %v6726, %v7293
  %v7295 = vpop.f32.mrf.mxu0
  %v7296 = vpop.f32.mrf.mxu0
  %7297 = vdwg.mxu0
  %7298 = vmatprep.subr.bf16.mxu0 %v7135
  %7299 = vmatpush1.bf16.msra.mxu0 %v7134
  %7300 = vmatprep.subr.bf16.mxu0 %v7132
  %7301 = vmatpush1.bf16.msra.mxu0 %v7131
  %7302 = vmatprep.subr.bf16.mxu0 %v7129
  %7303 = vmatpush1.bf16.msra.mxu0 %v7128
  %7304 = vmatprep.subr.bf16.mxu0 %v7126
  %7305 = vmatpush1.bf16.msra.mxu0 %v7125
  %7306 = vmatprep.subr.bf16.mxu0 %v7123
  %7307 = vmatpush1.bf16.msra.mxu0 %v7122
  %7308 = vmatprep.subr.bf16.mxu0 %v7120
  %7309 = vmatpush1.bf16.msra.mxu0 %v7119
  %7310 = vmatprep.subr.bf16.mxu0 %v7117
  %7311 = vmatpush1.bf16.msra.mxu0 %v7116
  %7312 = vmatprep.subr.bf16.mxu0 %v7114
  %7313 = vmatpush1.bf16.msra.mxu0 %v7113
  %7314 = vmatprep.subr.bf16.mxu0 %v7159
  %7315 = vmatpush2.bf16.msra.mxu0 %v7158
  %7316 = vmatprep.subr.bf16.mxu0 %v7156
  %7317 = vmatpush2.bf16.msra.mxu0 %v7155
  %7318 = vmatprep.subr.bf16.mxu0 %v7153
  %7319 = vmatpush2.bf16.msra.mxu0 %v7152
  %7320 = vmatprep.subr.bf16.mxu0 %v7150
  %7321 = vmatpush2.bf16.msra.mxu0 %v7149
  %7322 = vmatprep.subr.bf16.mxu0 %v7147
  %7323 = vmatpush2.bf16.msra.mxu0 %v7146
  %7324 = vmatprep.subr.bf16.mxu0 %v7144
  %7325 = vmatpush2.bf16.msra.mxu0 %v7143
  %7326 = vmatprep.subr.bf16.mxu0 %v7141
  %7327 = vmatpush2.bf16.msra.mxu0 %v7140
  %7328 = vmatprep.subr.bf16.mxu0 %v7138
  %7329 = vmatpush2.bf16.msra.mxu0 %v7137
  %7330 = vmatprep.mubr.bf16.mxu0 %v6740
  %7331 = vmatmul.mubr.bf16.gmra.mxu0 %v6739
  %v7332 = vpop.f32.mrf.mxu0
  %v7333 = vadd.f32 %v7292, %v7332
  %v7334 = vpop.f32.mrf.mxu0
  %v7335 = vadd.f32 %v7294, %v7334
  %v7336 = vpop.f32.mrf.mxu0
  %v7337 = vpop.f32.mrf.mxu0
  %7338 = vdwg.mxu0
  %7339 = vmatprep.subr.bf16.mxu0 0
  %7340 = vmatpush1.bf16.msra.mxu0 %v7088
  %7341 = vmatprep.subr.bf16.mxu0 0
  %7342 = vmatpush1.bf16.msra.mxu0 %v7085
  %7343 = vmatprep.subr.bf16.mxu0 0
  %7344 = vmatpush1.bf16.msra.mxu0 %v7082
  %7345 = vmatprep.subr.bf16.mxu0 0
  %7346 = vmatpush1.bf16.msra.mxu0 %v7079
  %7347 = vmatprep.subr.bf16.mxu0 0
  %7348 = vmatpush1.bf16.msra.mxu0 %v7076
  %7349 = vmatprep.subr.bf16.mxu0 0
  %7350 = vmatpush1.bf16.msra.mxu0 %v7073
  %7351 = vmatprep.subr.bf16.mxu0 0
  %7352 = vmatpush1.bf16.msra.mxu0 %v7070
  %7353 = vmatprep.subr.bf16.mxu0 0
  %7354 = vmatpush1.bf16.msra.mxu0 %v7067
  %7355 = vmatprep.subr.bf16.mxu0 0
  %7356 = vmatpush2.bf16.msra.mxu0 %v7112
  %7357 = vmatprep.subr.bf16.mxu0 0
  %7358 = vmatpush2.bf16.msra.mxu0 %v7109
  %7359 = vmatprep.subr.bf16.mxu0 0
  %7360 = vmatpush2.bf16.msra.mxu0 %v7106
  %7361 = vmatprep.subr.bf16.mxu0 0
  %7362 = vmatpush2.bf16.msra.mxu0 %v7103
  %7363 = vmatprep.subr.bf16.mxu0 0
  %7364 = vmatpush2.bf16.msra.mxu0 %v7100
  %7365 = vmatprep.subr.bf16.mxu0 0
  %7366 = vmatpush2.bf16.msra.mxu0 %v7097
  %7367 = vmatprep.subr.bf16.mxu0 0
  %7368 = vmatpush2.bf16.msra.mxu0 %v7094
  %7369 = vmatprep.subr.bf16.mxu0 0
  %7370 = vmatpush2.bf16.msra.mxu0 %v7091
  %7371 = vmatprep.mubr.bf16.mxu0 %v6738
  %7372 = vmatmul.mubr.bf16.gmra.mxu0 %v6737
  %v7373 = vpop.f32.mrf.mxu0
  %v7374 = vadd.f32 %v6730, %v7373
  %v7375 = vpop.f32.mrf.mxu0
  %v7376 = vpop.f32.mrf.mxu0
  %v7377 = vpop.f32.mrf.mxu0
  %7378 = vdwg.mxu0
  %7379 = vmatprep.subr.bf16.mxu0 0
  %7380 = vmatpush1.bf16.msra.mxu0 %v7136
  %7381 = vmatprep.subr.bf16.mxu0 0
  %7382 = vmatpush1.bf16.msra.mxu0 %v7133
  %7383 = vmatprep.subr.bf16.mxu0 0
  %7384 = vmatpush1.bf16.msra.mxu0 %v7130
  %7385 = vmatprep.subr.bf16.mxu0 0
  %7386 = vmatpush1.bf16.msra.mxu0 %v7127
  %7387 = vmatprep.subr.bf16.mxu0 0
  %7388 = vmatpush1.bf16.msra.mxu0 %v7124
  %7389 = vmatprep.subr.bf16.mxu0 0
  %7390 = vmatpush1.bf16.msra.mxu0 %v7121
  %7391 = vmatprep.subr.bf16.mxu0 0
  %7392 = vmatpush1.bf16.msra.mxu0 %v7118
  %7393 = vmatprep.subr.bf16.mxu0 0
  %7394 = vmatpush1.bf16.msra.mxu0 %v7115
  %7395 = vmatprep.subr.bf16.mxu0 0
  %7396 = vmatpush2.bf16.msra.mxu0 %v7160
  %7397 = vmatprep.subr.bf16.mxu0 0
  %7398 = vmatpush2.bf16.msra.mxu0 %v7157
  %7399 = vmatprep.subr.bf16.mxu0 0
  %7400 = vmatpush2.bf16.msra.mxu0 %v7154
  %7401 = vmatprep.subr.bf16.mxu0 0
  %7402 = vmatpush2.bf16.msra.mxu0 %v7151
  %7403 = vmatprep.subr.bf16.mxu0 0
  %7404 = vmatpush2.bf16.msra.mxu0 %v7148
  %7405 = vmatprep.subr.bf16.mxu0 0
  %7406 = vmatpush2.bf16.msra.mxu0 %v7145
  %7407 = vmatprep.subr.bf16.mxu0 0
  %7408 = vmatpush2.bf16.msra.mxu0 %v7142
  %7409 = vmatprep.subr.bf16.mxu0 0
  %7410 = vmatpush2.bf16.msra.mxu0 %v7139
  %7411 = vmatprep.mubr.bf16.mxu0 %v6740
  %7412 = vmatmul.mubr.bf16.gmra.mxu0 %v6739
  %v7413 = vpop.f32.mrf.mxu0
  %v7414 = vadd.f32 %v7374, %v7413
  %v7415 = vpop.f32.mrf.mxu0
  %v7416 = vpop.f32.mrf.mxu0
  %v7417 = vpop.f32.mrf.mxu0
  %7418 = vdwg.mxu0
  %v7419 = vmax.f32 %v7333, 0.0
  %v7420 = vmax.f32 %v7335, 0.0
  %v7421 = vmax.f32 %v7414, 0.0
  %v7422 = vpack.c.bf16 %v7419, %v7419
  %v7423 = vpack.c.bf16 %v7420, %v7420
  %v7424 = vpack.c.bf16 %v7421, %v7421
  %v7425 = vld [vmem:[%s10] sm:$0xf]
  %v7426 = vld [vmem:[%s10 + $0x4] sm:$0xf]
  %v7427 = vld [vmem:[%s10 + $0x8] sm:$0xf]
  %v7428 = vld [vmem:[%s10 + $0xc] sm:$0xf]
  %v7429 = vld [vmem:[%s10 + $0x10] sm:$0xf]
  %v7430 = vld [vmem:[%s10 + $0x14] sm:$0xf]
  %v7431 = vld [vmem:[%s10 + $0x18] sm:$0xf]
  %v7432 = vld [vmem:[%s10 + $0x1c] sm:$0xf]
  %v7433 = vld [vmem:[%s10 + $0x20] sm:$0xf]
  %v7434 = vld [vmem:[%s10 + $0x24] sm:$0xf]
  %v7435 = vld [vmem:[%s10 + $0x28] sm:$0xf]
  %v7436 = vld [vmem:[%s10 + $0x2c] sm:$0xf]
  %v7437 = vld [vmem:[%s10 + $0x30] sm:$0xf]
  %v7438 = vld [vmem:[%s10 + $0x34] sm:$0xf]
  %v7439 = vld [vmem:[%s10 + $0x38] sm:$0xf]
  %v7440 = vld [vmem:[%s10 + $0x3c] sm:$0xf]
  %v7441 = vld [vmem:[%s10 + $0x40] sm:$0xf]
  %v7442 = vld [vmem:[%s10 + $0x44] sm:$0xf]
  %v7443 = vld [vmem:[%s10 + $0x48] sm:$0xf]
  %v7444 = vld [vmem:[%s10 + $0x4c] sm:$0xf]
  %v7445 = vld [vmem:[%s10 + $0x50] sm:$0xf]
  %v7446 = vld [vmem:[%s10 + $0x54] sm:$0xf]
  %v7447 = vld [vmem:[%s10 + $0x58] sm:$0xf]
  %v7448 = vld [vmem:[%s10 + $0x5c] sm:$0xf]
  %v7449 = vld [vmem:[%s10 + $0x60] sm:$0xf]
  %v7450 = vld [vmem:[%s10 + $0x64] sm:$0xf]
  %v7451 = vld [vmem:[%s10 + $0x68] sm:$0xf]
  %v7452 = vld [vmem:[%s10 + $0x6c] sm:$0xf]
  %v7453 = vld [vmem:[%s10 + $0x70] sm:$0xf]
  %v7454 = vld [vmem:[%s10 + $0x74] sm:$0xf]
  %v7455 = vld [vmem:[%s10 + $0x78] sm:$0xf]
  %v7456 = vld [vmem:[%s10 + $0x7c] sm:$0xf]
  %v7457 = vld [vmem:[%s10 + $0x80] sm:$0xf]
  %v7458 = vld [vmem:[%s10 + $0x84] sm:$0xf]
  %v7459 = vld [vmem:[%s10 + $0x88] sm:$0xf]
  %v7460 = vld [vmem:[%s10 + $0x8c] sm:$0xf]
  %v7461 = vld [vmem:[%s10 + $0x90] sm:$0xf]
  %v7462 = vld [vmem:[%s10 + $0x94] sm:$0x3]
  %v7463 = vld [vmem:[#allocation5] sm:$0x1]
  %v7465 = vlaneseq
  %v7466 = vshrl.u32 %v7465, 7
  %v7467 = vsub.s32 0, %v7466
  %v7468 = vrot.slane %v7463, %v7467
  %v7508 = vunpack.c.l.b16 %v7425
  %v7509 = vunpack.c.l.b16 %v7426
  %v7510 = vunpack.c.l.b16 %v7427
  %v7511 = vunpack.c.l.b16 %v7428
  %v7512 = vunpack.c.l.b16 %v7429
  %v7513 = vunpack.c.l.b16 %v7430
  %v7514 = vunpack.c.l.b16 %v7431
  %v7515 = vunpack.c.l.b16 %v7432
  %v7516 = vunpack.c.l.b16 %v7433
  %v7517 = vunpack.c.l.b16 %v7434
  %v7518 = vunpack.c.l.b16 %v7435
  %v7519 = vunpack.c.l.b16 %v7436
  %v7520 = vunpack.c.l.b16 %v7437
  %v7521 = vunpack.c.l.b16 %v7438
  %v7522 = vunpack.c.l.b16 %v7439
  %v7523 = vunpack.c.l.b16 %v7440
  %v7524 = vunpack.c.l.b16 %v7441
  %v7525 = vunpack.c.l.b16 %v7442
  %v7526 = vunpack.c.l.b16 %v7443
  %v7527 = vunpack.c.l.b16 %v7444
  %v7528 = vunpack.c.l.b16 %v7445
  %v7529 = vunpack.c.l.b16 %v7446
  %v7530 = vunpack.c.l.b16 %v7447
  %v7531 = vunpack.c.l.b16 %v7448
  %v7532 = vunpack.c.l.b16 %v7449
  %v7533 = vunpack.c.l.b16 %v7450
  %v7534 = vunpack.c.l.b16 %v7451
  %v7535 = vunpack.c.l.b16 %v7452
  %v7536 = vunpack.c.l.b16 %v7453
  %v7537 = vunpack.c.l.b16 %v7454
  %v7538 = vunpack.c.l.b16 %v7455
  %v7539 = vunpack.c.l.b16 %v7456
  %v7540 = vunpack.c.l.b16 %v7457
  %v7541 = vunpack.c.l.b16 %v7458
  %v7542 = vunpack.c.l.b16 %v7459
  %v7543 = vunpack.c.l.b16 %v7460
  %v7544 = vunpack.c.l.b16 %v7461
  %v7545 = vunpack.c.l.b16 %v7462
  %v7546 = vpack.c.b16 %v7509, %v7508
  %v7547 = vpack.c.b16 %v7511, %v7510
  %v7548 = vpack.c.b16 %v7513, %v7512
  %v7549 = vpack.c.b16 %v7515, %v7514
  %v7550 = vpack.c.b16 %v7517, %v7516
  %v7551 = vpack.c.b16 %v7519, %v7518
  %v7552 = vpack.c.b16 %v7521, %v7520
  %v7553 = vpack.c.b16 %v7523, %v7522
  %v7554 = vpack.c.b16 %v7525, %v7524
  %v7555 = vpack.c.b16 %v7527, %v7526
  %v7556 = vpack.c.b16 %v7529, %v7528
  %v7557 = vpack.c.b16 %v7531, %v7530
  %v7558 = vpack.c.b16 %v7533, %v7532
  %v7559 = vpack.c.b16 %v7535, %v7534
  %v7560 = vpack.c.b16 %v7537, %v7536
  %v7561 = vpack.c.b16 %v7539, %v7538
  %v7562 = vpack.c.b16 %v7541, %v7540
  %v7563 = vpack.c.b16 %v7543, %v7542
  %v7564 = vpack.c.b16 %v7545, %v7544
  %vm7583 = vcmask 359424
  %v7585 = vsel %vm7583, %v7424, 0
  %vm7587 = vcmask 1045504
  %v7589 = vsel %vm7587, %v7564, 0
  %7591 = vmatprep.subr.bf16.mxu0 0
  %7592 = vmatpush1.bf16.msra.mxu0 %v7553
  %7593 = vmatprep.subr.bf16.mxu0 0
  %7594 = vmatpush1.bf16.msra.mxu0 %v7552
  %7595 = vmatprep.subr.bf16.mxu0 0
  %7596 = vmatpush1.bf16.msra.mxu0 %v7551
  %7597 = vmatprep.subr.bf16.mxu0 0
  %7598 = vmatpush1.bf16.msra.mxu0 %v7550
  %7599 = vmatprep.subr.bf16.mxu0 0
  %7600 = vmatpush1.bf16.msra.mxu0 %v7549
  %7601 = vmatprep.subr.bf16.mxu0 0
  %7602 = vmatpush1.bf16.msra.mxu0 %v7548
  %7603 = vmatprep.subr.bf16.mxu0 0
  %7604 = vmatpush1.bf16.msra.mxu0 %v7547
  %7605 = vmatprep.subr.bf16.mxu0 0
  %7606 = vmatpush1.bf16.msra.mxu0 %v7546
  %7607 = vmatprep.subr.bf16.mxu0 0
  %7608 = vmatpush2.bf16.msra.mxu0 %v7561
  %7609 = vmatprep.subr.bf16.mxu0 0
  %7610 = vmatpush2.bf16.msra.mxu0 %v7560
  %7611 = vmatprep.subr.bf16.mxu0 0
  %7612 = vmatpush2.bf16.msra.mxu0 %v7559
  %7613 = vmatprep.subr.bf16.mxu0 0
  %7614 = vmatpush2.bf16.msra.mxu0 %v7558
  %7615 = vmatprep.subr.bf16.mxu0 0
  %7616 = vmatpush2.bf16.msra.mxu0 %v7557
  %7617 = vmatprep.subr.bf16.mxu0 0
  %7618 = vmatpush2.bf16.msra.mxu0 %v7556
  %7619 = vmatprep.subr.bf16.mxu0 0
  %7620 = vmatpush2.bf16.msra.mxu0 %v7555
  %7621 = vmatprep.subr.bf16.mxu0 0
  %7622 = vmatpush2.bf16.msra.mxu0 %v7554
  %7623 = vmatprep.mubr.bf16.mxu0 %v7423
  %7624 = vmatmul.mubr.bf16.gmra.mxu0 %v7422
  %v7625 = vpop.f32.mrf.mxu0
  %v7626 = vadd.f32 %v7468, %v7625
  %v7627 = vpop.f32.mrf.mxu0
  %v7628 = vpop.f32.mrf.mxu0
  %v7629 = vpop.f32.mrf.mxu0
  %7630 = vdwg.mxu0
  %7631 = vmatprep.subr.bf16.mxu0 0
  %7632 = vmatpush1.bf16.msra.mxu0 0
  %7633 = vmatprep.subr.bf16.mxu0 0
  %7634 = vmatpush1.bf16.msra.mxu0 0
  %7635 = vmatprep.subr.bf16.mxu0 0
  %7636 = vmatpush1.bf16.msra.mxu0 0
  %7637 = vmatprep.subr.bf16.mxu0 0
  %7638 = vmatpush1.bf16.msra.mxu0 0
  %7639 = vmatprep.subr.bf16.mxu0 0
  %7640 = vmatpush1.bf16.msra.mxu0 0
  %7641 = vmatprep.subr.bf16.mxu0 0
  %7642 = vmatpush1.bf16.msra.mxu0 %v7589
  %7643 = vmatprep.subr.bf16.mxu0 0
  %7644 = vmatpush1.bf16.msra.mxu0 %v7563
  %7645 = vmatprep.subr.bf16.mxu0 0
  %7646 = vmatpush1.bf16.msra.mxu0 %v7562
  %7647 = vmatprep.subr.bf16.mxu0 0
  %7648 = vmatpush2.bf16.msra.mxu0 0
  %7649 = vmatprep.subr.bf16.mxu0 0
  %7650 = vmatpush2.bf16.msra.mxu0 0
  %7651 = vmatprep.subr.bf16.mxu0 0
  %7652 = vmatpush2.bf16.msra.mxu0 0
  %7653 = vmatprep.subr.bf16.mxu0 0
  %7654 = vmatpush2.bf16.msra.mxu0 0
  %7655 = vmatprep.subr.bf16.mxu0 0
  %7656 = vmatpush2.bf16.msra.mxu0 0
  %7657 = vmatprep.subr.bf16.mxu0 0
  %7658 = vmatpush2.bf16.msra.mxu0 0
  %7659 = vmatprep.subr.bf16.mxu0 0
  %7660 = vmatpush2.bf16.msra.mxu0 0
  %7661 = vmatprep.subr.bf16.mxu0 0
  %7662 = vmatpush2.bf16.msra.mxu0 0
  %7663 = vmatprep.mubr.bf16.mxu0 0
  %7664 = vmatmul.mubr.bf16.gmra.mxu0 %v7585
  %v7665 = vpop.f32.mrf.mxu0
  %v7666 = vadd.f32 %v7626, %v7665
  %v7667 = vpop.f32.mrf.mxu0
  %v7668 = vpop.f32.mrf.mxu0
  %v7669 = vpop.f32.mrf.mxu0
  %7670 = vdwg.mxu0
  %vm7671 = vcmask 1024
  %7672 = vst.msk [vmem:[%s12] sm:$0x3] %vm7671, %v7666
  // Predicated region
  $region110: #{critic_forward.1} parent=0 // pred_check
    _
  $region111: #{critic_forward.1} parent=0 // pred_check_branch
    %7674 = sbr.rel (0) target = $region113
  $region112: #{critic_forward.1} parent=0 // pred_region
    _
  $region113: #{critic_forward.1} parent=0 // pred_fallthru
    _
  // Predicated region
  $region114: #{critic_forward.1} parent=0 // pred_check
    _
  $region115: #{critic_forward.1} parent=0 // pred_check_branch
    %7676 = sbr.rel (0) target = $region117
  $region116: #{critic_forward.1} parent=0 // pred_region
    _
  $region117: #{critic_forward.1} parent=0 // pred_fallthru
    _
  %7677 = vsyncmov [#allocation4]
  %s7678 = vpop.sfrf %7677
  %p7679 = scmp.eq.s32.totalorder %s7678, 0
  %p7680 = pneg %p7679
  %7682 = shalt.err (%p7680)
  %s7683 = scalar_lea.sflag [#allocation4], 1
  %7684 = vsyncmov %s7683
  %s7685 = vpop.sfrf %7684
  %p7686 = scmp.eq.s32.totalorder %s7685, 0
  %p7687 = pneg %p7686
  %7689 = shalt.err (%p7687)

</llo_original>
